<compile_context>
chip_gen: v5e
topology: v5e:2x2
jax: 0.10.0
libtpu: 0.0.40
codegen_flags: <defaults>
</compile_context>

<pallas_src>
import functools

import numpy as np
import jax
import jax.numpy as jnp
from jax.experimental import pallas as pl
from jax.experimental.pallas import tpu as pltpu

LEVELS = ("p3", "p4", "p5")
FPN_STRIDES = {"p3": 8, "p4": 16, "p5": 32}

LANE = 128
N_PAD_FINAL = 128                       # num_classes+1 padded to one lane group (was 256)
VMEM_LIMIT = 48 * 1024 * 1024           # scoped-VMEM cap: headroom under v7x's 64 MiB physical
VMEM_BUDGET = 32 * 1024 * 1024          # tile-sizing budget (slack left for Mosaic scratch)
LARGE_SLAB_BYTES = 4 * 1024 * 1024      # input slab above which we force >=4 pipelined steps


def _round_up(x, m):
    return ((x + m - 1) // m) * m


def _pick_tile_m(M, K, N, out_bytes):
    """Budget-driven M tile.  Weight (K,N) bf16 stays resident; x/out tiles double-buffer."""
    resident = K * N * 2 + N * 4                      # bf16 weight + f32 bias

    def est(tm):
        return resident + 2 * tm * K * 2 + 2 * tm * N * out_bytes

    tm = _round_up(M, 16)
    # Large input slab -> >=4 grid steps so prefetch of block i+1 hides behind compute of
    # block i (and both v7x TensorCores get work under "parallel").  Small slab -> 1 step
    # (v5e/v6e: single TC, no per-step overhead, biggest tile).
    if M * K * 2 > LARGE_SLAB_BYTES:
        tm = min(tm, max(16, _round_up((M + 3) // 4, 16)))
    while est(tm) > VMEM_BUDGET and tm > 16:
        tm = max(16, _round_up(tm // 2, 16))
    return tm, _round_up(M, tm)


# ---------------------------------------------------------------------------
# Pallas kernels
# ---------------------------------------------------------------------------
def _matmul_bias_kernel(x_ref, w_ref, b_ref, o_ref, *, relu):
    """(TM,K)bf16 @ (K,N)bf16 + (1,N)f32 [-> ReLU] -> (TM,N).  MXU, f32 accumulate."""
    acc = jnp.dot(x_ref[...], w_ref[...], preferred_element_type=jnp.float32)
    acc = acc + b_ref[...]
    if relu:
        acc = jnp.maximum(acc, 0.0)
    o_ref[...] = acc.astype(o_ref.dtype)


def matmul_bias_pallas(x, w_bf16, b_f32, *, relu=False, out_dtype=jnp.float32):
    """x:(M,K) @ w:(K,N) + b, bf16 MXU inputs, f32 accumulate.  Budget-driven M tiling."""
    M, K = x.shape
    N = w_bf16.shape[1]
    tm, Mp = _pick_tile_m(M, K, N, jnp.dtype(out_dtype).itemsize)
    if Mp != M:
        x = jnp.pad(x, ((0, Mp - M), (0, 0)))
    out = pl.pallas_call(
        functools.partial(_matmul_bias_kernel, relu=relu),
        out_shape=jax.ShapeDtypeStruct((Mp, N), out_dtype),
        grid=(Mp // tm,),
        in_specs=[
            pl.BlockSpec((tm, K), lambda i: (i, 0)),
            pl.BlockSpec((K, N), lambda i: (0, 0)),
            pl.BlockSpec((1, N), lambda i: (0, 0)),
        ],
        out_specs=pl.BlockSpec((tm, N), lambda i: (i, 0)),
        compiler_params=pltpu.CompilerParams(
            dimension_semantics=("parallel",), vmem_limit_bytes=VMEM_LIMIT),
    )(x.astype(jnp.bfloat16), w_bf16, b_f32)
    return out[:M] if Mp != M else out


def conv3x3_relu_pallas(x, w_k, b_k):
    """3x3 conv, stride 1, pad 1, + bias + ReLU.

    x: (R, OH, OW, Cin) bf16 (Cin multiple of 128); w_k: (9*Cin, Cout) bf16; b_k: (1, Cout) f32.
    Returns (R*OH*OW, Cout) bf16 (row-major over (R, OH, OW)).
    """
    R, OH, OW, Cin = x.shape
    xp = jnp.pad(x, ((0, 0), (1, 1), (1, 1), (0, 0)))
    # Full 9-tap im2col along channels (XLA glue).  ~9x input bytes, trivial at ROI scale,
    # and it turns the conv into ONE lane-dense matmul (no in-kernel slicing, no dead rows).
    patches = jnp.concatenate(
        [xp[:, dy:dy + OH, dx:dx + OW, :] for dy in range(3) for dx in range(3)], axis=-1)
    patches = patches.reshape(R * OH * OW, 9 * Cin)
    return matmul_bias_pallas(patches, w_k, b_k, relu=True, out_dtype=jnp.bfloat16)


def _iou_kernel(b1_ref, b2t_ref, o_ref):
    b1 = b1_ref[...]                                   # (B, Mp, 4) boxes XYXY
    b2t = b2t_ref[...]                                 # (B, 4, Np) boxes, components as rows
    x1a, y1a, x2a, y2a = b1[:, :, 0:1], b1[:, :, 1:2], b1[:, :, 2:3], b1[:, :, 3:4]
    x1b, y1b, x2b, y2b = b2t[:, 0:1, :], b2t[:, 1:2, :], b2t[:, 2:3, :], b2t[:, 3:4, :]
    area1 = (x2a - x1a) * (y2a - y1a)                  # (B, Mp, 1)
    area2 = (x2b - x1b) * (y2b - y1b)                  # (B, 1, Np)
    w = jnp.maximum(jnp.minimum(x2a, x2b) - jnp.maximum(x1a, x1b), 0.0)
    h = jnp.maximum(jnp.minimum(y2a, y2b) - jnp.maximum(y1a, y1b), 0.0)
    inter = w * h
    union = area1 + area2 - inter
    # divide -> EUP approx reciprocal (otherwise-idle slot in this VPU-only kernel)
    o_ref[...] = inter * pl.reciprocal(union + 1e-6, approx=True)


def iou_batched_pallas(boxes1, boxes2t):
    """Batched IoU: (B, Mp, 4) x (B, 4, Np) -> (B, Mp, Np).  ONE launch, ONE grid step."""
    B, Mp, _ = boxes1.shape
    Np = boxes2t.shape[2]
    return pl.pallas_call(
        _iou_kernel,
        out_shape=jax.ShapeDtypeStruct((B, Mp, Np), jnp.float32),
        compiler_params=pltpu.CompilerParams(vmem_limit_bytes=VMEM_LIMIT),
    )(boxes1, boxes2t)


# ---------------------------------------------------------------------------
# Parameters (deterministic init, mirrors FasterRCNN.__init__; kernel-ready layouts)
# ---------------------------------------------------------------------------
def make_params(key, stem_channels, num_classes, roi_size):
    in_channels = 256
    params = {"stem": []}
    keys = jax.random.split(key, len(stem_channels) + 2)
    prev_real = in_channels
    prev_pad = _round_up(in_channels, LANE)
    for i, ch in enumerate(stem_channels):
        ch_pad = _round_up(ch, LANE)
        w_real = 0.01 * jax.random.normal(keys[i], (3, 3, prev_real, ch), jnp.float32)
        w = jnp.zeros((3, 3, prev_pad, ch_pad), jnp.float32)
        w = w.at[:, :, :prev_real, :ch].set(w_real)
        # Pre-reshape + pre-cast to the kernel's (9*Cin, Cout) bf16 layout: no per-forward
        # convert/copy, and the weight HBM read is halved (f32 -> bf16).
        params["stem"].append((w.reshape(9 * prev_pad, ch_pad).astype(jnp.bfloat16),
                               jnp.zeros((1, ch_pad), jnp.float32)))
        prev_real, prev_pad = ch, ch_pad
    final_real = prev_real if stem_channels else in_channels
    final_pad = prev_pad

    oh, ow = roi_size
    n_real = num_classes + 1
    # NOTE: half of K (the zero-padded stem channels 64->128) is dead weight/compute; kept
    # zero-padded for lane-dense layout simplicity (K work is trivial at ROI scale).
    wlin_real = 0.01 * jax.random.normal(keys[-2], (oh, ow, final_real, n_real), jnp.float32)
    wlin = jnp.zeros((oh, ow, final_pad, N_PAD_FINAL), jnp.float32)
    wlin = wlin.at[:, :, :final_real, :n_real].set(wlin_real)
    params["lin_w"] = wlin.reshape(oh * ow * final_pad, N_PAD_FINAL).astype(jnp.bfloat16)
    params["lin_b"] = jnp.zeros((1, N_PAD_FINAL), jnp.float32)

    # synthetic backbone 1x1 projection (3 -> 256) per FPN level
    bb_keys = jax.random.split(keys[-1], len(LEVELS))
    params["backbone"] = {
        lvl: 0.1 * jax.random.normal(bb_keys[i], (3, 256), jnp.float32)
        for i, lvl in enumerate(LEVELS)
    }
    return params


# ---------------------------------------------------------------------------
# Synthetic backbone / RPN (externals in the reference)
# ---------------------------------------------------------------------------
def synthetic_backbone(images, params):
    # TODO(synk): real backbone (RegNet+FPN) is an external nn.Module not defined in the
    # reference; replaced with deterministic avg-pool + 1x1 projection at strides 8/16/32.
    B, H, W, C = images.shape
    feats = {}
    for lvl in LEVELS:
        s = FPN_STRIDES[lvl]
        h, w = H // s, W // s
        pooled = images.reshape(B, h, s, w, s, C).mean(axis=(2, 4))
        feats[lvl] = jnp.einsum("bhwc,cd->bhwd", pooled, params["backbone"][lvl])
    return feats


def synthetic_rpn_proposals(B, img_size, num_props=4):
    # TODO(synk): RPN is an external nn.Module not defined in the reference; replaced with
    # deterministic proposal boxes and zero RPN losses.
    rs = np.random.RandomState(1)
    proposals = {}
    for lvl in LEVELS:
        plist = []
        for _ in range(B):
            x1y1 = rs.uniform(0.0, img_size * 0.6, size=(num_props, 2))
            wh = rs.uniform(4.0, 12.0, size=(num_props, 2))
            boxes = np.concatenate(
                [x1y1, np.minimum(x1y1 + wh, float(img_size))], axis=1).astype(np.float32)
            plist.append(boxes)
        proposals[lvl] = plist
    return proposals


# ---------------------------------------------------------------------------
# Host-side glue (proposal generation / GT mixing / padding) — runs BEFORE launch
# ---------------------------------------------------------------------------
def mix_gt_with_proposals(proposals, gt_boxes_np):
    for idx, gtb in enumerate(gt_boxes_np):
        if idx >= len(proposals["p3"]):
            continue
        gtb = gtb[gtb[:, 4] != -1]
        if len(gtb) == 0:
            continue
        area = (gtb[:, 2] - gtb[:, 0]) * (gtb[:, 3] - gtb[:, 1])
        lvl = np.floor(5 + np.log2(np.sqrt(area) / 224.0))
        lvl = np.clip(lvl, 3, 5).astype(np.int64)
        for name, plist in proposals.items():
            if idx >= len(plist):
                continue
            li = int(name[1])
            mask = lvl == li
            if mask.any():
                sub = gtb[mask]
                proposals[name][idx] = np.concatenate(
                    [plist[idx], sub[:, :4].astype(np.float32)], axis=0)
    return proposals


def pad_proposals(proposals, B):
    """Pad each level's per-image proposal lists to fixed (B, P_l, 4) + validity mask."""
    boxes, valids = [], []
    for lvl in LEVELS:
        plist = proposals[lvl]
        P = max(1, max(int(p.shape[0]) for p in plist))
        bx = np.zeros((B, P, 4), np.float32)
        vm = np.zeros((B, P), bool)
        for b in range(B):
            n = int(plist[b].shape[0])
            bx[b, :n] = plist[b]
            vm[b, :n] = True
        boxes.append(jnp.asarray(bx))
        valids.append(jnp.asarray(vm))
    return tuple(boxes), tuple(valids)


# ---------------------------------------------------------------------------
# Device-side pieces (all run inside one jit, no host syncs)
# ---------------------------------------------------------------------------
def _interp_matrix(coords, n):
    """Bilinear interpolation weights as a dense (P, n) matrix (clamped indices)."""
    c0 = jnp.floor(coords)
    frac = coords - c0
    i0 = jnp.clip(c0.astype(jnp.int32), 0, n - 1)
    i1 = jnp.clip(i0 + 1, 0, n - 1)
    return (jax.nn.one_hot(i0, n, dtype=jnp.float32) * (1.0 - frac)[:, None]
            + jax.nn.one_hot(i1, n, dtype=jnp.float32) * frac[:, None])


def _roi_align_one_box(feat, box, spatial_scale, out_size):
    # TODO(synk): torchvision roi_align uses adaptive sampling_ratio and zero-pads outside
    # the map; approximated with ONE bilinear sample per bin + index clamping.  Expressed
    # as separable interpolation (two small matmuls) — no XLA gathers, MXU-friendly.
    H, W, _ = feat.shape
    oh, ow = out_size
    b = box * spatial_scale - 0.5                      # aligned=True
    x1, y1, x2, y2 = b[0], b[1], b[2], b[3]
    ys = y1 + (jnp.arange(oh, dtype=jnp.float32) + 0.5) * ((y2 - y1) / oh)
    xs = x1 + (jnp.arange(ow, dtype=jnp.float32) + 0.5) * ((x2 - x1) / ow)
    wy = _interp_matrix(ys, H)                         # (oh, H)
    wx = _interp_matrix(xs, W)                         # (ow, W)
    t = jnp.einsum("ph,hwc->pwc", wy, feat)            # (oh, W, C)
    return jnp.einsum("qw,pwc->pqc", wx, t)            # (oh, ow, C)


def roi_align_batched(feats, boxes, spatial_scale, out_size):
    """feats (B,H,W,C), boxes (B,P,4) -> (B,P,oh,ow,C).  vmapped separable bilinear."""
    per_image = lambda f, bx: jax.vmap(
        lambda b: _roi_align_one_box(f, b, spatial_scale, out_size))(bx)
    return jax.vmap(per_image)(feats, boxes)


def match_proposals_to_gt(props_img, gt_pad, iou_thresholds=(0.5, 0.5)):
    """props_img (B,Mp,4), gt_pad (B,NGp,5) (class -1 = invalid) -> matched class (B,Mp)."""
    gt_t = jnp.transpose(gt_pad[..., :4], (0, 2, 1))              # (B, 4, NGp)
    ious = iou_batched_pallas(props_img, gt_t)                    # (B, Mp, NGp), single launch
    gt_ok = gt_pad[..., 4] != -1.0
    ious = jnp.where(gt_ok[:, None, :], ious, -1.0)
    quality = ious.max(axis=-1)
    idx = ious.argmax(axis=-1)
    cls = jnp.take_along_axis(gt_pad[..., 4], idx, axis=1)        # (B, Mp)
    lo, hi = iou_thresholds
    cls = jnp.where(quality <= lo, -1.0, cls)                     # background
    cls = jnp.where((quality > lo) & (quality < hi), -1e8, cls)   # neutral (empty band @ 0.5/0.5)
    return cls


def sample_and_cls_loss(logits, matched_cls, valid_mask, key,
                        num_samples, fg_fraction, num_classes):
    """Device-side fixed-shape version of sample_rpn_training + cross-entropy."""
    R = logits.shape[0]
    fg_mask = valid_mask & (matched_cls >= 0.0)
    bg_mask = valid_mask & (matched_cls == -1.0)
    rand = jax.random.uniform(key, (R,))
    fg_order = jnp.argsort(jnp.where(fg_mask, rand, -jnp.inf))[::-1]
    bg_order = jnp.argsort(jnp.where(bg_mask, rand, -jnp.inf))[::-1]
    num_fg_avail = jnp.sum(fg_mask)
    num_bg_avail = jnp.sum(bg_mask)
    max_fg = int(num_samples * fg_fraction)
    num_fg = jnp.minimum(num_fg_avail, max_fg)
    num_bg = jnp.minimum(num_samples - num_fg, num_bg_avail)

    slots = jnp.arange(num_samples)
    is_fg_slot = slots < num_fg
    fg_pick = fg_order[jnp.clip(slots, 0, R - 1)]
    bg_pick = bg_order[jnp.clip(slots - num_fg, 0, R - 1)]
    sampled_idx = jnp.where(is_fg_slot, fg_pick, bg_pick)
    slot_valid = slots < (num_fg + num_bg)

    labels = matched_cls[sampled_idx] + 1.0                       # bg -> 0, fg -> class+1
    label_valid = slot_valid & (labels >= 0.0) & (labels <= num_classes)
    labels_i = jnp.clip(labels, 0.0, float(num_classes)).astype(jnp.int32)
    sel_logits = logits[sampled_idx]
    bad = jnp.any(label_valid[:, None] & (jnp.isnan(sel_logits) | jnp.isinf(sel_logits)))
    logp = jax.nn.log_softmax(sel_logits, axis=-1)
    ce_per = -jnp.take_along_axis(logp, labels_i[:, None], axis=1)[:, 0]
    num_valid = jnp.sum(label_valid)
    ce = jnp.sum(jnp.where(label_valid, ce_per, 0.0)) / jnp.maximum(num_valid, 1)
    return jnp.where((num_valid == 0) | bad | jnp.isnan(ce), 0.0, ce)


@functools.partial(jax.jit, static_argnames=("num_classes", "batch_size_per_image", "roi_size"))
def _forward_device(images, gt_boxes, prop_boxes, prop_valid, params, key,
                    num_classes, batch_size_per_image, roi_size):
    B = images.shape[0]
    oh, ow = roi_size
    feats = synthetic_backbone(images, params)

    # ---- batched ROI-align, concatenated level-major (matches reference ordering) ----
    roi_list, valid_list = [], []
    for li, lvl in enumerate(LEVELS):
        stride = FPN_STRIDES[lvl]
        rf = roi_align_batched(feats[lvl], prop_boxes[li], 1.0 / stride, roi_size)
        P = rf.shape[1]
        roi_list.append(rf.reshape(B * P, oh, ow, rf.shape[-1]))
        valid_list.append(prop_valid[li].reshape(B * P))
    roi_feats = jnp.concatenate(roi_list, axis=0)                 # (R_total, 7, 7, 256)
    roi_valid = jnp.concatenate(valid_list, axis=0)
    R_total = roi_feats.shape[0]
    Rp = max(32, _round_up(R_total, 16))
    roi_feats = jnp.pad(roi_feats, ((0, Rp - R_total), (0, 0), (0, 0), (0, 0)))
    roi_valid = jnp.pad(roi_valid, (0, Rp - R_total))

    # ---- cls_pred head: Pallas im2col-matmul conv stem + Pallas linear (all bf16 MXU) ----
    x = roi_feats.astype(jnp.bfloat16)                            # (Rp, 7, 7, C)
    for (wk, bk) in params["stem"]:
        y2d = conv3x3_relu_pallas(x, wk, bk)                      # (Rp*49, Cout) bf16
        x = y2d.reshape(Rp, oh, ow, wk.shape[1])
    flat = x.reshape(Rp, -1)                                      # small relayout, ROI scale
    logits_pad = matmul_bias_pallas(flat, params["lin_w"], params["lin_b"])
    pred_cls_logits = logits_pad[:, :num_classes + 1]             # slice OUTSIDE the kernel

    # ---- proposal <-> GT matching: ONE batched IoU kernel, ONE grid step ----
    props_img = jnp.concatenate(prop_boxes, axis=1)               # (B, sumP, 4) level-major
    sumP = props_img.shape[1]
    Mp = _round_up(sumP, 8)
    props_img = jnp.pad(props_img, ((0, 0), (0, Mp - sumP), (0, 0)))
    NG = gt_boxes.shape[1]
    NGp = 128                                                     # lane-dense IoU output
    gt_pad = jnp.pad(gt_boxes, ((0, 0), (0, NGp - NG), (0, 0)), constant_values=-1.0)
    matched_cls_img = match_proposals_to_gt(props_img, gt_pad)    # (B, Mp)

    # Re-order labels image-major -> level-major so they pair with roi_feats / logits rows.
    chunks, off = [], 0
    for li, lvl in enumerate(LEVELS):
        P = prop_boxes[li].shape[1]
        chunks.append(matched_cls_img[:, off:off + P].reshape(B * P))
        off += P
    matched_cls = jnp.concatenate(chunks, axis=0)
    matched_cls = jnp.pad(matched_cls, (0, Rp - R_total), constant_values=-1e8)

    loss_cls = sample_and_cls_loss(pred_cls_logits, matched_cls, roi_valid, key,
                                   batch_size_per_image, 0.25, num_classes)
    zero = jnp.zeros((), jnp.float32)
    # TODO(synk): RPN losses come from the external RPN module; synthetic stand-in -> zeros.
    return {"loss_rpn_obj": zero, "loss_rpn_box": zero, "loss_cls": loss_cls}


# ---------------------------------------------------------------------------
# FasterRCNN.forward (training path)
# ---------------------------------------------------------------------------
def faster_rcnn_forward(images, gt_boxes, params, num_classes,
                        batch_size_per_image=16, roi_size=(7, 7), key=None):
    B = int(images.shape[0])
    img_size = int(images.shape[1])

    # Host-side proposal generation + GT mixing + padding, done once BEFORE launch
    # (no device->host syncs inside the forward after this point).
    gt_np = np.asarray(gt_boxes)
    proposals = synthetic_rpn_proposals(B, img_size)
    proposals = mix_gt_with_proposals(proposals, gt_np)
    prop_boxes, prop_valid = pad_proposals(proposals, B)

    if key is None:
        key = jax.random.PRNGKey(0)
    return _forward_device(images, gt_boxes, prop_boxes, prop_valid, params, key,
                           num_classes=num_classes,
                           batch_size_per_image=batch_size_per_image,
                           roi_size=roi_size)

    # TODO(synk): inference path (softmax + class_spec_nms) not implemented; class_spec_nms
    # is an undefined external dependency in the reference module.


if __name__ == "__main__":
    num_classes = 4
    key = jax.random.PRNGKey(0)
    k_img, k_xy, k_wh, k_cls, k_par, k_samp = jax.random.split(key, 6)

    images = jax.random.normal(k_img, (2, 32, 32, 3), jnp.float32)       # NHWC
    xy = jax.random.uniform(k_xy, (2, 3, 2), minval=0.0, maxval=16.0)
    wh = jax.random.uniform(k_wh, (2, 3, 2), minval=4.0, maxval=12.0)
    cls = jax.random.randint(k_cls, (2, 3, 1), 0, num_classes).astype(jnp.float32)
    gt_boxes = jnp.concatenate([xy, xy + wh, cls], axis=-1)              # (B, M, 5)
    gt_boxes = gt_boxes.at[1, 2, :].set(-1.0)                            # padded GT slot

    params = make_params(k_par, stem_channels=[64], num_classes=num_classes, roi_size=(7, 7))

    losses = faster_rcnn_forward(images, gt_boxes, params, num_classes,
                                 batch_size_per_image=16, roi_size=(7, 7), key=k_samp)
    jax.block_until_ready(losses["loss_cls"])
    print("KERNEL_OK")
</pallas_src>

<mosaic_0001>
module attributes {stable_mosaic.version = 11 : i64} {
  func.func @_matmul_bias_kernel(%arg0: i32, %arg1: memref<400x2304xbf16, #tpu.memory_space<vmem>>, %arg2: memref<2304x128xbf16, #tpu.memory_space<vmem>>, %arg3: memref<1x128xf32, #tpu.memory_space<vmem>>, %arg4: memref<400x128xbf16, #tpu.memory_space<vmem>>) attributes {dimension_semantics = [#tpu.dimension_semantics<parallel>], iteration_bounds = array<i64: 4>, scalar_prefetch = 0 : i64, scratch_operands = 0 : i64, tpu.core_type = #tpu.core_type<tc>, window_params = [{transform_indices = @transform_0, window_bounds = array<i64: 400, 2304>}, {pipeline_mode = #tpu.pipeline_mode<synchronous>, transform_indices = @transform_1, window_bounds = array<i64: 2304, 128>}, {pipeline_mode = #tpu.pipeline_mode<synchronous>, transform_indices = @transform_2, window_bounds = array<i64: 1, 128>}, {transform_indices = @transform_3, window_bounds = array<i64: 400, 128>}]} {
    %c0 = arith.constant 0 : index
    %c0_0 = arith.constant 0 : index
    %0 = vector.load %arg1[%c0, %c0_0] : memref<400x2304xbf16, #tpu.memory_space<vmem>>, vector<400x2304xbf16>
    %c0_1 = arith.constant 0 : index
    %c0_2 = arith.constant 0 : index
    %1 = vector.load %arg2[%c0_1, %c0_2] : memref<2304x128xbf16, #tpu.memory_space<vmem>>, vector<2304x128xbf16>
    %cst = arith.constant dense<0.000000e+00> : vector<400x128xf32>
    %2 = tpu.matmul %0, %1, %cst {dimension_numbers = #tpu.dot_dimension_numbers<[1], [0], [0], [1], [0, 0, 1, 1], [], []>} : vector<400x2304xbf16>, vector<2304x128xbf16>, vector<400x128xf32> -> vector<400x128xf32>
    %c0_3 = arith.constant 0 : index
    %c0_4 = arith.constant 0 : index
    %3 = vector.load %arg3[%c0_3, %c0_4] : memref<1x128xf32, #tpu.memory_space<vmem>>, vector<1x128xf32>
    %4 = vector.broadcast %3 : vector<1x128xf32> to vector<400x128xf32>
    %5 = arith.addf %2, %4 : vector<400x128xf32>
    %cst_5 = arith.constant 0.000000e+00 : f32
    %6 = vector.broadcast %cst_5 : f32 to vector<400x128xf32>
    %7 = arith.maximumf %5, %6 : vector<400x128xf32>
    %8 = arith.truncf %7 : vector<400x128xf32> to vector<400x128xbf16>
    %c0_6 = arith.constant 0 : index
    %c0_7 = arith.constant 0 : index
    %9 = vector.load %arg4[%c0_6, %c0_7] : memref<400x128xbf16, #tpu.memory_space<vmem>>, vector<400x128xbf16>
    tpu.vector_store %arg4[%c0_6, %c0_7], %8 {strides = array<i32>} : memref<400x128xbf16, #tpu.memory_space<vmem>>, vector<400x128xbf16>,
    return
  }
  func.func @transform_0(%arg0: i32) -> (i32, i32) {
    %c0_i32 = arith.constant 0 : i32
    %c0_i32_0 = arith.constant 0 : i32
    return %arg0, %c0_i32 : i32, i32
  }
  func.func @transform_1(%arg0: i32) -> (i32, i32) {
    %c0_i32 = arith.constant 0 : i32
    %c0_i32_0 = arith.constant 0 : i32
    %c0_i32_1 = arith.constant 0 : i32
    return %c0_i32, %c0_i32_0 : i32, i32
  }
  func.func @transform_2(%arg0: i32) -> (i32, i32) {
    %c0_i32 = arith.constant 0 : i32
    %c0_i32_0 = arith.constant 0 : i32
    %c0_i32_1 = arith.constant 0 : i32
    return %c0_i32, %c0_i32_0 : i32, i32
  }
  func.func @transform_3(%arg0: i32) -> (i32, i32) {
    %c0_i32 = arith.constant 0 : i32
    %c0_i32_0 = arith.constant 0 : i32
    return %arg0, %c0_i32 : i32, i32
  }
}

module attributes {stable_mosaic.version = 11 : i64} {
  func.func @_iou_kernel(%arg0: memref<2x16x4xf32, #tpu.memory_space<vmem>>, %arg1: memref<2x4x128xf32, #tpu.memory_space<vmem>>, %arg2: memref<2x16x128xf32, #tpu.memory_space<vmem>>) attributes {dimension_semantics = [], scalar_prefetch = 0 : i64, scratch_operands = 0 : i64, tpu.core_type = #tpu.core_type<tc>} {
    %c0 = arith.constant 0 : index
    %c0_0 = arith.constant 0 : index
    %c0_1 = arith.constant 0 : index
    %0 = vector.load %arg0[%c0, %c0_0, %c0_1] : memref<2x16x4xf32, #tpu.memory_space<vmem>>, vector<2x16x4xf32>
    %c0_2 = arith.constant 0 : index
    %c0_3 = arith.constant 0 : index
    %c0_4 = arith.constant 0 : index
    %1 = vector.load %arg1[%c0_2, %c0_3, %c0_4] : memref<2x4x128xf32, #tpu.memory_space<vmem>>, vector<2x4x128xf32>
    %2 = vector.extract_strided_slice %0 {offsets = [0, 0, 0], sizes = [2, 16, 1], strides = [1, 1, 1]} : vector<2x16x4xf32> to vector<2x16x1xf32>
    %3 = vector.extract_strided_slice %0 {offsets = [0, 0, 1], sizes = [2, 16, 1], strides = [1, 1, 1]} : vector<2x16x4xf32> to vector<2x16x1xf32>
    %4 = vector.extract_strided_slice %0 {offsets = [0, 0, 2], sizes = [2, 16, 1], strides = [1, 1, 1]} : vector<2x16x4xf32> to vector<2x16x1xf32>
    %5 = vector.extract_strided_slice %0 {offsets = [0, 0, 3], sizes = [2, 16, 1], strides = [1, 1, 1]} : vector<2x16x4xf32> to vector<2x16x1xf32>
    %6 = vector.extract_strided_slice %1 {offsets = [0, 0, 0], sizes = [2, 1, 128], strides = [1, 1, 1]} : vector<2x4x128xf32> to vector<2x1x128xf32>
    %7 = vector.extract_strided_slice %1 {offsets = [0, 1, 0], sizes = [2, 1, 128], strides = [1, 1, 1]} : vector<2x4x128xf32> to vector<2x1x128xf32>
    %8 = vector.extract_strided_slice %1 {offsets = [0, 2, 0], sizes = [2, 1, 128], strides = [1, 1, 1]} : vector<2x4x128xf32> to vector<2x1x128xf32>
    %9 = vector.extract_strided_slice %1 {offsets = [0, 3, 0], sizes = [2, 1, 128], strides = [1, 1, 1]} : vector<2x4x128xf32> to vector<2x1x128xf32>
    %10 = arith.subf %4, %2 : vector<2x16x1xf32>
    %11 = arith.subf %5, %3 : vector<2x16x1xf32>
    %12 = arith.mulf %10, %11 : vector<2x16x1xf32>
    %13 = arith.subf %8, %6 : vector<2x1x128xf32>
    %14 = arith.subf %9, %7 : vector<2x1x128xf32>
    %15 = arith.mulf %13, %14 : vector<2x1x128xf32>
    %16 = vector.broadcast %4 : vector<2x16x1xf32> to vector<2x16x128xf32>
    %17 = vector.broadcast %8 : vector<2x1x128xf32> to vector<2x16x128xf32>
    %18 = arith.minimumf %16, %17 : vector<2x16x128xf32>
    %19 = vector.broadcast %2 : vector<2x16x1xf32> to vector<2x16x128xf32>
    %20 = vector.broadcast %6 : vector<2x1x128xf32> to vector<2x16x128xf32>
    %21 = arith.maximumf %19, %20 : vector<2x16x128xf32>
    %22 = arith.subf %18, %21 : vector<2x16x128xf32>
    %cst = arith.constant 0.000000e+00 : f32
    %23 = vector.broadcast %cst : f32 to vector<2x16x128xf32>
    %24 = arith.maximumf %22, %23 : vector<2x16x128xf32>
    %25 = vector.broadcast %5 : vector<2x16x1xf32> to vector<2x16x128xf32>
    %26 = vector.broadcast %9 : vector<2x1x128xf32> to vector<2x16x128xf32>
    %27 = arith.minimumf %25, %26 : vector<2x16x128xf32>
    %28 = vector.broadcast %3 : vector<2x16x1xf32> to vector<2x16x128xf32>
    %29 = vector.broadcast %7 : vector<2x1x128xf32> to vector<2x16x128xf32>
    %30 = arith.maximumf %28, %29 : vector<2x16x128xf32>
    %31 = arith.subf %27, %30 : vector<2x16x128xf32>
    %cst_5 = arith.constant 0.000000e+00 : f32
    %32 = vector.broadcast %cst_5 : f32 to vector<2x16x128xf32>
    %33 = arith.maximumf %31, %32 : vector<2x16x128xf32>
    %34 = arith.mulf %24, %33 : vector<2x16x128xf32>
    %35 = vector.broadcast %12 : vector<2x16x1xf32> to vector<2x16x128xf32>
    %36 = vector.broadcast %15 : vector<2x1x128xf32> to vector<2x16x128xf32>
    %37 = arith.addf %35, %36 : vector<2x16x128xf32>
    %38 = arith.subf %37, %34 : vector<2x16x128xf32>
    %cst_6 = arith.constant 9.99999997E-7 : f32
    %39 = vector.broadcast %cst_6 : f32 to vector<2x16x128xf32>
    %40 = arith.addf %38, %39 : vector<2x16x128xf32>
    %41 = tpu.reciprocal %40 {approx = true} : vector<2x16x128xf32> -> vector<2x16x128xf32>
    %42 = arith.mulf %34, %41 : vector<2x16x128xf32>
    %c0_7 = arith.constant 0 : index
    %c0_8 = arith.constant 0 : index
    %c0_9 = arith.constant 0 : index
    %43 = vector.load %arg2[%c0_7, %c0_8, %c0_9] : memref<2x16x128xf32, #tpu.memory_space<vmem>>, vector<2x16x128xf32>
    tpu.vector_store %arg2[%c0_7, %c0_8, %c0_9], %42 {strides = array<i32>} : memref<2x16x128xf32, #tpu.memory_space<vmem>>, vector<2x16x128xf32>,
    return
  }
}

module attributes {stable_mosaic.version = 11 : i64} {
  func.func @_matmul_bias_kernel(%arg0: i32, %arg1: memref<32x6272xbf16, #tpu.memory_space<vmem>>, %arg2: memref<6272x128xbf16, #tpu.memory_space<vmem>>, %arg3: memref<1x128xf32, #tpu.memory_space<vmem>>, %arg4: memref<32x128xf32, #tpu.memory_space<vmem>>) attributes {dimension_semantics = [#tpu.dimension_semantics<parallel>], iteration_bounds = array<i64: 1>, scalar_prefetch = 0 : i64, scratch_operands = 0 : i64, tpu.core_type = #tpu.core_type<tc>, window_params = [{transform_indices = @transform_0, window_bounds = array<i64: 32, 6272>}, {pipeline_mode = #tpu.pipeline_mode<synchronous>, transform_indices = @transform_1, window_bounds = array<i64: 6272, 128>}, {pipeline_mode = #tpu.pipeline_mode<synchronous>, transform_indices = @transform_2, window_bounds = array<i64: 1, 128>}, {transform_indices = @transform_3, window_bounds = array<i64: 32, 128>}]} {
    %c0 = arith.constant 0 : index
    %c0_0 = arith.constant 0 : index
    %0 = vector.load %arg1[%c0, %c0_0] : memref<32x6272xbf16, #tpu.memory_space<vmem>>, vector<32x6272xbf16>
    %c0_1 = arith.constant 0 : index
    %c0_2 = arith.constant 0 : index
    %1 = vector.load %arg2[%c0_1, %c0_2] : memref<6272x128xbf16, #tpu.memory_space<vmem>>, vector<6272x128xbf16>
    %cst = arith.constant dense<0.000000e+00> : vector<32x128xf32>
    %2 = tpu.matmul %0, %1, %cst {dimension_numbers = #tpu.dot_dimension_numbers<[1], [0], [0], [1], [0, 0, 1, 1], [], []>} : vector<32x6272xbf16>, vector<6272x128xbf16>, vector<32x128xf32> -> vector<32x128xf32>
    %c0_3 = arith.constant 0 : index
    %c0_4 = arith.constant 0 : index
    %3 = vector.load %arg3[%c0_3, %c0_4] : memref<1x128xf32, #tpu.memory_space<vmem>>, vector<1x128xf32>
    %4 = vector.broadcast %3 : vector<1x128xf32> to vector<32x128xf32>
    %5 = arith.addf %2, %4 : vector<32x128xf32>
    %c0_5 = arith.constant 0 : index
    %c0_6 = arith.constant 0 : index
    %6 = vector.load %arg4[%c0_5, %c0_6] : memref<32x128xf32, #tpu.memory_space<vmem>>, vector<32x128xf32>
    tpu.vector_store %arg4[%c0_5, %c0_6], %5 {strides = array<i32>} : memref<32x128xf32, #tpu.memory_space<vmem>>, vector<32x128xf32>,
    return
  }
  func.func @transform_0(%arg0: i32) -> (i32, i32) {
    %c0_i32 = arith.constant 0 : i32
    %c0_i32_0 = arith.constant 0 : i32
    return %arg0, %c0_i32 : i32, i32
  }
  func.func @transform_1(%arg0: i32) -> (i32, i32) {
    %c0_i32 = arith.constant 0 : i32
    %c0_i32_0 = arith.constant 0 : i32
    %c0_i32_1 = arith.constant 0 : i32
    return %c0_i32, %c0_i32_0 : i32, i32
  }
  func.func @transform_2(%arg0: i32) -> (i32, i32) {
    %c0_i32 = arith.constant 0 : i32
    %c0_i32_0 = arith.constant 0 : i32
    %c0_i32_1 = arith.constant 0 : i32
    return %c0_i32, %c0_i32_0 : i32, i32
  }
  func.func @transform_3(%arg0: i32) -> (i32, i32) {
    %c0_i32 = arith.constant 0 : i32
    %c0_i32_0 = arith.constant 0 : i32
    return %arg0, %c0_i32 : i32, i32
  }
}

</mosaic_0001>

<llo_original>
// kernel: _forward_device.3
$region0: #{_forward_device.3}
  #allocation0 [shape = 'u32[]', space=smem, size = 0x4, offset = 0x4, fixed_abs, tag = 'smem constant byte address 0x4 - core index']
  #allocation1 [shape = 'u32[72,128]{1,0:T(1,128)}', space=vmem, size = 0x9000, scoped, tag = 'internal scratch']
  %s0 = inlined_call_operand.vmem [shape: f32[2,16,4], index: 0, kind: input, shape index: {}]
  %s1 = inlined_call_operand.vmem [shape: f32[2,4,128], index: 1, kind: input, shape index: {}]
  %s2 = inlined_call_operand.vmem [shape: f32[2,16,128], index: 2, kind: output, shape index: {}]
  %s3 = sld [smem:[#allocation0]]
  $region18: #{_forward_device.3} parent=0
    _
  %s5 = ssub.s32 1, %s3
  %s6 = scalar_select 0, %s5, %s3
  // Predicated region
  $region2: #{_forward_device.3} parent=0 // pred_check
    _
  $region3: #{_forward_device.3} parent=0 // pred_check_branch
    %8 = sbr.rel (0) target = $region5
  $region4: #{_forward_device.3} parent=0 // pred_region
    _
  $region5: #{_forward_device.3} parent=0 // pred_fallthru
    _
  // Predicated region
  $region6: #{_forward_device.3} parent=0 // pred_check
    _
  $region7: #{_forward_device.3} parent=0 // pred_check_branch
    %10 = sbr.rel (0) target = $region9
  $region8: #{_forward_device.3} parent=0 // pred_region
    _
  $region9: #{_forward_device.3} parent=0 // pred_fallthru
    _
  %v11 = vld [vmem:[%s0] sm:$0xff]
  %v12 = vld [vmem:[%s0 + $0x8] sm:$0xff]
  %v13 = vld [vmem:[%s0 + $0x10] sm:$0xff]
  %v14 = vld [vmem:[%s0 + $0x18] sm:$0xff]
  %v15 = vld [vmem:[%s1] sm:$0xf]
  %v16 = vld [vmem:[%s1 + $0x4] sm:$0xf]
  %21 = vrot.lane.b32.xlu0 %v11, 2
  %v22 = vpop.permute.xlu0 %21
  %23 = vrot.lane.b32.xlu0 %v12, 2
  %v24 = vpop.permute.xlu0 %23
  %25 = vrot.lane.b32.xlu0 %v13, 2
  %v26 = vpop.permute.xlu0 %25
  %27 = vrot.lane.b32.xlu0 %v14, 2
  %v28 = vpop.permute.xlu0 %27
  %v33 = vsub.f32 %v11, %v22
  %v34 = vsub.f32 %v12, %v24
  %v35 = vsub.f32 %v13, %v26
  %v36 = vsub.f32 %v14, %v28
  %41 = vrot.lane.b32.xlu0 %v33, 127
  %v42 = vpop.permute.xlu0 %41
  %43 = vrot.lane.b32.xlu0 %v34, 127
  %v44 = vpop.permute.xlu0 %43
  %45 = vrot.lane.b32.xlu0 %v35, 127
  %v46 = vpop.permute.xlu0 %45
  %47 = vrot.lane.b32.xlu0 %v36, 127
  %v48 = vpop.permute.xlu0 %47
  %v53 = vmul.f32 %v33, %v42
  %v54 = vmul.f32 %v34, %v44
  %v55 = vmul.f32 %v35, %v46
  %v56 = vmul.f32 %v36, %v48
  %v59 = vrot.slane %v15, 6
  %v60 = vrot.slane %v16, 6
  %v63 = vsub.f32 %v15, %v59
  %v64 = vsub.f32 %v16, %v60
  %v67 = vrot.slane %v63, 1
  %v68 = vrot.slane %v64, 1
  %v71 = vmul.f32 %v63, %v67
  %v72 = vmul.f32 %v64, %v68
  %73 = vset.pattern.permute.xlu0 2
  %74 = vperm.xlu0 %73, %v11
  %v75 = vpop.permute.xlu0 %74
  %77 = vset.pattern.permute.xlu0 2
  %78 = vperm.xlu0 %77, %v12
  %v79 = vpop.permute.xlu0 %78
  %81 = vset.pattern.permute.xlu0 2
  %82 = vperm.xlu0 %81, %v13
  %v83 = vpop.permute.xlu0 %82
  %85 = vset.pattern.permute.xlu0 2
  %86 = vperm.xlu0 %85, %v14
  %v87 = vpop.permute.xlu0 %86
  %v89 = vperm.slane %v15, 2
  %v90 = vperm.slane %v16, 2
  %v91 = vmin.f32 %v75, %v89
  %v92 = vmin.f32 %v79, %v89
  %v93 = vmin.f32 %v83, %v90
  %v94 = vmin.f32 %v87, %v90
  %95 = vset.pattern.permute.xlu0 0
  %96 = vperm.xlu0 %95, %v11
  %v97 = vpop.permute.xlu0 %96
  %99 = vset.pattern.permute.xlu0 0
  %100 = vperm.xlu0 %99, %v12
  %v101 = vpop.permute.xlu0 %100
  %103 = vset.pattern.permute.xlu0 0
  %104 = vperm.xlu0 %103, %v13
  %v105 = vpop.permute.xlu0 %104
  %107 = vset.pattern.permute.xlu0 0
  %108 = vperm.xlu0 %107, %v14
  %v109 = vpop.permute.xlu0 %108
  %v111 = vperm.slane %v15, 0
  %v112 = vperm.slane %v16, 0
  %v113 = vmax.f32 %v97, %v111
  %v114 = vmax.f32 %v101, %v111
  %v115 = vmax.f32 %v105, %v112
  %v116 = vmax.f32 %v109, %v112
  %v117 = vsub.f32 %v91, %v113
  %v118 = vsub.f32 %v92, %v114
  %v119 = vsub.f32 %v93, %v115
  %v120 = vsub.f32 %v94, %v116
  %v121 = vmax.f32 %v117, 0.0
  %v122 = vmax.f32 %v118, 0.0
  %v123 = vmax.f32 %v119, 0.0
  %v124 = vmax.f32 %v120, 0.0
  %125 = vset.pattern.permute.xlu0 3
  %126 = vperm.xlu0 %125, %v11
  %v127 = vpop.permute.xlu0 %126
  %129 = vset.pattern.permute.xlu0 3
  %130 = vperm.xlu0 %129, %v12
  %v131 = vpop.permute.xlu0 %130
  %133 = vset.pattern.permute.xlu0 3
  %134 = vperm.xlu0 %133, %v13
  %v135 = vpop.permute.xlu0 %134
  %137 = vset.pattern.permute.xlu0 3
  %138 = vperm.xlu0 %137, %v14
  %v139 = vpop.permute.xlu0 %138
  %v141 = vperm.slane %v15, 3
  %v142 = vperm.slane %v16, 3
  %v143 = vmin.f32 %v127, %v141
  %v144 = vmin.f32 %v131, %v141
  %v145 = vmin.f32 %v135, %v142
  %v146 = vmin.f32 %v139, %v142
  %147 = vset.pattern.permute.xlu0 1
  %148 = vperm.xlu0 %147, %v11
  %v149 = vpop.permute.xlu0 %148
  %151 = vset.pattern.permute.xlu0 1
  %152 = vperm.xlu0 %151, %v12
  %v153 = vpop.permute.xlu0 %152
  %155 = vset.pattern.permute.xlu0 1
  %156 = vperm.xlu0 %155, %v13
  %v157 = vpop.permute.xlu0 %156
  %159 = vset.pattern.permute.xlu0 1
  %160 = vperm.xlu0 %159, %v14
  %v161 = vpop.permute.xlu0 %160
  %v163 = vperm.slane %v15, 1
  %v164 = vperm.slane %v16, 1
  %v165 = vmax.f32 %v149, %v163
  %v166 = vmax.f32 %v153, %v163
  %v167 = vmax.f32 %v157, %v164
  %v168 = vmax.f32 %v161, %v164
  %v169 = vsub.f32 %v143, %v165
  %v170 = vsub.f32 %v144, %v166
  %v171 = vsub.f32 %v145, %v167
  %v172 = vsub.f32 %v146, %v168
  %v173 = vmax.f32 %v169, 0.0
  %v174 = vmax.f32 %v170, 0.0
  %v175 = vmax.f32 %v171, 0.0
  %v176 = vmax.f32 %v172, 0.0
  %v177 = vmul.f32 %v121, %v173
  %v178 = vmul.f32 %v122, %v174
  %v179 = vmul.f32 %v123, %v175
  %v180 = vmul.f32 %v124, %v176
  %182 = vset.pattern.permute.xlu0 2
  %183 = vperm.xlu0 %182, %v53
  %v184 = vpop.permute.xlu0 %183
  %187 = vset.pattern.permute.xlu0 2
  %188 = vperm.xlu0 %187, %v54
  %v189 = vpop.permute.xlu0 %188
  %192 = vset.pattern.permute.xlu0 2
  %193 = vperm.xlu0 %192, %v55
  %v194 = vpop.permute.xlu0 %193
  %197 = vset.pattern.permute.xlu0 2
  %198 = vperm.xlu0 %197, %v56
  %v199 = vpop.permute.xlu0 %198
  %v201 = vperm.slane %v71, 2
  %v202 = vperm.slane %v72, 2
  %v203 = vadd.f32 %v184, %v201
  %v204 = vadd.f32 %v189, %v201
  %v205 = vadd.f32 %v194, %v202
  %v206 = vadd.f32 %v199, %v202
  %v207 = vsub.f32 %v203, %v177
  %v208 = vsub.f32 %v204, %v178
  %v209 = vsub.f32 %v205, %v179
  %v210 = vsub.f32 %v206, %v180
  %v211 = vadd.f32 %v207, 1e-06
  %v212 = vadd.f32 %v208, 1e-06
  %v213 = vadd.f32 %v209, 1e-06
  %v214 = vadd.f32 %v210, 1e-06
  %v215 = vrcp.pop %v211
  %v216 = vrcp.pop %v212
  %v217 = vrcp.pop %v213
  %v218 = vrcp.pop %v214
  %v219 = vmul.f32 %v177, %v215
  %v220 = vmul.f32 %v178, %v216
  %v221 = vmul.f32 %v179, %v217
  %v222 = vmul.f32 %v180, %v218
  %223 = vst [vmem:[%s2] sm:$0xff] %v219
  %224 = vst [vmem:[%s2 + $0x8] sm:$0xff] %v220
  %225 = vst [vmem:[%s2 + $0x10] sm:$0xff] %v221
  %226 = vst [vmem:[%s2 + $0x18] sm:$0xff] %v222
  // Predicated region
  $region10: #{_forward_device.3} parent=0 // pred_check
    _
  $region11: #{_forward_device.3} parent=0 // pred_check_branch
    %228 = sbr.rel (0) target = $region13
  $region12: #{_forward_device.3} parent=0 // pred_region
    _
  $region13: #{_forward_device.3} parent=0 // pred_fallthru
    _
  // Predicated region
  $region14: #{_forward_device.3} parent=0 // pred_check
    _
  $region15: #{_forward_device.3} parent=0 // pred_check_branch
    %230 = sbr.rel (0) target = $region17
  $region16: #{_forward_device.3} parent=0 // pred_region
    _
  $region17: #{_forward_device.3} parent=0 // pred_fallthru
    _

// kernel: _forward_device.4
$region0: #{_forward_device.4}
  #allocation0 [shape = 'u32[]', space=smem, size = 0x4, offset = 0x4, fixed_abs, tag = 'smem constant byte address 0x4 - core index']
  #allocation1 [shape = 'u32[72,128]{1,0:T(1,128)}', space=vmem, size = 0x9000, scoped, tag = 'internal scratch']
  %s0 = inlined_call_operand.vmem [shape: bf16[1600,2304], index: 0, kind: input, shape index: {}]
  %s1 = inlined_call_operand.vmem [shape: bf16[2304,128], index: 1, kind: input, shape index: {}]
  %s2 = inlined_call_operand.vmem [shape: f32[1,128], index: 2, kind: input, shape index: {}]
  %s3 = inlined_call_operand.vmem [shape: bf16[1600,128], index: 3, kind: output, shape index: {}]
  %s4 = sld [smem:[#allocation0]]
  $region45: #{_forward_device.4} parent=0
    _
  %s6 = ssub.s32 1, %s4
  %s7 = scalar_select 0, %s6, %s4
  loop: start=0, step=1, limit=6
  $region2: #{_forward_device.4} parent=0 // loop_pre_header
    _
  $region3: #{_forward_device.4} parent=0 // loop_header
    %s9 = sphi 0, %s13
    %p10 = scmp.ge.s32.totalorder %s9, 6
    %s19 = sphi 0, %s21
    %s22 = sphi 0, %s19
    %s23 = sphi 0, %s22
    %s39 = sphi 0, %s23
    %s43 = sphi 0, %s43
    %s45 = sphi 0, %s43
    %s46 = sphi 0, %s45
    %s60 = sphi 0, %s46
    %s64 = sphi 0, %s64
    %s66 = sphi 0, %s64
    %s67 = sphi 0, %s66
    %s81 = sphi 0, %s67
    %s87 = sphi 0, %s89
    %s90 = sphi 0, %s87
    %s91 = sphi 0, %s90
    %s107 = sphi 0, %s91
  $region4: #{_forward_device.4} parent=0 // loop_header_branch
    %12 = sbr.rel (%p10) target = $region8
  $region5: #{_forward_device.4} parent=0 // loop_body
    %s14 = ssub.s32 %s9, 1
    %s15 = ssub.s32 %s9, 2
    %s16 = sadd.s32 %s9, 1
    %s17 = ssub.s32 %s9, %s16
    %p18 = scmp.eq.s32.totalorder %s17, 0
    %s20 = sadd.s32 %s19, 1
    %s21 = scalar_select %p18, %s19, %s20
    %p24 = pneg %p18
    %p25 = scmp.eq.s32.totalorder %s9, 3
    %p26 = por %p24, %p25
    %p27 = scmp.ne.s32.totalorder %s19, %s22
    %p28 = scmp.eq.s32.totalorder %s9, 0
    %p29 = por %p27, %p28
    %p30 = scmp.ne.s32.totalorder %s19, %s22
    %p31 = scmp.eq.s32.totalorder %s14, 3
    %p32 = por %p30, %p31
    %p33 = scmp.ne.s32.totalorder %s22, %s23
    %p34 = scmp.eq.s32.totalorder %s14, 0
    %p35 = por %p33, %p34
    %p36 = scmp.ne.s32.totalorder %s22, %s23
    %p37 = scmp.eq.s32.totalorder %s15, 3
    %p38 = por %p36, %p37
    %p40 = scmp.ne.s32.totalorder %s23, %s39
    %p41 = scmp.eq.s32.totalorder %s15, 0
    %p42 = por %p40, %p41
    %s44 = sadd.s32 %s43, 1
    %p47 = scmp.eq.s32.totalorder %s9, 3
    %p48 = scmp.ne.s32.totalorder %s43, %s45
    %p49 = scmp.eq.s32.totalorder %s9, 0
    %p50 = por %p48, %p49
    %p51 = scmp.ne.s32.totalorder %s43, %s45
    %p52 = scmp.eq.s32.totalorder %s14, 3
    %p53 = por %p51, %p52
    %p54 = scmp.ne.s32.totalorder %s45, %s46
    %p55 = scmp.eq.s32.totalorder %s14, 0
    %p56 = por %p54, %p55
    %p57 = scmp.ne.s32.totalorder %s45, %s46
    %p58 = scmp.eq.s32.totalorder %s15, 3
    %p59 = por %p57, %p58
    %p61 = scmp.ne.s32.totalorder %s46, %s60
    %p62 = scmp.eq.s32.totalorder %s15, 0
    %p63 = por %p61, %p62
    %s65 = sadd.s32 %s64, 1
    %p68 = scmp.eq.s32.totalorder %s9, 3
    %p69 = scmp.ne.s32.totalorder %s64, %s66
    %p70 = scmp.eq.s32.totalorder %s9, 0
    %p71 = por %p69, %p70
    %p72 = scmp.ne.s32.totalorder %s64, %s66
    %p73 = scmp.eq.s32.totalorder %s14, 3
    %p74 = por %p72, %p73
    %p75 = scmp.ne.s32.totalorder %s66, %s67
    %p76 = scmp.eq.s32.totalorder %s14, 0
    %p77 = por %p75, %p76
    %p78 = scmp.ne.s32.totalorder %s66, %s67
    %p79 = scmp.eq.s32.totalorder %s15, 3
    %p80 = por %p78, %p79
    %p82 = scmp.ne.s32.totalorder %s67, %s81
    %p83 = scmp.eq.s32.totalorder %s15, 0
    %p84 = por %p82, %p83
    %s85 = ssub.s32 %s9, %s16
    %p86 = scmp.eq.s32.totalorder %s85, 0
    %s88 = sadd.s32 %s87, 1
    %s89 = scalar_select %p86, %s87, %s88
    %p92 = pneg %p86
    %p93 = scmp.eq.s32.totalorder %s9, 3
    %p94 = por %p92, %p93
    %p95 = scmp.ne.s32.totalorder %s87, %s90
    %p96 = scmp.eq.s32.totalorder %s9, 0
    %p97 = por %p95, %p96
    %p98 = scmp.ne.s32.totalorder %s87, %s90
    %p99 = scmp.eq.s32.totalorder %s14, 3
    %p100 = por %p98, %p99
    %p101 = scmp.ne.s32.totalorder %s90, %s91
    %p102 = scmp.eq.s32.totalorder %s14, 0
    %p103 = por %p101, %p102
    %p104 = scmp.ne.s32.totalorder %s90, %s91
    %p105 = scmp.eq.s32.totalorder %s15, 3
    %p106 = por %p104, %p105
    %p108 = scmp.ne.s32.totalorder %s91, %s107
    %p109 = scmp.eq.s32.totalorder %s15, 0
    %p110 = por %p108, %p109
    %p111 = scmp.le.s32.totalorder 1, %s9
    %p112 = scmp.lt.s32.totalorder %s9, 5
    %p113 = pnand %p111, %p112
    %p114 = pneg %p113
    // Predicated region
    $region9: #{_forward_device.4} parent=5 // pred_check
      _
    $region10: #{_forward_device.4} parent=5 // pred_check_branch
      %116 = sbr.rel (%p113) target = $region12
    $region11: #{_forward_device.4} parent=5 // pred_region
      %s117 = ssub.s32 %s9, 1
      // Predicated region
      $region13: #{_forward_device.4} parent=11 // pred_check
        %p118 = pneg %p56
      $region14: #{_forward_device.4} parent=11 // pred_check_branch
        %120 = sbr.rel (%p118) target = $region16
      $region15: #{_forward_device.4} parent=11 // pred_region
        _
      $region16: #{_forward_device.4} parent=11 // pred_fallthru
        _
      // Predicated region
      $region17: #{_forward_device.4} parent=11 // pred_check
        %p121 = pneg %p77
      $region18: #{_forward_device.4} parent=11 // pred_check_branch
        %123 = sbr.rel (%p121) target = $region20
      $region19: #{_forward_device.4} parent=11 // pred_region
        _
      $region20: #{_forward_device.4} parent=11 // pred_fallthru
        _
    $region12: #{_forward_device.4} parent=5 // pred_fallthru
      _
    %p124 = scmp.lt.s32.totalorder %s9, 4
    // Predicated region
    $region21: #{_forward_device.4} parent=5 // pred_check
      %p125 = pneg %p124
    $region22: #{_forward_device.4} parent=5 // pred_check_branch
      %127 = sbr.rel (%p125) target = $region24
    $region23: #{_forward_device.4} parent=5 // pred_region
      // Predicated region
      $region25: #{_forward_device.4} parent=23 // pred_check
        %p128 = pneg %p29
      $region26: #{_forward_device.4} parent=23 // pred_check_branch
        %130 = sbr.rel (%p128) target = $region28
      $region27: #{_forward_device.4} parent=23 // pred_region
        %s131 = smul.u32 50, %s9
        %p132 = scmp.lt.s32.totalorder %s131, 199
        %s133 = scalar_select %p132, %s131, 199
        %s134 = smul.addr %s133, 18
        %s135 = smul.addr %s134, 4
        %s136 = scalar_lea.vmem %s0, %s135
        %s137 = smul.u32 50, %s9
      $region28: #{_forward_device.4} parent=23 // pred_fallthru
        _
    $region24: #{_forward_device.4} parent=5 // pred_fallthru
      _
    %p138 = scmp.le.s32.totalorder 1, %s9
    %p139 = scmp.lt.s32.totalorder %s9, 5
    %p140 = pnand %p138, %p139
    %p141 = pneg %p140
    // Predicated region
    $region29: #{_forward_device.4} parent=5 // pred_check
      _
    $region30: #{_forward_device.4} parent=5 // pred_check_branch
      %143 = sbr.rel (%p140) target = $region32
    $region31: #{_forward_device.4} parent=5 // pred_region
      %s144 = ssub.s32 %s9, 1
      %s145 = smul.u32 50, %s14
      %p146 = scmp.lt.s32.totalorder %s145, 199
      %s147 = scalar_select %p146, %s145, 199
      %s148 = smul.addr %s147, 18
      %s149 = smul.addr %s148, 4
      %s150 = scalar_lea.vmem %s0, %s149
      %p151 = pneg %p35
      %p152 = pneg %p32
      %p153 = pneg %p56
      %p154 = pneg %p53
      %p155 = pneg %p77
      %p156 = pneg %p74
      %p157 = pneg %p103
      %p158 = pneg %p100
      %s159 = smul.u32 50, %s14
      %p160 = scmp.lt.s32.totalorder %s159, 199
      %s161 = scalar_select %p160, %s159, 199
      %s162 = smul.addr %s161, 4
      %s163 = scalar_lea.vmem %s3, %s162
      %s164 = smul.u32 50, %s14
      %p165 = scmp.lt.s32.totalorder %s164, 199
      %s166 = scalar_select %p165, %s164, 199
      %s167 = smul.addr %s166, 18
      %s168 = smul.addr %s167, 4
      %s169 = scalar_lea.vmem %s0, %s168
      %s170 = smul.u32 50, %s14
      %s171 = smul.u32 50, %s14
      %p172 = scmp.lt.s32.totalorder %s171, 199
      %s173 = scalar_select %p172, %s171, 199
      %s174 = smul.addr %s173, 4
      %s175 = scalar_lea.vmem %s3, %s174
      %s176 = smul.u32 50, %s14
      %v177 = vld [vmem:[%s169] sm:$0xff]
      %v178 = vld [vmem:[%s169 + $0x8] sm:$0xff]
      %v179 = vld [vmem:[%s169 + $0x10] sm:$0xff]
      %v180 = vld [vmem:[%s169 + $0x18] sm:$0xff]
      %v181 = vld [vmem:[%s169 + $0x20] sm:$0xff]
      %v182 = vld [vmem:[%s169 + $0x28] sm:$0xff]
      %v183 = vld [vmem:[%s169 + $0x30] sm:$0xff]
      %v184 = vld [vmem:[%s169 + $0x38] sm:$0xff]
      %v185 = vld [vmem:[%s169 + $0x40] sm:$0xff]
      %v186 = vld [vmem:[%s169 + $0x48] sm:$0xff]
      %v187 = vld [vmem:[%s169 + $0x50] sm:$0xff]
      %v188 = vld [vmem:[%s169 + $0x58] sm:$0xff]
      %v189 = vld [vmem:[%s169 + $0x60] sm:$0xff]
      %v190 = vld [vmem:[%s169 + $0x68] sm:$0xff]
      %v191 = vld [vmem:[%s169 + $0x70] sm:$0xff]
      %v192 = vld [vmem:[%s169 + $0x78] sm:$0xff]
      %v193 = vld [vmem:[%s169 + $0x80] sm:$0xff]
      %v194 = vld [vmem:[%s169 + $0x88] sm:$0xff]
      %v195 = vld [vmem:[%s169 + $0x90] sm:$0xff]
      %v196 = vld [vmem:[%s169 + $0x98] sm:$0xff]
      %v197 = vld [vmem:[%s169 + $0xa0] sm:$0xff]
      %v198 = vld [vmem:[%s169 + $0xa8] sm:$0xff]
      %v199 = vld [vmem:[%s169 + $0xb0] sm:$0xff]
      %v200 = vld [vmem:[%s169 + $0xb8] sm:$0xff]
      %v201 = vld [vmem:[%s169 + $0xc0] sm:$0xff]
      %v202 = vld [vmem:[%s169 + $0xc8] sm:$0xff]
      %v203 = vld [vmem:[%s169 + $0xd0] sm:$0xff]
      %v204 = vld [vmem:[%s169 + $0xd8] sm:$0xff]
      %v205 = vld [vmem:[%s169 + $0xe0] sm:$0xff]
      %v206 = vld [vmem:[%s169 + $0xe8] sm:$0xff]
      %v207 = vld [vmem:[%s169 + $0xf0] sm:$0xff]
      %v208 = vld [vmem:[%s169 + $0xf8] sm:$0xff]
      %v209 = vld [vmem:[%s169 + $0x100] sm:$0xff]
      %v210 = vld [vmem:[%s169 + $0x108] sm:$0xff]
      %v211 = vld [vmem:[%s169 + $0x110] sm:$0xff]
      %v212 = vld [vmem:[%s169 + $0x118] sm:$0xff]
      %v213 = vld [vmem:[%s169 + $0x120] sm:$0xff]
      %v214 = vld [vmem:[%s169 + $0x128] sm:$0xff]
      %v215 = vld [vmem:[%s169 + $0x130] sm:$0xff]
      %v216 = vld [vmem:[%s169 + $0x138] sm:$0xff]
      %v217 = vld [vmem:[%s169 + $0x140] sm:$0xff]
      %v218 = vld [vmem:[%s169 + $0x148] sm:$0xff]
      %v219 = vld [vmem:[%s169 + $0x150] sm:$0xff]
      %v220 = vld [vmem:[%s169 + $0x158] sm:$0xff]
      %v221 = vld [vmem:[%s169 + $0x160] sm:$0xff]
      %v222 = vld [vmem:[%s169 + $0x168] sm:$0xff]
      %v223 = vld [vmem:[%s169 + $0x170] sm:$0xff]
      %v224 = vld [vmem:[%s169 + $0x178] sm:$0xff]
      %v225 = vld [vmem:[%s169 + $0x180] sm:$0xff]
      %v226 = vld [vmem:[%s169 + $0x188] sm:$0xff]
      %v227 = vld [vmem:[%s169 + $0x190] sm:$0xff]
      %v228 = vld [vmem:[%s169 + $0x198] sm:$0xff]
      %v229 = vld [vmem:[%s169 + $0x1a0] sm:$0xff]
      %v230 = vld [vmem:[%s169 + $0x1a8] sm:$0xff]
      %v231 = vld [vmem:[%s169 + $0x1b0] sm:$0xff]
      %v232 = vld [vmem:[%s169 + $0x1b8] sm:$0xff]
      %v233 = vld [vmem:[%s169 + $0x1c0] sm:$0xff]
      %v234 = vld [vmem:[%s169 + $0x1c8] sm:$0xff]
      %v235 = vld [vmem:[%s169 + $0x1d0] sm:$0xff]
      %v236 = vld [vmem:[%s169 + $0x1d8] sm:$0xff]
      %v237 = vld [vmem:[%s169 + $0x1e0] sm:$0xff]
      %v238 = vld [vmem:[%s169 + $0x1e8] sm:$0xff]
      %v239 = vld [vmem:[%s169 + $0x1f0] sm:$0xff]
      %v240 = vld [vmem:[%s169 + $0x1f8] sm:$0xff]
      %v241 = vld [vmem:[%s169 + $0x200] sm:$0xff]
      %v242 = vld [vmem:[%s169 + $0x208] sm:$0xff]
      %v243 = vld [vmem:[%s169 + $0x210] sm:$0xff]
      %v244 = vld [vmem:[%s169 + $0x218] sm:$0xff]
      %v245 = vld [vmem:[%s169 + $0x220] sm:$0xff]
      %v246 = vld [vmem:[%s169 + $0x228] sm:$0xff]
      %v247 = vld [vmem:[%s169 + $0x230] sm:$0xff]
      %v248 = vld [vmem:[%s169 + $0x238] sm:$0xff]
      %v249 = vld [vmem:[%s169 + $0x240] sm:$0xff]
      %v250 = vld [vmem:[%s169 + $0x248] sm:$0xff]
      %v251 = vld [vmem:[%s169 + $0x250] sm:$0xff]
      %v252 = vld [vmem:[%s169 + $0x258] sm:$0xff]
      %v253 = vld [vmem:[%s169 + $0x260] sm:$0xff]
      %v254 = vld [vmem:[%s169 + $0x268] sm:$0xff]
      %v255 = vld [vmem:[%s169 + $0x270] sm:$0xff]
      %v256 = vld [vmem:[%s169 + $0x278] sm:$0xff]
      %v257 = vld [vmem:[%s169 + $0x280] sm:$0xff]
      %v258 = vld [vmem:[%s169 + $0x288] sm:$0xff]
      %v259 = vld [vmem:[%s169 + $0x290] sm:$0xff]
      %v260 = vld [vmem:[%s169 + $0x298] sm:$0xff]
      %v261 = vld [vmem:[%s169 + $0x2a0] sm:$0xff]
      %v262 = vld [vmem:[%s169 + $0x2a8] sm:$0xff]
      %v263 = vld [vmem:[%s169 + $0x2b0] sm:$0xff]
      %v264 = vld [vmem:[%s169 + $0x2b8] sm:$0xff]
      %v265 = vld [vmem:[%s169 + $0x2c0] sm:$0xff]
      %v266 = vld [vmem:[%s169 + $0x2c8] sm:$0xff]
      %v267 = vld [vmem:[%s169 + $0x2d0] sm:$0xff]
      %v268 = vld [vmem:[%s169 + $0x2d8] sm:$0xff]
      %v269 = vld [vmem:[%s169 + $0x2e0] sm:$0xff]
      %v270 = vld [vmem:[%s169 + $0x2e8] sm:$0xff]
      %v271 = vld [vmem:[%s169 + $0x2f0] sm:$0xff]
      %v272 = vld [vmem:[%s169 + $0x2f8] sm:$0xff]
      %v273 = vld [vmem:[%s169 + $0x300] sm:$0xff]
      %v274 = vld [vmem:[%s169 + $0x308] sm:$0xff]
      %v275 = vld [vmem:[%s169 + $0x310] sm:$0xff]
      %v276 = vld [vmem:[%s169 + $0x318] sm:$0xff]
      %v277 = vld [vmem:[%s169 + $0x320] sm:$0xff]
      %v278 = vld [vmem:[%s169 + $0x328] sm:$0xff]
      %v279 = vld [vmem:[%s169 + $0x330] sm:$0xff]
      %v280 = vld [vmem:[%s169 + $0x338] sm:$0xff]
      %v281 = vld [vmem:[%s169 + $0x340] sm:$0xff]
      %v282 = vld [vmem:[%s169 + $0x348] sm:$0xff]
      %v283 = vld [vmem:[%s169 + $0x350] sm:$0xff]
      %v284 = vld [vmem:[%s169 + $0x358] sm:$0xff]
      %v285 = vld [vmem:[%s169 + $0x360] sm:$0xff]
      %v286 = vld [vmem:[%s169 + $0x368] sm:$0xff]
      %v287 = vld [vmem:[%s169 + $0x370] sm:$0xff]
      %v288 = vld [vmem:[%s169 + $0x378] sm:$0xff]
      %v289 = vld [vmem:[%s169 + $0x380] sm:$0xff]
      %v290 = vld [vmem:[%s169 + $0x388] sm:$0xff]
      %v291 = vld [vmem:[%s169 + $0x390] sm:$0xff]
      %v292 = vld [vmem:[%s169 + $0x398] sm:$0xff]
      %v293 = vld [vmem:[%s169 + $0x3a0] sm:$0xff]
      %v294 = vld [vmem:[%s169 + $0x3a8] sm:$0xff]
      %v295 = vld [vmem:[%s169 + $0x3b0] sm:$0xff]
      %v296 = vld [vmem:[%s169 + $0x3b8] sm:$0xff]
      %v297 = vld [vmem:[%s169 + $0x3c0] sm:$0xff]
      %v298 = vld [vmem:[%s169 + $0x3c8] sm:$0xff]
      %v299 = vld [vmem:[%s169 + $0x3d0] sm:$0xff]
      %v300 = vld [vmem:[%s169 + $0x3d8] sm:$0xff]
      %v301 = vld [vmem:[%s169 + $0x3e0] sm:$0xff]
      %v302 = vld [vmem:[%s169 + $0x3e8] sm:$0xff]
      %v303 = vld [vmem:[%s169 + $0x3f0] sm:$0xff]
      %v304 = vld [vmem:[%s169 + $0x3f8] sm:$0xff]
      %v305 = vld [vmem:[%s169 + $0x400] sm:$0xff]
      %v306 = vld [vmem:[%s169 + $0x408] sm:$0xff]
      %v307 = vld [vmem:[%s169 + $0x410] sm:$0xff]
      %v308 = vld [vmem:[%s169 + $0x418] sm:$0xff]
      %v309 = vld [vmem:[%s169 + $0x420] sm:$0xff]
      %v310 = vld [vmem:[%s169 + $0x428] sm:$0xff]
      %v311 = vld [vmem:[%s169 + $0x430] sm:$0xff]
      %v312 = vld [vmem:[%s169 + $0x438] sm:$0xff]
      %v313 = vld [vmem:[%s169 + $0x440] sm:$0xff]
      %v314 = vld [vmem:[%s169 + $0x448] sm:$0xff]
      %v315 = vld [vmem:[%s169 + $0x450] sm:$0xff]
      %v316 = vld [vmem:[%s169 + $0x458] sm:$0xff]
      %v317 = vld [vmem:[%s169 + $0x460] sm:$0xff]
      %v318 = vld [vmem:[%s169 + $0x468] sm:$0xff]
      %v319 = vld [vmem:[%s169 + $0x470] sm:$0xff]
      %v320 = vld [vmem:[%s169 + $0x478] sm:$0xff]
      %v321 = vld [vmem:[%s169 + $0x480] sm:$0xff]
      %v322 = vld [vmem:[%s169 + $0x488] sm:$0xff]
      %v323 = vld [vmem:[%s169 + $0x490] sm:$0xff]
      %v324 = vld [vmem:[%s169 + $0x498] sm:$0xff]
      %v325 = vld [vmem:[%s169 + $0x4a0] sm:$0xff]
      %v326 = vld [vmem:[%s169 + $0x4a8] sm:$0xff]
      %v327 = vld [vmem:[%s169 + $0x4b0] sm:$0xff]
      %v328 = vld [vmem:[%s169 + $0x4b8] sm:$0xff]
      %v329 = vld [vmem:[%s169 + $0x4c0] sm:$0xff]
      %v330 = vld [vmem:[%s169 + $0x4c8] sm:$0xff]
      %v331 = vld [vmem:[%s169 + $0x4d0] sm:$0xff]
      %v332 = vld [vmem:[%s169 + $0x4d8] sm:$0xff]
      %v333 = vld [vmem:[%s169 + $0x4e0] sm:$0xff]
      %v334 = vld [vmem:[%s169 + $0x4e8] sm:$0xff]
      %v335 = vld [vmem:[%s169 + $0x4f0] sm:$0xff]
      %v336 = vld [vmem:[%s169 + $0x4f8] sm:$0xff]
      %v337 = vld [vmem:[%s169 + $0x500] sm:$0xff]
      %v338 = vld [vmem:[%s169 + $0x508] sm:$0xff]
      %v339 = vld [vmem:[%s169 + $0x510] sm:$0xff]
      %v340 = vld [vmem:[%s169 + $0x518] sm:$0xff]
      %v341 = vld [vmem:[%s169 + $0x520] sm:$0xff]
      %v342 = vld [vmem:[%s169 + $0x528] sm:$0xff]
      %v343 = vld [vmem:[%s169 + $0x530] sm:$0xff]
      %v344 = vld [vmem:[%s169 + $0x538] sm:$0xff]
      %v345 = vld [vmem:[%s169 + $0x540] sm:$0xff]
      %v346 = vld [vmem:[%s169 + $0x548] sm:$0xff]
      %v347 = vld [vmem:[%s169 + $0x550] sm:$0xff]
      %v348 = vld [vmem:[%s169 + $0x558] sm:$0xff]
      %v349 = vld [vmem:[%s169 + $0x560] sm:$0xff]
      %v350 = vld [vmem:[%s169 + $0x568] sm:$0xff]
      %v351 = vld [vmem:[%s169 + $0x570] sm:$0xff]
      %v352 = vld [vmem:[%s169 + $0x578] sm:$0xff]
      %v353 = vld [vmem:[%s169 + $0x580] sm:$0xff]
      %v354 = vld [vmem:[%s169 + $0x588] sm:$0xff]
      %v355 = vld [vmem:[%s169 + $0x590] sm:$0xff]
      %v356 = vld [vmem:[%s169 + $0x598] sm:$0xff]
      %v357 = vld [vmem:[%s169 + $0x5a0] sm:$0xff]
      %v358 = vld [vmem:[%s169 + $0x5a8] sm:$0xff]
      %v359 = vld [vmem:[%s169 + $0x5b0] sm:$0xff]
      %v360 = vld [vmem:[%s169 + $0x5b8] sm:$0xff]
      %v361 = vld [vmem:[%s169 + $0x5c0] sm:$0xff]
      %v362 = vld [vmem:[%s169 + $0x5c8] sm:$0xff]
      %v363 = vld [vmem:[%s169 + $0x5d0] sm:$0xff]
      %v364 = vld [vmem:[%s169 + $0x5d8] sm:$0xff]
      %v365 = vld [vmem:[%s169 + $0x5e0] sm:$0xff]
      %v366 = vld [vmem:[%s169 + $0x5e8] sm:$0xff]
      %v367 = vld [vmem:[%s169 + $0x5f0] sm:$0xff]
      %v368 = vld [vmem:[%s169 + $0x5f8] sm:$0xff]
      %v369 = vld [vmem:[%s169 + $0x600] sm:$0xff]
      %v370 = vld [vmem:[%s169 + $0x608] sm:$0xff]
      %v371 = vld [vmem:[%s169 + $0x610] sm:$0xff]
      %v372 = vld [vmem:[%s169 + $0x618] sm:$0xff]
      %v373 = vld [vmem:[%s169 + $0x620] sm:$0xff]
      %v374 = vld [vmem:[%s169 + $0x628] sm:$0xff]
      %v375 = vld [vmem:[%s169 + $0x630] sm:$0xff]
      %v376 = vld [vmem:[%s169 + $0x638] sm:$0xff]
      %v377 = vld [vmem:[%s169 + $0x640] sm:$0xff]
      %v378 = vld [vmem:[%s169 + $0x648] sm:$0xff]
      %v379 = vld [vmem:[%s169 + $0x650] sm:$0xff]
      %v380 = vld [vmem:[%s169 + $0x658] sm:$0xff]
      %v381 = vld [vmem:[%s169 + $0x660] sm:$0xff]
      %v382 = vld [vmem:[%s169 + $0x668] sm:$0xff]
      %v383 = vld [vmem:[%s169 + $0x670] sm:$0xff]
      %v384 = vld [vmem:[%s169 + $0x678] sm:$0xff]
      %v385 = vld [vmem:[%s169 + $0x680] sm:$0xff]
      %v386 = vld [vmem:[%s169 + $0x688] sm:$0xff]
      %v387 = vld [vmem:[%s169 + $0x690] sm:$0xff]
      %v388 = vld [vmem:[%s169 + $0x698] sm:$0xff]
      %v389 = vld [vmem:[%s169 + $0x6a0] sm:$0xff]
      %v390 = vld [vmem:[%s169 + $0x6a8] sm:$0xff]
      %v391 = vld [vmem:[%s169 + $0x6b0] sm:$0xff]
      %v392 = vld [vmem:[%s169 + $0x6b8] sm:$0xff]
      %v393 = vld [vmem:[%s169 + $0x6c0] sm:$0xff]
      %v394 = vld [vmem:[%s169 + $0x6c8] sm:$0xff]
      %v395 = vld [vmem:[%s169 + $0x6d0] sm:$0xff]
      %v396 = vld [vmem:[%s169 + $0x6d8] sm:$0xff]
      %v397 = vld [vmem:[%s169 + $0x6e0] sm:$0xff]
      %v398 = vld [vmem:[%s169 + $0x6e8] sm:$0xff]
      %v399 = vld [vmem:[%s169 + $0x6f0] sm:$0xff]
      %v400 = vld [vmem:[%s169 + $0x6f8] sm:$0xff]
      %v401 = vld [vmem:[%s169 + $0x700] sm:$0xff]
      %v402 = vld [vmem:[%s169 + $0x708] sm:$0xff]
      %v403 = vld [vmem:[%s169 + $0x710] sm:$0xff]
      %v404 = vld [vmem:[%s169 + $0x718] sm:$0xff]
      %v405 = vld [vmem:[%s169 + $0x720] sm:$0xff]
      %v406 = vld [vmem:[%s169 + $0x728] sm:$0xff]
      %v407 = vld [vmem:[%s169 + $0x730] sm:$0xff]
      %v408 = vld [vmem:[%s169 + $0x738] sm:$0xff]
      %v409 = vld [vmem:[%s169 + $0x740] sm:$0xff]
      %v410 = vld [vmem:[%s169 + $0x748] sm:$0xff]
      %v411 = vld [vmem:[%s169 + $0x750] sm:$0xff]
      %v412 = vld [vmem:[%s169 + $0x758] sm:$0xff]
      %v413 = vld [vmem:[%s169 + $0x760] sm:$0xff]
      %v414 = vld [vmem:[%s169 + $0x768] sm:$0xff]
      %v415 = vld [vmem:[%s169 + $0x770] sm:$0xff]
      %v416 = vld [vmem:[%s169 + $0x778] sm:$0xff]
      %v417 = vld [vmem:[%s169 + $0x780] sm:$0xff]
      %v418 = vld [vmem:[%s169 + $0x788] sm:$0xff]
      %v419 = vld [vmem:[%s169 + $0x790] sm:$0xff]
      %v420 = vld [vmem:[%s169 + $0x798] sm:$0xff]
      %v421 = vld [vmem:[%s169 + $0x7a0] sm:$0xff]
      %v422 = vld [vmem:[%s169 + $0x7a8] sm:$0xff]
      %v423 = vld [vmem:[%s169 + $0x7b0] sm:$0xff]
      %v424 = vld [vmem:[%s169 + $0x7b8] sm:$0xff]
      %v425 = vld [vmem:[%s169 + $0x7c0] sm:$0xff]
      %v426 = vld [vmem:[%s169 + $0x7c8] sm:$0xff]
      %v427 = vld [vmem:[%s169 + $0x7d0] sm:$0xff]
      %v428 = vld [vmem:[%s169 + $0x7d8] sm:$0xff]
      %v429 = vld [vmem:[%s169 + $0x7e0] sm:$0xff]
      %v430 = vld [vmem:[%s169 + $0x7e8] sm:$0xff]
      %v431 = vld [vmem:[%s169 + $0x7f0] sm:$0xff]
      %v432 = vld [vmem:[%s169 + $0x7f8] sm:$0xff]
      %v433 = vld [vmem:[%s169 + $0x800] sm:$0xff]
      %v434 = vld [vmem:[%s169 + $0x808] sm:$0xff]
      %v435 = vld [vmem:[%s169 + $0x810] sm:$0xff]
      %v436 = vld [vmem:[%s169 + $0x818] sm:$0xff]
      %v437 = vld [vmem:[%s169 + $0x820] sm:$0xff]
      %v438 = vld [vmem:[%s169 + $0x828] sm:$0xff]
      %v439 = vld [vmem:[%s169 + $0x830] sm:$0xff]
      %v440 = vld [vmem:[%s169 + $0x838] sm:$0xff]
      %v441 = vld [vmem:[%s169 + $0x840] sm:$0xff]
      %v442 = vld [vmem:[%s169 + $0x848] sm:$0xff]
      %v443 = vld [vmem:[%s169 + $0x850] sm:$0xff]
      %v444 = vld [vmem:[%s169 + $0x858] sm:$0xff]
      %v445 = vld [vmem:[%s169 + $0x860] sm:$0xff]
      %v446 = vld [vmem:[%s169 + $0x868] sm:$0xff]
      %v447 = vld [vmem:[%s169 + $0x870] sm:$0xff]
      %v448 = vld [vmem:[%s169 + $0x878] sm:$0xff]
      %v449 = vld [vmem:[%s169 + $0x880] sm:$0xff]
      %v450 = vld [vmem:[%s169 + $0x888] sm:$0xff]
      %v451 = vld [vmem:[%s169 + $0x890] sm:$0xff]
      %v452 = vld [vmem:[%s169 + $0x898] sm:$0xff]
      %v453 = vld [vmem:[%s169 + $0x8a0] sm:$0xff]
      %v454 = vld [vmem:[%s169 + $0x8a8] sm:$0xff]
      %v455 = vld [vmem:[%s169 + $0x8b0] sm:$0xff]
      %v456 = vld [vmem:[%s169 + $0x8b8] sm:$0xff]
      %v457 = vld [vmem:[%s169 + $0x8c0] sm:$0xff]
      %v458 = vld [vmem:[%s169 + $0x8c8] sm:$0xff]
      %v459 = vld [vmem:[%s169 + $0x8d0] sm:$0xff]
      %v460 = vld [vmem:[%s169 + $0x8d8] sm:$0xff]
      %v461 = vld [vmem:[%s169 + $0x8e0] sm:$0xff]
      %v462 = vld [vmem:[%s169 + $0x8e8] sm:$0xff]
      %v463 = vld [vmem:[%s169 + $0x8f0] sm:$0xff]
      %v464 = vld [vmem:[%s169 + $0x8f8] sm:$0xff]
      %v465 = vld [vmem:[%s169 + $0x900] sm:$0xff]
      %v466 = vld [vmem:[%s169 + $0x908] sm:$0xff]
      %v467 = vld [vmem:[%s169 + $0x910] sm:$0xff]
      %v468 = vld [vmem:[%s169 + $0x918] sm:$0xff]
      %v469 = vld [vmem:[%s169 + $0x920] sm:$0xff]
      %v470 = vld [vmem:[%s169 + $0x928] sm:$0xff]
      %v471 = vld [vmem:[%s169 + $0x930] sm:$0xff]
      %v472 = vld [vmem:[%s169 + $0x938] sm:$0xff]
      %v473 = vld [vmem:[%s169 + $0x940] sm:$0xff]
      %v474 = vld [vmem:[%s169 + $0x948] sm:$0xff]
      %v475 = vld [vmem:[%s169 + $0x950] sm:$0xff]
      %v476 = vld [vmem:[%s169 + $0x958] sm:$0xff]
      %v477 = vld [vmem:[%s169 + $0x960] sm:$0xff]
      %v478 = vld [vmem:[%s169 + $0x968] sm:$0xff]
      %v479 = vld [vmem:[%s169 + $0x970] sm:$0xff]
      %v480 = vld [vmem:[%s169 + $0x978] sm:$0xff]
      %v481 = vld [vmem:[%s169 + $0x980] sm:$0xff]
      %v482 = vld [vmem:[%s169 + $0x988] sm:$0xff]
      %v483 = vld [vmem:[%s169 + $0x990] sm:$0xff]
      %v484 = vld [vmem:[%s169 + $0x998] sm:$0xff]
      %v485 = vld [vmem:[%s169 + $0x9a0] sm:$0xff]
      %v486 = vld [vmem:[%s169 + $0x9a8] sm:$0xff]
      %v487 = vld [vmem:[%s169 + $0x9b0] sm:$0xff]
      %v488 = vld [vmem:[%s169 + $0x9b8] sm:$0xff]
      %v489 = vld [vmem:[%s169 + $0x9c0] sm:$0xff]
      %v490 = vld [vmem:[%s169 + $0x9c8] sm:$0xff]
      %v491 = vld [vmem:[%s169 + $0x9d0] sm:$0xff]
      %v492 = vld [vmem:[%s169 + $0x9d8] sm:$0xff]
      %v493 = vld [vmem:[%s169 + $0x9e0] sm:$0xff]
      %v494 = vld [vmem:[%s169 + $0x9e8] sm:$0xff]
      %v495 = vld [vmem:[%s169 + $0x9f0] sm:$0xff]
      %v496 = vld [vmem:[%s169 + $0x9f8] sm:$0xff]
      %v497 = vld [vmem:[%s169 + $0xa00] sm:$0xff]
      %v498 = vld [vmem:[%s169 + $0xa08] sm:$0xff]
      %v499 = vld [vmem:[%s169 + $0xa10] sm:$0xff]
      %v500 = vld [vmem:[%s169 + $0xa18] sm:$0xff]
      %v501 = vld [vmem:[%s169 + $0xa20] sm:$0xff]
      %v502 = vld [vmem:[%s169 + $0xa28] sm:$0xff]
      %v503 = vld [vmem:[%s169 + $0xa30] sm:$0xff]
      %v504 = vld [vmem:[%s169 + $0xa38] sm:$0xff]
      %v505 = vld [vmem:[%s169 + $0xa40] sm:$0xff]
      %v506 = vld [vmem:[%s169 + $0xa48] sm:$0xff]
      %v507 = vld [vmem:[%s169 + $0xa50] sm:$0xff]
      %v508 = vld [vmem:[%s169 + $0xa58] sm:$0xff]
      %v509 = vld [vmem:[%s169 + $0xa60] sm:$0xff]
      %v510 = vld [vmem:[%s169 + $0xa68] sm:$0xff]
      %v511 = vld [vmem:[%s169 + $0xa70] sm:$0xff]
      %v512 = vld [vmem:[%s169 + $0xa78] sm:$0xff]
      %v513 = vld [vmem:[%s169 + $0xa80] sm:$0xff]
      %v514 = vld [vmem:[%s169 + $0xa88] sm:$0xff]
      %v515 = vld [vmem:[%s169 + $0xa90] sm:$0xff]
      %v516 = vld [vmem:[%s169 + $0xa98] sm:$0xff]
      %v517 = vld [vmem:[%s169 + $0xaa0] sm:$0xff]
      %v518 = vld [vmem:[%s169 + $0xaa8] sm:$0xff]
      %v519 = vld [vmem:[%s169 + $0xab0] sm:$0xff]
      %v520 = vld [vmem:[%s169 + $0xab8] sm:$0xff]
      %v521 = vld [vmem:[%s169 + $0xac0] sm:$0xff]
      %v522 = vld [vmem:[%s169 + $0xac8] sm:$0xff]
      %v523 = vld [vmem:[%s169 + $0xad0] sm:$0xff]
      %v524 = vld [vmem:[%s169 + $0xad8] sm:$0xff]
      %v525 = vld [vmem:[%s169 + $0xae0] sm:$0xff]
      %v526 = vld [vmem:[%s169 + $0xae8] sm:$0xff]
      %v527 = vld [vmem:[%s169 + $0xaf0] sm:$0xff]
      %v528 = vld [vmem:[%s169 + $0xaf8] sm:$0xff]
      %v529 = vld [vmem:[%s169 + $0xb00] sm:$0xff]
      %v530 = vld [vmem:[%s169 + $0xb08] sm:$0xff]
      %v531 = vld [vmem:[%s169 + $0xb10] sm:$0xff]
      %v532 = vld [vmem:[%s169 + $0xb18] sm:$0xff]
      %v533 = vld [vmem:[%s169 + $0xb20] sm:$0xff]
      %v534 = vld [vmem:[%s169 + $0xb28] sm:$0xff]
      %v535 = vld [vmem:[%s169 + $0xb30] sm:$0xff]
      %v536 = vld [vmem:[%s169 + $0xb38] sm:$0xff]
      %v537 = vld [vmem:[%s169 + $0xb40] sm:$0xff]
      %v538 = vld [vmem:[%s169 + $0xb48] sm:$0xff]
      %v539 = vld [vmem:[%s169 + $0xb50] sm:$0xff]
      %v540 = vld [vmem:[%s169 + $0xb58] sm:$0xff]
      %v541 = vld [vmem:[%s169 + $0xb60] sm:$0xff]
      %v542 = vld [vmem:[%s169 + $0xb68] sm:$0xff]
      %v543 = vld [vmem:[%s169 + $0xb70] sm:$0xff]
      %v544 = vld [vmem:[%s169 + $0xb78] sm:$0xff]
      %v545 = vld [vmem:[%s169 + $0xb80] sm:$0xff]
      %v546 = vld [vmem:[%s169 + $0xb88] sm:$0xff]
      %v547 = vld [vmem:[%s169 + $0xb90] sm:$0xff]
      %v548 = vld [vmem:[%s169 + $0xb98] sm:$0xff]
      %v549 = vld [vmem:[%s169 + $0xba0] sm:$0xff]
      %v550 = vld [vmem:[%s169 + $0xba8] sm:$0xff]
      %v551 = vld [vmem:[%s169 + $0xbb0] sm:$0xff]
      %v552 = vld [vmem:[%s169 + $0xbb8] sm:$0xff]
      %v553 = vld [vmem:[%s169 + $0xbc0] sm:$0xff]
      %v554 = vld [vmem:[%s169 + $0xbc8] sm:$0xff]
      %v555 = vld [vmem:[%s169 + $0xbd0] sm:$0xff]
      %v556 = vld [vmem:[%s169 + $0xbd8] sm:$0xff]
      %v557 = vld [vmem:[%s169 + $0xbe0] sm:$0xff]
      %v558 = vld [vmem:[%s169 + $0xbe8] sm:$0xff]
      %v559 = vld [vmem:[%s169 + $0xbf0] sm:$0xff]
      %v560 = vld [vmem:[%s169 + $0xbf8] sm:$0xff]
      %v561 = vld [vmem:[%s169 + $0xc00] sm:$0xff]
      %v562 = vld [vmem:[%s169 + $0xc08] sm:$0xff]
      %v563 = vld [vmem:[%s169 + $0xc10] sm:$0xff]
      %v564 = vld [vmem:[%s169 + $0xc18] sm:$0xff]
      %v565 = vld [vmem:[%s169 + $0xc20] sm:$0xff]
      %v566 = vld [vmem:[%s169 + $0xc28] sm:$0xff]
      %v567 = vld [vmem:[%s169 + $0xc30] sm:$0xff]
      %v568 = vld [vmem:[%s169 + $0xc38] sm:$0xff]
      %v569 = vld [vmem:[%s169 + $0xc40] sm:$0xff]
      %v570 = vld [vmem:[%s169 + $0xc48] sm:$0xff]
      %v571 = vld [vmem:[%s169 + $0xc50] sm:$0xff]
      %v572 = vld [vmem:[%s169 + $0xc58] sm:$0xff]
      %v573 = vld [vmem:[%s169 + $0xc60] sm:$0xff]
      %v574 = vld [vmem:[%s169 + $0xc68] sm:$0xff]
      %v575 = vld [vmem:[%s169 + $0xc70] sm:$0xff]
      %v576 = vld [vmem:[%s169 + $0xc78] sm:$0xff]
      %v577 = vld [vmem:[%s169 + $0xc80] sm:$0xff]
      %v578 = vld [vmem:[%s169 + $0xc88] sm:$0xff]
      %v579 = vld [vmem:[%s169 + $0xc90] sm:$0xff]
      %v580 = vld [vmem:[%s169 + $0xc98] sm:$0xff]
      %v581 = vld [vmem:[%s169 + $0xca0] sm:$0xff]
      %v582 = vld [vmem:[%s169 + $0xca8] sm:$0xff]
      %v583 = vld [vmem:[%s169 + $0xcb0] sm:$0xff]
      %v584 = vld [vmem:[%s169 + $0xcb8] sm:$0xff]
      %v585 = vld [vmem:[%s169 + $0xcc0] sm:$0xff]
      %v586 = vld [vmem:[%s169 + $0xcc8] sm:$0xff]
      %v587 = vld [vmem:[%s169 + $0xcd0] sm:$0xff]
      %v588 = vld [vmem:[%s169 + $0xcd8] sm:$0xff]
      %v589 = vld [vmem:[%s169 + $0xce0] sm:$0xff]
      %v590 = vld [vmem:[%s169 + $0xce8] sm:$0xff]
      %v591 = vld [vmem:[%s169 + $0xcf0] sm:$0xff]
      %v592 = vld [vmem:[%s169 + $0xcf8] sm:$0xff]
      %v593 = vld [vmem:[%s169 + $0xd00] sm:$0xff]
      %v594 = vld [vmem:[%s169 + $0xd08] sm:$0xff]
      %v595 = vld [vmem:[%s169 + $0xd10] sm:$0xff]
      %v596 = vld [vmem:[%s169 + $0xd18] sm:$0xff]
      %v597 = vld [vmem:[%s169 + $0xd20] sm:$0xff]
      %v598 = vld [vmem:[%s169 + $0xd28] sm:$0xff]
      %v599 = vld [vmem:[%s169 + $0xd30] sm:$0xff]
      %v600 = vld [vmem:[%s169 + $0xd38] sm:$0xff]
      %v601 = vld [vmem:[%s169 + $0xd40] sm:$0xff]
      %v602 = vld [vmem:[%s169 + $0xd48] sm:$0xff]
      %v603 = vld [vmem:[%s169 + $0xd50] sm:$0xff]
      %v604 = vld [vmem:[%s169 + $0xd58] sm:$0xff]
      %v605 = vld [vmem:[%s169 + $0xd60] sm:$0xff]
      %v606 = vld [vmem:[%s169 + $0xd68] sm:$0xff]
      %v607 = vld [vmem:[%s169 + $0xd70] sm:$0xff]
      %v608 = vld [vmem:[%s169 + $0xd78] sm:$0xff]
      %v609 = vld [vmem:[%s169 + $0xd80] sm:$0xff]
      %v610 = vld [vmem:[%s169 + $0xd88] sm:$0xff]
      %v611 = vld [vmem:[%s169 + $0xd90] sm:$0xff]
      %v612 = vld [vmem:[%s169 + $0xd98] sm:$0xff]
      %v613 = vld [vmem:[%s169 + $0xda0] sm:$0xff]
      %v614 = vld [vmem:[%s169 + $0xda8] sm:$0xff]
      %v615 = vld [vmem:[%s169 + $0xdb0] sm:$0xff]
      %v616 = vld [vmem:[%s169 + $0xdb8] sm:$0xff]
      %v617 = vld [vmem:[%s169 + $0xdc0] sm:$0xff]
      %v618 = vld [vmem:[%s169 + $0xdc8] sm:$0xff]
      %v619 = vld [vmem:[%s169 + $0xdd0] sm:$0xff]
      %v620 = vld [vmem:[%s169 + $0xdd8] sm:$0xff]
      %v621 = vld [vmem:[%s169 + $0xde0] sm:$0xff]
      %v622 = vld [vmem:[%s169 + $0xde8] sm:$0xff]
      %v623 = vld [vmem:[%s169 + $0xdf0] sm:$0xff]
      %v624 = vld [vmem:[%s169 + $0xdf8] sm:$0xff]
      %v625 = vld [vmem:[%s169 + $0xe00] sm:$0xff]
      %v626 = vld [vmem:[%s169 + $0xe08] sm:$0xff]
      %v627 = vld [vmem:[%s1] sm:$0xf]
      %v628 = vld [vmem:[%s1 + $0x4] sm:$0xf]
      %v629 = vld [vmem:[%s1 + $0x8] sm:$0xf]
      %v630 = vld [vmem:[%s1 + $0xc] sm:$0xf]
      %v631 = vld [vmem:[%s1 + $0x10] sm:$0xf]
      %v632 = vld [vmem:[%s1 + $0x14] sm:$0xf]
      %v633 = vld [vmem:[%s1 + $0x18] sm:$0xf]
      %v634 = vld [vmem:[%s1 + $0x1c] sm:$0xf]
      %v635 = vld [vmem:[%s1 + $0x20] sm:$0xf]
      %v636 = vld [vmem:[%s1 + $0x24] sm:$0xf]
      %v637 = vld [vmem:[%s1 + $0x28] sm:$0xf]
      %v638 = vld [vmem:[%s1 + $0x2c] sm:$0xf]
      %v639 = vld [vmem:[%s1 + $0x30] sm:$0xf]
      %v640 = vld [vmem:[%s1 + $0x34] sm:$0xf]
      %v641 = vld [vmem:[%s1 + $0x38] sm:$0xf]
      %v642 = vld [vmem:[%s1 + $0x3c] sm:$0xf]
      %v643 = vld [vmem:[%s1 + $0x40] sm:$0xf]
      %v644 = vld [vmem:[%s1 + $0x44] sm:$0xf]
      %v645 = vld [vmem:[%s1 + $0x48] sm:$0xf]
      %v646 = vld [vmem:[%s1 + $0x4c] sm:$0xf]
      %v647 = vld [vmem:[%s1 + $0x50] sm:$0xf]
      %v648 = vld [vmem:[%s1 + $0x54] sm:$0xf]
      %v649 = vld [vmem:[%s1 + $0x58] sm:$0xf]
      %v650 = vld [vmem:[%s1 + $0x5c] sm:$0xf]
      %v651 = vld [vmem:[%s1 + $0x60] sm:$0xf]
      %v652 = vld [vmem:[%s1 + $0x64] sm:$0xf]
      %v653 = vld [vmem:[%s1 + $0x68] sm:$0xf]
      %v654 = vld [vmem:[%s1 + $0x6c] sm:$0xf]
      %v655 = vld [vmem:[%s1 + $0x70] sm:$0xf]
      %v656 = vld [vmem:[%s1 + $0x74] sm:$0xf]
      %v657 = vld [vmem:[%s1 + $0x78] sm:$0xf]
      %v658 = vld [vmem:[%s1 + $0x7c] sm:$0xf]
      %v659 = vld [vmem:[%s1 + $0x80] sm:$0xf]
      %v660 = vld [vmem:[%s1 + $0x84] sm:$0xf]
      %v661 = vld [vmem:[%s1 + $0x88] sm:$0xf]
      %v662 = vld [vmem:[%s1 + $0x8c] sm:$0xf]
      %v663 = vld [vmem:[%s1 + $0x90] sm:$0xf]
      %v664 = vld [vmem:[%s1 + $0x94] sm:$0xf]
      %v665 = vld [vmem:[%s1 + $0x98] sm:$0xf]
      %v666 = vld [vmem:[%s1 + $0x9c] sm:$0xf]
      %v667 = vld [vmem:[%s1 + $0xa0] sm:$0xf]
      %v668 = vld [vmem:[%s1 + $0xa4] sm:$0xf]
      %v669 = vld [vmem:[%s1 + $0xa8] sm:$0xf]
      %v670 = vld [vmem:[%s1 + $0xac] sm:$0xf]
      %v671 = vld [vmem:[%s1 + $0xb0] sm:$0xf]
      %v672 = vld [vmem:[%s1 + $0xb4] sm:$0xf]
      %v673 = vld [vmem:[%s1 + $0xb8] sm:$0xf]
      %v674 = vld [vmem:[%s1 + $0xbc] sm:$0xf]
      %v675 = vld [vmem:[%s1 + $0xc0] sm:$0xf]
      %v676 = vld [vmem:[%s1 + $0xc4] sm:$0xf]
      %v677 = vld [vmem:[%s1 + $0xc8] sm:$0xf]
      %v678 = vld [vmem:[%s1 + $0xcc] sm:$0xf]
      %v679 = vld [vmem:[%s1 + $0xd0] sm:$0xf]
      %v680 = vld [vmem:[%s1 + $0xd4] sm:$0xf]
      %v681 = vld [vmem:[%s1 + $0xd8] sm:$0xf]
      %v682 = vld [vmem:[%s1 + $0xdc] sm:$0xf]
      %v683 = vld [vmem:[%s1 + $0xe0] sm:$0xf]
      %v684 = vld [vmem:[%s1 + $0xe4] sm:$0xf]
      %v685 = vld [vmem:[%s1 + $0xe8] sm:$0xf]
      %v686 = vld [vmem:[%s1 + $0xec] sm:$0xf]
      %v687 = vld [vmem:[%s1 + $0xf0] sm:$0xf]
      %v688 = vld [vmem:[%s1 + $0xf4] sm:$0xf]
      %v689 = vld [vmem:[%s1 + $0xf8] sm:$0xf]
      %v690 = vld [vmem:[%s1 + $0xfc] sm:$0xf]
      %v691 = vld [vmem:[%s1 + $0x100] sm:$0xf]
      %v692 = vld [vmem:[%s1 + $0x104] sm:$0xf]
      %v693 = vld [vmem:[%s1 + $0x108] sm:$0xf]
      %v694 = vld [vmem:[%s1 + $0x10c] sm:$0xf]
      %v695 = vld [vmem:[%s1 + $0x110] sm:$0xf]
      %v696 = vld [vmem:[%s1 + $0x114] sm:$0xf]
      %v697 = vld [vmem:[%s1 + $0x118] sm:$0xf]
      %v698 = vld [vmem:[%s1 + $0x11c] sm:$0xf]
      %v699 = vld [vmem:[%s1 + $0x120] sm:$0xf]
      %v700 = vld [vmem:[%s1 + $0x124] sm:$0xf]
      %v701 = vld [vmem:[%s1 + $0x128] sm:$0xf]
      %v702 = vld [vmem:[%s1 + $0x12c] sm:$0xf]
      %v703 = vld [vmem:[%s1 + $0x130] sm:$0xf]
      %v704 = vld [vmem:[%s1 + $0x134] sm:$0xf]
      %v705 = vld [vmem:[%s1 + $0x138] sm:$0xf]
      %v706 = vld [vmem:[%s1 + $0x13c] sm:$0xf]
      %v707 = vld [vmem:[%s1 + $0x140] sm:$0xf]
      %v708 = vld [vmem:[%s1 + $0x144] sm:$0xf]
      %v709 = vld [vmem:[%s1 + $0x148] sm:$0xf]
      %v710 = vld [vmem:[%s1 + $0x14c] sm:$0xf]
      %v711 = vld [vmem:[%s1 + $0x150] sm:$0xf]
      %v712 = vld [vmem:[%s1 + $0x154] sm:$0xf]
      %v713 = vld [vmem:[%s1 + $0x158] sm:$0xf]
      %v714 = vld [vmem:[%s1 + $0x15c] sm:$0xf]
      %v715 = vld [vmem:[%s1 + $0x160] sm:$0xf]
      %v716 = vld [vmem:[%s1 + $0x164] sm:$0xf]
      %v717 = vld [vmem:[%s1 + $0x168] sm:$0xf]
      %v718 = vld [vmem:[%s1 + $0x16c] sm:$0xf]
      %v719 = vld [vmem:[%s1 + $0x170] sm:$0xf]
      %v720 = vld [vmem:[%s1 + $0x174] sm:$0xf]
      %v721 = vld [vmem:[%s1 + $0x178] sm:$0xf]
      %v722 = vld [vmem:[%s1 + $0x17c] sm:$0xf]
      %v723 = vld [vmem:[%s1 + $0x180] sm:$0xf]
      %v724 = vld [vmem:[%s1 + $0x184] sm:$0xf]
      %v725 = vld [vmem:[%s1 + $0x188] sm:$0xf]
      %v726 = vld [vmem:[%s1 + $0x18c] sm:$0xf]
      %v727 = vld [vmem:[%s1 + $0x190] sm:$0xf]
      %v728 = vld [vmem:[%s1 + $0x194] sm:$0xf]
      %v729 = vld [vmem:[%s1 + $0x198] sm:$0xf]
      %v730 = vld [vmem:[%s1 + $0x19c] sm:$0xf]
      %v731 = vld [vmem:[%s1 + $0x1a0] sm:$0xf]
      %v732 = vld [vmem:[%s1 + $0x1a4] sm:$0xf]
      %v733 = vld [vmem:[%s1 + $0x1a8] sm:$0xf]
      %v734 = vld [vmem:[%s1 + $0x1ac] sm:$0xf]
      %v735 = vld [vmem:[%s1 + $0x1b0] sm:$0xf]
      %v736 = vld [vmem:[%s1 + $0x1b4] sm:$0xf]
      %v737 = vld [vmem:[%s1 + $0x1b8] sm:$0xf]
      %v738 = vld [vmem:[%s1 + $0x1bc] sm:$0xf]
      %v739 = vld [vmem:[%s1 + $0x1c0] sm:$0xf]
      %v740 = vld [vmem:[%s1 + $0x1c4] sm:$0xf]
      %v741 = vld [vmem:[%s1 + $0x1c8] sm:$0xf]
      %v742 = vld [vmem:[%s1 + $0x1cc] sm:$0xf]
      %v743 = vld [vmem:[%s1 + $0x1d0] sm:$0xf]
      %v744 = vld [vmem:[%s1 + $0x1d4] sm:$0xf]
      %v745 = vld [vmem:[%s1 + $0x1d8] sm:$0xf]
      %v746 = vld [vmem:[%s1 + $0x1dc] sm:$0xf]
      %v747 = vld [vmem:[%s1 + $0x1e0] sm:$0xf]
      %v748 = vld [vmem:[%s1 + $0x1e4] sm:$0xf]
      %v749 = vld [vmem:[%s1 + $0x1e8] sm:$0xf]
      %v750 = vld [vmem:[%s1 + $0x1ec] sm:$0xf]
      %v751 = vld [vmem:[%s1 + $0x1f0] sm:$0xf]
      %v752 = vld [vmem:[%s1 + $0x1f4] sm:$0xf]
      %v753 = vld [vmem:[%s1 + $0x1f8] sm:$0xf]
      %v754 = vld [vmem:[%s1 + $0x1fc] sm:$0xf]
      %v755 = vld [vmem:[%s1 + $0x200] sm:$0xf]
      %v756 = vld [vmem:[%s1 + $0x204] sm:$0xf]
      %v757 = vld [vmem:[%s1 + $0x208] sm:$0xf]
      %v758 = vld [vmem:[%s1 + $0x20c] sm:$0xf]
      %v759 = vld [vmem:[%s1 + $0x210] sm:$0xf]
      %v760 = vld [vmem:[%s1 + $0x214] sm:$0xf]
      %v761 = vld [vmem:[%s1 + $0x218] sm:$0xf]
      %v762 = vld [vmem:[%s1 + $0x21c] sm:$0xf]
      %v763 = vld [vmem:[%s1 + $0x220] sm:$0xf]
      %v764 = vld [vmem:[%s1 + $0x224] sm:$0xf]
      %v765 = vld [vmem:[%s1 + $0x228] sm:$0xf]
      %v766 = vld [vmem:[%s1 + $0x22c] sm:$0xf]
      %v767 = vld [vmem:[%s1 + $0x230] sm:$0xf]
      %v768 = vld [vmem:[%s1 + $0x234] sm:$0xf]
      %v769 = vld [vmem:[%s1 + $0x238] sm:$0xf]
      %v770 = vld [vmem:[%s1 + $0x23c] sm:$0xf]
      %v771 = vld [vmem:[%s1 + $0x240] sm:$0xf]
      %v772 = vld [vmem:[%s1 + $0x244] sm:$0xf]
      %v773 = vld [vmem:[%s1 + $0x248] sm:$0xf]
      %v774 = vld [vmem:[%s1 + $0x24c] sm:$0xf]
      %v775 = vld [vmem:[%s1 + $0x250] sm:$0xf]
      %v776 = vld [vmem:[%s1 + $0x254] sm:$0xf]
      %v777 = vld [vmem:[%s1 + $0x258] sm:$0xf]
      %v778 = vld [vmem:[%s1 + $0x25c] sm:$0xf]
      %v779 = vld [vmem:[%s1 + $0x260] sm:$0xf]
      %v780 = vld [vmem:[%s1 + $0x264] sm:$0xf]
      %v781 = vld [vmem:[%s1 + $0x268] sm:$0xf]
      %v782 = vld [vmem:[%s1 + $0x26c] sm:$0xf]
      %v783 = vld [vmem:[%s1 + $0x270] sm:$0xf]
      %v784 = vld [vmem:[%s1 + $0x274] sm:$0xf]
      %v785 = vld [vmem:[%s1 + $0x278] sm:$0xf]
      %v786 = vld [vmem:[%s1 + $0x27c] sm:$0xf]
      %v787 = vld [vmem:[%s1 + $0x280] sm:$0xf]
      %v788 = vld [vmem:[%s1 + $0x284] sm:$0xf]
      %v789 = vld [vmem:[%s1 + $0x288] sm:$0xf]
      %v790 = vld [vmem:[%s1 + $0x28c] sm:$0xf]
      %v791 = vld [vmem:[%s1 + $0x290] sm:$0xf]
      %v792 = vld [vmem:[%s1 + $0x294] sm:$0xf]
      %v793 = vld [vmem:[%s1 + $0x298] sm:$0xf]
      %v794 = vld [vmem:[%s1 + $0x29c] sm:$0xf]
      %v795 = vld [vmem:[%s1 + $0x2a0] sm:$0xf]
      %v796 = vld [vmem:[%s1 + $0x2a4] sm:$0xf]
      %v797 = vld [vmem:[%s1 + $0x2a8] sm:$0xf]
      %v798 = vld [vmem:[%s1 + $0x2ac] sm:$0xf]
      %v799 = vld [vmem:[%s1 + $0x2b0] sm:$0xf]
      %v800 = vld [vmem:[%s1 + $0x2b4] sm:$0xf]
      %v801 = vld [vmem:[%s1 + $0x2b8] sm:$0xf]
      %v802 = vld [vmem:[%s1 + $0x2bc] sm:$0xf]
      %v803 = vld [vmem:[%s1 + $0x2c0] sm:$0xf]
      %v804 = vld [vmem:[%s1 + $0x2c4] sm:$0xf]
      %v805 = vld [vmem:[%s1 + $0x2c8] sm:$0xf]
      %v806 = vld [vmem:[%s1 + $0x2cc] sm:$0xf]
      %v807 = vld [vmem:[%s1 + $0x2d0] sm:$0xf]
      %v808 = vld [vmem:[%s1 + $0x2d4] sm:$0xf]
      %v809 = vld [vmem:[%s1 + $0x2d8] sm:$0xf]
      %v810 = vld [vmem:[%s1 + $0x2dc] sm:$0xf]
      %v811 = vld [vmem:[%s1 + $0x2e0] sm:$0xf]
      %v812 = vld [vmem:[%s1 + $0x2e4] sm:$0xf]
      %v813 = vld [vmem:[%s1 + $0x2e8] sm:$0xf]
      %v814 = vld [vmem:[%s1 + $0x2ec] sm:$0xf]
      %v815 = vld [vmem:[%s1 + $0x2f0] sm:$0xf]
      %v816 = vld [vmem:[%s1 + $0x2f4] sm:$0xf]
      %v817 = vld [vmem:[%s1 + $0x2f8] sm:$0xf]
      %v818 = vld [vmem:[%s1 + $0x2fc] sm:$0xf]
      %v819 = vld [vmem:[%s1 + $0x300] sm:$0xf]
      %v820 = vld [vmem:[%s1 + $0x304] sm:$0xf]
      %v821 = vld [vmem:[%s1 + $0x308] sm:$0xf]
      %v822 = vld [vmem:[%s1 + $0x30c] sm:$0xf]
      %v823 = vld [vmem:[%s1 + $0x310] sm:$0xf]
      %v824 = vld [vmem:[%s1 + $0x314] sm:$0xf]
      %v825 = vld [vmem:[%s1 + $0x318] sm:$0xf]
      %v826 = vld [vmem:[%s1 + $0x31c] sm:$0xf]
      %v827 = vld [vmem:[%s1 + $0x320] sm:$0xf]
      %v828 = vld [vmem:[%s1 + $0x324] sm:$0xf]
      %v829 = vld [vmem:[%s1 + $0x328] sm:$0xf]
      %v830 = vld [vmem:[%s1 + $0x32c] sm:$0xf]
      %v831 = vld [vmem:[%s1 + $0x330] sm:$0xf]
      %v832 = vld [vmem:[%s1 + $0x334] sm:$0xf]
      %v833 = vld [vmem:[%s1 + $0x338] sm:$0xf]
      %v834 = vld [vmem:[%s1 + $0x33c] sm:$0xf]
      %v835 = vld [vmem:[%s1 + $0x340] sm:$0xf]
      %v836 = vld [vmem:[%s1 + $0x344] sm:$0xf]
      %v837 = vld [vmem:[%s1 + $0x348] sm:$0xf]
      %v838 = vld [vmem:[%s1 + $0x34c] sm:$0xf]
      %v839 = vld [vmem:[%s1 + $0x350] sm:$0xf]
      %v840 = vld [vmem:[%s1 + $0x354] sm:$0xf]
      %v841 = vld [vmem:[%s1 + $0x358] sm:$0xf]
      %v842 = vld [vmem:[%s1 + $0x35c] sm:$0xf]
      %v843 = vld [vmem:[%s1 + $0x360] sm:$0xf]
      %v844 = vld [vmem:[%s1 + $0x364] sm:$0xf]
      %v845 = vld [vmem:[%s1 + $0x368] sm:$0xf]
      %v846 = vld [vmem:[%s1 + $0x36c] sm:$0xf]
      %v847 = vld [vmem:[%s1 + $0x370] sm:$0xf]
      %v848 = vld [vmem:[%s1 + $0x374] sm:$0xf]
      %v849 = vld [vmem:[%s1 + $0x378] sm:$0xf]
      %v850 = vld [vmem:[%s1 + $0x37c] sm:$0xf]
      %v851 = vld [vmem:[%s1 + $0x380] sm:$0xf]
      %v852 = vld [vmem:[%s1 + $0x384] sm:$0xf]
      %v853 = vld [vmem:[%s1 + $0x388] sm:$0xf]
      %v854 = vld [vmem:[%s1 + $0x38c] sm:$0xf]
      %v855 = vld [vmem:[%s1 + $0x390] sm:$0xf]
      %v856 = vld [vmem:[%s1 + $0x394] sm:$0xf]
      %v857 = vld [vmem:[%s1 + $0x398] sm:$0xf]
      %v858 = vld [vmem:[%s1 + $0x39c] sm:$0xf]
      %v859 = vld [vmem:[%s1 + $0x3a0] sm:$0xf]
      %v860 = vld [vmem:[%s1 + $0x3a4] sm:$0xf]
      %v861 = vld [vmem:[%s1 + $0x3a8] sm:$0xf]
      %v862 = vld [vmem:[%s1 + $0x3ac] sm:$0xf]
      %v863 = vld [vmem:[%s1 + $0x3b0] sm:$0xf]
      %v864 = vld [vmem:[%s1 + $0x3b4] sm:$0xf]
      %v865 = vld [vmem:[%s1 + $0x3b8] sm:$0xf]
      %v866 = vld [vmem:[%s1 + $0x3bc] sm:$0xf]
      %v867 = vld [vmem:[%s1 + $0x3c0] sm:$0xf]
      %v868 = vld [vmem:[%s1 + $0x3c4] sm:$0xf]
      %v869 = vld [vmem:[%s1 + $0x3c8] sm:$0xf]
      %v870 = vld [vmem:[%s1 + $0x3cc] sm:$0xf]
      %v871 = vld [vmem:[%s1 + $0x3d0] sm:$0xf]
      %v872 = vld [vmem:[%s1 + $0x3d4] sm:$0xf]
      %v873 = vld [vmem:[%s1 + $0x3d8] sm:$0xf]
      %v874 = vld [vmem:[%s1 + $0x3dc] sm:$0xf]
      %v875 = vld [vmem:[%s1 + $0x3e0] sm:$0xf]
      %v876 = vld [vmem:[%s1 + $0x3e4] sm:$0xf]
      %v877 = vld [vmem:[%s1 + $0x3e8] sm:$0xf]
      %v878 = vld [vmem:[%s1 + $0x3ec] sm:$0xf]
      %v879 = vld [vmem:[%s1 + $0x3f0] sm:$0xf]
      %v880 = vld [vmem:[%s1 + $0x3f4] sm:$0xf]
      %v881 = vld [vmem:[%s1 + $0x3f8] sm:$0xf]
      %v882 = vld [vmem:[%s1 + $0x3fc] sm:$0xf]
      %v883 = vld [vmem:[%s1 + $0x400] sm:$0xf]
      %v884 = vld [vmem:[%s1 + $0x404] sm:$0xf]
      %v885 = vld [vmem:[%s1 + $0x408] sm:$0xf]
      %v886 = vld [vmem:[%s1 + $0x40c] sm:$0xf]
      %v887 = vld [vmem:[%s1 + $0x410] sm:$0xf]
      %v888 = vld [vmem:[%s1 + $0x414] sm:$0xf]
      %v889 = vld [vmem:[%s1 + $0x418] sm:$0xf]
      %v890 = vld [vmem:[%s1 + $0x41c] sm:$0xf]
      %v891 = vld [vmem:[%s1 + $0x420] sm:$0xf]
      %v892 = vld [vmem:[%s1 + $0x424] sm:$0xf]
      %v893 = vld [vmem:[%s1 + $0x428] sm:$0xf]
      %v894 = vld [vmem:[%s1 + $0x42c] sm:$0xf]
      %v895 = vld [vmem:[%s1 + $0x430] sm:$0xf]
      %v896 = vld [vmem:[%s1 + $0x434] sm:$0xf]
      %v897 = vld [vmem:[%s1 + $0x438] sm:$0xf]
      %v898 = vld [vmem:[%s1 + $0x43c] sm:$0xf]
      %v899 = vld [vmem:[%s1 + $0x440] sm:$0xf]
      %v900 = vld [vmem:[%s1 + $0x444] sm:$0xf]
      %v901 = vld [vmem:[%s1 + $0x448] sm:$0xf]
      %v902 = vld [vmem:[%s1 + $0x44c] sm:$0xf]
      %v903 = vld [vmem:[%s1 + $0x450] sm:$0xf]
      %v904 = vld [vmem:[%s1 + $0x454] sm:$0xf]
      %v905 = vld [vmem:[%s1 + $0x458] sm:$0xf]
      %v906 = vld [vmem:[%s1 + $0x45c] sm:$0xf]
      %v907 = vld [vmem:[%s1 + $0x460] sm:$0xf]
      %v908 = vld [vmem:[%s1 + $0x464] sm:$0xf]
      %v909 = vld [vmem:[%s1 + $0x468] sm:$0xf]
      %v910 = vld [vmem:[%s1 + $0x46c] sm:$0xf]
      %v911 = vld [vmem:[%s1 + $0x470] sm:$0xf]
      %v912 = vld [vmem:[%s1 + $0x474] sm:$0xf]
      %v913 = vld [vmem:[%s1 + $0x478] sm:$0xf]
      %v914 = vld [vmem:[%s1 + $0x47c] sm:$0xf]
      %v915 = vld [vmem:[%s2] sm:$0x1]
      %v917 = vperm.slane %v915, 0
      %v1369 = vunpack.c.l.b16 %v177
      %v1370 = vunpack.c.h.b16 %v177
      %v1371 = vunpack.c.l.b16 %v178
      %v1372 = vunpack.c.h.b16 %v178
      %v1373 = vunpack.c.l.b16 %v179
      %v1374 = vunpack.c.h.b16 %v179
      %v1375 = vunpack.c.l.b16 %v180
      %v1376 = vunpack.c.h.b16 %v180
      %v1377 = vunpack.c.l.b16 %v181
      %v1378 = vunpack.c.h.b16 %v181
      %v1379 = vunpack.c.l.b16 %v182
      %v1380 = vunpack.c.h.b16 %v182
      %v1381 = vunpack.c.l.b16 %v183
      %v1382 = vunpack.c.h.b16 %v183
      %v1383 = vunpack.c.l.b16 %v184
      %v1384 = vunpack.c.h.b16 %v184
      %v1385 = vunpack.c.l.b16 %v185
      %v1386 = vunpack.c.h.b16 %v185
      %v1387 = vunpack.c.l.b16 %v186
      %v1388 = vunpack.c.h.b16 %v186
      %v1389 = vunpack.c.l.b16 %v187
      %v1390 = vunpack.c.h.b16 %v187
      %v1391 = vunpack.c.l.b16 %v188
      %v1392 = vunpack.c.h.b16 %v188
      %v1393 = vunpack.c.l.b16 %v189
      %v1394 = vunpack.c.h.b16 %v189
      %v1395 = vunpack.c.l.b16 %v190
      %v1396 = vunpack.c.h.b16 %v190
      %v1397 = vunpack.c.l.b16 %v191
      %v1398 = vunpack.c.h.b16 %v191
      %v1399 = vunpack.c.l.b16 %v192
      %v1400 = vunpack.c.h.b16 %v192
      %v1401 = vunpack.c.l.b16 %v193
      %v1402 = vunpack.c.h.b16 %v193
      %v1403 = vunpack.c.l.b16 %v194
      %v1404 = vunpack.c.h.b16 %v194
      %v1405 = vunpack.c.l.b16 %v195
      %v1406 = vunpack.c.h.b16 %v195
      %v1407 = vunpack.c.l.b16 %v196
      %v1408 = vunpack.c.h.b16 %v196
      %v1409 = vunpack.c.l.b16 %v197
      %v1410 = vunpack.c.h.b16 %v197
      %v1411 = vunpack.c.l.b16 %v198
      %v1412 = vunpack.c.h.b16 %v198
      %v1413 = vunpack.c.l.b16 %v199
      %v1414 = vunpack.c.h.b16 %v199
      %v1415 = vunpack.c.l.b16 %v200
      %v1416 = vunpack.c.h.b16 %v200
      %v1417 = vunpack.c.l.b16 %v201
      %v1418 = vunpack.c.h.b16 %v201
      %v1419 = vunpack.c.l.b16 %v202
      %v1420 = vunpack.c.h.b16 %v202
      %v1421 = vunpack.c.l.b16 %v203
      %v1422 = vunpack.c.h.b16 %v203
      %v1423 = vunpack.c.l.b16 %v204
      %v1424 = vunpack.c.h.b16 %v204
      %v1425 = vunpack.c.l.b16 %v205
      %v1426 = vunpack.c.h.b16 %v205
      %v1427 = vunpack.c.l.b16 %v206
      %v1428 = vunpack.c.h.b16 %v206
      %v1429 = vunpack.c.l.b16 %v207
      %v1430 = vunpack.c.h.b16 %v207
      %v1431 = vunpack.c.l.b16 %v208
      %v1432 = vunpack.c.h.b16 %v208
      %v1433 = vunpack.c.l.b16 %v209
      %v1434 = vunpack.c.h.b16 %v209
      %v1435 = vunpack.c.l.b16 %v210
      %v1436 = vunpack.c.h.b16 %v210
      %v1437 = vunpack.c.l.b16 %v211
      %v1438 = vunpack.c.h.b16 %v211
      %v1439 = vunpack.c.l.b16 %v212
      %v1440 = vunpack.c.h.b16 %v212
      %v1441 = vunpack.c.l.b16 %v213
      %v1442 = vunpack.c.h.b16 %v213
      %v1443 = vunpack.c.l.b16 %v214
      %v1444 = vunpack.c.h.b16 %v214
      %v1445 = vunpack.c.l.b16 %v215
      %v1446 = vunpack.c.h.b16 %v215
      %v1447 = vunpack.c.l.b16 %v216
      %v1448 = vunpack.c.h.b16 %v216
      %v1449 = vunpack.c.l.b16 %v217
      %v1450 = vunpack.c.h.b16 %v217
      %v1451 = vunpack.c.l.b16 %v218
      %v1452 = vunpack.c.h.b16 %v218
      %v1453 = vunpack.c.l.b16 %v219
      %v1454 = vunpack.c.h.b16 %v219
      %v1455 = vunpack.c.l.b16 %v220
      %v1456 = vunpack.c.h.b16 %v220
      %v1457 = vunpack.c.l.b16 %v221
      %v1458 = vunpack.c.h.b16 %v221
      %v1459 = vunpack.c.l.b16 %v222
      %v1460 = vunpack.c.h.b16 %v222
      %v1461 = vunpack.c.l.b16 %v223
      %v1462 = vunpack.c.h.b16 %v223
      %v1463 = vunpack.c.l.b16 %v224
      %v1464 = vunpack.c.h.b16 %v224
      %v1465 = vunpack.c.l.b16 %v225
      %v1466 = vunpack.c.h.b16 %v225
      %v1467 = vunpack.c.l.b16 %v226
      %v1468 = vunpack.c.h.b16 %v226
      %v1469 = vunpack.c.l.b16 %v227
      %v1470 = vunpack.c.h.b16 %v227
      %v1471 = vunpack.c.l.b16 %v228
      %v1472 = vunpack.c.h.b16 %v228
      %v1473 = vunpack.c.l.b16 %v229
      %v1474 = vunpack.c.h.b16 %v229
      %v1475 = vunpack.c.l.b16 %v230
      %v1476 = vunpack.c.h.b16 %v230
      %v1477 = vunpack.c.l.b16 %v231
      %v1478 = vunpack.c.h.b16 %v231
      %v1479 = vunpack.c.l.b16 %v232
      %v1480 = vunpack.c.h.b16 %v232
      %v1481 = vunpack.c.l.b16 %v233
      %v1482 = vunpack.c.h.b16 %v233
      %v1483 = vunpack.c.l.b16 %v234
      %v1484 = vunpack.c.h.b16 %v234
      %v1485 = vunpack.c.l.b16 %v235
      %v1486 = vunpack.c.h.b16 %v235
      %v1487 = vunpack.c.l.b16 %v236
      %v1488 = vunpack.c.h.b16 %v236
      %v1489 = vunpack.c.l.b16 %v237
      %v1490 = vunpack.c.h.b16 %v237
      %v1491 = vunpack.c.l.b16 %v238
      %v1492 = vunpack.c.h.b16 %v238
      %v1493 = vunpack.c.l.b16 %v239
      %v1494 = vunpack.c.h.b16 %v239
      %v1495 = vunpack.c.l.b16 %v240
      %v1496 = vunpack.c.h.b16 %v240
      %v1497 = vunpack.c.l.b16 %v241
      %v1498 = vunpack.c.h.b16 %v241
      %v1499 = vunpack.c.l.b16 %v242
      %v1500 = vunpack.c.h.b16 %v242
      %v1501 = vunpack.c.l.b16 %v243
      %v1502 = vunpack.c.h.b16 %v243
      %v1503 = vunpack.c.l.b16 %v244
      %v1504 = vunpack.c.h.b16 %v244
      %v1505 = vunpack.c.l.b16 %v245
      %v1506 = vunpack.c.h.b16 %v245
      %v1507 = vunpack.c.l.b16 %v246
      %v1508 = vunpack.c.h.b16 %v246
      %v1509 = vunpack.c.l.b16 %v247
      %v1510 = vunpack.c.h.b16 %v247
      %v1511 = vunpack.c.l.b16 %v248
      %v1512 = vunpack.c.h.b16 %v248
      %v1513 = vunpack.c.l.b16 %v249
      %v1514 = vunpack.c.h.b16 %v249
      %v1515 = vunpack.c.l.b16 %v250
      %v1516 = vunpack.c.h.b16 %v250
      %v1517 = vunpack.c.l.b16 %v251
      %v1518 = vunpack.c.h.b16 %v251
      %v1519 = vunpack.c.l.b16 %v252
      %v1520 = vunpack.c.h.b16 %v252
      %v1521 = vunpack.c.l.b16 %v253
      %v1522 = vunpack.c.h.b16 %v253
      %v1523 = vunpack.c.l.b16 %v254
      %v1524 = vunpack.c.h.b16 %v254
      %v1525 = vunpack.c.l.b16 %v255
      %v1526 = vunpack.c.h.b16 %v255
      %v1527 = vunpack.c.l.b16 %v256
      %v1528 = vunpack.c.h.b16 %v256
      %v1529 = vunpack.c.l.b16 %v257
      %v1530 = vunpack.c.h.b16 %v257
      %v1531 = vunpack.c.l.b16 %v258
      %v1532 = vunpack.c.h.b16 %v258
      %v1533 = vunpack.c.l.b16 %v259
      %v1534 = vunpack.c.h.b16 %v259
      %v1535 = vunpack.c.l.b16 %v260
      %v1536 = vunpack.c.h.b16 %v260
      %v1537 = vunpack.c.l.b16 %v261
      %v1538 = vunpack.c.h.b16 %v261
      %v1539 = vunpack.c.l.b16 %v262
      %v1540 = vunpack.c.h.b16 %v262
      %v1541 = vunpack.c.l.b16 %v263
      %v1542 = vunpack.c.h.b16 %v263
      %v1543 = vunpack.c.l.b16 %v264
      %v1544 = vunpack.c.h.b16 %v264
      %v1545 = vunpack.c.l.b16 %v265
      %v1546 = vunpack.c.h.b16 %v265
      %v1547 = vunpack.c.l.b16 %v266
      %v1548 = vunpack.c.h.b16 %v266
      %v1549 = vunpack.c.l.b16 %v267
      %v1550 = vunpack.c.h.b16 %v267
      %v1551 = vunpack.c.l.b16 %v268
      %v1552 = vunpack.c.h.b16 %v268
      %v1553 = vunpack.c.l.b16 %v269
      %v1554 = vunpack.c.h.b16 %v269
      %v1555 = vunpack.c.l.b16 %v270
      %v1556 = vunpack.c.h.b16 %v270
      %v1557 = vunpack.c.l.b16 %v271
      %v1558 = vunpack.c.h.b16 %v271
      %v1559 = vunpack.c.l.b16 %v272
      %v1560 = vunpack.c.h.b16 %v272
      %v1561 = vunpack.c.l.b16 %v273
      %v1562 = vunpack.c.h.b16 %v273
      %v1563 = vunpack.c.l.b16 %v274
      %v1564 = vunpack.c.h.b16 %v274
      %v1565 = vunpack.c.l.b16 %v275
      %v1566 = vunpack.c.h.b16 %v275
      %v1567 = vunpack.c.l.b16 %v276
      %v1568 = vunpack.c.h.b16 %v276
      %v1569 = vunpack.c.l.b16 %v277
      %v1570 = vunpack.c.h.b16 %v277
      %v1571 = vunpack.c.l.b16 %v278
      %v1572 = vunpack.c.h.b16 %v278
      %v1573 = vunpack.c.l.b16 %v279
      %v1574 = vunpack.c.h.b16 %v279
      %v1575 = vunpack.c.l.b16 %v280
      %v1576 = vunpack.c.h.b16 %v280
      %v1577 = vunpack.c.l.b16 %v281
      %v1578 = vunpack.c.h.b16 %v281
      %v1579 = vunpack.c.l.b16 %v282
      %v1580 = vunpack.c.h.b16 %v282
      %v1581 = vunpack.c.l.b16 %v283
      %v1582 = vunpack.c.h.b16 %v283
      %v1583 = vunpack.c.l.b16 %v284
      %v1584 = vunpack.c.h.b16 %v284
      %v1585 = vunpack.c.l.b16 %v285
      %v1586 = vunpack.c.h.b16 %v285
      %v1587 = vunpack.c.l.b16 %v286
      %v1588 = vunpack.c.h.b16 %v286
      %v1589 = vunpack.c.l.b16 %v287
      %v1590 = vunpack.c.h.b16 %v287
      %v1591 = vunpack.c.l.b16 %v288
      %v1592 = vunpack.c.h.b16 %v288
      %v1593 = vunpack.c.l.b16 %v289
      %v1594 = vunpack.c.h.b16 %v289
      %v1595 = vunpack.c.l.b16 %v290
      %v1596 = vunpack.c.h.b16 %v290
      %v1597 = vunpack.c.l.b16 %v291
      %v1598 = vunpack.c.h.b16 %v291
      %v1599 = vunpack.c.l.b16 %v292
      %v1600 = vunpack.c.h.b16 %v292
      %v1601 = vunpack.c.l.b16 %v293
      %v1602 = vunpack.c.h.b16 %v293
      %v1603 = vunpack.c.l.b16 %v294
      %v1604 = vunpack.c.h.b16 %v294
      %v1605 = vunpack.c.l.b16 %v295
      %v1606 = vunpack.c.h.b16 %v295
      %v1607 = vunpack.c.l.b16 %v296
      %v1608 = vunpack.c.h.b16 %v296
      %v1609 = vunpack.c.l.b16 %v297
      %v1610 = vunpack.c.h.b16 %v297
      %v1611 = vunpack.c.l.b16 %v298
      %v1612 = vunpack.c.h.b16 %v298
      %v1613 = vunpack.c.l.b16 %v299
      %v1614 = vunpack.c.h.b16 %v299
      %v1615 = vunpack.c.l.b16 %v300
      %v1616 = vunpack.c.h.b16 %v300
      %v1617 = vunpack.c.l.b16 %v301
      %v1618 = vunpack.c.h.b16 %v301
      %v1619 = vunpack.c.l.b16 %v302
      %v1620 = vunpack.c.h.b16 %v302
      %v1621 = vunpack.c.l.b16 %v303
      %v1622 = vunpack.c.h.b16 %v303
      %v1623 = vunpack.c.l.b16 %v304
      %v1624 = vunpack.c.h.b16 %v304
      %v1625 = vunpack.c.l.b16 %v305
      %v1626 = vunpack.c.h.b16 %v305
      %v1627 = vunpack.c.l.b16 %v306
      %v1628 = vunpack.c.h.b16 %v306
      %v1629 = vunpack.c.l.b16 %v307
      %v1630 = vunpack.c.h.b16 %v307
      %v1631 = vunpack.c.l.b16 %v308
      %v1632 = vunpack.c.h.b16 %v308
      %v1633 = vunpack.c.l.b16 %v309
      %v1634 = vunpack.c.h.b16 %v309
      %v1635 = vunpack.c.l.b16 %v310
      %v1636 = vunpack.c.h.b16 %v310
      %v1637 = vunpack.c.l.b16 %v311
      %v1638 = vunpack.c.h.b16 %v311
      %v1639 = vunpack.c.l.b16 %v312
      %v1640 = vunpack.c.h.b16 %v312
      %v1641 = vunpack.c.l.b16 %v313
      %v1642 = vunpack.c.h.b16 %v313
      %v1643 = vunpack.c.l.b16 %v314
      %v1644 = vunpack.c.h.b16 %v314
      %v1645 = vunpack.c.l.b16 %v315
      %v1646 = vunpack.c.h.b16 %v315
      %v1647 = vunpack.c.l.b16 %v316
      %v1648 = vunpack.c.h.b16 %v316
      %v1649 = vunpack.c.l.b16 %v317
      %v1650 = vunpack.c.h.b16 %v317
      %v1651 = vunpack.c.l.b16 %v318
      %v1652 = vunpack.c.h.b16 %v318
      %v1653 = vunpack.c.l.b16 %v319
      %v1654 = vunpack.c.h.b16 %v319
      %v1655 = vunpack.c.l.b16 %v320
      %v1656 = vunpack.c.h.b16 %v320
      %v1657 = vunpack.c.l.b16 %v321
      %v1658 = vunpack.c.h.b16 %v321
      %v1659 = vunpack.c.l.b16 %v322
      %v1660 = vunpack.c.h.b16 %v322
      %v1661 = vunpack.c.l.b16 %v323
      %v1662 = vunpack.c.h.b16 %v323
      %v1663 = vunpack.c.l.b16 %v324
      %v1664 = vunpack.c.h.b16 %v324
      %v1665 = vunpack.c.l.b16 %v325
      %v1666 = vunpack.c.h.b16 %v325
      %v1667 = vunpack.c.l.b16 %v326
      %v1668 = vunpack.c.h.b16 %v326
      %v1669 = vunpack.c.l.b16 %v327
      %v1670 = vunpack.c.h.b16 %v327
      %v1671 = vunpack.c.l.b16 %v328
      %v1672 = vunpack.c.h.b16 %v328
      %v1673 = vunpack.c.l.b16 %v329
      %v1674 = vunpack.c.h.b16 %v329
      %v1675 = vunpack.c.l.b16 %v330
      %v1676 = vunpack.c.h.b16 %v330
      %v1677 = vunpack.c.l.b16 %v331
      %v1678 = vunpack.c.h.b16 %v331
      %v1679 = vunpack.c.l.b16 %v332
      %v1680 = vunpack.c.h.b16 %v332
      %v1681 = vunpack.c.l.b16 %v333
      %v1682 = vunpack.c.h.b16 %v333
      %v1683 = vunpack.c.l.b16 %v334
      %v1684 = vunpack.c.h.b16 %v334
      %v1685 = vunpack.c.l.b16 %v335
      %v1686 = vunpack.c.h.b16 %v335
      %v1687 = vunpack.c.l.b16 %v336
      %v1688 = vunpack.c.h.b16 %v336
      %v1689 = vunpack.c.l.b16 %v337
      %v1690 = vunpack.c.h.b16 %v337
      %v1691 = vunpack.c.l.b16 %v338
      %v1692 = vunpack.c.h.b16 %v338
      %v1693 = vunpack.c.l.b16 %v339
      %v1694 = vunpack.c.h.b16 %v339
      %v1695 = vunpack.c.l.b16 %v340
      %v1696 = vunpack.c.h.b16 %v340
      %v1697 = vunpack.c.l.b16 %v341
      %v1698 = vunpack.c.h.b16 %v341
      %v1699 = vunpack.c.l.b16 %v342
      %v1700 = vunpack.c.h.b16 %v342
      %v1701 = vunpack.c.l.b16 %v343
      %v1702 = vunpack.c.h.b16 %v343
      %v1703 = vunpack.c.l.b16 %v344
      %v1704 = vunpack.c.h.b16 %v344
      %v1705 = vunpack.c.l.b16 %v345
      %v1706 = vunpack.c.h.b16 %v345
      %v1707 = vunpack.c.l.b16 %v346
      %v1708 = vunpack.c.h.b16 %v346
      %v1709 = vunpack.c.l.b16 %v347
      %v1710 = vunpack.c.h.b16 %v347
      %v1711 = vunpack.c.l.b16 %v348
      %v1712 = vunpack.c.h.b16 %v348
      %v1713 = vunpack.c.l.b16 %v349
      %v1714 = vunpack.c.h.b16 %v349
      %v1715 = vunpack.c.l.b16 %v350
      %v1716 = vunpack.c.h.b16 %v350
      %v1717 = vunpack.c.l.b16 %v351
      %v1718 = vunpack.c.h.b16 %v351
      %v1719 = vunpack.c.l.b16 %v352
      %v1720 = vunpack.c.h.b16 %v352
      %v1721 = vunpack.c.l.b16 %v353
      %v1722 = vunpack.c.h.b16 %v353
      %v1723 = vunpack.c.l.b16 %v354
      %v1724 = vunpack.c.h.b16 %v354
      %v1725 = vunpack.c.l.b16 %v355
      %v1726 = vunpack.c.h.b16 %v355
      %v1727 = vunpack.c.l.b16 %v356
      %v1728 = vunpack.c.h.b16 %v356
      %v1729 = vunpack.c.l.b16 %v357
      %v1730 = vunpack.c.h.b16 %v357
      %v1731 = vunpack.c.l.b16 %v358
      %v1732 = vunpack.c.h.b16 %v358
      %v1733 = vunpack.c.l.b16 %v359
      %v1734 = vunpack.c.h.b16 %v359
      %v1735 = vunpack.c.l.b16 %v360
      %v1736 = vunpack.c.h.b16 %v360
      %v1737 = vunpack.c.l.b16 %v361
      %v1738 = vunpack.c.h.b16 %v361
      %v1739 = vunpack.c.l.b16 %v362
      %v1740 = vunpack.c.h.b16 %v362
      %v1741 = vunpack.c.l.b16 %v363
      %v1742 = vunpack.c.h.b16 %v363
      %v1743 = vunpack.c.l.b16 %v364
      %v1744 = vunpack.c.h.b16 %v364
      %v1745 = vunpack.c.l.b16 %v365
      %v1746 = vunpack.c.h.b16 %v365
      %v1747 = vunpack.c.l.b16 %v366
      %v1748 = vunpack.c.h.b16 %v366
      %v1749 = vunpack.c.l.b16 %v367
      %v1750 = vunpack.c.h.b16 %v367
      %v1751 = vunpack.c.l.b16 %v368
      %v1752 = vunpack.c.h.b16 %v368
      %v1753 = vunpack.c.l.b16 %v369
      %v1754 = vunpack.c.h.b16 %v369
      %v1755 = vunpack.c.l.b16 %v370
      %v1756 = vunpack.c.h.b16 %v370
      %v1757 = vunpack.c.l.b16 %v371
      %v1758 = vunpack.c.h.b16 %v371
      %v1759 = vunpack.c.l.b16 %v372
      %v1760 = vunpack.c.h.b16 %v372
      %v1761 = vunpack.c.l.b16 %v373
      %v1762 = vunpack.c.h.b16 %v373
      %v1763 = vunpack.c.l.b16 %v374
      %v1764 = vunpack.c.h.b16 %v374
      %v1765 = vunpack.c.l.b16 %v375
      %v1766 = vunpack.c.h.b16 %v375
      %v1767 = vunpack.c.l.b16 %v376
      %v1768 = vunpack.c.h.b16 %v376
      %v1769 = vunpack.c.l.b16 %v377
      %v1770 = vunpack.c.h.b16 %v377
      %v1771 = vunpack.c.l.b16 %v378
      %v1772 = vunpack.c.h.b16 %v378
      %v1773 = vunpack.c.l.b16 %v379
      %v1774 = vunpack.c.h.b16 %v379
      %v1775 = vunpack.c.l.b16 %v380
      %v1776 = vunpack.c.h.b16 %v380
      %v1777 = vunpack.c.l.b16 %v381
      %v1778 = vunpack.c.h.b16 %v381
      %v1779 = vunpack.c.l.b16 %v382
      %v1780 = vunpack.c.h.b16 %v382
      %v1781 = vunpack.c.l.b16 %v383
      %v1782 = vunpack.c.h.b16 %v383
      %v1783 = vunpack.c.l.b16 %v384
      %v1784 = vunpack.c.h.b16 %v384
      %v1785 = vunpack.c.l.b16 %v385
      %v1786 = vunpack.c.h.b16 %v385
      %v1787 = vunpack.c.l.b16 %v386
      %v1788 = vunpack.c.h.b16 %v386
      %v1789 = vunpack.c.l.b16 %v387
      %v1790 = vunpack.c.h.b16 %v387
      %v1791 = vunpack.c.l.b16 %v388
      %v1792 = vunpack.c.h.b16 %v388
      %v1793 = vunpack.c.l.b16 %v389
      %v1794 = vunpack.c.h.b16 %v389
      %v1795 = vunpack.c.l.b16 %v390
      %v1796 = vunpack.c.h.b16 %v390
      %v1797 = vunpack.c.l.b16 %v391
      %v1798 = vunpack.c.h.b16 %v391
      %v1799 = vunpack.c.l.b16 %v392
      %v1800 = vunpack.c.h.b16 %v392
      %v1801 = vunpack.c.l.b16 %v393
      %v1802 = vunpack.c.h.b16 %v393
      %v1803 = vunpack.c.l.b16 %v394
      %v1804 = vunpack.c.h.b16 %v394
      %v1805 = vunpack.c.l.b16 %v395
      %v1806 = vunpack.c.h.b16 %v395
      %v1807 = vunpack.c.l.b16 %v396
      %v1808 = vunpack.c.h.b16 %v396
      %v1809 = vunpack.c.l.b16 %v397
      %v1810 = vunpack.c.h.b16 %v397
      %v1811 = vunpack.c.l.b16 %v398
      %v1812 = vunpack.c.h.b16 %v398
      %v1813 = vunpack.c.l.b16 %v399
      %v1814 = vunpack.c.h.b16 %v399
      %v1815 = vunpack.c.l.b16 %v400
      %v1816 = vunpack.c.h.b16 %v400
      %v1817 = vunpack.c.l.b16 %v401
      %v1818 = vunpack.c.h.b16 %v401
      %v1819 = vunpack.c.l.b16 %v402
      %v1820 = vunpack.c.h.b16 %v402
      %v1821 = vunpack.c.l.b16 %v403
      %v1822 = vunpack.c.h.b16 %v403
      %v1823 = vunpack.c.l.b16 %v404
      %v1824 = vunpack.c.h.b16 %v404
      %v1825 = vunpack.c.l.b16 %v405
      %v1826 = vunpack.c.h.b16 %v405
      %v1827 = vunpack.c.l.b16 %v406
      %v1828 = vunpack.c.h.b16 %v406
      %v1829 = vunpack.c.l.b16 %v407
      %v1830 = vunpack.c.h.b16 %v407
      %v1831 = vunpack.c.l.b16 %v408
      %v1832 = vunpack.c.h.b16 %v408
      %v1833 = vunpack.c.l.b16 %v409
      %v1834 = vunpack.c.h.b16 %v409
      %v1835 = vunpack.c.l.b16 %v410
      %v1836 = vunpack.c.h.b16 %v410
      %v1837 = vunpack.c.l.b16 %v411
      %v1838 = vunpack.c.h.b16 %v411
      %v1839 = vunpack.c.l.b16 %v412
      %v1840 = vunpack.c.h.b16 %v412
      %v1841 = vunpack.c.l.b16 %v413
      %v1842 = vunpack.c.h.b16 %v413
      %v1843 = vunpack.c.l.b16 %v414
      %v1844 = vunpack.c.h.b16 %v414
      %v1845 = vunpack.c.l.b16 %v415
      %v1846 = vunpack.c.h.b16 %v415
      %v1847 = vunpack.c.l.b16 %v416
      %v1848 = vunpack.c.h.b16 %v416
      %v1849 = vunpack.c.l.b16 %v417
      %v1850 = vunpack.c.h.b16 %v417
      %v1851 = vunpack.c.l.b16 %v418
      %v1852 = vunpack.c.h.b16 %v418
      %v1853 = vunpack.c.l.b16 %v419
      %v1854 = vunpack.c.h.b16 %v419
      %v1855 = vunpack.c.l.b16 %v420
      %v1856 = vunpack.c.h.b16 %v420
      %v1857 = vunpack.c.l.b16 %v421
      %v1858 = vunpack.c.h.b16 %v421
      %v1859 = vunpack.c.l.b16 %v422
      %v1860 = vunpack.c.h.b16 %v422
      %v1861 = vunpack.c.l.b16 %v423
      %v1862 = vunpack.c.h.b16 %v423
      %v1863 = vunpack.c.l.b16 %v424
      %v1864 = vunpack.c.h.b16 %v424
      %v1865 = vunpack.c.l.b16 %v425
      %v1866 = vunpack.c.h.b16 %v425
      %v1867 = vunpack.c.l.b16 %v426
      %v1868 = vunpack.c.h.b16 %v426
      %v1869 = vunpack.c.l.b16 %v427
      %v1870 = vunpack.c.h.b16 %v427
      %v1871 = vunpack.c.l.b16 %v428
      %v1872 = vunpack.c.h.b16 %v428
      %v1873 = vunpack.c.l.b16 %v429
      %v1874 = vunpack.c.h.b16 %v429
      %v1875 = vunpack.c.l.b16 %v430
      %v1876 = vunpack.c.h.b16 %v430
      %v1877 = vunpack.c.l.b16 %v431
      %v1878 = vunpack.c.h.b16 %v431
      %v1879 = vunpack.c.l.b16 %v432
      %v1880 = vunpack.c.h.b16 %v432
      %v1881 = vunpack.c.l.b16 %v433
      %v1882 = vunpack.c.h.b16 %v433
      %v1883 = vunpack.c.l.b16 %v434
      %v1884 = vunpack.c.h.b16 %v434
      %v1885 = vunpack.c.l.b16 %v435
      %v1886 = vunpack.c.h.b16 %v435
      %v1887 = vunpack.c.l.b16 %v436
      %v1888 = vunpack.c.h.b16 %v436
      %v1889 = vunpack.c.l.b16 %v437
      %v1890 = vunpack.c.h.b16 %v437
      %v1891 = vunpack.c.l.b16 %v438
      %v1892 = vunpack.c.h.b16 %v438
      %v1893 = vunpack.c.l.b16 %v439
      %v1894 = vunpack.c.h.b16 %v439
      %v1895 = vunpack.c.l.b16 %v440
      %v1896 = vunpack.c.h.b16 %v440
      %v1897 = vunpack.c.l.b16 %v441
      %v1898 = vunpack.c.h.b16 %v441
      %v1899 = vunpack.c.l.b16 %v442
      %v1900 = vunpack.c.h.b16 %v442
      %v1901 = vunpack.c.l.b16 %v443
      %v1902 = vunpack.c.h.b16 %v443
      %v1903 = vunpack.c.l.b16 %v444
      %v1904 = vunpack.c.h.b16 %v444
      %v1905 = vunpack.c.l.b16 %v445
      %v1906 = vunpack.c.h.b16 %v445
      %v1907 = vunpack.c.l.b16 %v446
      %v1908 = vunpack.c.h.b16 %v446
      %v1909 = vunpack.c.l.b16 %v447
      %v1910 = vunpack.c.h.b16 %v447
      %v1911 = vunpack.c.l.b16 %v448
      %v1912 = vunpack.c.h.b16 %v448
      %v1913 = vunpack.c.l.b16 %v449
      %v1914 = vunpack.c.h.b16 %v449
      %v1915 = vunpack.c.l.b16 %v450
      %v1916 = vunpack.c.h.b16 %v450
      %v1917 = vunpack.c.l.b16 %v451
      %v1918 = vunpack.c.h.b16 %v451
      %v1919 = vunpack.c.l.b16 %v452
      %v1920 = vunpack.c.h.b16 %v452
      %v1921 = vunpack.c.l.b16 %v453
      %v1922 = vunpack.c.h.b16 %v453
      %v1923 = vunpack.c.l.b16 %v454
      %v1924 = vunpack.c.h.b16 %v454
      %v1925 = vunpack.c.l.b16 %v455
      %v1926 = vunpack.c.h.b16 %v455
      %v1927 = vunpack.c.l.b16 %v456
      %v1928 = vunpack.c.h.b16 %v456
      %v1929 = vunpack.c.l.b16 %v457
      %v1930 = vunpack.c.h.b16 %v457
      %v1931 = vunpack.c.l.b16 %v458
      %v1932 = vunpack.c.h.b16 %v458
      %v1933 = vunpack.c.l.b16 %v459
      %v1934 = vunpack.c.h.b16 %v459
      %v1935 = vunpack.c.l.b16 %v460
      %v1936 = vunpack.c.h.b16 %v460
      %v1937 = vunpack.c.l.b16 %v461
      %v1938 = vunpack.c.h.b16 %v461
      %v1939 = vunpack.c.l.b16 %v462
      %v1940 = vunpack.c.h.b16 %v462
      %v1941 = vunpack.c.l.b16 %v463
      %v1942 = vunpack.c.h.b16 %v463
      %v1943 = vunpack.c.l.b16 %v464
      %v1944 = vunpack.c.h.b16 %v464
      %v1945 = vunpack.c.l.b16 %v465
      %v1946 = vunpack.c.h.b16 %v465
      %v1947 = vunpack.c.l.b16 %v466
      %v1948 = vunpack.c.h.b16 %v466
      %v1949 = vunpack.c.l.b16 %v467
      %v1950 = vunpack.c.h.b16 %v467
      %v1951 = vunpack.c.l.b16 %v468
      %v1952 = vunpack.c.h.b16 %v468
      %v1953 = vunpack.c.l.b16 %v469
      %v1954 = vunpack.c.h.b16 %v469
      %v1955 = vunpack.c.l.b16 %v470
      %v1956 = vunpack.c.h.b16 %v470
      %v1957 = vunpack.c.l.b16 %v471
      %v1958 = vunpack.c.h.b16 %v471
      %v1959 = vunpack.c.l.b16 %v472
      %v1960 = vunpack.c.h.b16 %v472
      %v1961 = vunpack.c.l.b16 %v473
      %v1962 = vunpack.c.h.b16 %v473
      %v1963 = vunpack.c.l.b16 %v474
      %v1964 = vunpack.c.h.b16 %v474
      %v1965 = vunpack.c.l.b16 %v475
      %v1966 = vunpack.c.h.b16 %v475
      %v1967 = vunpack.c.l.b16 %v476
      %v1968 = vunpack.c.h.b16 %v476
      %v1969 = vunpack.c.l.b16 %v477
      %v1970 = vunpack.c.h.b16 %v477
      %v1971 = vunpack.c.l.b16 %v478
      %v1972 = vunpack.c.h.b16 %v478
      %v1973 = vunpack.c.l.b16 %v479
      %v1974 = vunpack.c.h.b16 %v479
      %v1975 = vunpack.c.l.b16 %v480
      %v1976 = vunpack.c.h.b16 %v480
      %v1977 = vunpack.c.l.b16 %v481
      %v1978 = vunpack.c.h.b16 %v481
      %v1979 = vunpack.c.l.b16 %v482
      %v1980 = vunpack.c.h.b16 %v482
      %v1981 = vunpack.c.l.b16 %v483
      %v1982 = vunpack.c.h.b16 %v483
      %v1983 = vunpack.c.l.b16 %v484
      %v1984 = vunpack.c.h.b16 %v484
      %v1985 = vunpack.c.l.b16 %v485
      %v1986 = vunpack.c.h.b16 %v485
      %v1987 = vunpack.c.l.b16 %v486
      %v1988 = vunpack.c.h.b16 %v486
      %v1989 = vunpack.c.l.b16 %v487
      %v1990 = vunpack.c.h.b16 %v487
      %v1991 = vunpack.c.l.b16 %v488
      %v1992 = vunpack.c.h.b16 %v488
      %v1993 = vunpack.c.l.b16 %v489
      %v1994 = vunpack.c.h.b16 %v489
      %v1995 = vunpack.c.l.b16 %v490
      %v1996 = vunpack.c.h.b16 %v490
      %v1997 = vunpack.c.l.b16 %v491
      %v1998 = vunpack.c.h.b16 %v491
      %v1999 = vunpack.c.l.b16 %v492
      %v2000 = vunpack.c.h.b16 %v492
      %v2001 = vunpack.c.l.b16 %v493
      %v2002 = vunpack.c.h.b16 %v493
      %v2003 = vunpack.c.l.b16 %v494
      %v2004 = vunpack.c.h.b16 %v494
      %v2005 = vunpack.c.l.b16 %v495
      %v2006 = vunpack.c.h.b16 %v495
      %v2007 = vunpack.c.l.b16 %v496
      %v2008 = vunpack.c.h.b16 %v496
      %v2009 = vunpack.c.l.b16 %v497
      %v2010 = vunpack.c.h.b16 %v497
      %v2011 = vunpack.c.l.b16 %v498
      %v2012 = vunpack.c.h.b16 %v498
      %v2013 = vunpack.c.l.b16 %v499
      %v2014 = vunpack.c.h.b16 %v499
      %v2015 = vunpack.c.l.b16 %v500
      %v2016 = vunpack.c.h.b16 %v500
      %v2017 = vunpack.c.l.b16 %v501
      %v2018 = vunpack.c.h.b16 %v501
      %v2019 = vunpack.c.l.b16 %v502
      %v2020 = vunpack.c.h.b16 %v502
      %v2021 = vunpack.c.l.b16 %v503
      %v2022 = vunpack.c.h.b16 %v503
      %v2023 = vunpack.c.l.b16 %v504
      %v2024 = vunpack.c.h.b16 %v504
      %v2025 = vunpack.c.l.b16 %v505
      %v2026 = vunpack.c.h.b16 %v505
      %v2027 = vunpack.c.l.b16 %v506
      %v2028 = vunpack.c.h.b16 %v506
      %v2029 = vunpack.c.l.b16 %v507
      %v2030 = vunpack.c.h.b16 %v507
      %v2031 = vunpack.c.l.b16 %v508
      %v2032 = vunpack.c.h.b16 %v508
      %v2033 = vunpack.c.l.b16 %v509
      %v2034 = vunpack.c.h.b16 %v509
      %v2035 = vunpack.c.l.b16 %v510
      %v2036 = vunpack.c.h.b16 %v510
      %v2037 = vunpack.c.l.b16 %v511
      %v2038 = vunpack.c.h.b16 %v511
      %v2039 = vunpack.c.l.b16 %v512
      %v2040 = vunpack.c.h.b16 %v512
      %v2041 = vunpack.c.l.b16 %v513
      %v2042 = vunpack.c.h.b16 %v513
      %v2043 = vunpack.c.l.b16 %v514
      %v2044 = vunpack.c.h.b16 %v514
      %v2045 = vunpack.c.l.b16 %v515
      %v2046 = vunpack.c.h.b16 %v515
      %v2047 = vunpack.c.l.b16 %v516
      %v2048 = vunpack.c.h.b16 %v516
      %v2049 = vunpack.c.l.b16 %v517
      %v2050 = vunpack.c.h.b16 %v517
      %v2051 = vunpack.c.l.b16 %v518
      %v2052 = vunpack.c.h.b16 %v518
      %v2053 = vunpack.c.l.b16 %v519
      %v2054 = vunpack.c.h.b16 %v519
      %v2055 = vunpack.c.l.b16 %v520
      %v2056 = vunpack.c.h.b16 %v520
      %v2057 = vunpack.c.l.b16 %v521
      %v2058 = vunpack.c.h.b16 %v521
      %v2059 = vunpack.c.l.b16 %v522
      %v2060 = vunpack.c.h.b16 %v522
      %v2061 = vunpack.c.l.b16 %v523
      %v2062 = vunpack.c.h.b16 %v523
      %v2063 = vunpack.c.l.b16 %v524
      %v2064 = vunpack.c.h.b16 %v524
      %v2065 = vunpack.c.l.b16 %v525
      %v2066 = vunpack.c.h.b16 %v525
      %v2067 = vunpack.c.l.b16 %v526
      %v2068 = vunpack.c.h.b16 %v526
      %v2069 = vunpack.c.l.b16 %v527
      %v2070 = vunpack.c.h.b16 %v527
      %v2071 = vunpack.c.l.b16 %v528
      %v2072 = vunpack.c.h.b16 %v528
      %v2073 = vunpack.c.l.b16 %v529
      %v2074 = vunpack.c.h.b16 %v529
      %v2075 = vunpack.c.l.b16 %v530
      %v2076 = vunpack.c.h.b16 %v530
      %v2077 = vunpack.c.l.b16 %v531
      %v2078 = vunpack.c.h.b16 %v531
      %v2079 = vunpack.c.l.b16 %v532
      %v2080 = vunpack.c.h.b16 %v532
      %v2081 = vunpack.c.l.b16 %v533
      %v2082 = vunpack.c.h.b16 %v533
      %v2083 = vunpack.c.l.b16 %v534
      %v2084 = vunpack.c.h.b16 %v534
      %v2085 = vunpack.c.l.b16 %v535
      %v2086 = vunpack.c.h.b16 %v535
      %v2087 = vunpack.c.l.b16 %v536
      %v2088 = vunpack.c.h.b16 %v536
      %v2089 = vunpack.c.l.b16 %v537
      %v2090 = vunpack.c.h.b16 %v537
      %v2091 = vunpack.c.l.b16 %v538
      %v2092 = vunpack.c.h.b16 %v538
      %v2093 = vunpack.c.l.b16 %v539
      %v2094 = vunpack.c.h.b16 %v539
      %v2095 = vunpack.c.l.b16 %v540
      %v2096 = vunpack.c.h.b16 %v540
      %v2097 = vunpack.c.l.b16 %v541
      %v2098 = vunpack.c.h.b16 %v541
      %v2099 = vunpack.c.l.b16 %v542
      %v2100 = vunpack.c.h.b16 %v542
      %v2101 = vunpack.c.l.b16 %v543
      %v2102 = vunpack.c.h.b16 %v543
      %v2103 = vunpack.c.l.b16 %v544
      %v2104 = vunpack.c.h.b16 %v544
      %v2105 = vunpack.c.l.b16 %v545
      %v2106 = vunpack.c.h.b16 %v545
      %v2107 = vunpack.c.l.b16 %v546
      %v2108 = vunpack.c.h.b16 %v546
      %v2109 = vunpack.c.l.b16 %v547
      %v2110 = vunpack.c.h.b16 %v547
      %v2111 = vunpack.c.l.b16 %v548
      %v2112 = vunpack.c.h.b16 %v548
      %v2113 = vunpack.c.l.b16 %v549
      %v2114 = vunpack.c.h.b16 %v549
      %v2115 = vunpack.c.l.b16 %v550
      %v2116 = vunpack.c.h.b16 %v550
      %v2117 = vunpack.c.l.b16 %v551
      %v2118 = vunpack.c.h.b16 %v551
      %v2119 = vunpack.c.l.b16 %v552
      %v2120 = vunpack.c.h.b16 %v552
      %v2121 = vunpack.c.l.b16 %v553
      %v2122 = vunpack.c.h.b16 %v553
      %v2123 = vunpack.c.l.b16 %v554
      %v2124 = vunpack.c.h.b16 %v554
      %v2125 = vunpack.c.l.b16 %v555
      %v2126 = vunpack.c.h.b16 %v555
      %v2127 = vunpack.c.l.b16 %v556
      %v2128 = vunpack.c.h.b16 %v556
      %v2129 = vunpack.c.l.b16 %v557
      %v2130 = vunpack.c.h.b16 %v557
      %v2131 = vunpack.c.l.b16 %v558
      %v2132 = vunpack.c.h.b16 %v558
      %v2133 = vunpack.c.l.b16 %v559
      %v2134 = vunpack.c.h.b16 %v559
      %v2135 = vunpack.c.l.b16 %v560
      %v2136 = vunpack.c.h.b16 %v560
      %v2137 = vunpack.c.l.b16 %v561
      %v2138 = vunpack.c.h.b16 %v561
      %v2139 = vunpack.c.l.b16 %v562
      %v2140 = vunpack.c.h.b16 %v562
      %v2141 = vunpack.c.l.b16 %v563
      %v2142 = vunpack.c.h.b16 %v563
      %v2143 = vunpack.c.l.b16 %v564
      %v2144 = vunpack.c.h.b16 %v564
      %v2145 = vunpack.c.l.b16 %v565
      %v2146 = vunpack.c.h.b16 %v565
      %v2147 = vunpack.c.l.b16 %v566
      %v2148 = vunpack.c.h.b16 %v566
      %v2149 = vunpack.c.l.b16 %v567
      %v2150 = vunpack.c.h.b16 %v567
      %v2151 = vunpack.c.l.b16 %v568
      %v2152 = vunpack.c.h.b16 %v568
      %v2153 = vunpack.c.l.b16 %v569
      %v2154 = vunpack.c.h.b16 %v569
      %v2155 = vunpack.c.l.b16 %v570
      %v2156 = vunpack.c.h.b16 %v570
      %v2157 = vunpack.c.l.b16 %v571
      %v2158 = vunpack.c.h.b16 %v571
      %v2159 = vunpack.c.l.b16 %v572
      %v2160 = vunpack.c.h.b16 %v572
      %v2161 = vunpack.c.l.b16 %v573
      %v2162 = vunpack.c.h.b16 %v573
      %v2163 = vunpack.c.l.b16 %v574
      %v2164 = vunpack.c.h.b16 %v574
      %v2165 = vunpack.c.l.b16 %v575
      %v2166 = vunpack.c.h.b16 %v575
      %v2167 = vunpack.c.l.b16 %v576
      %v2168 = vunpack.c.h.b16 %v576
      %v2169 = vunpack.c.l.b16 %v577
      %v2170 = vunpack.c.h.b16 %v577
      %v2171 = vunpack.c.l.b16 %v578
      %v2172 = vunpack.c.h.b16 %v578
      %v2173 = vunpack.c.l.b16 %v579
      %v2174 = vunpack.c.h.b16 %v579
      %v2175 = vunpack.c.l.b16 %v580
      %v2176 = vunpack.c.h.b16 %v580
      %v2177 = vunpack.c.l.b16 %v581
      %v2178 = vunpack.c.h.b16 %v581
      %v2179 = vunpack.c.l.b16 %v582
      %v2180 = vunpack.c.h.b16 %v582
      %v2181 = vunpack.c.l.b16 %v583
      %v2182 = vunpack.c.h.b16 %v583
      %v2183 = vunpack.c.l.b16 %v584
      %v2184 = vunpack.c.h.b16 %v584
      %v2185 = vunpack.c.l.b16 %v585
      %v2186 = vunpack.c.h.b16 %v585
      %v2187 = vunpack.c.l.b16 %v586
      %v2188 = vunpack.c.h.b16 %v586
      %v2189 = vunpack.c.l.b16 %v587
      %v2190 = vunpack.c.h.b16 %v587
      %v2191 = vunpack.c.l.b16 %v588
      %v2192 = vunpack.c.h.b16 %v588
      %v2193 = vunpack.c.l.b16 %v589
      %v2194 = vunpack.c.h.b16 %v589
      %v2195 = vunpack.c.l.b16 %v590
      %v2196 = vunpack.c.h.b16 %v590
      %v2197 = vunpack.c.l.b16 %v591
      %v2198 = vunpack.c.h.b16 %v591
      %v2199 = vunpack.c.l.b16 %v592
      %v2200 = vunpack.c.h.b16 %v592
      %v2201 = vunpack.c.l.b16 %v593
      %v2202 = vunpack.c.h.b16 %v593
      %v2203 = vunpack.c.l.b16 %v594
      %v2204 = vunpack.c.h.b16 %v594
      %v2205 = vunpack.c.l.b16 %v595
      %v2206 = vunpack.c.h.b16 %v595
      %v2207 = vunpack.c.l.b16 %v596
      %v2208 = vunpack.c.h.b16 %v596
      %v2209 = vunpack.c.l.b16 %v597
      %v2210 = vunpack.c.h.b16 %v597
      %v2211 = vunpack.c.l.b16 %v598
      %v2212 = vunpack.c.h.b16 %v598
      %v2213 = vunpack.c.l.b16 %v599
      %v2214 = vunpack.c.h.b16 %v599
      %v2215 = vunpack.c.l.b16 %v600
      %v2216 = vunpack.c.h.b16 %v600
      %v2217 = vunpack.c.l.b16 %v601
      %v2218 = vunpack.c.h.b16 %v601
      %v2219 = vunpack.c.l.b16 %v602
      %v2220 = vunpack.c.h.b16 %v602
      %v2221 = vunpack.c.l.b16 %v603
      %v2222 = vunpack.c.h.b16 %v603
      %v2223 = vunpack.c.l.b16 %v604
      %v2224 = vunpack.c.h.b16 %v604
      %v2225 = vunpack.c.l.b16 %v605
      %v2226 = vunpack.c.h.b16 %v605
      %v2227 = vunpack.c.l.b16 %v606
      %v2228 = vunpack.c.h.b16 %v606
      %v2229 = vunpack.c.l.b16 %v607
      %v2230 = vunpack.c.h.b16 %v607
      %v2231 = vunpack.c.l.b16 %v608
      %v2232 = vunpack.c.h.b16 %v608
      %v2233 = vunpack.c.l.b16 %v609
      %v2234 = vunpack.c.h.b16 %v609
      %v2235 = vunpack.c.l.b16 %v610
      %v2236 = vunpack.c.h.b16 %v610
      %v2237 = vunpack.c.l.b16 %v611
      %v2238 = vunpack.c.h.b16 %v611
      %v2239 = vunpack.c.l.b16 %v612
      %v2240 = vunpack.c.h.b16 %v612
      %v2241 = vunpack.c.l.b16 %v613
      %v2242 = vunpack.c.h.b16 %v613
      %v2243 = vunpack.c.l.b16 %v614
      %v2244 = vunpack.c.h.b16 %v614
      %v2245 = vunpack.c.l.b16 %v615
      %v2246 = vunpack.c.h.b16 %v615
      %v2247 = vunpack.c.l.b16 %v616
      %v2248 = vunpack.c.h.b16 %v616
      %v2249 = vunpack.c.l.b16 %v617
      %v2250 = vunpack.c.h.b16 %v617
      %v2251 = vunpack.c.l.b16 %v618
      %v2252 = vunpack.c.h.b16 %v618
      %v2253 = vunpack.c.l.b16 %v619
      %v2254 = vunpack.c.h.b16 %v619
      %v2255 = vunpack.c.l.b16 %v620
      %v2256 = vunpack.c.h.b16 %v620
      %v2257 = vunpack.c.l.b16 %v621
      %v2258 = vunpack.c.h.b16 %v621
      %v2259 = vunpack.c.l.b16 %v622
      %v2260 = vunpack.c.h.b16 %v622
      %v2261 = vunpack.c.l.b16 %v623
      %v2262 = vunpack.c.h.b16 %v623
      %v2263 = vunpack.c.l.b16 %v624
      %v2264 = vunpack.c.h.b16 %v624
      %v2265 = vunpack.c.l.b16 %v625
      %v2266 = vunpack.c.h.b16 %v625
      %v2267 = vunpack.c.l.b16 %v626
      %v2268 = vunpack.c.h.b16 %v626
      %v2269 = vpack.c.b16 %v1387, %v1369
      %v2270 = vpack.c.b16 %v1388, %v1370
      %v2271 = vpack.c.b16 %v1389, %v1371
      %v2272 = vpack.c.b16 %v1390, %v1372
      %v2273 = vpack.c.b16 %v1391, %v1373
      %v2274 = vpack.c.b16 %v1392, %v1374
      %v2275 = vpack.c.b16 %v1393, %v1375
      %v2276 = vpack.c.b16 %v1394, %v1376
      %v2277 = vpack.c.b16 %v1395, %v1377
      %v2278 = vpack.c.b16 %v1396, %v1378
      %v2279 = vpack.c.b16 %v1397, %v1379
      %v2280 = vpack.c.b16 %v1398, %v1380
      %v2281 = vpack.c.b16 %v1399, %v1381
      %v2282 = vpack.c.b16 %v1400, %v1382
      %v2283 = vpack.c.b16 %v1401, %v1383
      %v2284 = vpack.c.b16 %v1402, %v1384
      %v2285 = vpack.c.b16 %v1403, %v1385
      %v2286 = vpack.c.b16 %v1404, %v1386
      %v2287 = vpack.c.b16 %v1423, %v1405
      %v2288 = vpack.c.b16 %v1424, %v1406
      %v2289 = vpack.c.b16 %v1425, %v1407
      %v2290 = vpack.c.b16 %v1426, %v1408
      %v2291 = vpack.c.b16 %v1427, %v1409
      %v2292 = vpack.c.b16 %v1428, %v1410
      %v2293 = vpack.c.b16 %v1429, %v1411
      %v2294 = vpack.c.b16 %v1430, %v1412
      %v2295 = vpack.c.b16 %v1431, %v1413
      %v2296 = vpack.c.b16 %v1432, %v1414
      %v2297 = vpack.c.b16 %v1433, %v1415
      %v2298 = vpack.c.b16 %v1434, %v1416
      %v2299 = vpack.c.b16 %v1435, %v1417
      %v2300 = vpack.c.b16 %v1436, %v1418
      %v2301 = vpack.c.b16 %v1437, %v1419
      %v2302 = vpack.c.b16 %v1438, %v1420
      %v2303 = vpack.c.b16 %v1439, %v1421
      %v2304 = vpack.c.b16 %v1440, %v1422
      %v2305 = vpack.c.b16 %v1459, %v1441
      %v2306 = vpack.c.b16 %v1460, %v1442
      %v2307 = vpack.c.b16 %v1461, %v1443
      %v2308 = vpack.c.b16 %v1462, %v1444
      %v2309 = vpack.c.b16 %v1463, %v1445
      %v2310 = vpack.c.b16 %v1464, %v1446
      %v2311 = vpack.c.b16 %v1465, %v1447
      %v2312 = vpack.c.b16 %v1466, %v1448
      %v2313 = vpack.c.b16 %v1467, %v1449
      %v2314 = vpack.c.b16 %v1468, %v1450
      %v2315 = vpack.c.b16 %v1469, %v1451
      %v2316 = vpack.c.b16 %v1470, %v1452
      %v2317 = vpack.c.b16 %v1471, %v1453
      %v2318 = vpack.c.b16 %v1472, %v1454
      %v2319 = vpack.c.b16 %v1473, %v1455
      %v2320 = vpack.c.b16 %v1474, %v1456
      %v2321 = vpack.c.b16 %v1475, %v1457
      %v2322 = vpack.c.b16 %v1476, %v1458
      %v2323 = vpack.c.b16 %v1495, %v1477
      %v2324 = vpack.c.b16 %v1496, %v1478
      %v2325 = vpack.c.b16 %v1497, %v1479
      %v2326 = vpack.c.b16 %v1498, %v1480
      %v2327 = vpack.c.b16 %v1499, %v1481
      %v2328 = vpack.c.b16 %v1500, %v1482
      %v2329 = vpack.c.b16 %v1501, %v1483
      %v2330 = vpack.c.b16 %v1502, %v1484
      %v2331 = vpack.c.b16 %v1503, %v1485
      %v2332 = vpack.c.b16 %v1504, %v1486
      %v2333 = vpack.c.b16 %v1505, %v1487
      %v2334 = vpack.c.b16 %v1506, %v1488
      %v2335 = vpack.c.b16 %v1507, %v1489
      %v2336 = vpack.c.b16 %v1508, %v1490
      %v2337 = vpack.c.b16 %v1509, %v1491
      %v2338 = vpack.c.b16 %v1510, %v1492
      %v2339 = vpack.c.b16 %v1511, %v1493
      %v2340 = vpack.c.b16 %v1512, %v1494
      %v2341 = vpack.c.b16 %v1531, %v1513
      %v2342 = vpack.c.b16 %v1532, %v1514
      %v2343 = vpack.c.b16 %v1533, %v1515
      %v2344 = vpack.c.b16 %v1534, %v1516
      %v2345 = vpack.c.b16 %v1535, %v1517
      %v2346 = vpack.c.b16 %v1536, %v1518
      %v2347 = vpack.c.b16 %v1537, %v1519
      %v2348 = vpack.c.b16 %v1538, %v1520
      %v2349 = vpack.c.b16 %v1539, %v1521
      %v2350 = vpack.c.b16 %v1540, %v1522
      %v2351 = vpack.c.b16 %v1541, %v1523
      %v2352 = vpack.c.b16 %v1542, %v1524
      %v2353 = vpack.c.b16 %v1543, %v1525
      %v2354 = vpack.c.b16 %v1544, %v1526
      %v2355 = vpack.c.b16 %v1545, %v1527
      %v2356 = vpack.c.b16 %v1546, %v1528
      %v2357 = vpack.c.b16 %v1547, %v1529
      %v2358 = vpack.c.b16 %v1548, %v1530
      %v2359 = vpack.c.b16 %v1567, %v1549
      %v2360 = vpack.c.b16 %v1568, %v1550
      %v2361 = vpack.c.b16 %v1569, %v1551
      %v2362 = vpack.c.b16 %v1570, %v1552
      %v2363 = vpack.c.b16 %v1571, %v1553
      %v2364 = vpack.c.b16 %v1572, %v1554
      %v2365 = vpack.c.b16 %v1573, %v1555
      %v2366 = vpack.c.b16 %v1574, %v1556
      %v2367 = vpack.c.b16 %v1575, %v1557
      %v2368 = vpack.c.b16 %v1576, %v1558
      %v2369 = vpack.c.b16 %v1577, %v1559
      %v2370 = vpack.c.b16 %v1578, %v1560
      %v2371 = vpack.c.b16 %v1579, %v1561
      %v2372 = vpack.c.b16 %v1580, %v1562
      %v2373 = vpack.c.b16 %v1581, %v1563
      %v2374 = vpack.c.b16 %v1582, %v1564
      %v2375 = vpack.c.b16 %v1583, %v1565
      %v2376 = vpack.c.b16 %v1584, %v1566
      %v2377 = vpack.c.b16 %v1603, %v1585
      %v2378 = vpack.c.b16 %v1604, %v1586
      %v2379 = vpack.c.b16 %v1605, %v1587
      %v2380 = vpack.c.b16 %v1606, %v1588
      %v2381 = vpack.c.b16 %v1607, %v1589
      %v2382 = vpack.c.b16 %v1608, %v1590
      %v2383 = vpack.c.b16 %v1609, %v1591
      %v2384 = vpack.c.b16 %v1610, %v1592
      %v2385 = vpack.c.b16 %v1611, %v1593
      %v2386 = vpack.c.b16 %v1612, %v1594
      %v2387 = vpack.c.b16 %v1613, %v1595
      %v2388 = vpack.c.b16 %v1614, %v1596
      %v2389 = vpack.c.b16 %v1615, %v1597
      %v2390 = vpack.c.b16 %v1616, %v1598
      %v2391 = vpack.c.b16 %v1617, %v1599
      %v2392 = vpack.c.b16 %v1618, %v1600
      %v2393 = vpack.c.b16 %v1619, %v1601
      %v2394 = vpack.c.b16 %v1620, %v1602
      %v2395 = vpack.c.b16 %v1639, %v1621
      %v2396 = vpack.c.b16 %v1640, %v1622
      %v2397 = vpack.c.b16 %v1641, %v1623
      %v2398 = vpack.c.b16 %v1642, %v1624
      %v2399 = vpack.c.b16 %v1643, %v1625
      %v2400 = vpack.c.b16 %v1644, %v1626
      %v2401 = vpack.c.b16 %v1645, %v1627
      %v2402 = vpack.c.b16 %v1646, %v1628
      %v2403 = vpack.c.b16 %v1647, %v1629
      %v2404 = vpack.c.b16 %v1648, %v1630
      %v2405 = vpack.c.b16 %v1649, %v1631
      %v2406 = vpack.c.b16 %v1650, %v1632
      %v2407 = vpack.c.b16 %v1651, %v1633
      %v2408 = vpack.c.b16 %v1652, %v1634
      %v2409 = vpack.c.b16 %v1653, %v1635
      %v2410 = vpack.c.b16 %v1654, %v1636
      %v2411 = vpack.c.b16 %v1655, %v1637
      %v2412 = vpack.c.b16 %v1656, %v1638
      %v2413 = vpack.c.b16 %v1675, %v1657
      %v2414 = vpack.c.b16 %v1676, %v1658
      %v2415 = vpack.c.b16 %v1677, %v1659
      %v2416 = vpack.c.b16 %v1678, %v1660
      %v2417 = vpack.c.b16 %v1679, %v1661
      %v2418 = vpack.c.b16 %v1680, %v1662
      %v2419 = vpack.c.b16 %v1681, %v1663
      %v2420 = vpack.c.b16 %v1682, %v1664
      %v2421 = vpack.c.b16 %v1683, %v1665
      %v2422 = vpack.c.b16 %v1684, %v1666
      %v2423 = vpack.c.b16 %v1685, %v1667
      %v2424 = vpack.c.b16 %v1686, %v1668
      %v2425 = vpack.c.b16 %v1687, %v1669
      %v2426 = vpack.c.b16 %v1688, %v1670
      %v2427 = vpack.c.b16 %v1689, %v1671
      %v2428 = vpack.c.b16 %v1690, %v1672
      %v2429 = vpack.c.b16 %v1691, %v1673
      %v2430 = vpack.c.b16 %v1692, %v1674
      %v2431 = vpack.c.b16 %v1711, %v1693
      %v2432 = vpack.c.b16 %v1712, %v1694
      %v2433 = vpack.c.b16 %v1713, %v1695
      %v2434 = vpack.c.b16 %v1714, %v1696
      %v2435 = vpack.c.b16 %v1715, %v1697
      %v2436 = vpack.c.b16 %v1716, %v1698
      %v2437 = vpack.c.b16 %v1717, %v1699
      %v2438 = vpack.c.b16 %v1718, %v1700
      %v2439 = vpack.c.b16 %v1719, %v1701
      %v2440 = vpack.c.b16 %v1720, %v1702
      %v2441 = vpack.c.b16 %v1721, %v1703
      %v2442 = vpack.c.b16 %v1722, %v1704
      %v2443 = vpack.c.b16 %v1723, %v1705
      %v2444 = vpack.c.b16 %v1724, %v1706
      %v2445 = vpack.c.b16 %v1725, %v1707
      %v2446 = vpack.c.b16 %v1726, %v1708
      %v2447 = vpack.c.b16 %v1727, %v1709
      %v2448 = vpack.c.b16 %v1728, %v1710
      %v2449 = vpack.c.b16 %v1747, %v1729
      %v2450 = vpack.c.b16 %v1748, %v1730
      %v2451 = vpack.c.b16 %v1749, %v1731
      %v2452 = vpack.c.b16 %v1750, %v1732
      %v2453 = vpack.c.b16 %v1751, %v1733
      %v2454 = vpack.c.b16 %v1752, %v1734
      %v2455 = vpack.c.b16 %v1753, %v1735
      %v2456 = vpack.c.b16 %v1754, %v1736
      %v2457 = vpack.c.b16 %v1755, %v1737
      %v2458 = vpack.c.b16 %v1756, %v1738
      %v2459 = vpack.c.b16 %v1757, %v1739
      %v2460 = vpack.c.b16 %v1758, %v1740
      %v2461 = vpack.c.b16 %v1759, %v1741
      %v2462 = vpack.c.b16 %v1760, %v1742
      %v2463 = vpack.c.b16 %v1761, %v1743
      %v2464 = vpack.c.b16 %v1762, %v1744
      %v2465 = vpack.c.b16 %v1763, %v1745
      %v2466 = vpack.c.b16 %v1764, %v1746
      %v2467 = vpack.c.b16 %v1783, %v1765
      %v2468 = vpack.c.b16 %v1784, %v1766
      %v2469 = vpack.c.b16 %v1785, %v1767
      %v2470 = vpack.c.b16 %v1786, %v1768
      %v2471 = vpack.c.b16 %v1787, %v1769
      %v2472 = vpack.c.b16 %v1788, %v1770
      %v2473 = vpack.c.b16 %v1789, %v1771
      %v2474 = vpack.c.b16 %v1790, %v1772
      %v2475 = vpack.c.b16 %v1791, %v1773
      %v2476 = vpack.c.b16 %v1792, %v1774
      %v2477 = vpack.c.b16 %v1793, %v1775
      %v2478 = vpack.c.b16 %v1794, %v1776
      %v2479 = vpack.c.b16 %v1795, %v1777
      %v2480 = vpack.c.b16 %v1796, %v1778
      %v2481 = vpack.c.b16 %v1797, %v1779
      %v2482 = vpack.c.b16 %v1798, %v1780
      %v2483 = vpack.c.b16 %v1799, %v1781
      %v2484 = vpack.c.b16 %v1800, %v1782
      %v2485 = vpack.c.b16 %v1819, %v1801
      %v2486 = vpack.c.b16 %v1820, %v1802
      %v2487 = vpack.c.b16 %v1821, %v1803
      %v2488 = vpack.c.b16 %v1822, %v1804
      %v2489 = vpack.c.b16 %v1823, %v1805
      %v2490 = vpack.c.b16 %v1824, %v1806
      %v2491 = vpack.c.b16 %v1825, %v1807
      %v2492 = vpack.c.b16 %v1826, %v1808
      %v2493 = vpack.c.b16 %v1827, %v1809
      %v2494 = vpack.c.b16 %v1828, %v1810
      %v2495 = vpack.c.b16 %v1829, %v1811
      %v2496 = vpack.c.b16 %v1830, %v1812
      %v2497 = vpack.c.b16 %v1831, %v1813
      %v2498 = vpack.c.b16 %v1832, %v1814
      %v2499 = vpack.c.b16 %v1833, %v1815
      %v2500 = vpack.c.b16 %v1834, %v1816
      %v2501 = vpack.c.b16 %v1835, %v1817
      %v2502 = vpack.c.b16 %v1836, %v1818
      %v2503 = vpack.c.b16 %v1855, %v1837
      %v2504 = vpack.c.b16 %v1856, %v1838
      %v2505 = vpack.c.b16 %v1857, %v1839
      %v2506 = vpack.c.b16 %v1858, %v1840
      %v2507 = vpack.c.b16 %v1859, %v1841
      %v2508 = vpack.c.b16 %v1860, %v1842
      %v2509 = vpack.c.b16 %v1861, %v1843
      %v2510 = vpack.c.b16 %v1862, %v1844
      %v2511 = vpack.c.b16 %v1863, %v1845
      %v2512 = vpack.c.b16 %v1864, %v1846
      %v2513 = vpack.c.b16 %v1865, %v1847
      %v2514 = vpack.c.b16 %v1866, %v1848
      %v2515 = vpack.c.b16 %v1867, %v1849
      %v2516 = vpack.c.b16 %v1868, %v1850
      %v2517 = vpack.c.b16 %v1869, %v1851
      %v2518 = vpack.c.b16 %v1870, %v1852
      %v2519 = vpack.c.b16 %v1871, %v1853
      %v2520 = vpack.c.b16 %v1872, %v1854
      %v2521 = vpack.c.b16 %v1891, %v1873
      %v2522 = vpack.c.b16 %v1892, %v1874
      %v2523 = vpack.c.b16 %v1893, %v1875
      %v2524 = vpack.c.b16 %v1894, %v1876
      %v2525 = vpack.c.b16 %v1895, %v1877
      %v2526 = vpack.c.b16 %v1896, %v1878
      %v2527 = vpack.c.b16 %v1897, %v1879
      %v2528 = vpack.c.b16 %v1898, %v1880
      %v2529 = vpack.c.b16 %v1899, %v1881
      %v2530 = vpack.c.b16 %v1900, %v1882
      %v2531 = vpack.c.b16 %v1901, %v1883
      %v2532 = vpack.c.b16 %v1902, %v1884
      %v2533 = vpack.c.b16 %v1903, %v1885
      %v2534 = vpack.c.b16 %v1904, %v1886
      %v2535 = vpack.c.b16 %v1905, %v1887
      %v2536 = vpack.c.b16 %v1906, %v1888
      %v2537 = vpack.c.b16 %v1907, %v1889
      %v2538 = vpack.c.b16 %v1908, %v1890
      %v2539 = vpack.c.b16 %v1927, %v1909
      %v2540 = vpack.c.b16 %v1928, %v1910
      %v2541 = vpack.c.b16 %v1929, %v1911
      %v2542 = vpack.c.b16 %v1930, %v1912
      %v2543 = vpack.c.b16 %v1931, %v1913
      %v2544 = vpack.c.b16 %v1932, %v1914
      %v2545 = vpack.c.b16 %v1933, %v1915
      %v2546 = vpack.c.b16 %v1934, %v1916
      %v2547 = vpack.c.b16 %v1935, %v1917
      %v2548 = vpack.c.b16 %v1936, %v1918
      %v2549 = vpack.c.b16 %v1937, %v1919
      %v2550 = vpack.c.b16 %v1938, %v1920
      %v2551 = vpack.c.b16 %v1939, %v1921
      %v2552 = vpack.c.b16 %v1940, %v1922
      %v2553 = vpack.c.b16 %v1941, %v1923
      %v2554 = vpack.c.b16 %v1942, %v1924
      %v2555 = vpack.c.b16 %v1943, %v1925
      %v2556 = vpack.c.b16 %v1944, %v1926
      %v2557 = vpack.c.b16 %v1963, %v1945
      %v2558 = vpack.c.b16 %v1964, %v1946
      %v2559 = vpack.c.b16 %v1965, %v1947
      %v2560 = vpack.c.b16 %v1966, %v1948
      %v2561 = vpack.c.b16 %v1967, %v1949
      %v2562 = vpack.c.b16 %v1968, %v1950
      %v2563 = vpack.c.b16 %v1969, %v1951
      %v2564 = vpack.c.b16 %v1970, %v1952
      %v2565 = vpack.c.b16 %v1971, %v1953
      %v2566 = vpack.c.b16 %v1972, %v1954
      %v2567 = vpack.c.b16 %v1973, %v1955
      %v2568 = vpack.c.b16 %v1974, %v1956
      %v2569 = vpack.c.b16 %v1975, %v1957
      %v2570 = vpack.c.b16 %v1976, %v1958
      %v2571 = vpack.c.b16 %v1977, %v1959
      %v2572 = vpack.c.b16 %v1978, %v1960
      %v2573 = vpack.c.b16 %v1979, %v1961
      %v2574 = vpack.c.b16 %v1980, %v1962
      %v2575 = vpack.c.b16 %v1999, %v1981
      %v2576 = vpack.c.b16 %v2000, %v1982
      %v2577 = vpack.c.b16 %v2001, %v1983
      %v2578 = vpack.c.b16 %v2002, %v1984
      %v2579 = vpack.c.b16 %v2003, %v1985
      %v2580 = vpack.c.b16 %v2004, %v1986
      %v2581 = vpack.c.b16 %v2005, %v1987
      %v2582 = vpack.c.b16 %v2006, %v1988
      %v2583 = vpack.c.b16 %v2007, %v1989
      %v2584 = vpack.c.b16 %v2008, %v1990
      %v2585 = vpack.c.b16 %v2009, %v1991
      %v2586 = vpack.c.b16 %v2010, %v1992
      %v2587 = vpack.c.b16 %v2011, %v1993
      %v2588 = vpack.c.b16 %v2012, %v1994
      %v2589 = vpack.c.b16 %v2013, %v1995
      %v2590 = vpack.c.b16 %v2014, %v1996
      %v2591 = vpack.c.b16 %v2015, %v1997
      %v2592 = vpack.c.b16 %v2016, %v1998
      %v2593 = vpack.c.b16 %v2035, %v2017
      %v2594 = vpack.c.b16 %v2036, %v2018
      %v2595 = vpack.c.b16 %v2037, %v2019
      %v2596 = vpack.c.b16 %v2038, %v2020
      %v2597 = vpack.c.b16 %v2039, %v2021
      %v2598 = vpack.c.b16 %v2040, %v2022
      %v2599 = vpack.c.b16 %v2041, %v2023
      %v2600 = vpack.c.b16 %v2042, %v2024
      %v2601 = vpack.c.b16 %v2043, %v2025
      %v2602 = vpack.c.b16 %v2044, %v2026
      %v2603 = vpack.c.b16 %v2045, %v2027
      %v2604 = vpack.c.b16 %v2046, %v2028
      %v2605 = vpack.c.b16 %v2047, %v2029
      %v2606 = vpack.c.b16 %v2048, %v2030
      %v2607 = vpack.c.b16 %v2049, %v2031
      %v2608 = vpack.c.b16 %v2050, %v2032
      %v2609 = vpack.c.b16 %v2051, %v2033
      %v2610 = vpack.c.b16 %v2052, %v2034
      %v2611 = vpack.c.b16 %v2071, %v2053
      %v2612 = vpack.c.b16 %v2072, %v2054
      %v2613 = vpack.c.b16 %v2073, %v2055
      %v2614 = vpack.c.b16 %v2074, %v2056
      %v2615 = vpack.c.b16 %v2075, %v2057
      %v2616 = vpack.c.b16 %v2076, %v2058
      %v2617 = vpack.c.b16 %v2077, %v2059
      %v2618 = vpack.c.b16 %v2078, %v2060
      %v2619 = vpack.c.b16 %v2079, %v2061
      %v2620 = vpack.c.b16 %v2080, %v2062
      %v2621 = vpack.c.b16 %v2081, %v2063
      %v2622 = vpack.c.b16 %v2082, %v2064
      %v2623 = vpack.c.b16 %v2083, %v2065
      %v2624 = vpack.c.b16 %v2084, %v2066
      %v2625 = vpack.c.b16 %v2085, %v2067
      %v2626 = vpack.c.b16 %v2086, %v2068
      %v2627 = vpack.c.b16 %v2087, %v2069
      %v2628 = vpack.c.b16 %v2088, %v2070
      %v2629 = vpack.c.b16 %v2107, %v2089
      %v2630 = vpack.c.b16 %v2108, %v2090
      %v2631 = vpack.c.b16 %v2109, %v2091
      %v2632 = vpack.c.b16 %v2110, %v2092
      %v2633 = vpack.c.b16 %v2111, %v2093
      %v2634 = vpack.c.b16 %v2112, %v2094
      %v2635 = vpack.c.b16 %v2113, %v2095
      %v2636 = vpack.c.b16 %v2114, %v2096
      %v2637 = vpack.c.b16 %v2115, %v2097
      %v2638 = vpack.c.b16 %v2116, %v2098
      %v2639 = vpack.c.b16 %v2117, %v2099
      %v2640 = vpack.c.b16 %v2118, %v2100
      %v2641 = vpack.c.b16 %v2119, %v2101
      %v2642 = vpack.c.b16 %v2120, %v2102
      %v2643 = vpack.c.b16 %v2121, %v2103
      %v2644 = vpack.c.b16 %v2122, %v2104
      %v2645 = vpack.c.b16 %v2123, %v2105
      %v2646 = vpack.c.b16 %v2124, %v2106
      %v2647 = vpack.c.b16 %v2143, %v2125
      %v2648 = vpack.c.b16 %v2144, %v2126
      %v2649 = vpack.c.b16 %v2145, %v2127
      %v2650 = vpack.c.b16 %v2146, %v2128
      %v2651 = vpack.c.b16 %v2147, %v2129
      %v2652 = vpack.c.b16 %v2148, %v2130
      %v2653 = vpack.c.b16 %v2149, %v2131
      %v2654 = vpack.c.b16 %v2150, %v2132
      %v2655 = vpack.c.b16 %v2151, %v2133
      %v2656 = vpack.c.b16 %v2152, %v2134
      %v2657 = vpack.c.b16 %v2153, %v2135
      %v2658 = vpack.c.b16 %v2154, %v2136
      %v2659 = vpack.c.b16 %v2155, %v2137
      %v2660 = vpack.c.b16 %v2156, %v2138
      %v2661 = vpack.c.b16 %v2157, %v2139
      %v2662 = vpack.c.b16 %v2158, %v2140
      %v2663 = vpack.c.b16 %v2159, %v2141
      %v2664 = vpack.c.b16 %v2160, %v2142
      %v2665 = vpack.c.b16 %v2179, %v2161
      %v2666 = vpack.c.b16 %v2180, %v2162
      %v2667 = vpack.c.b16 %v2181, %v2163
      %v2668 = vpack.c.b16 %v2182, %v2164
      %v2669 = vpack.c.b16 %v2183, %v2165
      %v2670 = vpack.c.b16 %v2184, %v2166
      %v2671 = vpack.c.b16 %v2185, %v2167
      %v2672 = vpack.c.b16 %v2186, %v2168
      %v2673 = vpack.c.b16 %v2187, %v2169
      %v2674 = vpack.c.b16 %v2188, %v2170
      %v2675 = vpack.c.b16 %v2189, %v2171
      %v2676 = vpack.c.b16 %v2190, %v2172
      %v2677 = vpack.c.b16 %v2191, %v2173
      %v2678 = vpack.c.b16 %v2192, %v2174
      %v2679 = vpack.c.b16 %v2193, %v2175
      %v2680 = vpack.c.b16 %v2194, %v2176
      %v2681 = vpack.c.b16 %v2195, %v2177
      %v2682 = vpack.c.b16 %v2196, %v2178
      %v2683 = vpack.c.b16 %v2215, %v2197
      %v2684 = vpack.c.b16 %v2216, %v2198
      %v2685 = vpack.c.b16 %v2217, %v2199
      %v2686 = vpack.c.b16 %v2218, %v2200
      %v2687 = vpack.c.b16 %v2219, %v2201
      %v2688 = vpack.c.b16 %v2220, %v2202
      %v2689 = vpack.c.b16 %v2221, %v2203
      %v2690 = vpack.c.b16 %v2222, %v2204
      %v2691 = vpack.c.b16 %v2223, %v2205
      %v2692 = vpack.c.b16 %v2224, %v2206
      %v2693 = vpack.c.b16 %v2225, %v2207
      %v2694 = vpack.c.b16 %v2226, %v2208
      %v2695 = vpack.c.b16 %v2227, %v2209
      %v2696 = vpack.c.b16 %v2228, %v2210
      %v2697 = vpack.c.b16 %v2229, %v2211
      %v2698 = vpack.c.b16 %v2230, %v2212
      %v2699 = vpack.c.b16 %v2231, %v2213
      %v2700 = vpack.c.b16 %v2232, %v2214
      %v2701 = vpack.c.b16 %v2251, %v2233
      %v2702 = vpack.c.b16 %v2252, %v2234
      %v2703 = vpack.c.b16 %v2253, %v2235
      %v2704 = vpack.c.b16 %v2254, %v2236
      %v2705 = vpack.c.b16 %v2255, %v2237
      %v2706 = vpack.c.b16 %v2256, %v2238
      %v2707 = vpack.c.b16 %v2257, %v2239
      %v2708 = vpack.c.b16 %v2258, %v2240
      %v2709 = vpack.c.b16 %v2259, %v2241
      %v2710 = vpack.c.b16 %v2260, %v2242
      %v2711 = vpack.c.b16 %v2261, %v2243
      %v2712 = vpack.c.b16 %v2262, %v2244
      %v2713 = vpack.c.b16 %v2263, %v2245
      %v2714 = vpack.c.b16 %v2264, %v2246
      %v2715 = vpack.c.b16 %v2265, %v2247
      %v2716 = vpack.c.b16 %v2266, %v2248
      %v2717 = vpack.c.b16 %v2267, %v2249
      %v2718 = vpack.c.b16 %v2268, %v2250
      %v3457 = vunpack.c.l.b16 %v627
      %v3458 = vunpack.c.l.b16 %v628
      %v3459 = vunpack.c.l.b16 %v629
      %v3460 = vunpack.c.l.b16 %v630
      %v3461 = vunpack.c.l.b16 %v631
      %v3462 = vunpack.c.l.b16 %v632
      %v3463 = vunpack.c.l.b16 %v633
      %v3464 = vunpack.c.l.b16 %v634
      %v3465 = vunpack.c.l.b16 %v635
      %v3466 = vunpack.c.l.b16 %v636
      %v3467 = vunpack.c.l.b16 %v637
      %v3468 = vunpack.c.l.b16 %v638
      %v3469 = vunpack.c.l.b16 %v639
      %v3470 = vunpack.c.l.b16 %v640
      %v3471 = vunpack.c.l.b16 %v641
      %v3472 = vunpack.c.l.b16 %v642
      %v3473 = vunpack.c.l.b16 %v643
      %v3474 = vunpack.c.l.b16 %v644
      %v3475 = vunpack.c.l.b16 %v645
      %v3476 = vunpack.c.l.b16 %v646
      %v3477 = vunpack.c.l.b16 %v647
      %v3478 = vunpack.c.l.b16 %v648
      %v3479 = vunpack.c.l.b16 %v649
      %v3480 = vunpack.c.l.b16 %v650
      %v3481 = vunpack.c.l.b16 %v651
      %v3482 = vunpack.c.l.b16 %v652
      %v3483 = vunpack.c.l.b16 %v653
      %v3484 = vunpack.c.l.b16 %v654
      %v3485 = vunpack.c.l.b16 %v655
      %v3486 = vunpack.c.l.b16 %v656
      %v3487 = vunpack.c.l.b16 %v657
      %v3488 = vunpack.c.l.b16 %v658
      %v3489 = vunpack.c.l.b16 %v659
      %v3490 = vunpack.c.l.b16 %v660
      %v3491 = vunpack.c.l.b16 %v661
      %v3492 = vunpack.c.l.b16 %v662
      %v3493 = vunpack.c.l.b16 %v663
      %v3494 = vunpack.c.l.b16 %v664
      %v3495 = vunpack.c.l.b16 %v665
      %v3496 = vunpack.c.l.b16 %v666
      %v3497 = vunpack.c.l.b16 %v667
      %v3498 = vunpack.c.l.b16 %v668
      %v3499 = vunpack.c.l.b16 %v669
      %v3500 = vunpack.c.l.b16 %v670
      %v3501 = vunpack.c.l.b16 %v671
      %v3502 = vunpack.c.l.b16 %v672
      %v3503 = vunpack.c.l.b16 %v673
      %v3504 = vunpack.c.l.b16 %v674
      %v3505 = vunpack.c.l.b16 %v675
      %v3506 = vunpack.c.l.b16 %v676
      %v3507 = vunpack.c.l.b16 %v677
      %v3508 = vunpack.c.l.b16 %v678
      %v3509 = vunpack.c.l.b16 %v679
      %v3510 = vunpack.c.l.b16 %v680
      %v3511 = vunpack.c.l.b16 %v681
      %v3512 = vunpack.c.l.b16 %v682
      %v3513 = vunpack.c.l.b16 %v683
      %v3514 = vunpack.c.l.b16 %v684
      %v3515 = vunpack.c.l.b16 %v685
      %v3516 = vunpack.c.l.b16 %v686
      %v3517 = vunpack.c.l.b16 %v687
      %v3518 = vunpack.c.l.b16 %v688
      %v3519 = vunpack.c.l.b16 %v689
      %v3520 = vunpack.c.l.b16 %v690
      %v3521 = vunpack.c.l.b16 %v691
      %v3522 = vunpack.c.l.b16 %v692
      %v3523 = vunpack.c.l.b16 %v693
      %v3524 = vunpack.c.l.b16 %v694
      %v3525 = vunpack.c.l.b16 %v695
      %v3526 = vunpack.c.l.b16 %v696
      %v3527 = vunpack.c.l.b16 %v697
      %v3528 = vunpack.c.l.b16 %v698
      %v3529 = vunpack.c.l.b16 %v699
      %v3530 = vunpack.c.l.b16 %v700
      %v3531 = vunpack.c.l.b16 %v701
      %v3532 = vunpack.c.l.b16 %v702
      %v3533 = vunpack.c.l.b16 %v703
      %v3534 = vunpack.c.l.b16 %v704
      %v3535 = vunpack.c.l.b16 %v705
      %v3536 = vunpack.c.l.b16 %v706
      %v3537 = vunpack.c.l.b16 %v707
      %v3538 = vunpack.c.l.b16 %v708
      %v3539 = vunpack.c.l.b16 %v709
      %v3540 = vunpack.c.l.b16 %v710
      %v3541 = vunpack.c.l.b16 %v711
      %v3542 = vunpack.c.l.b16 %v712
      %v3543 = vunpack.c.l.b16 %v713
      %v3544 = vunpack.c.l.b16 %v714
      %v3545 = vunpack.c.l.b16 %v715
      %v3546 = vunpack.c.l.b16 %v716
      %v3547 = vunpack.c.l.b16 %v717
      %v3548 = vunpack.c.l.b16 %v718
      %v3549 = vunpack.c.l.b16 %v719
      %v3550 = vunpack.c.l.b16 %v720
      %v3551 = vunpack.c.l.b16 %v721
      %v3552 = vunpack.c.l.b16 %v722
      %v3553 = vunpack.c.l.b16 %v723
      %v3554 = vunpack.c.l.b16 %v724
      %v3555 = vunpack.c.l.b16 %v725
      %v3556 = vunpack.c.l.b16 %v726
      %v3557 = vunpack.c.l.b16 %v727
      %v3558 = vunpack.c.l.b16 %v728
      %v3559 = vunpack.c.l.b16 %v729
      %v3560 = vunpack.c.l.b16 %v730
      %v3561 = vunpack.c.l.b16 %v731
      %v3562 = vunpack.c.l.b16 %v732
      %v3563 = vunpack.c.l.b16 %v733
      %v3564 = vunpack.c.l.b16 %v734
      %v3565 = vunpack.c.l.b16 %v735
      %v3566 = vunpack.c.l.b16 %v736
      %v3567 = vunpack.c.l.b16 %v737
      %v3568 = vunpack.c.l.b16 %v738
      %v3569 = vunpack.c.l.b16 %v739
      %v3570 = vunpack.c.l.b16 %v740
      %v3571 = vunpack.c.l.b16 %v741
      %v3572 = vunpack.c.l.b16 %v742
      %v3573 = vunpack.c.l.b16 %v743
      %v3574 = vunpack.c.l.b16 %v744
      %v3575 = vunpack.c.l.b16 %v745
      %v3576 = vunpack.c.l.b16 %v746
      %v3577 = vunpack.c.l.b16 %v747
      %v3578 = vunpack.c.l.b16 %v748
      %v3579 = vunpack.c.l.b16 %v749
      %v3580 = vunpack.c.l.b16 %v750
      %v3581 = vunpack.c.l.b16 %v751
      %v3582 = vunpack.c.l.b16 %v752
      %v3583 = vunpack.c.l.b16 %v753
      %v3584 = vunpack.c.l.b16 %v754
      %v3585 = vunpack.c.l.b16 %v755
      %v3586 = vunpack.c.l.b16 %v756
      %v3587 = vunpack.c.l.b16 %v757
      %v3588 = vunpack.c.l.b16 %v758
      %v3589 = vunpack.c.l.b16 %v759
      %v3590 = vunpack.c.l.b16 %v760
      %v3591 = vunpack.c.l.b16 %v761
      %v3592 = vunpack.c.l.b16 %v762
      %v3593 = vunpack.c.l.b16 %v763
      %v3594 = vunpack.c.l.b16 %v764
      %v3595 = vunpack.c.l.b16 %v765
      %v3596 = vunpack.c.l.b16 %v766
      %v3597 = vunpack.c.l.b16 %v767
      %v3598 = vunpack.c.l.b16 %v768
      %v3599 = vunpack.c.l.b16 %v769
      %v3600 = vunpack.c.l.b16 %v770
      %v3601 = vunpack.c.l.b16 %v771
      %v3602 = vunpack.c.l.b16 %v772
      %v3603 = vunpack.c.l.b16 %v773
      %v3604 = vunpack.c.l.b16 %v774
      %v3605 = vunpack.c.l.b16 %v775
      %v3606 = vunpack.c.l.b16 %v776
      %v3607 = vunpack.c.l.b16 %v777
      %v3608 = vunpack.c.l.b16 %v778
      %v3609 = vunpack.c.l.b16 %v779
      %v3610 = vunpack.c.l.b16 %v780
      %v3611 = vunpack.c.l.b16 %v781
      %v3612 = vunpack.c.l.b16 %v782
      %v3613 = vunpack.c.l.b16 %v783
      %v3614 = vunpack.c.l.b16 %v784
      %v3615 = vunpack.c.l.b16 %v785
      %v3616 = vunpack.c.l.b16 %v786
      %v3617 = vunpack.c.l.b16 %v787
      %v3618 = vunpack.c.l.b16 %v788
      %v3619 = vunpack.c.l.b16 %v789
      %v3620 = vunpack.c.l.b16 %v790
      %v3621 = vunpack.c.l.b16 %v791
      %v3622 = vunpack.c.l.b16 %v792
      %v3623 = vunpack.c.l.b16 %v793
      %v3624 = vunpack.c.l.b16 %v794
      %v3625 = vunpack.c.l.b16 %v795
      %v3626 = vunpack.c.l.b16 %v796
      %v3627 = vunpack.c.l.b16 %v797
      %v3628 = vunpack.c.l.b16 %v798
      %v3629 = vunpack.c.l.b16 %v799
      %v3630 = vunpack.c.l.b16 %v800
      %v3631 = vunpack.c.l.b16 %v801
      %v3632 = vunpack.c.l.b16 %v802
      %v3633 = vunpack.c.l.b16 %v803
      %v3634 = vunpack.c.l.b16 %v804
      %v3635 = vunpack.c.l.b16 %v805
      %v3636 = vunpack.c.l.b16 %v806
      %v3637 = vunpack.c.l.b16 %v807
      %v3638 = vunpack.c.l.b16 %v808
      %v3639 = vunpack.c.l.b16 %v809
      %v3640 = vunpack.c.l.b16 %v810
      %v3641 = vunpack.c.l.b16 %v811
      %v3642 = vunpack.c.l.b16 %v812
      %v3643 = vunpack.c.l.b16 %v813
      %v3644 = vunpack.c.l.b16 %v814
      %v3645 = vunpack.c.l.b16 %v815
      %v3646 = vunpack.c.l.b16 %v816
      %v3647 = vunpack.c.l.b16 %v817
      %v3648 = vunpack.c.l.b16 %v818
      %v3649 = vunpack.c.l.b16 %v819
      %v3650 = vunpack.c.l.b16 %v820
      %v3651 = vunpack.c.l.b16 %v821
      %v3652 = vunpack.c.l.b16 %v822
      %v3653 = vunpack.c.l.b16 %v823
      %v3654 = vunpack.c.l.b16 %v824
      %v3655 = vunpack.c.l.b16 %v825
      %v3656 = vunpack.c.l.b16 %v826
      %v3657 = vunpack.c.l.b16 %v827
      %v3658 = vunpack.c.l.b16 %v828
      %v3659 = vunpack.c.l.b16 %v829
      %v3660 = vunpack.c.l.b16 %v830
      %v3661 = vunpack.c.l.b16 %v831
      %v3662 = vunpack.c.l.b16 %v832
      %v3663 = vunpack.c.l.b16 %v833
      %v3664 = vunpack.c.l.b16 %v834
      %v3665 = vunpack.c.l.b16 %v835
      %v3666 = vunpack.c.l.b16 %v836
      %v3667 = vunpack.c.l.b16 %v837
      %v3668 = vunpack.c.l.b16 %v838
      %v3669 = vunpack.c.l.b16 %v839
      %v3670 = vunpack.c.l.b16 %v840
      %v3671 = vunpack.c.l.b16 %v841
      %v3672 = vunpack.c.l.b16 %v842
      %v3673 = vunpack.c.l.b16 %v843
      %v3674 = vunpack.c.l.b16 %v844
      %v3675 = vunpack.c.l.b16 %v845
      %v3676 = vunpack.c.l.b16 %v846
      %v3677 = vunpack.c.l.b16 %v847
      %v3678 = vunpack.c.l.b16 %v848
      %v3679 = vunpack.c.l.b16 %v849
      %v3680 = vunpack.c.l.b16 %v850
      %v3681 = vunpack.c.l.b16 %v851
      %v3682 = vunpack.c.l.b16 %v852
      %v3683 = vunpack.c.l.b16 %v853
      %v3684 = vunpack.c.l.b16 %v854
      %v3685 = vunpack.c.l.b16 %v855
      %v3686 = vunpack.c.l.b16 %v856
      %v3687 = vunpack.c.l.b16 %v857
      %v3688 = vunpack.c.l.b16 %v858
      %v3689 = vunpack.c.l.b16 %v859
      %v3690 = vunpack.c.l.b16 %v860
      %v3691 = vunpack.c.l.b16 %v861
      %v3692 = vunpack.c.l.b16 %v862
      %v3693 = vunpack.c.l.b16 %v863
      %v3694 = vunpack.c.l.b16 %v864
      %v3695 = vunpack.c.l.b16 %v865
      %v3696 = vunpack.c.l.b16 %v866
      %v3697 = vunpack.c.l.b16 %v867
      %v3698 = vunpack.c.l.b16 %v868
      %v3699 = vunpack.c.l.b16 %v869
      %v3700 = vunpack.c.l.b16 %v870
      %v3701 = vunpack.c.l.b16 %v871
      %v3702 = vunpack.c.l.b16 %v872
      %v3703 = vunpack.c.l.b16 %v873
      %v3704 = vunpack.c.l.b16 %v874
      %v3705 = vunpack.c.l.b16 %v875
      %v3706 = vunpack.c.l.b16 %v876
      %v3707 = vunpack.c.l.b16 %v877
      %v3708 = vunpack.c.l.b16 %v878
      %v3709 = vunpack.c.l.b16 %v879
      %v3710 = vunpack.c.l.b16 %v880
      %v3711 = vunpack.c.l.b16 %v881
      %v3712 = vunpack.c.l.b16 %v882
      %v3713 = vunpack.c.l.b16 %v883
      %v3714 = vunpack.c.l.b16 %v884
      %v3715 = vunpack.c.l.b16 %v885
      %v3716 = vunpack.c.l.b16 %v886
      %v3717 = vunpack.c.l.b16 %v887
      %v3718 = vunpack.c.l.b16 %v888
      %v3719 = vunpack.c.l.b16 %v889
      %v3720 = vunpack.c.l.b16 %v890
      %v3721 = vunpack.c.l.b16 %v891
      %v3722 = vunpack.c.l.b16 %v892
      %v3723 = vunpack.c.l.b16 %v893
      %v3724 = vunpack.c.l.b16 %v894
      %v3725 = vunpack.c.l.b16 %v895
      %v3726 = vunpack.c.l.b16 %v896
      %v3727 = vunpack.c.l.b16 %v897
      %v3728 = vunpack.c.l.b16 %v898
      %v3729 = vunpack.c.l.b16 %v899
      %v3730 = vunpack.c.l.b16 %v900
      %v3731 = vunpack.c.l.b16 %v901
      %v3732 = vunpack.c.l.b16 %v902
      %v3733 = vunpack.c.l.b16 %v903
      %v3734 = vunpack.c.l.b16 %v904
      %v3735 = vunpack.c.l.b16 %v905
      %v3736 = vunpack.c.l.b16 %v906
      %v3737 = vunpack.c.l.b16 %v907
      %v3738 = vunpack.c.l.b16 %v908
      %v3739 = vunpack.c.l.b16 %v909
      %v3740 = vunpack.c.l.b16 %v910
      %v3741 = vunpack.c.l.b16 %v911
      %v3742 = vunpack.c.l.b16 %v912
      %v3743 = vunpack.c.l.b16 %v913
      %v3744 = vunpack.c.l.b16 %v914
      %v3745 = vpack.c.b16 %v3458, %v3457
      %v3746 = vpack.c.b16 %v3460, %v3459
      %v3747 = vpack.c.b16 %v3462, %v3461
      %v3748 = vpack.c.b16 %v3464, %v3463
      %v3749 = vpack.c.b16 %v3466, %v3465
      %v3750 = vpack.c.b16 %v3468, %v3467
      %v3751 = vpack.c.b16 %v3470, %v3469
      %v3752 = vpack.c.b16 %v3472, %v3471
      %v3753 = vpack.c.b16 %v3474, %v3473
      %v3754 = vpack.c.b16 %v3476, %v3475
      %v3755 = vpack.c.b16 %v3478, %v3477
      %v3756 = vpack.c.b16 %v3480, %v3479
      %v3757 = vpack.c.b16 %v3482, %v3481
      %v3758 = vpack.c.b16 %v3484, %v3483
      %v3759 = vpack.c.b16 %v3486, %v3485
      %v3760 = vpack.c.b16 %v3488, %v3487
      %v3761 = vpack.c.b16 %v3490, %v3489
      %v3762 = vpack.c.b16 %v3492, %v3491
      %v3763 = vpack.c.b16 %v3494, %v3493
      %v3764 = vpack.c.b16 %v3496, %v3495
      %v3765 = vpack.c.b16 %v3498, %v3497
      %v3766 = vpack.c.b16 %v3500, %v3499
      %v3767 = vpack.c.b16 %v3502, %v3501
      %v3768 = vpack.c.b16 %v3504, %v3503
      %v3769 = vpack.c.b16 %v3506, %v3505
      %v3770 = vpack.c.b16 %v3508, %v3507
      %v3771 = vpack.c.b16 %v3510, %v3509
      %v3772 = vpack.c.b16 %v3512, %v3511
      %v3773 = vpack.c.b16 %v3514, %v3513
      %v3774 = vpack.c.b16 %v3516, %v3515
      %v3775 = vpack.c.b16 %v3518, %v3517
      %v3776 = vpack.c.b16 %v3520, %v3519
      %v3777 = vpack.c.b16 %v3522, %v3521
      %v3778 = vpack.c.b16 %v3524, %v3523
      %v3779 = vpack.c.b16 %v3526, %v3525
      %v3780 = vpack.c.b16 %v3528, %v3527
      %v3781 = vpack.c.b16 %v3530, %v3529
      %v3782 = vpack.c.b16 %v3532, %v3531
      %v3783 = vpack.c.b16 %v3534, %v3533
      %v3784 = vpack.c.b16 %v3536, %v3535
      %v3785 = vpack.c.b16 %v3538, %v3537
      %v3786 = vpack.c.b16 %v3540, %v3539
      %v3787 = vpack.c.b16 %v3542, %v3541
      %v3788 = vpack.c.b16 %v3544, %v3543
      %v3789 = vpack.c.b16 %v3546, %v3545
      %v3790 = vpack.c.b16 %v3548, %v3547
      %v3791 = vpack.c.b16 %v3550, %v3549
      %v3792 = vpack.c.b16 %v3552, %v3551
      %v3793 = vpack.c.b16 %v3554, %v3553
      %v3794 = vpack.c.b16 %v3556, %v3555
      %v3795 = vpack.c.b16 %v3558, %v3557
      %v3796 = vpack.c.b16 %v3560, %v3559
      %v3797 = vpack.c.b16 %v3562, %v3561
      %v3798 = vpack.c.b16 %v3564, %v3563
      %v3799 = vpack.c.b16 %v3566, %v3565
      %v3800 = vpack.c.b16 %v3568, %v3567
      %v3801 = vpack.c.b16 %v3570, %v3569
      %v3802 = vpack.c.b16 %v3572, %v3571
      %v3803 = vpack.c.b16 %v3574, %v3573
      %v3804 = vpack.c.b16 %v3576, %v3575
      %v3805 = vpack.c.b16 %v3578, %v3577
      %v3806 = vpack.c.b16 %v3580, %v3579
      %v3807 = vpack.c.b16 %v3582, %v3581
      %v3808 = vpack.c.b16 %v3584, %v3583
      %v3809 = vpack.c.b16 %v3586, %v3585
      %v3810 = vpack.c.b16 %v3588, %v3587
      %v3811 = vpack.c.b16 %v3590, %v3589
      %v3812 = vpack.c.b16 %v3592, %v3591
      %v3813 = vpack.c.b16 %v3594, %v3593
      %v3814 = vpack.c.b16 %v3596, %v3595
      %v3815 = vpack.c.b16 %v3598, %v3597
      %v3816 = vpack.c.b16 %v3600, %v3599
      %v3817 = vpack.c.b16 %v3602, %v3601
      %v3818 = vpack.c.b16 %v3604, %v3603
      %v3819 = vpack.c.b16 %v3606, %v3605
      %v3820 = vpack.c.b16 %v3608, %v3607
      %v3821 = vpack.c.b16 %v3610, %v3609
      %v3822 = vpack.c.b16 %v3612, %v3611
      %v3823 = vpack.c.b16 %v3614, %v3613
      %v3824 = vpack.c.b16 %v3616, %v3615
      %v3825 = vpack.c.b16 %v3618, %v3617
      %v3826 = vpack.c.b16 %v3620, %v3619
      %v3827 = vpack.c.b16 %v3622, %v3621
      %v3828 = vpack.c.b16 %v3624, %v3623
      %v3829 = vpack.c.b16 %v3626, %v3625
      %v3830 = vpack.c.b16 %v3628, %v3627
      %v3831 = vpack.c.b16 %v3630, %v3629
      %v3832 = vpack.c.b16 %v3632, %v3631
      %v3833 = vpack.c.b16 %v3634, %v3633
      %v3834 = vpack.c.b16 %v3636, %v3635
      %v3835 = vpack.c.b16 %v3638, %v3637
      %v3836 = vpack.c.b16 %v3640, %v3639
      %v3837 = vpack.c.b16 %v3642, %v3641
      %v3838 = vpack.c.b16 %v3644, %v3643
      %v3839 = vpack.c.b16 %v3646, %v3645
      %v3840 = vpack.c.b16 %v3648, %v3647
      %v3841 = vpack.c.b16 %v3650, %v3649
      %v3842 = vpack.c.b16 %v3652, %v3651
      %v3843 = vpack.c.b16 %v3654, %v3653
      %v3844 = vpack.c.b16 %v3656, %v3655
      %v3845 = vpack.c.b16 %v3658, %v3657
      %v3846 = vpack.c.b16 %v3660, %v3659
      %v3847 = vpack.c.b16 %v3662, %v3661
      %v3848 = vpack.c.b16 %v3664, %v3663
      %v3849 = vpack.c.b16 %v3666, %v3665
      %v3850 = vpack.c.b16 %v3668, %v3667
      %v3851 = vpack.c.b16 %v3670, %v3669
      %v3852 = vpack.c.b16 %v3672, %v3671
      %v3853 = vpack.c.b16 %v3674, %v3673
      %v3854 = vpack.c.b16 %v3676, %v3675
      %v3855 = vpack.c.b16 %v3678, %v3677
      %v3856 = vpack.c.b16 %v3680, %v3679
      %v3857 = vpack.c.b16 %v3682, %v3681
      %v3858 = vpack.c.b16 %v3684, %v3683
      %v3859 = vpack.c.b16 %v3686, %v3685
      %v3860 = vpack.c.b16 %v3688, %v3687
      %v3861 = vpack.c.b16 %v3690, %v3689
      %v3862 = vpack.c.b16 %v3692, %v3691
      %v3863 = vpack.c.b16 %v3694, %v3693
      %v3864 = vpack.c.b16 %v3696, %v3695
      %v3865 = vpack.c.b16 %v3698, %v3697
      %v3866 = vpack.c.b16 %v3700, %v3699
      %v3867 = vpack.c.b16 %v3702, %v3701
      %v3868 = vpack.c.b16 %v3704, %v3703
      %v3869 = vpack.c.b16 %v3706, %v3705
      %v3870 = vpack.c.b16 %v3708, %v3707
      %v3871 = vpack.c.b16 %v3710, %v3709
      %v3872 = vpack.c.b16 %v3712, %v3711
      %v3873 = vpack.c.b16 %v3714, %v3713
      %v3874 = vpack.c.b16 %v3716, %v3715
      %v3875 = vpack.c.b16 %v3718, %v3717
      %v3876 = vpack.c.b16 %v3720, %v3719
      %v3877 = vpack.c.b16 %v3722, %v3721
      %v3878 = vpack.c.b16 %v3724, %v3723
      %v3879 = vpack.c.b16 %v3726, %v3725
      %v3880 = vpack.c.b16 %v3728, %v3727
      %v3881 = vpack.c.b16 %v3730, %v3729
      %v3882 = vpack.c.b16 %v3732, %v3731
      %v3883 = vpack.c.b16 %v3734, %v3733
      %v3884 = vpack.c.b16 %v3736, %v3735
      %v3885 = vpack.c.b16 %v3738, %v3737
      %v3886 = vpack.c.b16 %v3740, %v3739
      %v3887 = vpack.c.b16 %v3742, %v3741
      %v3888 = vpack.c.b16 %v3744, %v3743
      %4033 = vmatpush.bf16.msra.mxu0 %v3752
      %4034 = vmatpush.bf16.msra.mxu0 %v3751
      %4035 = vmatpush.bf16.msra.mxu0 %v3750
      %4036 = vmatpush.bf16.msra.mxu0 %v3749
      %4037 = vmatpush.bf16.msra.mxu0 %v3748
      %4038 = vmatpush.bf16.msra.mxu0 %v3747
      %4039 = vmatpush.bf16.msra.mxu0 %v3746
      %4040 = vmatpush.bf16.msra.mxu0 %v3745
      %4041 = vmatmul.bf16.gmra.mxu0 %v2269
      %v4042 = vpop.f32.mrf.mxu0
      %v4043 = vadd.f32 %v917, %v4042
      %v4044 = vpop.f32.mrf.mxu0
      %v4045 = vadd.f32 %v917, %v4044
      %4046 = vmatmul.bf16.gmra.mxu0 %v2287
      %v4047 = vpop.f32.mrf.mxu0
      %v4048 = vadd.f32 %v917, %v4047
      %v4049 = vpop.f32.mrf.mxu0
      %v4050 = vadd.f32 %v917, %v4049
      %4051 = vmatmul.bf16.gmra.mxu0 %v2305
      %v4052 = vpop.f32.mrf.mxu0
      %v4053 = vadd.f32 %v917, %v4052
      %v4054 = vpop.f32.mrf.mxu0
      %v4055 = vadd.f32 %v917, %v4054
      %4056 = vmatmul.bf16.gmra.mxu0 %v2323
      %v4057 = vpop.f32.mrf.mxu0
      %v4058 = vadd.f32 %v917, %v4057
      %v4059 = vpop.f32.mrf.mxu0
      %v4060 = vadd.f32 %v917, %v4059
      %4061 = vmatmul.bf16.gmra.mxu0 %v2341
      %v4062 = vpop.f32.mrf.mxu0
      %v4063 = vadd.f32 %v917, %v4062
      %v4064 = vpop.f32.mrf.mxu0
      %v4065 = vadd.f32 %v917, %v4064
      %4066 = vmatmul.bf16.gmra.mxu0 %v2359
      %v4067 = vpop.f32.mrf.mxu0
      %v4068 = vadd.f32 %v917, %v4067
      %v4069 = vpop.f32.mrf.mxu0
      %v4070 = vadd.f32 %v917, %v4069
      %4071 = vmatmul.bf16.gmra.mxu0 %v2377
      %v4072 = vpop.f32.mrf.mxu0
      %v4073 = vadd.f32 %v917, %v4072
      %v4074 = vpop.f32.mrf.mxu0
      %v4075 = vadd.f32 %v917, %v4074
      %4076 = vmatmul.bf16.gmra.mxu0 %v2395
      %v4077 = vpop.f32.mrf.mxu0
      %v4078 = vadd.f32 %v917, %v4077
      %v4079 = vpop.f32.mrf.mxu0
      %v4080 = vadd.f32 %v917, %v4079
      %4081 = vmatmul.bf16.gmra.mxu0 %v2413
      %v4082 = vpop.f32.mrf.mxu0
      %v4083 = vadd.f32 %v917, %v4082
      %v4084 = vpop.f32.mrf.mxu0
      %v4085 = vadd.f32 %v917, %v4084
      %4086 = vmatmul.bf16.gmra.mxu0 %v2431
      %v4087 = vpop.f32.mrf.mxu0
      %v4088 = vadd.f32 %v917, %v4087
      %v4089 = vpop.f32.mrf.mxu0
      %v4090 = vadd.f32 %v917, %v4089
      %4091 = vmatmul.bf16.gmra.mxu0 %v2449
      %v4092 = vpop.f32.mrf.mxu0
      %v4093 = vadd.f32 %v917, %v4092
      %v4094 = vpop.f32.mrf.mxu0
      %v4095 = vadd.f32 %v917, %v4094
      %4096 = vmatmul.bf16.gmra.mxu0 %v2467
      %v4097 = vpop.f32.mrf.mxu0
      %v4098 = vadd.f32 %v917, %v4097
      %v4099 = vpop.f32.mrf.mxu0
      %v4100 = vadd.f32 %v917, %v4099
      %4101 = vmatmul.bf16.gmra.mxu0 %v2485
      %v4102 = vpop.f32.mrf.mxu0
      %v4103 = vadd.f32 %v917, %v4102
      %v4104 = vpop.f32.mrf.mxu0
      %v4105 = vadd.f32 %v917, %v4104
      %4106 = vmatmul.bf16.gmra.mxu0 %v2503
      %v4107 = vpop.f32.mrf.mxu0
      %v4108 = vadd.f32 %v917, %v4107
      %v4109 = vpop.f32.mrf.mxu0
      %v4110 = vadd.f32 %v917, %v4109
      %4111 = vmatmul.bf16.gmra.mxu0 %v2521
      %v4112 = vpop.f32.mrf.mxu0
      %v4113 = vadd.f32 %v917, %v4112
      %v4114 = vpop.f32.mrf.mxu0
      %v4115 = vadd.f32 %v917, %v4114
      %4116 = vmatmul.bf16.gmra.mxu0 %v2539
      %v4117 = vpop.f32.mrf.mxu0
      %v4118 = vadd.f32 %v917, %v4117
      %v4119 = vpop.f32.mrf.mxu0
      %v4120 = vadd.f32 %v917, %v4119
      %4121 = vmatmul.bf16.gmra.mxu0 %v2557
      %v4122 = vpop.f32.mrf.mxu0
      %v4123 = vadd.f32 %v917, %v4122
      %v4124 = vpop.f32.mrf.mxu0
      %v4125 = vadd.f32 %v917, %v4124
      %4126 = vmatmul.bf16.gmra.mxu0 %v2575
      %v4127 = vpop.f32.mrf.mxu0
      %v4128 = vadd.f32 %v917, %v4127
      %v4129 = vpop.f32.mrf.mxu0
      %v4130 = vadd.f32 %v917, %v4129
      %4131 = vmatmul.bf16.gmra.mxu0 %v2593
      %v4132 = vpop.f32.mrf.mxu0
      %v4133 = vadd.f32 %v917, %v4132
      %v4134 = vpop.f32.mrf.mxu0
      %v4135 = vadd.f32 %v917, %v4134
      %4136 = vmatmul.bf16.gmra.mxu0 %v2611
      %v4137 = vpop.f32.mrf.mxu0
      %v4138 = vadd.f32 %v917, %v4137
      %v4139 = vpop.f32.mrf.mxu0
      %v4140 = vadd.f32 %v917, %v4139
      %4141 = vmatmul.bf16.gmra.mxu0 %v2629
      %v4142 = vpop.f32.mrf.mxu0
      %v4143 = vadd.f32 %v917, %v4142
      %v4144 = vpop.f32.mrf.mxu0
      %v4145 = vadd.f32 %v917, %v4144
      %4146 = vmatmul.bf16.gmra.mxu0 %v2647
      %v4147 = vpop.f32.mrf.mxu0
      %v4148 = vadd.f32 %v917, %v4147
      %v4149 = vpop.f32.mrf.mxu0
      %v4150 = vadd.f32 %v917, %v4149
      %4151 = vmatmul.bf16.gmra.mxu0 %v2665
      %v4152 = vpop.f32.mrf.mxu0
      %v4153 = vadd.f32 %v917, %v4152
      %v4154 = vpop.f32.mrf.mxu0
      %v4155 = vadd.f32 %v917, %v4154
      %4156 = vmatmul.bf16.gmra.mxu0 %v2683
      %v4157 = vpop.f32.mrf.mxu0
      %v4158 = vadd.f32 %v917, %v4157
      %v4159 = vpop.f32.mrf.mxu0
      %v4160 = vadd.f32 %v917, %v4159
      %4161 = vmatmul.bf16.gmra.mxu0 %v2701
      %v4162 = vpop.f32.mrf.mxu0
      %v4163 = vadd.f32 %v917, %v4162
      %v4164 = vpop.f32.mrf.mxu0
      %v4165 = vadd.f32 %v917, %v4164
      %4166 = vdwg.mxu0
      %4167 = vmatpush.bf16.msra.mxu0 %v3760
      %4168 = vmatpush.bf16.msra.mxu0 %v3759
      %4169 = vmatpush.bf16.msra.mxu0 %v3758
      %4170 = vmatpush.bf16.msra.mxu0 %v3757
      %4171 = vmatpush.bf16.msra.mxu0 %v3756
      %4172 = vmatpush.bf16.msra.mxu0 %v3755
      %4173 = vmatpush.bf16.msra.mxu0 %v3754
      %4174 = vmatpush.bf16.msra.mxu0 %v3753
      %4175 = vmatmul.bf16.gmra.mxu0 %v2270
      %v4176 = vpop.f32.mrf.mxu0
      %v4177 = vadd.f32 %v4043, %v4176
      %v4178 = vpop.f32.mrf.mxu0
      %v4179 = vadd.f32 %v4045, %v4178
      %4180 = vmatmul.bf16.gmra.mxu0 %v2288
      %v4181 = vpop.f32.mrf.mxu0
      %v4182 = vadd.f32 %v4048, %v4181
      %v4183 = vpop.f32.mrf.mxu0
      %v4184 = vadd.f32 %v4050, %v4183
      %4185 = vmatmul.bf16.gmra.mxu0 %v2306
      %v4186 = vpop.f32.mrf.mxu0
      %v4187 = vadd.f32 %v4053, %v4186
      %v4188 = vpop.f32.mrf.mxu0
      %v4189 = vadd.f32 %v4055, %v4188
      %4190 = vmatmul.bf16.gmra.mxu0 %v2324
      %v4191 = vpop.f32.mrf.mxu0
      %v4192 = vadd.f32 %v4058, %v4191
      %v4193 = vpop.f32.mrf.mxu0
      %v4194 = vadd.f32 %v4060, %v4193
      %4195 = vmatmul.bf16.gmra.mxu0 %v2342
      %v4196 = vpop.f32.mrf.mxu0
      %v4197 = vadd.f32 %v4063, %v4196
      %v4198 = vpop.f32.mrf.mxu0
      %v4199 = vadd.f32 %v4065, %v4198
      %4200 = vmatmul.bf16.gmra.mxu0 %v2360
      %v4201 = vpop.f32.mrf.mxu0
      %v4202 = vadd.f32 %v4068, %v4201
      %v4203 = vpop.f32.mrf.mxu0
      %v4204 = vadd.f32 %v4070, %v4203
      %4205 = vmatmul.bf16.gmra.mxu0 %v2378
      %v4206 = vpop.f32.mrf.mxu0
      %v4207 = vadd.f32 %v4073, %v4206
      %v4208 = vpop.f32.mrf.mxu0
      %v4209 = vadd.f32 %v4075, %v4208
      %4210 = vmatmul.bf16.gmra.mxu0 %v2396
      %v4211 = vpop.f32.mrf.mxu0
      %v4212 = vadd.f32 %v4078, %v4211
      %v4213 = vpop.f32.mrf.mxu0
      %v4214 = vadd.f32 %v4080, %v4213
      %4215 = vmatmul.bf16.gmra.mxu0 %v2414
      %v4216 = vpop.f32.mrf.mxu0
      %v4217 = vadd.f32 %v4083, %v4216
      %v4218 = vpop.f32.mrf.mxu0
      %v4219 = vadd.f32 %v4085, %v4218
      %4220 = vmatmul.bf16.gmra.mxu0 %v2432
      %v4221 = vpop.f32.mrf.mxu0
      %v4222 = vadd.f32 %v4088, %v4221
      %v4223 = vpop.f32.mrf.mxu0
      %v4224 = vadd.f32 %v4090, %v4223
      %4225 = vmatmul.bf16.gmra.mxu0 %v2450
      %v4226 = vpop.f32.mrf.mxu0
      %v4227 = vadd.f32 %v4093, %v4226
      %v4228 = vpop.f32.mrf.mxu0
      %v4229 = vadd.f32 %v4095, %v4228
      %4230 = vmatmul.bf16.gmra.mxu0 %v2468
      %v4231 = vpop.f32.mrf.mxu0
      %v4232 = vadd.f32 %v4098, %v4231
      %v4233 = vpop.f32.mrf.mxu0
      %v4234 = vadd.f32 %v4100, %v4233
      %4235 = vmatmul.bf16.gmra.mxu0 %v2486
      %v4236 = vpop.f32.mrf.mxu0
      %v4237 = vadd.f32 %v4103, %v4236
      %v4238 = vpop.f32.mrf.mxu0
      %v4239 = vadd.f32 %v4105, %v4238
      %4240 = vmatmul.bf16.gmra.mxu0 %v2504
      %v4241 = vpop.f32.mrf.mxu0
      %v4242 = vadd.f32 %v4108, %v4241
      %v4243 = vpop.f32.mrf.mxu0
      %v4244 = vadd.f32 %v4110, %v4243
      %4245 = vmatmul.bf16.gmra.mxu0 %v2522
      %v4246 = vpop.f32.mrf.mxu0
      %v4247 = vadd.f32 %v4113, %v4246
      %v4248 = vpop.f32.mrf.mxu0
      %v4249 = vadd.f32 %v4115, %v4248
      %4250 = vmatmul.bf16.gmra.mxu0 %v2540
      %v4251 = vpop.f32.mrf.mxu0
      %v4252 = vadd.f32 %v4118, %v4251
      %v4253 = vpop.f32.mrf.mxu0
      %v4254 = vadd.f32 %v4120, %v4253
      %4255 = vmatmul.bf16.gmra.mxu0 %v2558
      %v4256 = vpop.f32.mrf.mxu0
      %v4257 = vadd.f32 %v4123, %v4256
      %v4258 = vpop.f32.mrf.mxu0
      %v4259 = vadd.f32 %v4125, %v4258
      %4260 = vmatmul.bf16.gmra.mxu0 %v2576
      %v4261 = vpop.f32.mrf.mxu0
      %v4262 = vadd.f32 %v4128, %v4261
      %v4263 = vpop.f32.mrf.mxu0
      %v4264 = vadd.f32 %v4130, %v4263
      %4265 = vmatmul.bf16.gmra.mxu0 %v2594
      %v4266 = vpop.f32.mrf.mxu0
      %v4267 = vadd.f32 %v4133, %v4266
      %v4268 = vpop.f32.mrf.mxu0
      %v4269 = vadd.f32 %v4135, %v4268
      %4270 = vmatmul.bf16.gmra.mxu0 %v2612
      %v4271 = vpop.f32.mrf.mxu0
      %v4272 = vadd.f32 %v4138, %v4271
      %v4273 = vpop.f32.mrf.mxu0
      %v4274 = vadd.f32 %v4140, %v4273
      %4275 = vmatmul.bf16.gmra.mxu0 %v2630
      %v4276 = vpop.f32.mrf.mxu0
      %v4277 = vadd.f32 %v4143, %v4276
      %v4278 = vpop.f32.mrf.mxu0
      %v4279 = vadd.f32 %v4145, %v4278
      %4280 = vmatmul.bf16.gmra.mxu0 %v2648
      %v4281 = vpop.f32.mrf.mxu0
      %v4282 = vadd.f32 %v4148, %v4281
      %v4283 = vpop.f32.mrf.mxu0
      %v4284 = vadd.f32 %v4150, %v4283
      %4285 = vmatmul.bf16.gmra.mxu0 %v2666
      %v4286 = vpop.f32.mrf.mxu0
      %v4287 = vadd.f32 %v4153, %v4286
      %v4288 = vpop.f32.mrf.mxu0
      %v4289 = vadd.f32 %v4155, %v4288
      %4290 = vmatmul.bf16.gmra.mxu0 %v2684
      %v4291 = vpop.f32.mrf.mxu0
      %v4292 = vadd.f32 %v4158, %v4291
      %v4293 = vpop.f32.mrf.mxu0
      %v4294 = vadd.f32 %v4160, %v4293
      %4295 = vmatmul.bf16.gmra.mxu0 %v2702
      %v4296 = vpop.f32.mrf.mxu0
      %v4297 = vadd.f32 %v4163, %v4296
      %v4298 = vpop.f32.mrf.mxu0
      %v4299 = vadd.f32 %v4165, %v4298
      %4300 = vdwg.mxu0
      %4301 = vmatpush.bf16.msra.mxu0 %v3768
      %4302 = vmatpush.bf16.msra.mxu0 %v3767
      %4303 = vmatpush.bf16.msra.mxu0 %v3766
      %4304 = vmatpush.bf16.msra.mxu0 %v3765
      %4305 = vmatpush.bf16.msra.mxu0 %v3764
      %4306 = vmatpush.bf16.msra.mxu0 %v3763
      %4307 = vmatpush.bf16.msra.mxu0 %v3762
      %4308 = vmatpush.bf16.msra.mxu0 %v3761
      %4309 = vmatmul.bf16.gmra.mxu0 %v2271
      %v4310 = vpop.f32.mrf.mxu0
      %v4311 = vadd.f32 %v4177, %v4310
      %v4312 = vpop.f32.mrf.mxu0
      %v4313 = vadd.f32 %v4179, %v4312
      %4314 = vmatmul.bf16.gmra.mxu0 %v2289
      %v4315 = vpop.f32.mrf.mxu0
      %v4316 = vadd.f32 %v4182, %v4315
      %v4317 = vpop.f32.mrf.mxu0
      %v4318 = vadd.f32 %v4184, %v4317
      %4319 = vmatmul.bf16.gmra.mxu0 %v2307
      %v4320 = vpop.f32.mrf.mxu0
      %v4321 = vadd.f32 %v4187, %v4320
      %v4322 = vpop.f32.mrf.mxu0
      %v4323 = vadd.f32 %v4189, %v4322
      %4324 = vmatmul.bf16.gmra.mxu0 %v2325
      %v4325 = vpop.f32.mrf.mxu0
      %v4326 = vadd.f32 %v4192, %v4325
      %v4327 = vpop.f32.mrf.mxu0
      %v4328 = vadd.f32 %v4194, %v4327
      %4329 = vmatmul.bf16.gmra.mxu0 %v2343
      %v4330 = vpop.f32.mrf.mxu0
      %v4331 = vadd.f32 %v4197, %v4330
      %v4332 = vpop.f32.mrf.mxu0
      %v4333 = vadd.f32 %v4199, %v4332
      %4334 = vmatmul.bf16.gmra.mxu0 %v2361
      %v4335 = vpop.f32.mrf.mxu0
      %v4336 = vadd.f32 %v4202, %v4335
      %v4337 = vpop.f32.mrf.mxu0
      %v4338 = vadd.f32 %v4204, %v4337
      %4339 = vmatmul.bf16.gmra.mxu0 %v2379
      %v4340 = vpop.f32.mrf.mxu0
      %v4341 = vadd.f32 %v4207, %v4340
      %v4342 = vpop.f32.mrf.mxu0
      %v4343 = vadd.f32 %v4209, %v4342
      %4344 = vmatmul.bf16.gmra.mxu0 %v2397
      %v4345 = vpop.f32.mrf.mxu0
      %v4346 = vadd.f32 %v4212, %v4345
      %v4347 = vpop.f32.mrf.mxu0
      %v4348 = vadd.f32 %v4214, %v4347
      %4349 = vmatmul.bf16.gmra.mxu0 %v2415
      %v4350 = vpop.f32.mrf.mxu0
      %v4351 = vadd.f32 %v4217, %v4350
      %v4352 = vpop.f32.mrf.mxu0
      %v4353 = vadd.f32 %v4219, %v4352
      %4354 = vmatmul.bf16.gmra.mxu0 %v2433
      %v4355 = vpop.f32.mrf.mxu0
      %v4356 = vadd.f32 %v4222, %v4355
      %v4357 = vpop.f32.mrf.mxu0
      %v4358 = vadd.f32 %v4224, %v4357
      %4359 = vmatmul.bf16.gmra.mxu0 %v2451
      %v4360 = vpop.f32.mrf.mxu0
      %v4361 = vadd.f32 %v4227, %v4360
      %v4362 = vpop.f32.mrf.mxu0
      %v4363 = vadd.f32 %v4229, %v4362
      %4364 = vmatmul.bf16.gmra.mxu0 %v2469
      %v4365 = vpop.f32.mrf.mxu0
      %v4366 = vadd.f32 %v4232, %v4365
      %v4367 = vpop.f32.mrf.mxu0
      %v4368 = vadd.f32 %v4234, %v4367
      %4369 = vmatmul.bf16.gmra.mxu0 %v2487
      %v4370 = vpop.f32.mrf.mxu0
      %v4371 = vadd.f32 %v4237, %v4370
      %v4372 = vpop.f32.mrf.mxu0
      %v4373 = vadd.f32 %v4239, %v4372
      %4374 = vmatmul.bf16.gmra.mxu0 %v2505
      %v4375 = vpop.f32.mrf.mxu0
      %v4376 = vadd.f32 %v4242, %v4375
      %v4377 = vpop.f32.mrf.mxu0
      %v4378 = vadd.f32 %v4244, %v4377
      %4379 = vmatmul.bf16.gmra.mxu0 %v2523
      %v4380 = vpop.f32.mrf.mxu0
      %v4381 = vadd.f32 %v4247, %v4380
      %v4382 = vpop.f32.mrf.mxu0
      %v4383 = vadd.f32 %v4249, %v4382
      %4384 = vmatmul.bf16.gmra.mxu0 %v2541
      %v4385 = vpop.f32.mrf.mxu0
      %v4386 = vadd.f32 %v4252, %v4385
      %v4387 = vpop.f32.mrf.mxu0
      %v4388 = vadd.f32 %v4254, %v4387
      %4389 = vmatmul.bf16.gmra.mxu0 %v2559
      %v4390 = vpop.f32.mrf.mxu0
      %v4391 = vadd.f32 %v4257, %v4390
      %v4392 = vpop.f32.mrf.mxu0
      %v4393 = vadd.f32 %v4259, %v4392
      %4394 = vmatmul.bf16.gmra.mxu0 %v2577
      %v4395 = vpop.f32.mrf.mxu0
      %v4396 = vadd.f32 %v4262, %v4395
      %v4397 = vpop.f32.mrf.mxu0
      %v4398 = vadd.f32 %v4264, %v4397
      %4399 = vmatmul.bf16.gmra.mxu0 %v2595
      %v4400 = vpop.f32.mrf.mxu0
      %v4401 = vadd.f32 %v4267, %v4400
      %v4402 = vpop.f32.mrf.mxu0
      %v4403 = vadd.f32 %v4269, %v4402
      %4404 = vmatmul.bf16.gmra.mxu0 %v2613
      %v4405 = vpop.f32.mrf.mxu0
      %v4406 = vadd.f32 %v4272, %v4405
      %v4407 = vpop.f32.mrf.mxu0
      %v4408 = vadd.f32 %v4274, %v4407
      %4409 = vmatmul.bf16.gmra.mxu0 %v2631
      %v4410 = vpop.f32.mrf.mxu0
      %v4411 = vadd.f32 %v4277, %v4410
      %v4412 = vpop.f32.mrf.mxu0
      %v4413 = vadd.f32 %v4279, %v4412
      %4414 = vmatmul.bf16.gmra.mxu0 %v2649
      %v4415 = vpop.f32.mrf.mxu0
      %v4416 = vadd.f32 %v4282, %v4415
      %v4417 = vpop.f32.mrf.mxu0
      %v4418 = vadd.f32 %v4284, %v4417
      %4419 = vmatmul.bf16.gmra.mxu0 %v2667
      %v4420 = vpop.f32.mrf.mxu0
      %v4421 = vadd.f32 %v4287, %v4420
      %v4422 = vpop.f32.mrf.mxu0
      %v4423 = vadd.f32 %v4289, %v4422
      %4424 = vmatmul.bf16.gmra.mxu0 %v2685
      %v4425 = vpop.f32.mrf.mxu0
      %v4426 = vadd.f32 %v4292, %v4425
      %v4427 = vpop.f32.mrf.mxu0
      %v4428 = vadd.f32 %v4294, %v4427
      %4429 = vmatmul.bf16.gmra.mxu0 %v2703
      %v4430 = vpop.f32.mrf.mxu0
      %v4431 = vadd.f32 %v4297, %v4430
      %v4432 = vpop.f32.mrf.mxu0
      %v4433 = vadd.f32 %v4299, %v4432
      %4434 = vdwg.mxu0
      %4435 = vmatpush.bf16.msra.mxu0 %v3776
      %4436 = vmatpush.bf16.msra.mxu0 %v3775
      %4437 = vmatpush.bf16.msra.mxu0 %v3774
      %4438 = vmatpush.bf16.msra.mxu0 %v3773
      %4439 = vmatpush.bf16.msra.mxu0 %v3772
      %4440 = vmatpush.bf16.msra.mxu0 %v3771
      %4441 = vmatpush.bf16.msra.mxu0 %v3770
      %4442 = vmatpush.bf16.msra.mxu0 %v3769
      %4443 = vmatmul.bf16.gmra.mxu0 %v2272
      %v4444 = vpop.f32.mrf.mxu0
      %v4445 = vadd.f32 %v4311, %v4444
      %v4446 = vpop.f32.mrf.mxu0
      %v4447 = vadd.f32 %v4313, %v4446
      %4448 = vmatmul.bf16.gmra.mxu0 %v2290
      %v4449 = vpop.f32.mrf.mxu0
      %v4450 = vadd.f32 %v4316, %v4449
      %v4451 = vpop.f32.mrf.mxu0
      %v4452 = vadd.f32 %v4318, %v4451
      %4453 = vmatmul.bf16.gmra.mxu0 %v2308
      %v4454 = vpop.f32.mrf.mxu0
      %v4455 = vadd.f32 %v4321, %v4454
      %v4456 = vpop.f32.mrf.mxu0
      %v4457 = vadd.f32 %v4323, %v4456
      %4458 = vmatmul.bf16.gmra.mxu0 %v2326
      %v4459 = vpop.f32.mrf.mxu0
      %v4460 = vadd.f32 %v4326, %v4459
      %v4461 = vpop.f32.mrf.mxu0
      %v4462 = vadd.f32 %v4328, %v4461
      %4463 = vmatmul.bf16.gmra.mxu0 %v2344
      %v4464 = vpop.f32.mrf.mxu0
      %v4465 = vadd.f32 %v4331, %v4464
      %v4466 = vpop.f32.mrf.mxu0
      %v4467 = vadd.f32 %v4333, %v4466
      %4468 = vmatmul.bf16.gmra.mxu0 %v2362
      %v4469 = vpop.f32.mrf.mxu0
      %v4470 = vadd.f32 %v4336, %v4469
      %v4471 = vpop.f32.mrf.mxu0
      %v4472 = vadd.f32 %v4338, %v4471
      %4473 = vmatmul.bf16.gmra.mxu0 %v2380
      %v4474 = vpop.f32.mrf.mxu0
      %v4475 = vadd.f32 %v4341, %v4474
      %v4476 = vpop.f32.mrf.mxu0
      %v4477 = vadd.f32 %v4343, %v4476
      %4478 = vmatmul.bf16.gmra.mxu0 %v2398
      %v4479 = vpop.f32.mrf.mxu0
      %v4480 = vadd.f32 %v4346, %v4479
      %v4481 = vpop.f32.mrf.mxu0
      %v4482 = vadd.f32 %v4348, %v4481
      %4483 = vmatmul.bf16.gmra.mxu0 %v2416
      %v4484 = vpop.f32.mrf.mxu0
      %v4485 = vadd.f32 %v4351, %v4484
      %v4486 = vpop.f32.mrf.mxu0
      %v4487 = vadd.f32 %v4353, %v4486
      %4488 = vmatmul.bf16.gmra.mxu0 %v2434
      %v4489 = vpop.f32.mrf.mxu0
      %v4490 = vadd.f32 %v4356, %v4489
      %v4491 = vpop.f32.mrf.mxu0
      %v4492 = vadd.f32 %v4358, %v4491
      %4493 = vmatmul.bf16.gmra.mxu0 %v2452
      %v4494 = vpop.f32.mrf.mxu0
      %v4495 = vadd.f32 %v4361, %v4494
      %v4496 = vpop.f32.mrf.mxu0
      %v4497 = vadd.f32 %v4363, %v4496
      %4498 = vmatmul.bf16.gmra.mxu0 %v2470
      %v4499 = vpop.f32.mrf.mxu0
      %v4500 = vadd.f32 %v4366, %v4499
      %v4501 = vpop.f32.mrf.mxu0
      %v4502 = vadd.f32 %v4368, %v4501
      %4503 = vmatmul.bf16.gmra.mxu0 %v2488
      %v4504 = vpop.f32.mrf.mxu0
      %v4505 = vadd.f32 %v4371, %v4504
      %v4506 = vpop.f32.mrf.mxu0
      %v4507 = vadd.f32 %v4373, %v4506
      %4508 = vmatmul.bf16.gmra.mxu0 %v2506
      %v4509 = vpop.f32.mrf.mxu0
      %v4510 = vadd.f32 %v4376, %v4509
      %v4511 = vpop.f32.mrf.mxu0
      %v4512 = vadd.f32 %v4378, %v4511
      %4513 = vmatmul.bf16.gmra.mxu0 %v2524
      %v4514 = vpop.f32.mrf.mxu0
      %v4515 = vadd.f32 %v4381, %v4514
      %v4516 = vpop.f32.mrf.mxu0
      %v4517 = vadd.f32 %v4383, %v4516
      %4518 = vmatmul.bf16.gmra.mxu0 %v2542
      %v4519 = vpop.f32.mrf.mxu0
      %v4520 = vadd.f32 %v4386, %v4519
      %v4521 = vpop.f32.mrf.mxu0
      %v4522 = vadd.f32 %v4388, %v4521
      %4523 = vmatmul.bf16.gmra.mxu0 %v2560
      %v4524 = vpop.f32.mrf.mxu0
      %v4525 = vadd.f32 %v4391, %v4524
      %v4526 = vpop.f32.mrf.mxu0
      %v4527 = vadd.f32 %v4393, %v4526
      %4528 = vmatmul.bf16.gmra.mxu0 %v2578
      %v4529 = vpop.f32.mrf.mxu0
      %v4530 = vadd.f32 %v4396, %v4529
      %v4531 = vpop.f32.mrf.mxu0
      %v4532 = vadd.f32 %v4398, %v4531
      %4533 = vmatmul.bf16.gmra.mxu0 %v2596
      %v4534 = vpop.f32.mrf.mxu0
      %v4535 = vadd.f32 %v4401, %v4534
      %v4536 = vpop.f32.mrf.mxu0
      %v4537 = vadd.f32 %v4403, %v4536
      %4538 = vmatmul.bf16.gmra.mxu0 %v2614
      %v4539 = vpop.f32.mrf.mxu0
      %v4540 = vadd.f32 %v4406, %v4539
      %v4541 = vpop.f32.mrf.mxu0
      %v4542 = vadd.f32 %v4408, %v4541
      %4543 = vmatmul.bf16.gmra.mxu0 %v2632
      %v4544 = vpop.f32.mrf.mxu0
      %v4545 = vadd.f32 %v4411, %v4544
      %v4546 = vpop.f32.mrf.mxu0
      %v4547 = vadd.f32 %v4413, %v4546
      %4548 = vmatmul.bf16.gmra.mxu0 %v2650
      %v4549 = vpop.f32.mrf.mxu0
      %v4550 = vadd.f32 %v4416, %v4549
      %v4551 = vpop.f32.mrf.mxu0
      %v4552 = vadd.f32 %v4418, %v4551
      %4553 = vmatmul.bf16.gmra.mxu0 %v2668
      %v4554 = vpop.f32.mrf.mxu0
      %v4555 = vadd.f32 %v4421, %v4554
      %v4556 = vpop.f32.mrf.mxu0
      %v4557 = vadd.f32 %v4423, %v4556
      %4558 = vmatmul.bf16.gmra.mxu0 %v2686
      %v4559 = vpop.f32.mrf.mxu0
      %v4560 = vadd.f32 %v4426, %v4559
      %v4561 = vpop.f32.mrf.mxu0
      %v4562 = vadd.f32 %v4428, %v4561
      %4563 = vmatmul.bf16.gmra.mxu0 %v2704
      %v4564 = vpop.f32.mrf.mxu0
      %v4565 = vadd.f32 %v4431, %v4564
      %v4566 = vpop.f32.mrf.mxu0
      %v4567 = vadd.f32 %v4433, %v4566
      %4568 = vdwg.mxu0
      %4569 = vmatpush.bf16.msra.mxu0 %v3784
      %4570 = vmatpush.bf16.msra.mxu0 %v3783
      %4571 = vmatpush.bf16.msra.mxu0 %v3782
      %4572 = vmatpush.bf16.msra.mxu0 %v3781
      %4573 = vmatpush.bf16.msra.mxu0 %v3780
      %4574 = vmatpush.bf16.msra.mxu0 %v3779
      %4575 = vmatpush.bf16.msra.mxu0 %v3778
      %4576 = vmatpush.bf16.msra.mxu0 %v3777
      %4577 = vmatmul.bf16.gmra.mxu0 %v2273
      %v4578 = vpop.f32.mrf.mxu0
      %v4579 = vadd.f32 %v4445, %v4578
      %v4580 = vpop.f32.mrf.mxu0
      %v4581 = vadd.f32 %v4447, %v4580
      %4582 = vmatmul.bf16.gmra.mxu0 %v2291
      %v4583 = vpop.f32.mrf.mxu0
      %v4584 = vadd.f32 %v4450, %v4583
      %v4585 = vpop.f32.mrf.mxu0
      %v4586 = vadd.f32 %v4452, %v4585
      %4587 = vmatmul.bf16.gmra.mxu0 %v2309
      %v4588 = vpop.f32.mrf.mxu0
      %v4589 = vadd.f32 %v4455, %v4588
      %v4590 = vpop.f32.mrf.mxu0
      %v4591 = vadd.f32 %v4457, %v4590
      %4592 = vmatmul.bf16.gmra.mxu0 %v2327
      %v4593 = vpop.f32.mrf.mxu0
      %v4594 = vadd.f32 %v4460, %v4593
      %v4595 = vpop.f32.mrf.mxu0
      %v4596 = vadd.f32 %v4462, %v4595
      %4597 = vmatmul.bf16.gmra.mxu0 %v2345
      %v4598 = vpop.f32.mrf.mxu0
      %v4599 = vadd.f32 %v4465, %v4598
      %v4600 = vpop.f32.mrf.mxu0
      %v4601 = vadd.f32 %v4467, %v4600
      %4602 = vmatmul.bf16.gmra.mxu0 %v2363
      %v4603 = vpop.f32.mrf.mxu0
      %v4604 = vadd.f32 %v4470, %v4603
      %v4605 = vpop.f32.mrf.mxu0
      %v4606 = vadd.f32 %v4472, %v4605
      %4607 = vmatmul.bf16.gmra.mxu0 %v2381
      %v4608 = vpop.f32.mrf.mxu0
      %v4609 = vadd.f32 %v4475, %v4608
      %v4610 = vpop.f32.mrf.mxu0
      %v4611 = vadd.f32 %v4477, %v4610
      %4612 = vmatmul.bf16.gmra.mxu0 %v2399
      %v4613 = vpop.f32.mrf.mxu0
      %v4614 = vadd.f32 %v4480, %v4613
      %v4615 = vpop.f32.mrf.mxu0
      %v4616 = vadd.f32 %v4482, %v4615
      %4617 = vmatmul.bf16.gmra.mxu0 %v2417
      %v4618 = vpop.f32.mrf.mxu0
      %v4619 = vadd.f32 %v4485, %v4618
      %v4620 = vpop.f32.mrf.mxu0
      %v4621 = vadd.f32 %v4487, %v4620
      %4622 = vmatmul.bf16.gmra.mxu0 %v2435
      %v4623 = vpop.f32.mrf.mxu0
      %v4624 = vadd.f32 %v4490, %v4623
      %v4625 = vpop.f32.mrf.mxu0
      %v4626 = vadd.f32 %v4492, %v4625
      %4627 = vmatmul.bf16.gmra.mxu0 %v2453
      %v4628 = vpop.f32.mrf.mxu0
      %v4629 = vadd.f32 %v4495, %v4628
      %v4630 = vpop.f32.mrf.mxu0
      %v4631 = vadd.f32 %v4497, %v4630
      %4632 = vmatmul.bf16.gmra.mxu0 %v2471
      %v4633 = vpop.f32.mrf.mxu0
      %v4634 = vadd.f32 %v4500, %v4633
      %v4635 = vpop.f32.mrf.mxu0
      %v4636 = vadd.f32 %v4502, %v4635
      %4637 = vmatmul.bf16.gmra.mxu0 %v2489
      %v4638 = vpop.f32.mrf.mxu0
      %v4639 = vadd.f32 %v4505, %v4638
      %v4640 = vpop.f32.mrf.mxu0
      %v4641 = vadd.f32 %v4507, %v4640
      %4642 = vmatmul.bf16.gmra.mxu0 %v2507
      %v4643 = vpop.f32.mrf.mxu0
      %v4644 = vadd.f32 %v4510, %v4643
      %v4645 = vpop.f32.mrf.mxu0
      %v4646 = vadd.f32 %v4512, %v4645
      %4647 = vmatmul.bf16.gmra.mxu0 %v2525
      %v4648 = vpop.f32.mrf.mxu0
      %v4649 = vadd.f32 %v4515, %v4648
      %v4650 = vpop.f32.mrf.mxu0
      %v4651 = vadd.f32 %v4517, %v4650
      %4652 = vmatmul.bf16.gmra.mxu0 %v2543
      %v4653 = vpop.f32.mrf.mxu0
      %v4654 = vadd.f32 %v4520, %v4653
      %v4655 = vpop.f32.mrf.mxu0
      %v4656 = vadd.f32 %v4522, %v4655
      %4657 = vmatmul.bf16.gmra.mxu0 %v2561
      %v4658 = vpop.f32.mrf.mxu0
      %v4659 = vadd.f32 %v4525, %v4658
      %v4660 = vpop.f32.mrf.mxu0
      %v4661 = vadd.f32 %v4527, %v4660
      %4662 = vmatmul.bf16.gmra.mxu0 %v2579
      %v4663 = vpop.f32.mrf.mxu0
      %v4664 = vadd.f32 %v4530, %v4663
      %v4665 = vpop.f32.mrf.mxu0
      %v4666 = vadd.f32 %v4532, %v4665
      %4667 = vmatmul.bf16.gmra.mxu0 %v2597
      %v4668 = vpop.f32.mrf.mxu0
      %v4669 = vadd.f32 %v4535, %v4668
      %v4670 = vpop.f32.mrf.mxu0
      %v4671 = vadd.f32 %v4537, %v4670
      %4672 = vmatmul.bf16.gmra.mxu0 %v2615
      %v4673 = vpop.f32.mrf.mxu0
      %v4674 = vadd.f32 %v4540, %v4673
      %v4675 = vpop.f32.mrf.mxu0
      %v4676 = vadd.f32 %v4542, %v4675
      %4677 = vmatmul.bf16.gmra.mxu0 %v2633
      %v4678 = vpop.f32.mrf.mxu0
      %v4679 = vadd.f32 %v4545, %v4678
      %v4680 = vpop.f32.mrf.mxu0
      %v4681 = vadd.f32 %v4547, %v4680
      %4682 = vmatmul.bf16.gmra.mxu0 %v2651
      %v4683 = vpop.f32.mrf.mxu0
      %v4684 = vadd.f32 %v4550, %v4683
      %v4685 = vpop.f32.mrf.mxu0
      %v4686 = vadd.f32 %v4552, %v4685
      %4687 = vmatmul.bf16.gmra.mxu0 %v2669
      %v4688 = vpop.f32.mrf.mxu0
      %v4689 = vadd.f32 %v4555, %v4688
      %v4690 = vpop.f32.mrf.mxu0
      %v4691 = vadd.f32 %v4557, %v4690
      %4692 = vmatmul.bf16.gmra.mxu0 %v2687
      %v4693 = vpop.f32.mrf.mxu0
      %v4694 = vadd.f32 %v4560, %v4693
      %v4695 = vpop.f32.mrf.mxu0
      %v4696 = vadd.f32 %v4562, %v4695
      %4697 = vmatmul.bf16.gmra.mxu0 %v2705
      %v4698 = vpop.f32.mrf.mxu0
      %v4699 = vadd.f32 %v4565, %v4698
      %v4700 = vpop.f32.mrf.mxu0
      %v4701 = vadd.f32 %v4567, %v4700
      %4702 = vdwg.mxu0
      %4703 = vmatpush.bf16.msra.mxu0 %v3792
      %4704 = vmatpush.bf16.msra.mxu0 %v3791
      %4705 = vmatpush.bf16.msra.mxu0 %v3790
      %4706 = vmatpush.bf16.msra.mxu0 %v3789
      %4707 = vmatpush.bf16.msra.mxu0 %v3788
      %4708 = vmatpush.bf16.msra.mxu0 %v3787
      %4709 = vmatpush.bf16.msra.mxu0 %v3786
      %4710 = vmatpush.bf16.msra.mxu0 %v3785
      %4711 = vmatmul.bf16.gmra.mxu0 %v2274
      %v4712 = vpop.f32.mrf.mxu0
      %v4713 = vadd.f32 %v4579, %v4712
      %v4714 = vpop.f32.mrf.mxu0
      %v4715 = vadd.f32 %v4581, %v4714
      %4716 = vmatmul.bf16.gmra.mxu0 %v2292
      %v4717 = vpop.f32.mrf.mxu0
      %v4718 = vadd.f32 %v4584, %v4717
      %v4719 = vpop.f32.mrf.mxu0
      %v4720 = vadd.f32 %v4586, %v4719
      %4721 = vmatmul.bf16.gmra.mxu0 %v2310
      %v4722 = vpop.f32.mrf.mxu0
      %v4723 = vadd.f32 %v4589, %v4722
      %v4724 = vpop.f32.mrf.mxu0
      %v4725 = vadd.f32 %v4591, %v4724
      %4726 = vmatmul.bf16.gmra.mxu0 %v2328
      %v4727 = vpop.f32.mrf.mxu0
      %v4728 = vadd.f32 %v4594, %v4727
      %v4729 = vpop.f32.mrf.mxu0
      %v4730 = vadd.f32 %v4596, %v4729
      %4731 = vmatmul.bf16.gmra.mxu0 %v2346
      %v4732 = vpop.f32.mrf.mxu0
      %v4733 = vadd.f32 %v4599, %v4732
      %v4734 = vpop.f32.mrf.mxu0
      %v4735 = vadd.f32 %v4601, %v4734
      %4736 = vmatmul.bf16.gmra.mxu0 %v2364
      %v4737 = vpop.f32.mrf.mxu0
      %v4738 = vadd.f32 %v4604, %v4737
      %v4739 = vpop.f32.mrf.mxu0
      %v4740 = vadd.f32 %v4606, %v4739
      %4741 = vmatmul.bf16.gmra.mxu0 %v2382
      %v4742 = vpop.f32.mrf.mxu0
      %v4743 = vadd.f32 %v4609, %v4742
      %v4744 = vpop.f32.mrf.mxu0
      %v4745 = vadd.f32 %v4611, %v4744
      %4746 = vmatmul.bf16.gmra.mxu0 %v2400
      %v4747 = vpop.f32.mrf.mxu0
      %v4748 = vadd.f32 %v4614, %v4747
      %v4749 = vpop.f32.mrf.mxu0
      %v4750 = vadd.f32 %v4616, %v4749
      %4751 = vmatmul.bf16.gmra.mxu0 %v2418
      %v4752 = vpop.f32.mrf.mxu0
      %v4753 = vadd.f32 %v4619, %v4752
      %v4754 = vpop.f32.mrf.mxu0
      %v4755 = vadd.f32 %v4621, %v4754
      %4756 = vmatmul.bf16.gmra.mxu0 %v2436
      %v4757 = vpop.f32.mrf.mxu0
      %v4758 = vadd.f32 %v4624, %v4757
      %v4759 = vpop.f32.mrf.mxu0
      %v4760 = vadd.f32 %v4626, %v4759
      %4761 = vmatmul.bf16.gmra.mxu0 %v2454
      %v4762 = vpop.f32.mrf.mxu0
      %v4763 = vadd.f32 %v4629, %v4762
      %v4764 = vpop.f32.mrf.mxu0
      %v4765 = vadd.f32 %v4631, %v4764
      %4766 = vmatmul.bf16.gmra.mxu0 %v2472
      %v4767 = vpop.f32.mrf.mxu0
      %v4768 = vadd.f32 %v4634, %v4767
      %v4769 = vpop.f32.mrf.mxu0
      %v4770 = vadd.f32 %v4636, %v4769
      %4771 = vmatmul.bf16.gmra.mxu0 %v2490
      %v4772 = vpop.f32.mrf.mxu0
      %v4773 = vadd.f32 %v4639, %v4772
      %v4774 = vpop.f32.mrf.mxu0
      %v4775 = vadd.f32 %v4641, %v4774
      %4776 = vmatmul.bf16.gmra.mxu0 %v2508
      %v4777 = vpop.f32.mrf.mxu0
      %v4778 = vadd.f32 %v4644, %v4777
      %v4779 = vpop.f32.mrf.mxu0
      %v4780 = vadd.f32 %v4646, %v4779
      %4781 = vmatmul.bf16.gmra.mxu0 %v2526
      %v4782 = vpop.f32.mrf.mxu0
      %v4783 = vadd.f32 %v4649, %v4782
      %v4784 = vpop.f32.mrf.mxu0
      %v4785 = vadd.f32 %v4651, %v4784
      %4786 = vmatmul.bf16.gmra.mxu0 %v2544
      %v4787 = vpop.f32.mrf.mxu0
      %v4788 = vadd.f32 %v4654, %v4787
      %v4789 = vpop.f32.mrf.mxu0
      %v4790 = vadd.f32 %v4656, %v4789
      %4791 = vmatmul.bf16.gmra.mxu0 %v2562
      %v4792 = vpop.f32.mrf.mxu0
      %v4793 = vadd.f32 %v4659, %v4792
      %v4794 = vpop.f32.mrf.mxu0
      %v4795 = vadd.f32 %v4661, %v4794
      %4796 = vmatmul.bf16.gmra.mxu0 %v2580
      %v4797 = vpop.f32.mrf.mxu0
      %v4798 = vadd.f32 %v4664, %v4797
      %v4799 = vpop.f32.mrf.mxu0
      %v4800 = vadd.f32 %v4666, %v4799
      %4801 = vmatmul.bf16.gmra.mxu0 %v2598
      %v4802 = vpop.f32.mrf.mxu0
      %v4803 = vadd.f32 %v4669, %v4802
      %v4804 = vpop.f32.mrf.mxu0
      %v4805 = vadd.f32 %v4671, %v4804
      %4806 = vmatmul.bf16.gmra.mxu0 %v2616
      %v4807 = vpop.f32.mrf.mxu0
      %v4808 = vadd.f32 %v4674, %v4807
      %v4809 = vpop.f32.mrf.mxu0
      %v4810 = vadd.f32 %v4676, %v4809
      %4811 = vmatmul.bf16.gmra.mxu0 %v2634
      %v4812 = vpop.f32.mrf.mxu0
      %v4813 = vadd.f32 %v4679, %v4812
      %v4814 = vpop.f32.mrf.mxu0
      %v4815 = vadd.f32 %v4681, %v4814
      %4816 = vmatmul.bf16.gmra.mxu0 %v2652
      %v4817 = vpop.f32.mrf.mxu0
      %v4818 = vadd.f32 %v4684, %v4817
      %v4819 = vpop.f32.mrf.mxu0
      %v4820 = vadd.f32 %v4686, %v4819
      %4821 = vmatmul.bf16.gmra.mxu0 %v2670
      %v4822 = vpop.f32.mrf.mxu0
      %v4823 = vadd.f32 %v4689, %v4822
      %v4824 = vpop.f32.mrf.mxu0
      %v4825 = vadd.f32 %v4691, %v4824
      %4826 = vmatmul.bf16.gmra.mxu0 %v2688
      %v4827 = vpop.f32.mrf.mxu0
      %v4828 = vadd.f32 %v4694, %v4827
      %v4829 = vpop.f32.mrf.mxu0
      %v4830 = vadd.f32 %v4696, %v4829
      %4831 = vmatmul.bf16.gmra.mxu0 %v2706
      %v4832 = vpop.f32.mrf.mxu0
      %v4833 = vadd.f32 %v4699, %v4832
      %v4834 = vpop.f32.mrf.mxu0
      %v4835 = vadd.f32 %v4701, %v4834
      %4836 = vdwg.mxu0
      %4837 = vmatpush.bf16.msra.mxu0 %v3800
      %4838 = vmatpush.bf16.msra.mxu0 %v3799
      %4839 = vmatpush.bf16.msra.mxu0 %v3798
      %4840 = vmatpush.bf16.msra.mxu0 %v3797
      %4841 = vmatpush.bf16.msra.mxu0 %v3796
      %4842 = vmatpush.bf16.msra.mxu0 %v3795
      %4843 = vmatpush.bf16.msra.mxu0 %v3794
      %4844 = vmatpush.bf16.msra.mxu0 %v3793
      %4845 = vmatmul.bf16.gmra.mxu0 %v2275
      %v4846 = vpop.f32.mrf.mxu0
      %v4847 = vadd.f32 %v4713, %v4846
      %v4848 = vpop.f32.mrf.mxu0
      %v4849 = vadd.f32 %v4715, %v4848
      %4850 = vmatmul.bf16.gmra.mxu0 %v2293
      %v4851 = vpop.f32.mrf.mxu0
      %v4852 = vadd.f32 %v4718, %v4851
      %v4853 = vpop.f32.mrf.mxu0
      %v4854 = vadd.f32 %v4720, %v4853
      %4855 = vmatmul.bf16.gmra.mxu0 %v2311
      %v4856 = vpop.f32.mrf.mxu0
      %v4857 = vadd.f32 %v4723, %v4856
      %v4858 = vpop.f32.mrf.mxu0
      %v4859 = vadd.f32 %v4725, %v4858
      %4860 = vmatmul.bf16.gmra.mxu0 %v2329
      %v4861 = vpop.f32.mrf.mxu0
      %v4862 = vadd.f32 %v4728, %v4861
      %v4863 = vpop.f32.mrf.mxu0
      %v4864 = vadd.f32 %v4730, %v4863
      %4865 = vmatmul.bf16.gmra.mxu0 %v2347
      %v4866 = vpop.f32.mrf.mxu0
      %v4867 = vadd.f32 %v4733, %v4866
      %v4868 = vpop.f32.mrf.mxu0
      %v4869 = vadd.f32 %v4735, %v4868
      %4870 = vmatmul.bf16.gmra.mxu0 %v2365
      %v4871 = vpop.f32.mrf.mxu0
      %v4872 = vadd.f32 %v4738, %v4871
      %v4873 = vpop.f32.mrf.mxu0
      %v4874 = vadd.f32 %v4740, %v4873
      %4875 = vmatmul.bf16.gmra.mxu0 %v2383
      %v4876 = vpop.f32.mrf.mxu0
      %v4877 = vadd.f32 %v4743, %v4876
      %v4878 = vpop.f32.mrf.mxu0
      %v4879 = vadd.f32 %v4745, %v4878
      %4880 = vmatmul.bf16.gmra.mxu0 %v2401
      %v4881 = vpop.f32.mrf.mxu0
      %v4882 = vadd.f32 %v4748, %v4881
      %v4883 = vpop.f32.mrf.mxu0
      %v4884 = vadd.f32 %v4750, %v4883
      %4885 = vmatmul.bf16.gmra.mxu0 %v2419
      %v4886 = vpop.f32.mrf.mxu0
      %v4887 = vadd.f32 %v4753, %v4886
      %v4888 = vpop.f32.mrf.mxu0
      %v4889 = vadd.f32 %v4755, %v4888
      %4890 = vmatmul.bf16.gmra.mxu0 %v2437
      %v4891 = vpop.f32.mrf.mxu0
      %v4892 = vadd.f32 %v4758, %v4891
      %v4893 = vpop.f32.mrf.mxu0
      %v4894 = vadd.f32 %v4760, %v4893
      %4895 = vmatmul.bf16.gmra.mxu0 %v2455
      %v4896 = vpop.f32.mrf.mxu0
      %v4897 = vadd.f32 %v4763, %v4896
      %v4898 = vpop.f32.mrf.mxu0
      %v4899 = vadd.f32 %v4765, %v4898
      %4900 = vmatmul.bf16.gmra.mxu0 %v2473
      %v4901 = vpop.f32.mrf.mxu0
      %v4902 = vadd.f32 %v4768, %v4901
      %v4903 = vpop.f32.mrf.mxu0
      %v4904 = vadd.f32 %v4770, %v4903
      %4905 = vmatmul.bf16.gmra.mxu0 %v2491
      %v4906 = vpop.f32.mrf.mxu0
      %v4907 = vadd.f32 %v4773, %v4906
      %v4908 = vpop.f32.mrf.mxu0
      %v4909 = vadd.f32 %v4775, %v4908
      %4910 = vmatmul.bf16.gmra.mxu0 %v2509
      %v4911 = vpop.f32.mrf.mxu0
      %v4912 = vadd.f32 %v4778, %v4911
      %v4913 = vpop.f32.mrf.mxu0
      %v4914 = vadd.f32 %v4780, %v4913
      %4915 = vmatmul.bf16.gmra.mxu0 %v2527
      %v4916 = vpop.f32.mrf.mxu0
      %v4917 = vadd.f32 %v4783, %v4916
      %v4918 = vpop.f32.mrf.mxu0
      %v4919 = vadd.f32 %v4785, %v4918
      %4920 = vmatmul.bf16.gmra.mxu0 %v2545
      %v4921 = vpop.f32.mrf.mxu0
      %v4922 = vadd.f32 %v4788, %v4921
      %v4923 = vpop.f32.mrf.mxu0
      %v4924 = vadd.f32 %v4790, %v4923
      %4925 = vmatmul.bf16.gmra.mxu0 %v2563
      %v4926 = vpop.f32.mrf.mxu0
      %v4927 = vadd.f32 %v4793, %v4926
      %v4928 = vpop.f32.mrf.mxu0
      %v4929 = vadd.f32 %v4795, %v4928
      %4930 = vmatmul.bf16.gmra.mxu0 %v2581
      %v4931 = vpop.f32.mrf.mxu0
      %v4932 = vadd.f32 %v4798, %v4931
      %v4933 = vpop.f32.mrf.mxu0
      %v4934 = vadd.f32 %v4800, %v4933
      %4935 = vmatmul.bf16.gmra.mxu0 %v2599
      %v4936 = vpop.f32.mrf.mxu0
      %v4937 = vadd.f32 %v4803, %v4936
      %v4938 = vpop.f32.mrf.mxu0
      %v4939 = vadd.f32 %v4805, %v4938
      %4940 = vmatmul.bf16.gmra.mxu0 %v2617
      %v4941 = vpop.f32.mrf.mxu0
      %v4942 = vadd.f32 %v4808, %v4941
      %v4943 = vpop.f32.mrf.mxu0
      %v4944 = vadd.f32 %v4810, %v4943
      %4945 = vmatmul.bf16.gmra.mxu0 %v2635
      %v4946 = vpop.f32.mrf.mxu0
      %v4947 = vadd.f32 %v4813, %v4946
      %v4948 = vpop.f32.mrf.mxu0
      %v4949 = vadd.f32 %v4815, %v4948
      %4950 = vmatmul.bf16.gmra.mxu0 %v2653
      %v4951 = vpop.f32.mrf.mxu0
      %v4952 = vadd.f32 %v4818, %v4951
      %v4953 = vpop.f32.mrf.mxu0
      %v4954 = vadd.f32 %v4820, %v4953
      %4955 = vmatmul.bf16.gmra.mxu0 %v2671
      %v4956 = vpop.f32.mrf.mxu0
      %v4957 = vadd.f32 %v4823, %v4956
      %v4958 = vpop.f32.mrf.mxu0
      %v4959 = vadd.f32 %v4825, %v4958
      %4960 = vmatmul.bf16.gmra.mxu0 %v2689
      %v4961 = vpop.f32.mrf.mxu0
      %v4962 = vadd.f32 %v4828, %v4961
      %v4963 = vpop.f32.mrf.mxu0
      %v4964 = vadd.f32 %v4830, %v4963
      %4965 = vmatmul.bf16.gmra.mxu0 %v2707
      %v4966 = vpop.f32.mrf.mxu0
      %v4967 = vadd.f32 %v4833, %v4966
      %v4968 = vpop.f32.mrf.mxu0
      %v4969 = vadd.f32 %v4835, %v4968
      %4970 = vdwg.mxu0
      %4971 = vmatpush.bf16.msra.mxu0 %v3808
      %4972 = vmatpush.bf16.msra.mxu0 %v3807
      %4973 = vmatpush.bf16.msra.mxu0 %v3806
      %4974 = vmatpush.bf16.msra.mxu0 %v3805
      %4975 = vmatpush.bf16.msra.mxu0 %v3804
      %4976 = vmatpush.bf16.msra.mxu0 %v3803
      %4977 = vmatpush.bf16.msra.mxu0 %v3802
      %4978 = vmatpush.bf16.msra.mxu0 %v3801
      %4979 = vmatmul.bf16.gmra.mxu0 %v2276
      %v4980 = vpop.f32.mrf.mxu0
      %v4981 = vadd.f32 %v4847, %v4980
      %v4982 = vpop.f32.mrf.mxu0
      %v4983 = vadd.f32 %v4849, %v4982
      %4984 = vmatmul.bf16.gmra.mxu0 %v2294
      %v4985 = vpop.f32.mrf.mxu0
      %v4986 = vadd.f32 %v4852, %v4985
      %v4987 = vpop.f32.mrf.mxu0
      %v4988 = vadd.f32 %v4854, %v4987
      %4989 = vmatmul.bf16.gmra.mxu0 %v2312
      %v4990 = vpop.f32.mrf.mxu0
      %v4991 = vadd.f32 %v4857, %v4990
      %v4992 = vpop.f32.mrf.mxu0
      %v4993 = vadd.f32 %v4859, %v4992
      %4994 = vmatmul.bf16.gmra.mxu0 %v2330
      %v4995 = vpop.f32.mrf.mxu0
      %v4996 = vadd.f32 %v4862, %v4995
      %v4997 = vpop.f32.mrf.mxu0
      %v4998 = vadd.f32 %v4864, %v4997
      %4999 = vmatmul.bf16.gmra.mxu0 %v2348
      %v5000 = vpop.f32.mrf.mxu0
      %v5001 = vadd.f32 %v4867, %v5000
      %v5002 = vpop.f32.mrf.mxu0
      %v5003 = vadd.f32 %v4869, %v5002
      %5004 = vmatmul.bf16.gmra.mxu0 %v2366
      %v5005 = vpop.f32.mrf.mxu0
      %v5006 = vadd.f32 %v4872, %v5005
      %v5007 = vpop.f32.mrf.mxu0
      %v5008 = vadd.f32 %v4874, %v5007
      %5009 = vmatmul.bf16.gmra.mxu0 %v2384
      %v5010 = vpop.f32.mrf.mxu0
      %v5011 = vadd.f32 %v4877, %v5010
      %v5012 = vpop.f32.mrf.mxu0
      %v5013 = vadd.f32 %v4879, %v5012
      %5014 = vmatmul.bf16.gmra.mxu0 %v2402
      %v5015 = vpop.f32.mrf.mxu0
      %v5016 = vadd.f32 %v4882, %v5015
      %v5017 = vpop.f32.mrf.mxu0
      %v5018 = vadd.f32 %v4884, %v5017
      %5019 = vmatmul.bf16.gmra.mxu0 %v2420
      %v5020 = vpop.f32.mrf.mxu0
      %v5021 = vadd.f32 %v4887, %v5020
      %v5022 = vpop.f32.mrf.mxu0
      %v5023 = vadd.f32 %v4889, %v5022
      %5024 = vmatmul.bf16.gmra.mxu0 %v2438
      %v5025 = vpop.f32.mrf.mxu0
      %v5026 = vadd.f32 %v4892, %v5025
      %v5027 = vpop.f32.mrf.mxu0
      %v5028 = vadd.f32 %v4894, %v5027
      %5029 = vmatmul.bf16.gmra.mxu0 %v2456
      %v5030 = vpop.f32.mrf.mxu0
      %v5031 = vadd.f32 %v4897, %v5030
      %v5032 = vpop.f32.mrf.mxu0
      %v5033 = vadd.f32 %v4899, %v5032
      %5034 = vmatmul.bf16.gmra.mxu0 %v2474
      %v5035 = vpop.f32.mrf.mxu0
      %v5036 = vadd.f32 %v4902, %v5035
      %v5037 = vpop.f32.mrf.mxu0
      %v5038 = vadd.f32 %v4904, %v5037
      %5039 = vmatmul.bf16.gmra.mxu0 %v2492
      %v5040 = vpop.f32.mrf.mxu0
      %v5041 = vadd.f32 %v4907, %v5040
      %v5042 = vpop.f32.mrf.mxu0
      %v5043 = vadd.f32 %v4909, %v5042
      %5044 = vmatmul.bf16.gmra.mxu0 %v2510
      %v5045 = vpop.f32.mrf.mxu0
      %v5046 = vadd.f32 %v4912, %v5045
      %v5047 = vpop.f32.mrf.mxu0
      %v5048 = vadd.f32 %v4914, %v5047
      %5049 = vmatmul.bf16.gmra.mxu0 %v2528
      %v5050 = vpop.f32.mrf.mxu0
      %v5051 = vadd.f32 %v4917, %v5050
      %v5052 = vpop.f32.mrf.mxu0
      %v5053 = vadd.f32 %v4919, %v5052
      %5054 = vmatmul.bf16.gmra.mxu0 %v2546
      %v5055 = vpop.f32.mrf.mxu0
      %v5056 = vadd.f32 %v4922, %v5055
      %v5057 = vpop.f32.mrf.mxu0
      %v5058 = vadd.f32 %v4924, %v5057
      %5059 = vmatmul.bf16.gmra.mxu0 %v2564
      %v5060 = vpop.f32.mrf.mxu0
      %v5061 = vadd.f32 %v4927, %v5060
      %v5062 = vpop.f32.mrf.mxu0
      %v5063 = vadd.f32 %v4929, %v5062
      %5064 = vmatmul.bf16.gmra.mxu0 %v2582
      %v5065 = vpop.f32.mrf.mxu0
      %v5066 = vadd.f32 %v4932, %v5065
      %v5067 = vpop.f32.mrf.mxu0
      %v5068 = vadd.f32 %v4934, %v5067
      %5069 = vmatmul.bf16.gmra.mxu0 %v2600
      %v5070 = vpop.f32.mrf.mxu0
      %v5071 = vadd.f32 %v4937, %v5070
      %v5072 = vpop.f32.mrf.mxu0
      %v5073 = vadd.f32 %v4939, %v5072
      %5074 = vmatmul.bf16.gmra.mxu0 %v2618
      %v5075 = vpop.f32.mrf.mxu0
      %v5076 = vadd.f32 %v4942, %v5075
      %v5077 = vpop.f32.mrf.mxu0
      %v5078 = vadd.f32 %v4944, %v5077
      %5079 = vmatmul.bf16.gmra.mxu0 %v2636
      %v5080 = vpop.f32.mrf.mxu0
      %v5081 = vadd.f32 %v4947, %v5080
      %v5082 = vpop.f32.mrf.mxu0
      %v5083 = vadd.f32 %v4949, %v5082
      %5084 = vmatmul.bf16.gmra.mxu0 %v2654
      %v5085 = vpop.f32.mrf.mxu0
      %v5086 = vadd.f32 %v4952, %v5085
      %v5087 = vpop.f32.mrf.mxu0
      %v5088 = vadd.f32 %v4954, %v5087
      %5089 = vmatmul.bf16.gmra.mxu0 %v2672
      %v5090 = vpop.f32.mrf.mxu0
      %v5091 = vadd.f32 %v4957, %v5090
      %v5092 = vpop.f32.mrf.mxu0
      %v5093 = vadd.f32 %v4959, %v5092
      %5094 = vmatmul.bf16.gmra.mxu0 %v2690
      %v5095 = vpop.f32.mrf.mxu0
      %v5096 = vadd.f32 %v4962, %v5095
      %v5097 = vpop.f32.mrf.mxu0
      %v5098 = vadd.f32 %v4964, %v5097
      %5099 = vmatmul.bf16.gmra.mxu0 %v2708
      %v5100 = vpop.f32.mrf.mxu0
      %v5101 = vadd.f32 %v4967, %v5100
      %v5102 = vpop.f32.mrf.mxu0
      %v5103 = vadd.f32 %v4969, %v5102
      %5104 = vdwg.mxu0
      %5105 = vmatpush.bf16.msra.mxu0 %v3816
      %5106 = vmatpush.bf16.msra.mxu0 %v3815
      %5107 = vmatpush.bf16.msra.mxu0 %v3814
      %5108 = vmatpush.bf16.msra.mxu0 %v3813
      %5109 = vmatpush.bf16.msra.mxu0 %v3812
      %5110 = vmatpush.bf16.msra.mxu0 %v3811
      %5111 = vmatpush.bf16.msra.mxu0 %v3810
      %5112 = vmatpush.bf16.msra.mxu0 %v3809
      %5113 = vmatmul.bf16.gmra.mxu0 %v2277
      %v5114 = vpop.f32.mrf.mxu0
      %v5115 = vadd.f32 %v4981, %v5114
      %v5116 = vpop.f32.mrf.mxu0
      %v5117 = vadd.f32 %v4983, %v5116
      %5118 = vmatmul.bf16.gmra.mxu0 %v2295
      %v5119 = vpop.f32.mrf.mxu0
      %v5120 = vadd.f32 %v4986, %v5119
      %v5121 = vpop.f32.mrf.mxu0
      %v5122 = vadd.f32 %v4988, %v5121
      %5123 = vmatmul.bf16.gmra.mxu0 %v2313
      %v5124 = vpop.f32.mrf.mxu0
      %v5125 = vadd.f32 %v4991, %v5124
      %v5126 = vpop.f32.mrf.mxu0
      %v5127 = vadd.f32 %v4993, %v5126
      %5128 = vmatmul.bf16.gmra.mxu0 %v2331
      %v5129 = vpop.f32.mrf.mxu0
      %v5130 = vadd.f32 %v4996, %v5129
      %v5131 = vpop.f32.mrf.mxu0
      %v5132 = vadd.f32 %v4998, %v5131
      %5133 = vmatmul.bf16.gmra.mxu0 %v2349
      %v5134 = vpop.f32.mrf.mxu0
      %v5135 = vadd.f32 %v5001, %v5134
      %v5136 = vpop.f32.mrf.mxu0
      %v5137 = vadd.f32 %v5003, %v5136
      %5138 = vmatmul.bf16.gmra.mxu0 %v2367
      %v5139 = vpop.f32.mrf.mxu0
      %v5140 = vadd.f32 %v5006, %v5139
      %v5141 = vpop.f32.mrf.mxu0
      %v5142 = vadd.f32 %v5008, %v5141
      %5143 = vmatmul.bf16.gmra.mxu0 %v2385
      %v5144 = vpop.f32.mrf.mxu0
      %v5145 = vadd.f32 %v5011, %v5144
      %v5146 = vpop.f32.mrf.mxu0
      %v5147 = vadd.f32 %v5013, %v5146
      %5148 = vmatmul.bf16.gmra.mxu0 %v2403
      %v5149 = vpop.f32.mrf.mxu0
      %v5150 = vadd.f32 %v5016, %v5149
      %v5151 = vpop.f32.mrf.mxu0
      %v5152 = vadd.f32 %v5018, %v5151
      %5153 = vmatmul.bf16.gmra.mxu0 %v2421
      %v5154 = vpop.f32.mrf.mxu0
      %v5155 = vadd.f32 %v5021, %v5154
      %v5156 = vpop.f32.mrf.mxu0
      %v5157 = vadd.f32 %v5023, %v5156
      %5158 = vmatmul.bf16.gmra.mxu0 %v2439
      %v5159 = vpop.f32.mrf.mxu0
      %v5160 = vadd.f32 %v5026, %v5159
      %v5161 = vpop.f32.mrf.mxu0
      %v5162 = vadd.f32 %v5028, %v5161
      %5163 = vmatmul.bf16.gmra.mxu0 %v2457
      %v5164 = vpop.f32.mrf.mxu0
      %v5165 = vadd.f32 %v5031, %v5164
      %v5166 = vpop.f32.mrf.mxu0
      %v5167 = vadd.f32 %v5033, %v5166
      %5168 = vmatmul.bf16.gmra.mxu0 %v2475
      %v5169 = vpop.f32.mrf.mxu0
      %v5170 = vadd.f32 %v5036, %v5169
      %v5171 = vpop.f32.mrf.mxu0
      %v5172 = vadd.f32 %v5038, %v5171
      %5173 = vmatmul.bf16.gmra.mxu0 %v2493
      %v5174 = vpop.f32.mrf.mxu0
      %v5175 = vadd.f32 %v5041, %v5174
      %v5176 = vpop.f32.mrf.mxu0
      %v5177 = vadd.f32 %v5043, %v5176
      %5178 = vmatmul.bf16.gmra.mxu0 %v2511
      %v5179 = vpop.f32.mrf.mxu0
      %v5180 = vadd.f32 %v5046, %v5179
      %v5181 = vpop.f32.mrf.mxu0
      %v5182 = vadd.f32 %v5048, %v5181
      %5183 = vmatmul.bf16.gmra.mxu0 %v2529
      %v5184 = vpop.f32.mrf.mxu0
      %v5185 = vadd.f32 %v5051, %v5184
      %v5186 = vpop.f32.mrf.mxu0
      %v5187 = vadd.f32 %v5053, %v5186
      %5188 = vmatmul.bf16.gmra.mxu0 %v2547
      %v5189 = vpop.f32.mrf.mxu0
      %v5190 = vadd.f32 %v5056, %v5189
      %v5191 = vpop.f32.mrf.mxu0
      %v5192 = vadd.f32 %v5058, %v5191
      %5193 = vmatmul.bf16.gmra.mxu0 %v2565
      %v5194 = vpop.f32.mrf.mxu0
      %v5195 = vadd.f32 %v5061, %v5194
      %v5196 = vpop.f32.mrf.mxu0
      %v5197 = vadd.f32 %v5063, %v5196
      %5198 = vmatmul.bf16.gmra.mxu0 %v2583
      %v5199 = vpop.f32.mrf.mxu0
      %v5200 = vadd.f32 %v5066, %v5199
      %v5201 = vpop.f32.mrf.mxu0
      %v5202 = vadd.f32 %v5068, %v5201
      %5203 = vmatmul.bf16.gmra.mxu0 %v2601
      %v5204 = vpop.f32.mrf.mxu0
      %v5205 = vadd.f32 %v5071, %v5204
      %v5206 = vpop.f32.mrf.mxu0
      %v5207 = vadd.f32 %v5073, %v5206
      %5208 = vmatmul.bf16.gmra.mxu0 %v2619
      %v5209 = vpop.f32.mrf.mxu0
      %v5210 = vadd.f32 %v5076, %v5209
      %v5211 = vpop.f32.mrf.mxu0
      %v5212 = vadd.f32 %v5078, %v5211
      %5213 = vmatmul.bf16.gmra.mxu0 %v2637
      %v5214 = vpop.f32.mrf.mxu0
      %v5215 = vadd.f32 %v5081, %v5214
      %v5216 = vpop.f32.mrf.mxu0
      %v5217 = vadd.f32 %v5083, %v5216
      %5218 = vmatmul.bf16.gmra.mxu0 %v2655
      %v5219 = vpop.f32.mrf.mxu0
      %v5220 = vadd.f32 %v5086, %v5219
      %v5221 = vpop.f32.mrf.mxu0
      %v5222 = vadd.f32 %v5088, %v5221
      %5223 = vmatmul.bf16.gmra.mxu0 %v2673
      %v5224 = vpop.f32.mrf.mxu0
      %v5225 = vadd.f32 %v5091, %v5224
      %v5226 = vpop.f32.mrf.mxu0
      %v5227 = vadd.f32 %v5093, %v5226
      %5228 = vmatmul.bf16.gmra.mxu0 %v2691
      %v5229 = vpop.f32.mrf.mxu0
      %v5230 = vadd.f32 %v5096, %v5229
      %v5231 = vpop.f32.mrf.mxu0
      %v5232 = vadd.f32 %v5098, %v5231
      %5233 = vmatmul.bf16.gmra.mxu0 %v2709
      %v5234 = vpop.f32.mrf.mxu0
      %v5235 = vadd.f32 %v5101, %v5234
      %v5236 = vpop.f32.mrf.mxu0
      %v5237 = vadd.f32 %v5103, %v5236
      %5238 = vdwg.mxu0
      %5239 = vmatpush.bf16.msra.mxu0 %v3824
      %5240 = vmatpush.bf16.msra.mxu0 %v3823
      %5241 = vmatpush.bf16.msra.mxu0 %v3822
      %5242 = vmatpush.bf16.msra.mxu0 %v3821
      %5243 = vmatpush.bf16.msra.mxu0 %v3820
      %5244 = vmatpush.bf16.msra.mxu0 %v3819
      %5245 = vmatpush.bf16.msra.mxu0 %v3818
      %5246 = vmatpush.bf16.msra.mxu0 %v3817
      %5247 = vmatmul.bf16.gmra.mxu0 %v2278
      %v5248 = vpop.f32.mrf.mxu0
      %v5249 = vadd.f32 %v5115, %v5248
      %v5250 = vpop.f32.mrf.mxu0
      %v5251 = vadd.f32 %v5117, %v5250
      %5252 = vmatmul.bf16.gmra.mxu0 %v2296
      %v5253 = vpop.f32.mrf.mxu0
      %v5254 = vadd.f32 %v5120, %v5253
      %v5255 = vpop.f32.mrf.mxu0
      %v5256 = vadd.f32 %v5122, %v5255
      %5257 = vmatmul.bf16.gmra.mxu0 %v2314
      %v5258 = vpop.f32.mrf.mxu0
      %v5259 = vadd.f32 %v5125, %v5258
      %v5260 = vpop.f32.mrf.mxu0
      %v5261 = vadd.f32 %v5127, %v5260
      %5262 = vmatmul.bf16.gmra.mxu0 %v2332
      %v5263 = vpop.f32.mrf.mxu0
      %v5264 = vadd.f32 %v5130, %v5263
      %v5265 = vpop.f32.mrf.mxu0
      %v5266 = vadd.f32 %v5132, %v5265
      %5267 = vmatmul.bf16.gmra.mxu0 %v2350
      %v5268 = vpop.f32.mrf.mxu0
      %v5269 = vadd.f32 %v5135, %v5268
      %v5270 = vpop.f32.mrf.mxu0
      %v5271 = vadd.f32 %v5137, %v5270
      %5272 = vmatmul.bf16.gmra.mxu0 %v2368
      %v5273 = vpop.f32.mrf.mxu0
      %v5274 = vadd.f32 %v5140, %v5273
      %v5275 = vpop.f32.mrf.mxu0
      %v5276 = vadd.f32 %v5142, %v5275
      %5277 = vmatmul.bf16.gmra.mxu0 %v2386
      %v5278 = vpop.f32.mrf.mxu0
      %v5279 = vadd.f32 %v5145, %v5278
      %v5280 = vpop.f32.mrf.mxu0
      %v5281 = vadd.f32 %v5147, %v5280
      %5282 = vmatmul.bf16.gmra.mxu0 %v2404
      %v5283 = vpop.f32.mrf.mxu0
      %v5284 = vadd.f32 %v5150, %v5283
      %v5285 = vpop.f32.mrf.mxu0
      %v5286 = vadd.f32 %v5152, %v5285
      %5287 = vmatmul.bf16.gmra.mxu0 %v2422
      %v5288 = vpop.f32.mrf.mxu0
      %v5289 = vadd.f32 %v5155, %v5288
      %v5290 = vpop.f32.mrf.mxu0
      %v5291 = vadd.f32 %v5157, %v5290
      %5292 = vmatmul.bf16.gmra.mxu0 %v2440
      %v5293 = vpop.f32.mrf.mxu0
      %v5294 = vadd.f32 %v5160, %v5293
      %v5295 = vpop.f32.mrf.mxu0
      %v5296 = vadd.f32 %v5162, %v5295
      %5297 = vmatmul.bf16.gmra.mxu0 %v2458
      %v5298 = vpop.f32.mrf.mxu0
      %v5299 = vadd.f32 %v5165, %v5298
      %v5300 = vpop.f32.mrf.mxu0
      %v5301 = vadd.f32 %v5167, %v5300
      %5302 = vmatmul.bf16.gmra.mxu0 %v2476
      %v5303 = vpop.f32.mrf.mxu0
      %v5304 = vadd.f32 %v5170, %v5303
      %v5305 = vpop.f32.mrf.mxu0
      %v5306 = vadd.f32 %v5172, %v5305
      %5307 = vmatmul.bf16.gmra.mxu0 %v2494
      %v5308 = vpop.f32.mrf.mxu0
      %v5309 = vadd.f32 %v5175, %v5308
      %v5310 = vpop.f32.mrf.mxu0
      %v5311 = vadd.f32 %v5177, %v5310
      %5312 = vmatmul.bf16.gmra.mxu0 %v2512
      %v5313 = vpop.f32.mrf.mxu0
      %v5314 = vadd.f32 %v5180, %v5313
      %v5315 = vpop.f32.mrf.mxu0
      %v5316 = vadd.f32 %v5182, %v5315
      %5317 = vmatmul.bf16.gmra.mxu0 %v2530
      %v5318 = vpop.f32.mrf.mxu0
      %v5319 = vadd.f32 %v5185, %v5318
      %v5320 = vpop.f32.mrf.mxu0
      %v5321 = vadd.f32 %v5187, %v5320
      %5322 = vmatmul.bf16.gmra.mxu0 %v2548
      %v5323 = vpop.f32.mrf.mxu0
      %v5324 = vadd.f32 %v5190, %v5323
      %v5325 = vpop.f32.mrf.mxu0
      %v5326 = vadd.f32 %v5192, %v5325
      %5327 = vmatmul.bf16.gmra.mxu0 %v2566
      %v5328 = vpop.f32.mrf.mxu0
      %v5329 = vadd.f32 %v5195, %v5328
      %v5330 = vpop.f32.mrf.mxu0
      %v5331 = vadd.f32 %v5197, %v5330
      %5332 = vmatmul.bf16.gmra.mxu0 %v2584
      %v5333 = vpop.f32.mrf.mxu0
      %v5334 = vadd.f32 %v5200, %v5333
      %v5335 = vpop.f32.mrf.mxu0
      %v5336 = vadd.f32 %v5202, %v5335
      %5337 = vmatmul.bf16.gmra.mxu0 %v2602
      %v5338 = vpop.f32.mrf.mxu0
      %v5339 = vadd.f32 %v5205, %v5338
      %v5340 = vpop.f32.mrf.mxu0
      %v5341 = vadd.f32 %v5207, %v5340
      %5342 = vmatmul.bf16.gmra.mxu0 %v2620
      %v5343 = vpop.f32.mrf.mxu0
      %v5344 = vadd.f32 %v5210, %v5343
      %v5345 = vpop.f32.mrf.mxu0
      %v5346 = vadd.f32 %v5212, %v5345
      %5347 = vmatmul.bf16.gmra.mxu0 %v2638
      %v5348 = vpop.f32.mrf.mxu0
      %v5349 = vadd.f32 %v5215, %v5348
      %v5350 = vpop.f32.mrf.mxu0
      %v5351 = vadd.f32 %v5217, %v5350
      %5352 = vmatmul.bf16.gmra.mxu0 %v2656
      %v5353 = vpop.f32.mrf.mxu0
      %v5354 = vadd.f32 %v5220, %v5353
      %v5355 = vpop.f32.mrf.mxu0
      %v5356 = vadd.f32 %v5222, %v5355
      %5357 = vmatmul.bf16.gmra.mxu0 %v2674
      %v5358 = vpop.f32.mrf.mxu0
      %v5359 = vadd.f32 %v5225, %v5358
      %v5360 = vpop.f32.mrf.mxu0
      %v5361 = vadd.f32 %v5227, %v5360
      %5362 = vmatmul.bf16.gmra.mxu0 %v2692
      %v5363 = vpop.f32.mrf.mxu0
      %v5364 = vadd.f32 %v5230, %v5363
      %v5365 = vpop.f32.mrf.mxu0
      %v5366 = vadd.f32 %v5232, %v5365
      %5367 = vmatmul.bf16.gmra.mxu0 %v2710
      %v5368 = vpop.f32.mrf.mxu0
      %v5369 = vadd.f32 %v5235, %v5368
      %v5370 = vpop.f32.mrf.mxu0
      %v5371 = vadd.f32 %v5237, %v5370
      %5372 = vdwg.mxu0
      %5373 = vmatpush.bf16.msra.mxu0 %v3832
      %5374 = vmatpush.bf16.msra.mxu0 %v3831
      %5375 = vmatpush.bf16.msra.mxu0 %v3830
      %5376 = vmatpush.bf16.msra.mxu0 %v3829
      %5377 = vmatpush.bf16.msra.mxu0 %v3828
      %5378 = vmatpush.bf16.msra.mxu0 %v3827
      %5379 = vmatpush.bf16.msra.mxu0 %v3826
      %5380 = vmatpush.bf16.msra.mxu0 %v3825
      %5381 = vmatmul.bf16.gmra.mxu0 %v2279
      %v5382 = vpop.f32.mrf.mxu0
      %v5383 = vadd.f32 %v5249, %v5382
      %v5384 = vpop.f32.mrf.mxu0
      %v5385 = vadd.f32 %v5251, %v5384
      %5386 = vmatmul.bf16.gmra.mxu0 %v2297
      %v5387 = vpop.f32.mrf.mxu0
      %v5388 = vadd.f32 %v5254, %v5387
      %v5389 = vpop.f32.mrf.mxu0
      %v5390 = vadd.f32 %v5256, %v5389
      %5391 = vmatmul.bf16.gmra.mxu0 %v2315
      %v5392 = vpop.f32.mrf.mxu0
      %v5393 = vadd.f32 %v5259, %v5392
      %v5394 = vpop.f32.mrf.mxu0
      %v5395 = vadd.f32 %v5261, %v5394
      %5396 = vmatmul.bf16.gmra.mxu0 %v2333
      %v5397 = vpop.f32.mrf.mxu0
      %v5398 = vadd.f32 %v5264, %v5397
      %v5399 = vpop.f32.mrf.mxu0
      %v5400 = vadd.f32 %v5266, %v5399
      %5401 = vmatmul.bf16.gmra.mxu0 %v2351
      %v5402 = vpop.f32.mrf.mxu0
      %v5403 = vadd.f32 %v5269, %v5402
      %v5404 = vpop.f32.mrf.mxu0
      %v5405 = vadd.f32 %v5271, %v5404
      %5406 = vmatmul.bf16.gmra.mxu0 %v2369
      %v5407 = vpop.f32.mrf.mxu0
      %v5408 = vadd.f32 %v5274, %v5407
      %v5409 = vpop.f32.mrf.mxu0
      %v5410 = vadd.f32 %v5276, %v5409
      %5411 = vmatmul.bf16.gmra.mxu0 %v2387
      %v5412 = vpop.f32.mrf.mxu0
      %v5413 = vadd.f32 %v5279, %v5412
      %v5414 = vpop.f32.mrf.mxu0
      %v5415 = vadd.f32 %v5281, %v5414
      %5416 = vmatmul.bf16.gmra.mxu0 %v2405
      %v5417 = vpop.f32.mrf.mxu0
      %v5418 = vadd.f32 %v5284, %v5417
      %v5419 = vpop.f32.mrf.mxu0
      %v5420 = vadd.f32 %v5286, %v5419
      %5421 = vmatmul.bf16.gmra.mxu0 %v2423
      %v5422 = vpop.f32.mrf.mxu0
      %v5423 = vadd.f32 %v5289, %v5422
      %v5424 = vpop.f32.mrf.mxu0
      %v5425 = vadd.f32 %v5291, %v5424
      %5426 = vmatmul.bf16.gmra.mxu0 %v2441
      %v5427 = vpop.f32.mrf.mxu0
      %v5428 = vadd.f32 %v5294, %v5427
      %v5429 = vpop.f32.mrf.mxu0
      %v5430 = vadd.f32 %v5296, %v5429
      %5431 = vmatmul.bf16.gmra.mxu0 %v2459
      %v5432 = vpop.f32.mrf.mxu0
      %v5433 = vadd.f32 %v5299, %v5432
      %v5434 = vpop.f32.mrf.mxu0
      %v5435 = vadd.f32 %v5301, %v5434
      %5436 = vmatmul.bf16.gmra.mxu0 %v2477
      %v5437 = vpop.f32.mrf.mxu0
      %v5438 = vadd.f32 %v5304, %v5437
      %v5439 = vpop.f32.mrf.mxu0
      %v5440 = vadd.f32 %v5306, %v5439
      %5441 = vmatmul.bf16.gmra.mxu0 %v2495
      %v5442 = vpop.f32.mrf.mxu0
      %v5443 = vadd.f32 %v5309, %v5442
      %v5444 = vpop.f32.mrf.mxu0
      %v5445 = vadd.f32 %v5311, %v5444
      %5446 = vmatmul.bf16.gmra.mxu0 %v2513
      %v5447 = vpop.f32.mrf.mxu0
      %v5448 = vadd.f32 %v5314, %v5447
      %v5449 = vpop.f32.mrf.mxu0
      %v5450 = vadd.f32 %v5316, %v5449
      %5451 = vmatmul.bf16.gmra.mxu0 %v2531
      %v5452 = vpop.f32.mrf.mxu0
      %v5453 = vadd.f32 %v5319, %v5452
      %v5454 = vpop.f32.mrf.mxu0
      %v5455 = vadd.f32 %v5321, %v5454
      %5456 = vmatmul.bf16.gmra.mxu0 %v2549
      %v5457 = vpop.f32.mrf.mxu0
      %v5458 = vadd.f32 %v5324, %v5457
      %v5459 = vpop.f32.mrf.mxu0
      %v5460 = vadd.f32 %v5326, %v5459
      %5461 = vmatmul.bf16.gmra.mxu0 %v2567
      %v5462 = vpop.f32.mrf.mxu0
      %v5463 = vadd.f32 %v5329, %v5462
      %v5464 = vpop.f32.mrf.mxu0
      %v5465 = vadd.f32 %v5331, %v5464
      %5466 = vmatmul.bf16.gmra.mxu0 %v2585
      %v5467 = vpop.f32.mrf.mxu0
      %v5468 = vadd.f32 %v5334, %v5467
      %v5469 = vpop.f32.mrf.mxu0
      %v5470 = vadd.f32 %v5336, %v5469
      %5471 = vmatmul.bf16.gmra.mxu0 %v2603
      %v5472 = vpop.f32.mrf.mxu0
      %v5473 = vadd.f32 %v5339, %v5472
      %v5474 = vpop.f32.mrf.mxu0
      %v5475 = vadd.f32 %v5341, %v5474
      %5476 = vmatmul.bf16.gmra.mxu0 %v2621
      %v5477 = vpop.f32.mrf.mxu0
      %v5478 = vadd.f32 %v5344, %v5477
      %v5479 = vpop.f32.mrf.mxu0
      %v5480 = vadd.f32 %v5346, %v5479
      %5481 = vmatmul.bf16.gmra.mxu0 %v2639
      %v5482 = vpop.f32.mrf.mxu0
      %v5483 = vadd.f32 %v5349, %v5482
      %v5484 = vpop.f32.mrf.mxu0
      %v5485 = vadd.f32 %v5351, %v5484
      %5486 = vmatmul.bf16.gmra.mxu0 %v2657
      %v5487 = vpop.f32.mrf.mxu0
      %v5488 = vadd.f32 %v5354, %v5487
      %v5489 = vpop.f32.mrf.mxu0
      %v5490 = vadd.f32 %v5356, %v5489
      %5491 = vmatmul.bf16.gmra.mxu0 %v2675
      %v5492 = vpop.f32.mrf.mxu0
      %v5493 = vadd.f32 %v5359, %v5492
      %v5494 = vpop.f32.mrf.mxu0
      %v5495 = vadd.f32 %v5361, %v5494
      %5496 = vmatmul.bf16.gmra.mxu0 %v2693
      %v5497 = vpop.f32.mrf.mxu0
      %v5498 = vadd.f32 %v5364, %v5497
      %v5499 = vpop.f32.mrf.mxu0
      %v5500 = vadd.f32 %v5366, %v5499
      %5501 = vmatmul.bf16.gmra.mxu0 %v2711
      %v5502 = vpop.f32.mrf.mxu0
      %v5503 = vadd.f32 %v5369, %v5502
      %v5504 = vpop.f32.mrf.mxu0
      %v5505 = vadd.f32 %v5371, %v5504
      %5506 = vdwg.mxu0
      %5507 = vmatpush.bf16.msra.mxu0 %v3840
      %5508 = vmatpush.bf16.msra.mxu0 %v3839
      %5509 = vmatpush.bf16.msra.mxu0 %v3838
      %5510 = vmatpush.bf16.msra.mxu0 %v3837
      %5511 = vmatpush.bf16.msra.mxu0 %v3836
      %5512 = vmatpush.bf16.msra.mxu0 %v3835
      %5513 = vmatpush.bf16.msra.mxu0 %v3834
      %5514 = vmatpush.bf16.msra.mxu0 %v3833
      %5515 = vmatmul.bf16.gmra.mxu0 %v2280
      %v5516 = vpop.f32.mrf.mxu0
      %v5517 = vadd.f32 %v5383, %v5516
      %v5518 = vpop.f32.mrf.mxu0
      %v5519 = vadd.f32 %v5385, %v5518
      %5520 = vmatmul.bf16.gmra.mxu0 %v2298
      %v5521 = vpop.f32.mrf.mxu0
      %v5522 = vadd.f32 %v5388, %v5521
      %v5523 = vpop.f32.mrf.mxu0
      %v5524 = vadd.f32 %v5390, %v5523
      %5525 = vmatmul.bf16.gmra.mxu0 %v2316
      %v5526 = vpop.f32.mrf.mxu0
      %v5527 = vadd.f32 %v5393, %v5526
      %v5528 = vpop.f32.mrf.mxu0
      %v5529 = vadd.f32 %v5395, %v5528
      %5530 = vmatmul.bf16.gmra.mxu0 %v2334
      %v5531 = vpop.f32.mrf.mxu0
      %v5532 = vadd.f32 %v5398, %v5531
      %v5533 = vpop.f32.mrf.mxu0
      %v5534 = vadd.f32 %v5400, %v5533
      %5535 = vmatmul.bf16.gmra.mxu0 %v2352
      %v5536 = vpop.f32.mrf.mxu0
      %v5537 = vadd.f32 %v5403, %v5536
      %v5538 = vpop.f32.mrf.mxu0
      %v5539 = vadd.f32 %v5405, %v5538
      %5540 = vmatmul.bf16.gmra.mxu0 %v2370
      %v5541 = vpop.f32.mrf.mxu0
      %v5542 = vadd.f32 %v5408, %v5541
      %v5543 = vpop.f32.mrf.mxu0
      %v5544 = vadd.f32 %v5410, %v5543
      %5545 = vmatmul.bf16.gmra.mxu0 %v2388
      %v5546 = vpop.f32.mrf.mxu0
      %v5547 = vadd.f32 %v5413, %v5546
      %v5548 = vpop.f32.mrf.mxu0
      %v5549 = vadd.f32 %v5415, %v5548
      %5550 = vmatmul.bf16.gmra.mxu0 %v2406
      %v5551 = vpop.f32.mrf.mxu0
      %v5552 = vadd.f32 %v5418, %v5551
      %v5553 = vpop.f32.mrf.mxu0
      %v5554 = vadd.f32 %v5420, %v5553
      %5555 = vmatmul.bf16.gmra.mxu0 %v2424
      %v5556 = vpop.f32.mrf.mxu0
      %v5557 = vadd.f32 %v5423, %v5556
      %v5558 = vpop.f32.mrf.mxu0
      %v5559 = vadd.f32 %v5425, %v5558
      %5560 = vmatmul.bf16.gmra.mxu0 %v2442
      %v5561 = vpop.f32.mrf.mxu0
      %v5562 = vadd.f32 %v5428, %v5561
      %v5563 = vpop.f32.mrf.mxu0
      %v5564 = vadd.f32 %v5430, %v5563
      %5565 = vmatmul.bf16.gmra.mxu0 %v2460
      %v5566 = vpop.f32.mrf.mxu0
      %v5567 = vadd.f32 %v5433, %v5566
      %v5568 = vpop.f32.mrf.mxu0
      %v5569 = vadd.f32 %v5435, %v5568
      %5570 = vmatmul.bf16.gmra.mxu0 %v2478
      %v5571 = vpop.f32.mrf.mxu0
      %v5572 = vadd.f32 %v5438, %v5571
      %v5573 = vpop.f32.mrf.mxu0
      %v5574 = vadd.f32 %v5440, %v5573
      %5575 = vmatmul.bf16.gmra.mxu0 %v2496
      %v5576 = vpop.f32.mrf.mxu0
      %v5577 = vadd.f32 %v5443, %v5576
      %v5578 = vpop.f32.mrf.mxu0
      %v5579 = vadd.f32 %v5445, %v5578
      %5580 = vmatmul.bf16.gmra.mxu0 %v2514
      %v5581 = vpop.f32.mrf.mxu0
      %v5582 = vadd.f32 %v5448, %v5581
      %v5583 = vpop.f32.mrf.mxu0
      %v5584 = vadd.f32 %v5450, %v5583
      %5585 = vmatmul.bf16.gmra.mxu0 %v2532
      %v5586 = vpop.f32.mrf.mxu0
      %v5587 = vadd.f32 %v5453, %v5586
      %v5588 = vpop.f32.mrf.mxu0
      %v5589 = vadd.f32 %v5455, %v5588
      %5590 = vmatmul.bf16.gmra.mxu0 %v2550
      %v5591 = vpop.f32.mrf.mxu0
      %v5592 = vadd.f32 %v5458, %v5591
      %v5593 = vpop.f32.mrf.mxu0
      %v5594 = vadd.f32 %v5460, %v5593
      %5595 = vmatmul.bf16.gmra.mxu0 %v2568
      %v5596 = vpop.f32.mrf.mxu0
      %v5597 = vadd.f32 %v5463, %v5596
      %v5598 = vpop.f32.mrf.mxu0
      %v5599 = vadd.f32 %v5465, %v5598
      %5600 = vmatmul.bf16.gmra.mxu0 %v2586
      %v5601 = vpop.f32.mrf.mxu0
      %v5602 = vadd.f32 %v5468, %v5601
      %v5603 = vpop.f32.mrf.mxu0
      %v5604 = vadd.f32 %v5470, %v5603
      %5605 = vmatmul.bf16.gmra.mxu0 %v2604
      %v5606 = vpop.f32.mrf.mxu0
      %v5607 = vadd.f32 %v5473, %v5606
      %v5608 = vpop.f32.mrf.mxu0
      %v5609 = vadd.f32 %v5475, %v5608
      %5610 = vmatmul.bf16.gmra.mxu0 %v2622
      %v5611 = vpop.f32.mrf.mxu0
      %v5612 = vadd.f32 %v5478, %v5611
      %v5613 = vpop.f32.mrf.mxu0
      %v5614 = vadd.f32 %v5480, %v5613
      %5615 = vmatmul.bf16.gmra.mxu0 %v2640
      %v5616 = vpop.f32.mrf.mxu0
      %v5617 = vadd.f32 %v5483, %v5616
      %v5618 = vpop.f32.mrf.mxu0
      %v5619 = vadd.f32 %v5485, %v5618
      %5620 = vmatmul.bf16.gmra.mxu0 %v2658
      %v5621 = vpop.f32.mrf.mxu0
      %v5622 = vadd.f32 %v5488, %v5621
      %v5623 = vpop.f32.mrf.mxu0
      %v5624 = vadd.f32 %v5490, %v5623
      %5625 = vmatmul.bf16.gmra.mxu0 %v2676
      %v5626 = vpop.f32.mrf.mxu0
      %v5627 = vadd.f32 %v5493, %v5626
      %v5628 = vpop.f32.mrf.mxu0
      %v5629 = vadd.f32 %v5495, %v5628
      %5630 = vmatmul.bf16.gmra.mxu0 %v2694
      %v5631 = vpop.f32.mrf.mxu0
      %v5632 = vadd.f32 %v5498, %v5631
      %v5633 = vpop.f32.mrf.mxu0
      %v5634 = vadd.f32 %v5500, %v5633
      %5635 = vmatmul.bf16.gmra.mxu0 %v2712
      %v5636 = vpop.f32.mrf.mxu0
      %v5637 = vadd.f32 %v5503, %v5636
      %v5638 = vpop.f32.mrf.mxu0
      %v5639 = vadd.f32 %v5505, %v5638
      %5640 = vdwg.mxu0
      %5641 = vmatpush.bf16.msra.mxu0 %v3848
      %5642 = vmatpush.bf16.msra.mxu0 %v3847
      %5643 = vmatpush.bf16.msra.mxu0 %v3846
      %5644 = vmatpush.bf16.msra.mxu0 %v3845
      %5645 = vmatpush.bf16.msra.mxu0 %v3844
      %5646 = vmatpush.bf16.msra.mxu0 %v3843
      %5647 = vmatpush.bf16.msra.mxu0 %v3842
      %5648 = vmatpush.bf16.msra.mxu0 %v3841
      %5649 = vmatmul.bf16.gmra.mxu0 %v2281
      %v5650 = vpop.f32.mrf.mxu0
      %v5651 = vadd.f32 %v5517, %v5650
      %v5652 = vpop.f32.mrf.mxu0
      %v5653 = vadd.f32 %v5519, %v5652
      %5654 = vmatmul.bf16.gmra.mxu0 %v2299
      %v5655 = vpop.f32.mrf.mxu0
      %v5656 = vadd.f32 %v5522, %v5655
      %v5657 = vpop.f32.mrf.mxu0
      %v5658 = vadd.f32 %v5524, %v5657
      %5659 = vmatmul.bf16.gmra.mxu0 %v2317
      %v5660 = vpop.f32.mrf.mxu0
      %v5661 = vadd.f32 %v5527, %v5660
      %v5662 = vpop.f32.mrf.mxu0
      %v5663 = vadd.f32 %v5529, %v5662
      %5664 = vmatmul.bf16.gmra.mxu0 %v2335
      %v5665 = vpop.f32.mrf.mxu0
      %v5666 = vadd.f32 %v5532, %v5665
      %v5667 = vpop.f32.mrf.mxu0
      %v5668 = vadd.f32 %v5534, %v5667
      %5669 = vmatmul.bf16.gmra.mxu0 %v2353
      %v5670 = vpop.f32.mrf.mxu0
      %v5671 = vadd.f32 %v5537, %v5670
      %v5672 = vpop.f32.mrf.mxu0
      %v5673 = vadd.f32 %v5539, %v5672
      %5674 = vmatmul.bf16.gmra.mxu0 %v2371
      %v5675 = vpop.f32.mrf.mxu0
      %v5676 = vadd.f32 %v5542, %v5675
      %v5677 = vpop.f32.mrf.mxu0
      %v5678 = vadd.f32 %v5544, %v5677
      %5679 = vmatmul.bf16.gmra.mxu0 %v2389
      %v5680 = vpop.f32.mrf.mxu0
      %v5681 = vadd.f32 %v5547, %v5680
      %v5682 = vpop.f32.mrf.mxu0
      %v5683 = vadd.f32 %v5549, %v5682
      %5684 = vmatmul.bf16.gmra.mxu0 %v2407
      %v5685 = vpop.f32.mrf.mxu0
      %v5686 = vadd.f32 %v5552, %v5685
      %v5687 = vpop.f32.mrf.mxu0
      %v5688 = vadd.f32 %v5554, %v5687
      %5689 = vmatmul.bf16.gmra.mxu0 %v2425
      %v5690 = vpop.f32.mrf.mxu0
      %v5691 = vadd.f32 %v5557, %v5690
      %v5692 = vpop.f32.mrf.mxu0
      %v5693 = vadd.f32 %v5559, %v5692
      %5694 = vmatmul.bf16.gmra.mxu0 %v2443
      %v5695 = vpop.f32.mrf.mxu0
      %v5696 = vadd.f32 %v5562, %v5695
      %v5697 = vpop.f32.mrf.mxu0
      %v5698 = vadd.f32 %v5564, %v5697
      %5699 = vmatmul.bf16.gmra.mxu0 %v2461
      %v5700 = vpop.f32.mrf.mxu0
      %v5701 = vadd.f32 %v5567, %v5700
      %v5702 = vpop.f32.mrf.mxu0
      %v5703 = vadd.f32 %v5569, %v5702
      %5704 = vmatmul.bf16.gmra.mxu0 %v2479
      %v5705 = vpop.f32.mrf.mxu0
      %v5706 = vadd.f32 %v5572, %v5705
      %v5707 = vpop.f32.mrf.mxu0
      %v5708 = vadd.f32 %v5574, %v5707
      %5709 = vmatmul.bf16.gmra.mxu0 %v2497
      %v5710 = vpop.f32.mrf.mxu0
      %v5711 = vadd.f32 %v5577, %v5710
      %v5712 = vpop.f32.mrf.mxu0
      %v5713 = vadd.f32 %v5579, %v5712
      %5714 = vmatmul.bf16.gmra.mxu0 %v2515
      %v5715 = vpop.f32.mrf.mxu0
      %v5716 = vadd.f32 %v5582, %v5715
      %v5717 = vpop.f32.mrf.mxu0
      %v5718 = vadd.f32 %v5584, %v5717
      %5719 = vmatmul.bf16.gmra.mxu0 %v2533
      %v5720 = vpop.f32.mrf.mxu0
      %v5721 = vadd.f32 %v5587, %v5720
      %v5722 = vpop.f32.mrf.mxu0
      %v5723 = vadd.f32 %v5589, %v5722
      %5724 = vmatmul.bf16.gmra.mxu0 %v2551
      %v5725 = vpop.f32.mrf.mxu0
      %v5726 = vadd.f32 %v5592, %v5725
      %v5727 = vpop.f32.mrf.mxu0
      %v5728 = vadd.f32 %v5594, %v5727
      %5729 = vmatmul.bf16.gmra.mxu0 %v2569
      %v5730 = vpop.f32.mrf.mxu0
      %v5731 = vadd.f32 %v5597, %v5730
      %v5732 = vpop.f32.mrf.mxu0
      %v5733 = vadd.f32 %v5599, %v5732
      %5734 = vmatmul.bf16.gmra.mxu0 %v2587
      %v5735 = vpop.f32.mrf.mxu0
      %v5736 = vadd.f32 %v5602, %v5735
      %v5737 = vpop.f32.mrf.mxu0
      %v5738 = vadd.f32 %v5604, %v5737
      %5739 = vmatmul.bf16.gmra.mxu0 %v2605
      %v5740 = vpop.f32.mrf.mxu0
      %v5741 = vadd.f32 %v5607, %v5740
      %v5742 = vpop.f32.mrf.mxu0
      %v5743 = vadd.f32 %v5609, %v5742
      %5744 = vmatmul.bf16.gmra.mxu0 %v2623
      %v5745 = vpop.f32.mrf.mxu0
      %v5746 = vadd.f32 %v5612, %v5745
      %v5747 = vpop.f32.mrf.mxu0
      %v5748 = vadd.f32 %v5614, %v5747
      %5749 = vmatmul.bf16.gmra.mxu0 %v2641
      %v5750 = vpop.f32.mrf.mxu0
      %v5751 = vadd.f32 %v5617, %v5750
      %v5752 = vpop.f32.mrf.mxu0
      %v5753 = vadd.f32 %v5619, %v5752
      %5754 = vmatmul.bf16.gmra.mxu0 %v2659
      %v5755 = vpop.f32.mrf.mxu0
      %v5756 = vadd.f32 %v5622, %v5755
      %v5757 = vpop.f32.mrf.mxu0
      %v5758 = vadd.f32 %v5624, %v5757
      %5759 = vmatmul.bf16.gmra.mxu0 %v2677
      %v5760 = vpop.f32.mrf.mxu0
      %v5761 = vadd.f32 %v5627, %v5760
      %v5762 = vpop.f32.mrf.mxu0
      %v5763 = vadd.f32 %v5629, %v5762
      %5764 = vmatmul.bf16.gmra.mxu0 %v2695
      %v5765 = vpop.f32.mrf.mxu0
      %v5766 = vadd.f32 %v5632, %v5765
      %v5767 = vpop.f32.mrf.mxu0
      %v5768 = vadd.f32 %v5634, %v5767
      %5769 = vmatmul.bf16.gmra.mxu0 %v2713
      %v5770 = vpop.f32.mrf.mxu0
      %v5771 = vadd.f32 %v5637, %v5770
      %v5772 = vpop.f32.mrf.mxu0
      %v5773 = vadd.f32 %v5639, %v5772
      %5774 = vdwg.mxu0
      %5775 = vmatpush.bf16.msra.mxu0 %v3856
      %5776 = vmatpush.bf16.msra.mxu0 %v3855
      %5777 = vmatpush.bf16.msra.mxu0 %v3854
      %5778 = vmatpush.bf16.msra.mxu0 %v3853
      %5779 = vmatpush.bf16.msra.mxu0 %v3852
      %5780 = vmatpush.bf16.msra.mxu0 %v3851
      %5781 = vmatpush.bf16.msra.mxu0 %v3850
      %5782 = vmatpush.bf16.msra.mxu0 %v3849
      %5783 = vmatmul.bf16.gmra.mxu0 %v2282
      %v5784 = vpop.f32.mrf.mxu0
      %v5785 = vadd.f32 %v5651, %v5784
      %v5786 = vpop.f32.mrf.mxu0
      %v5787 = vadd.f32 %v5653, %v5786
      %5788 = vmatmul.bf16.gmra.mxu0 %v2300
      %v5789 = vpop.f32.mrf.mxu0
      %v5790 = vadd.f32 %v5656, %v5789
      %v5791 = vpop.f32.mrf.mxu0
      %v5792 = vadd.f32 %v5658, %v5791
      %5793 = vmatmul.bf16.gmra.mxu0 %v2318
      %v5794 = vpop.f32.mrf.mxu0
      %v5795 = vadd.f32 %v5661, %v5794
      %v5796 = vpop.f32.mrf.mxu0
      %v5797 = vadd.f32 %v5663, %v5796
      %5798 = vmatmul.bf16.gmra.mxu0 %v2336
      %v5799 = vpop.f32.mrf.mxu0
      %v5800 = vadd.f32 %v5666, %v5799
      %v5801 = vpop.f32.mrf.mxu0
      %v5802 = vadd.f32 %v5668, %v5801
      %5803 = vmatmul.bf16.gmra.mxu0 %v2354
      %v5804 = vpop.f32.mrf.mxu0
      %v5805 = vadd.f32 %v5671, %v5804
      %v5806 = vpop.f32.mrf.mxu0
      %v5807 = vadd.f32 %v5673, %v5806
      %5808 = vmatmul.bf16.gmra.mxu0 %v2372
      %v5809 = vpop.f32.mrf.mxu0
      %v5810 = vadd.f32 %v5676, %v5809
      %v5811 = vpop.f32.mrf.mxu0
      %v5812 = vadd.f32 %v5678, %v5811
      %5813 = vmatmul.bf16.gmra.mxu0 %v2390
      %v5814 = vpop.f32.mrf.mxu0
      %v5815 = vadd.f32 %v5681, %v5814
      %v5816 = vpop.f32.mrf.mxu0
      %v5817 = vadd.f32 %v5683, %v5816
      %5818 = vmatmul.bf16.gmra.mxu0 %v2408
      %v5819 = vpop.f32.mrf.mxu0
      %v5820 = vadd.f32 %v5686, %v5819
      %v5821 = vpop.f32.mrf.mxu0
      %v5822 = vadd.f32 %v5688, %v5821
      %5823 = vmatmul.bf16.gmra.mxu0 %v2426
      %v5824 = vpop.f32.mrf.mxu0
      %v5825 = vadd.f32 %v5691, %v5824
      %v5826 = vpop.f32.mrf.mxu0
      %v5827 = vadd.f32 %v5693, %v5826
      %5828 = vmatmul.bf16.gmra.mxu0 %v2444
      %v5829 = vpop.f32.mrf.mxu0
      %v5830 = vadd.f32 %v5696, %v5829
      %v5831 = vpop.f32.mrf.mxu0
      %v5832 = vadd.f32 %v5698, %v5831
      %5833 = vmatmul.bf16.gmra.mxu0 %v2462
      %v5834 = vpop.f32.mrf.mxu0
      %v5835 = vadd.f32 %v5701, %v5834
      %v5836 = vpop.f32.mrf.mxu0
      %v5837 = vadd.f32 %v5703, %v5836
      %5838 = vmatmul.bf16.gmra.mxu0 %v2480
      %v5839 = vpop.f32.mrf.mxu0
      %v5840 = vadd.f32 %v5706, %v5839
      %v5841 = vpop.f32.mrf.mxu0
      %v5842 = vadd.f32 %v5708, %v5841
      %5843 = vmatmul.bf16.gmra.mxu0 %v2498
      %v5844 = vpop.f32.mrf.mxu0
      %v5845 = vadd.f32 %v5711, %v5844
      %v5846 = vpop.f32.mrf.mxu0
      %v5847 = vadd.f32 %v5713, %v5846
      %5848 = vmatmul.bf16.gmra.mxu0 %v2516
      %v5849 = vpop.f32.mrf.mxu0
      %v5850 = vadd.f32 %v5716, %v5849
      %v5851 = vpop.f32.mrf.mxu0
      %v5852 = vadd.f32 %v5718, %v5851
      %5853 = vmatmul.bf16.gmra.mxu0 %v2534
      %v5854 = vpop.f32.mrf.mxu0
      %v5855 = vadd.f32 %v5721, %v5854
      %v5856 = vpop.f32.mrf.mxu0
      %v5857 = vadd.f32 %v5723, %v5856
      %5858 = vmatmul.bf16.gmra.mxu0 %v2552
      %v5859 = vpop.f32.mrf.mxu0
      %v5860 = vadd.f32 %v5726, %v5859
      %v5861 = vpop.f32.mrf.mxu0
      %v5862 = vadd.f32 %v5728, %v5861
      %5863 = vmatmul.bf16.gmra.mxu0 %v2570
      %v5864 = vpop.f32.mrf.mxu0
      %v5865 = vadd.f32 %v5731, %v5864
      %v5866 = vpop.f32.mrf.mxu0
      %v5867 = vadd.f32 %v5733, %v5866
      %5868 = vmatmul.bf16.gmra.mxu0 %v2588
      %v5869 = vpop.f32.mrf.mxu0
      %v5870 = vadd.f32 %v5736, %v5869
      %v5871 = vpop.f32.mrf.mxu0
      %v5872 = vadd.f32 %v5738, %v5871
      %5873 = vmatmul.bf16.gmra.mxu0 %v2606
      %v5874 = vpop.f32.mrf.mxu0
      %v5875 = vadd.f32 %v5741, %v5874
      %v5876 = vpop.f32.mrf.mxu0
      %v5877 = vadd.f32 %v5743, %v5876
      %5878 = vmatmul.bf16.gmra.mxu0 %v2624
      %v5879 = vpop.f32.mrf.mxu0
      %v5880 = vadd.f32 %v5746, %v5879
      %v5881 = vpop.f32.mrf.mxu0
      %v5882 = vadd.f32 %v5748, %v5881
      %5883 = vmatmul.bf16.gmra.mxu0 %v2642
      %v5884 = vpop.f32.mrf.mxu0
      %v5885 = vadd.f32 %v5751, %v5884
      %v5886 = vpop.f32.mrf.mxu0
      %v5887 = vadd.f32 %v5753, %v5886
      %5888 = vmatmul.bf16.gmra.mxu0 %v2660
      %v5889 = vpop.f32.mrf.mxu0
      %v5890 = vadd.f32 %v5756, %v5889
      %v5891 = vpop.f32.mrf.mxu0
      %v5892 = vadd.f32 %v5758, %v5891
      %5893 = vmatmul.bf16.gmra.mxu0 %v2678
      %v5894 = vpop.f32.mrf.mxu0
      %v5895 = vadd.f32 %v5761, %v5894
      %v5896 = vpop.f32.mrf.mxu0
      %v5897 = vadd.f32 %v5763, %v5896
      %5898 = vmatmul.bf16.gmra.mxu0 %v2696
      %v5899 = vpop.f32.mrf.mxu0
      %v5900 = vadd.f32 %v5766, %v5899
      %v5901 = vpop.f32.mrf.mxu0
      %v5902 = vadd.f32 %v5768, %v5901
      %5903 = vmatmul.bf16.gmra.mxu0 %v2714
      %v5904 = vpop.f32.mrf.mxu0
      %v5905 = vadd.f32 %v5771, %v5904
      %v5906 = vpop.f32.mrf.mxu0
      %v5907 = vadd.f32 %v5773, %v5906
      %5908 = vdwg.mxu0
      %5909 = vmatpush.bf16.msra.mxu0 %v3864
      %5910 = vmatpush.bf16.msra.mxu0 %v3863
      %5911 = vmatpush.bf16.msra.mxu0 %v3862
      %5912 = vmatpush.bf16.msra.mxu0 %v3861
      %5913 = vmatpush.bf16.msra.mxu0 %v3860
      %5914 = vmatpush.bf16.msra.mxu0 %v3859
      %5915 = vmatpush.bf16.msra.mxu0 %v3858
      %5916 = vmatpush.bf16.msra.mxu0 %v3857
      %5917 = vmatmul.bf16.gmra.mxu0 %v2283
      %v5918 = vpop.f32.mrf.mxu0
      %v5919 = vadd.f32 %v5785, %v5918
      %v5920 = vpop.f32.mrf.mxu0
      %v5921 = vadd.f32 %v5787, %v5920
      %5922 = vmatmul.bf16.gmra.mxu0 %v2301
      %v5923 = vpop.f32.mrf.mxu0
      %v5924 = vadd.f32 %v5790, %v5923
      %v5925 = vpop.f32.mrf.mxu0
      %v5926 = vadd.f32 %v5792, %v5925
      %5927 = vmatmul.bf16.gmra.mxu0 %v2319
      %v5928 = vpop.f32.mrf.mxu0
      %v5929 = vadd.f32 %v5795, %v5928
      %v5930 = vpop.f32.mrf.mxu0
      %v5931 = vadd.f32 %v5797, %v5930
      %5932 = vmatmul.bf16.gmra.mxu0 %v2337
      %v5933 = vpop.f32.mrf.mxu0
      %v5934 = vadd.f32 %v5800, %v5933
      %v5935 = vpop.f32.mrf.mxu0
      %v5936 = vadd.f32 %v5802, %v5935
      %5937 = vmatmul.bf16.gmra.mxu0 %v2355
      %v5938 = vpop.f32.mrf.mxu0
      %v5939 = vadd.f32 %v5805, %v5938
      %v5940 = vpop.f32.mrf.mxu0
      %v5941 = vadd.f32 %v5807, %v5940
      %5942 = vmatmul.bf16.gmra.mxu0 %v2373
      %v5943 = vpop.f32.mrf.mxu0
      %v5944 = vadd.f32 %v5810, %v5943
      %v5945 = vpop.f32.mrf.mxu0
      %v5946 = vadd.f32 %v5812, %v5945
      %5947 = vmatmul.bf16.gmra.mxu0 %v2391
      %v5948 = vpop.f32.mrf.mxu0
      %v5949 = vadd.f32 %v5815, %v5948
      %v5950 = vpop.f32.mrf.mxu0
      %v5951 = vadd.f32 %v5817, %v5950
      %5952 = vmatmul.bf16.gmra.mxu0 %v2409
      %v5953 = vpop.f32.mrf.mxu0
      %v5954 = vadd.f32 %v5820, %v5953
      %v5955 = vpop.f32.mrf.mxu0
      %v5956 = vadd.f32 %v5822, %v5955
      %5957 = vmatmul.bf16.gmra.mxu0 %v2427
      %v5958 = vpop.f32.mrf.mxu0
      %v5959 = vadd.f32 %v5825, %v5958
      %v5960 = vpop.f32.mrf.mxu0
      %v5961 = vadd.f32 %v5827, %v5960
      %5962 = vmatmul.bf16.gmra.mxu0 %v2445
      %v5963 = vpop.f32.mrf.mxu0
      %v5964 = vadd.f32 %v5830, %v5963
      %v5965 = vpop.f32.mrf.mxu0
      %v5966 = vadd.f32 %v5832, %v5965
      %5967 = vmatmul.bf16.gmra.mxu0 %v2463
      %v5968 = vpop.f32.mrf.mxu0
      %v5969 = vadd.f32 %v5835, %v5968
      %v5970 = vpop.f32.mrf.mxu0
      %v5971 = vadd.f32 %v5837, %v5970
      %5972 = vmatmul.bf16.gmra.mxu0 %v2481
      %v5973 = vpop.f32.mrf.mxu0
      %v5974 = vadd.f32 %v5840, %v5973
      %v5975 = vpop.f32.mrf.mxu0
      %v5976 = vadd.f32 %v5842, %v5975
      %5977 = vmatmul.bf16.gmra.mxu0 %v2499
      %v5978 = vpop.f32.mrf.mxu0
      %v5979 = vadd.f32 %v5845, %v5978
      %v5980 = vpop.f32.mrf.mxu0
      %v5981 = vadd.f32 %v5847, %v5980
      %5982 = vmatmul.bf16.gmra.mxu0 %v2517
      %v5983 = vpop.f32.mrf.mxu0
      %v5984 = vadd.f32 %v5850, %v5983
      %v5985 = vpop.f32.mrf.mxu0
      %v5986 = vadd.f32 %v5852, %v5985
      %5987 = vmatmul.bf16.gmra.mxu0 %v2535
      %v5988 = vpop.f32.mrf.mxu0
      %v5989 = vadd.f32 %v5855, %v5988
      %v5990 = vpop.f32.mrf.mxu0
      %v5991 = vadd.f32 %v5857, %v5990
      %5992 = vmatmul.bf16.gmra.mxu0 %v2553
      %v5993 = vpop.f32.mrf.mxu0
      %v5994 = vadd.f32 %v5860, %v5993
      %v5995 = vpop.f32.mrf.mxu0
      %v5996 = vadd.f32 %v5862, %v5995
      %5997 = vmatmul.bf16.gmra.mxu0 %v2571
      %v5998 = vpop.f32.mrf.mxu0
      %v5999 = vadd.f32 %v5865, %v5998
      %v6000 = vpop.f32.mrf.mxu0
      %v6001 = vadd.f32 %v5867, %v6000
      %6002 = vmatmul.bf16.gmra.mxu0 %v2589
      %v6003 = vpop.f32.mrf.mxu0
      %v6004 = vadd.f32 %v5870, %v6003
      %v6005 = vpop.f32.mrf.mxu0
      %v6006 = vadd.f32 %v5872, %v6005
      %6007 = vmatmul.bf16.gmra.mxu0 %v2607
      %v6008 = vpop.f32.mrf.mxu0
      %v6009 = vadd.f32 %v5875, %v6008
      %v6010 = vpop.f32.mrf.mxu0
      %v6011 = vadd.f32 %v5877, %v6010
      %6012 = vmatmul.bf16.gmra.mxu0 %v2625
      %v6013 = vpop.f32.mrf.mxu0
      %v6014 = vadd.f32 %v5880, %v6013
      %v6015 = vpop.f32.mrf.mxu0
      %v6016 = vadd.f32 %v5882, %v6015
      %6017 = vmatmul.bf16.gmra.mxu0 %v2643
      %v6018 = vpop.f32.mrf.mxu0
      %v6019 = vadd.f32 %v5885, %v6018
      %v6020 = vpop.f32.mrf.mxu0
      %v6021 = vadd.f32 %v5887, %v6020
      %6022 = vmatmul.bf16.gmra.mxu0 %v2661
      %v6023 = vpop.f32.mrf.mxu0
      %v6024 = vadd.f32 %v5890, %v6023
      %v6025 = vpop.f32.mrf.mxu0
      %v6026 = vadd.f32 %v5892, %v6025
      %6027 = vmatmul.bf16.gmra.mxu0 %v2679
      %v6028 = vpop.f32.mrf.mxu0
      %v6029 = vadd.f32 %v5895, %v6028
      %v6030 = vpop.f32.mrf.mxu0
      %v6031 = vadd.f32 %v5897, %v6030
      %6032 = vmatmul.bf16.gmra.mxu0 %v2697
      %v6033 = vpop.f32.mrf.mxu0
      %v6034 = vadd.f32 %v5900, %v6033
      %v6035 = vpop.f32.mrf.mxu0
      %v6036 = vadd.f32 %v5902, %v6035
      %6037 = vmatmul.bf16.gmra.mxu0 %v2715
      %v6038 = vpop.f32.mrf.mxu0
      %v6039 = vadd.f32 %v5905, %v6038
      %v6040 = vpop.f32.mrf.mxu0
      %v6041 = vadd.f32 %v5907, %v6040
      %6042 = vdwg.mxu0
      %6043 = vmatpush.bf16.msra.mxu0 %v3872
      %6044 = vmatpush.bf16.msra.mxu0 %v3871
      %6045 = vmatpush.bf16.msra.mxu0 %v3870
      %6046 = vmatpush.bf16.msra.mxu0 %v3869
      %6047 = vmatpush.bf16.msra.mxu0 %v3868
      %6048 = vmatpush.bf16.msra.mxu0 %v3867
      %6049 = vmatpush.bf16.msra.mxu0 %v3866
      %6050 = vmatpush.bf16.msra.mxu0 %v3865
      %6051 = vmatmul.bf16.gmra.mxu0 %v2284
      %v6052 = vpop.f32.mrf.mxu0
      %v6053 = vadd.f32 %v5919, %v6052
      %v6054 = vpop.f32.mrf.mxu0
      %v6055 = vadd.f32 %v5921, %v6054
      %6056 = vmatmul.bf16.gmra.mxu0 %v2302
      %v6057 = vpop.f32.mrf.mxu0
      %v6058 = vadd.f32 %v5924, %v6057
      %v6059 = vpop.f32.mrf.mxu0
      %v6060 = vadd.f32 %v5926, %v6059
      %6061 = vmatmul.bf16.gmra.mxu0 %v2320
      %v6062 = vpop.f32.mrf.mxu0
      %v6063 = vadd.f32 %v5929, %v6062
      %v6064 = vpop.f32.mrf.mxu0
      %v6065 = vadd.f32 %v5931, %v6064
      %6066 = vmatmul.bf16.gmra.mxu0 %v2338
      %v6067 = vpop.f32.mrf.mxu0
      %v6068 = vadd.f32 %v5934, %v6067
      %v6069 = vpop.f32.mrf.mxu0
      %v6070 = vadd.f32 %v5936, %v6069
      %6071 = vmatmul.bf16.gmra.mxu0 %v2356
      %v6072 = vpop.f32.mrf.mxu0
      %v6073 = vadd.f32 %v5939, %v6072
      %v6074 = vpop.f32.mrf.mxu0
      %v6075 = vadd.f32 %v5941, %v6074
      %6076 = vmatmul.bf16.gmra.mxu0 %v2374
      %v6077 = vpop.f32.mrf.mxu0
      %v6078 = vadd.f32 %v5944, %v6077
      %v6079 = vpop.f32.mrf.mxu0
      %v6080 = vadd.f32 %v5946, %v6079
      %6081 = vmatmul.bf16.gmra.mxu0 %v2392
      %v6082 = vpop.f32.mrf.mxu0
      %v6083 = vadd.f32 %v5949, %v6082
      %v6084 = vpop.f32.mrf.mxu0
      %v6085 = vadd.f32 %v5951, %v6084
      %6086 = vmatmul.bf16.gmra.mxu0 %v2410
      %v6087 = vpop.f32.mrf.mxu0
      %v6088 = vadd.f32 %v5954, %v6087
      %v6089 = vpop.f32.mrf.mxu0
      %v6090 = vadd.f32 %v5956, %v6089
      %6091 = vmatmul.bf16.gmra.mxu0 %v2428
      %v6092 = vpop.f32.mrf.mxu0
      %v6093 = vadd.f32 %v5959, %v6092
      %v6094 = vpop.f32.mrf.mxu0
      %v6095 = vadd.f32 %v5961, %v6094
      %6096 = vmatmul.bf16.gmra.mxu0 %v2446
      %v6097 = vpop.f32.mrf.mxu0
      %v6098 = vadd.f32 %v5964, %v6097
      %v6099 = vpop.f32.mrf.mxu0
      %v6100 = vadd.f32 %v5966, %v6099
      %6101 = vmatmul.bf16.gmra.mxu0 %v2464
      %v6102 = vpop.f32.mrf.mxu0
      %v6103 = vadd.f32 %v5969, %v6102
      %v6104 = vpop.f32.mrf.mxu0
      %v6105 = vadd.f32 %v5971, %v6104
      %6106 = vmatmul.bf16.gmra.mxu0 %v2482
      %v6107 = vpop.f32.mrf.mxu0
      %v6108 = vadd.f32 %v5974, %v6107
      %v6109 = vpop.f32.mrf.mxu0
      %v6110 = vadd.f32 %v5976, %v6109
      %6111 = vmatmul.bf16.gmra.mxu0 %v2500
      %v6112 = vpop.f32.mrf.mxu0
      %v6113 = vadd.f32 %v5979, %v6112
      %v6114 = vpop.f32.mrf.mxu0
      %v6115 = vadd.f32 %v5981, %v6114
      %6116 = vmatmul.bf16.gmra.mxu0 %v2518
      %v6117 = vpop.f32.mrf.mxu0
      %v6118 = vadd.f32 %v5984, %v6117
      %v6119 = vpop.f32.mrf.mxu0
      %v6120 = vadd.f32 %v5986, %v6119
      %6121 = vmatmul.bf16.gmra.mxu0 %v2536
      %v6122 = vpop.f32.mrf.mxu0
      %v6123 = vadd.f32 %v5989, %v6122
      %v6124 = vpop.f32.mrf.mxu0
      %v6125 = vadd.f32 %v5991, %v6124
      %6126 = vmatmul.bf16.gmra.mxu0 %v2554
      %v6127 = vpop.f32.mrf.mxu0
      %v6128 = vadd.f32 %v5994, %v6127
      %v6129 = vpop.f32.mrf.mxu0
      %v6130 = vadd.f32 %v5996, %v6129
      %6131 = vmatmul.bf16.gmra.mxu0 %v2572
      %v6132 = vpop.f32.mrf.mxu0
      %v6133 = vadd.f32 %v5999, %v6132
      %v6134 = vpop.f32.mrf.mxu0
      %v6135 = vadd.f32 %v6001, %v6134
      %6136 = vmatmul.bf16.gmra.mxu0 %v2590
      %v6137 = vpop.f32.mrf.mxu0
      %v6138 = vadd.f32 %v6004, %v6137
      %v6139 = vpop.f32.mrf.mxu0
      %v6140 = vadd.f32 %v6006, %v6139
      %6141 = vmatmul.bf16.gmra.mxu0 %v2608
      %v6142 = vpop.f32.mrf.mxu0
      %v6143 = vadd.f32 %v6009, %v6142
      %v6144 = vpop.f32.mrf.mxu0
      %v6145 = vadd.f32 %v6011, %v6144
      %6146 = vmatmul.bf16.gmra.mxu0 %v2626
      %v6147 = vpop.f32.mrf.mxu0
      %v6148 = vadd.f32 %v6014, %v6147
      %v6149 = vpop.f32.mrf.mxu0
      %v6150 = vadd.f32 %v6016, %v6149
      %6151 = vmatmul.bf16.gmra.mxu0 %v2644
      %v6152 = vpop.f32.mrf.mxu0
      %v6153 = vadd.f32 %v6019, %v6152
      %v6154 = vpop.f32.mrf.mxu0
      %v6155 = vadd.f32 %v6021, %v6154
      %6156 = vmatmul.bf16.gmra.mxu0 %v2662
      %v6157 = vpop.f32.mrf.mxu0
      %v6158 = vadd.f32 %v6024, %v6157
      %v6159 = vpop.f32.mrf.mxu0
      %v6160 = vadd.f32 %v6026, %v6159
      %6161 = vmatmul.bf16.gmra.mxu0 %v2680
      %v6162 = vpop.f32.mrf.mxu0
      %v6163 = vadd.f32 %v6029, %v6162
      %v6164 = vpop.f32.mrf.mxu0
      %v6165 = vadd.f32 %v6031, %v6164
      %6166 = vmatmul.bf16.gmra.mxu0 %v2698
      %v6167 = vpop.f32.mrf.mxu0
      %v6168 = vadd.f32 %v6034, %v6167
      %v6169 = vpop.f32.mrf.mxu0
      %v6170 = vadd.f32 %v6036, %v6169
      %6171 = vmatmul.bf16.gmra.mxu0 %v2716
      %v6172 = vpop.f32.mrf.mxu0
      %v6173 = vadd.f32 %v6039, %v6172
      %v6174 = vpop.f32.mrf.mxu0
      %v6175 = vadd.f32 %v6041, %v6174
      %6176 = vdwg.mxu0
      %6177 = vmatpush.bf16.msra.mxu0 %v3880
      %6178 = vmatpush.bf16.msra.mxu0 %v3879
      %6179 = vmatpush.bf16.msra.mxu0 %v3878
      %6180 = vmatpush.bf16.msra.mxu0 %v3877
      %6181 = vmatpush.bf16.msra.mxu0 %v3876
      %6182 = vmatpush.bf16.msra.mxu0 %v3875
      %6183 = vmatpush.bf16.msra.mxu0 %v3874
      %6184 = vmatpush.bf16.msra.mxu0 %v3873
      %6185 = vmatmul.bf16.gmra.mxu0 %v2285
      %v6186 = vpop.f32.mrf.mxu0
      %v6187 = vadd.f32 %v6053, %v6186
      %v6188 = vpop.f32.mrf.mxu0
      %v6189 = vadd.f32 %v6055, %v6188
      %6190 = vmatmul.bf16.gmra.mxu0 %v2303
      %v6191 = vpop.f32.mrf.mxu0
      %v6192 = vadd.f32 %v6058, %v6191
      %v6193 = vpop.f32.mrf.mxu0
      %v6194 = vadd.f32 %v6060, %v6193
      %6195 = vmatmul.bf16.gmra.mxu0 %v2321
      %v6196 = vpop.f32.mrf.mxu0
      %v6197 = vadd.f32 %v6063, %v6196
      %v6198 = vpop.f32.mrf.mxu0
      %v6199 = vadd.f32 %v6065, %v6198
      %6200 = vmatmul.bf16.gmra.mxu0 %v2339
      %v6201 = vpop.f32.mrf.mxu0
      %v6202 = vadd.f32 %v6068, %v6201
      %v6203 = vpop.f32.mrf.mxu0
      %v6204 = vadd.f32 %v6070, %v6203
      %6205 = vmatmul.bf16.gmra.mxu0 %v2357
      %v6206 = vpop.f32.mrf.mxu0
      %v6207 = vadd.f32 %v6073, %v6206
      %v6208 = vpop.f32.mrf.mxu0
      %v6209 = vadd.f32 %v6075, %v6208
      %6210 = vmatmul.bf16.gmra.mxu0 %v2375
      %v6211 = vpop.f32.mrf.mxu0
      %v6212 = vadd.f32 %v6078, %v6211
      %v6213 = vpop.f32.mrf.mxu0
      %v6214 = vadd.f32 %v6080, %v6213
      %6215 = vmatmul.bf16.gmra.mxu0 %v2393
      %v6216 = vpop.f32.mrf.mxu0
      %v6217 = vadd.f32 %v6083, %v6216
      %v6218 = vpop.f32.mrf.mxu0
      %v6219 = vadd.f32 %v6085, %v6218
      %6220 = vmatmul.bf16.gmra.mxu0 %v2411
      %v6221 = vpop.f32.mrf.mxu0
      %v6222 = vadd.f32 %v6088, %v6221
      %v6223 = vpop.f32.mrf.mxu0
      %v6224 = vadd.f32 %v6090, %v6223
      %6225 = vmatmul.bf16.gmra.mxu0 %v2429
      %v6226 = vpop.f32.mrf.mxu0
      %v6227 = vadd.f32 %v6093, %v6226
      %v6228 = vpop.f32.mrf.mxu0
      %v6229 = vadd.f32 %v6095, %v6228
      %6230 = vmatmul.bf16.gmra.mxu0 %v2447
      %v6231 = vpop.f32.mrf.mxu0
      %v6232 = vadd.f32 %v6098, %v6231
      %v6233 = vpop.f32.mrf.mxu0
      %v6234 = vadd.f32 %v6100, %v6233
      %6235 = vmatmul.bf16.gmra.mxu0 %v2465
      %v6236 = vpop.f32.mrf.mxu0
      %v6237 = vadd.f32 %v6103, %v6236
      %v6238 = vpop.f32.mrf.mxu0
      %v6239 = vadd.f32 %v6105, %v6238
      %6240 = vmatmul.bf16.gmra.mxu0 %v2483
      %v6241 = vpop.f32.mrf.mxu0
      %v6242 = vadd.f32 %v6108, %v6241
      %v6243 = vpop.f32.mrf.mxu0
      %v6244 = vadd.f32 %v6110, %v6243
      %6245 = vmatmul.bf16.gmra.mxu0 %v2501
      %v6246 = vpop.f32.mrf.mxu0
      %v6247 = vadd.f32 %v6113, %v6246
      %v6248 = vpop.f32.mrf.mxu0
      %v6249 = vadd.f32 %v6115, %v6248
      %6250 = vmatmul.bf16.gmra.mxu0 %v2519
      %v6251 = vpop.f32.mrf.mxu0
      %v6252 = vadd.f32 %v6118, %v6251
      %v6253 = vpop.f32.mrf.mxu0
      %v6254 = vadd.f32 %v6120, %v6253
      %6255 = vmatmul.bf16.gmra.mxu0 %v2537
      %v6256 = vpop.f32.mrf.mxu0
      %v6257 = vadd.f32 %v6123, %v6256
      %v6258 = vpop.f32.mrf.mxu0
      %v6259 = vadd.f32 %v6125, %v6258
      %6260 = vmatmul.bf16.gmra.mxu0 %v2555
      %v6261 = vpop.f32.mrf.mxu0
      %v6262 = vadd.f32 %v6128, %v6261
      %v6263 = vpop.f32.mrf.mxu0
      %v6264 = vadd.f32 %v6130, %v6263
      %6265 = vmatmul.bf16.gmra.mxu0 %v2573
      %v6266 = vpop.f32.mrf.mxu0
      %v6267 = vadd.f32 %v6133, %v6266
      %v6268 = vpop.f32.mrf.mxu0
      %v6269 = vadd.f32 %v6135, %v6268
      %6270 = vmatmul.bf16.gmra.mxu0 %v2591
      %v6271 = vpop.f32.mrf.mxu0
      %v6272 = vadd.f32 %v6138, %v6271
      %v6273 = vpop.f32.mrf.mxu0
      %v6274 = vadd.f32 %v6140, %v6273
      %6275 = vmatmul.bf16.gmra.mxu0 %v2609
      %v6276 = vpop.f32.mrf.mxu0
      %v6277 = vadd.f32 %v6143, %v6276
      %v6278 = vpop.f32.mrf.mxu0
      %v6279 = vadd.f32 %v6145, %v6278
      %6280 = vmatmul.bf16.gmra.mxu0 %v2627
      %v6281 = vpop.f32.mrf.mxu0
      %v6282 = vadd.f32 %v6148, %v6281
      %v6283 = vpop.f32.mrf.mxu0
      %v6284 = vadd.f32 %v6150, %v6283
      %6285 = vmatmul.bf16.gmra.mxu0 %v2645
      %v6286 = vpop.f32.mrf.mxu0
      %v6287 = vadd.f32 %v6153, %v6286
      %v6288 = vpop.f32.mrf.mxu0
      %v6289 = vadd.f32 %v6155, %v6288
      %6290 = vmatmul.bf16.gmra.mxu0 %v2663
      %v6291 = vpop.f32.mrf.mxu0
      %v6292 = vadd.f32 %v6158, %v6291
      %v6293 = vpop.f32.mrf.mxu0
      %v6294 = vadd.f32 %v6160, %v6293
      %6295 = vmatmul.bf16.gmra.mxu0 %v2681
      %v6296 = vpop.f32.mrf.mxu0
      %v6297 = vadd.f32 %v6163, %v6296
      %v6298 = vpop.f32.mrf.mxu0
      %v6299 = vadd.f32 %v6165, %v6298
      %6300 = vmatmul.bf16.gmra.mxu0 %v2699
      %v6301 = vpop.f32.mrf.mxu0
      %v6302 = vadd.f32 %v6168, %v6301
      %v6303 = vpop.f32.mrf.mxu0
      %v6304 = vadd.f32 %v6170, %v6303
      %6305 = vmatmul.bf16.gmra.mxu0 %v2717
      %v6306 = vpop.f32.mrf.mxu0
      %v6307 = vadd.f32 %v6173, %v6306
      %v6308 = vpop.f32.mrf.mxu0
      %v6309 = vadd.f32 %v6175, %v6308
      %6310 = vdwg.mxu0
      %6311 = vmatpush.bf16.msra.mxu0 %v3888
      %6312 = vmatpush.bf16.msra.mxu0 %v3887
      %6313 = vmatpush.bf16.msra.mxu0 %v3886
      %6314 = vmatpush.bf16.msra.mxu0 %v3885
      %6315 = vmatpush.bf16.msra.mxu0 %v3884
      %6316 = vmatpush.bf16.msra.mxu0 %v3883
      %6317 = vmatpush.bf16.msra.mxu0 %v3882
      %6318 = vmatpush.bf16.msra.mxu0 %v3881
      %6319 = vmatmul.bf16.gmra.mxu0 %v2286
      %v6320 = vpop.f32.mrf.mxu0
      %v6321 = vadd.f32 %v6187, %v6320
      %v6322 = vpop.f32.mrf.mxu0
      %v6323 = vadd.f32 %v6189, %v6322
      %6324 = vmatmul.bf16.gmra.mxu0 %v2304
      %v6325 = vpop.f32.mrf.mxu0
      %v6326 = vadd.f32 %v6192, %v6325
      %v6327 = vpop.f32.mrf.mxu0
      %v6328 = vadd.f32 %v6194, %v6327
      %6329 = vmatmul.bf16.gmra.mxu0 %v2322
      %v6330 = vpop.f32.mrf.mxu0
      %v6331 = vadd.f32 %v6197, %v6330
      %v6332 = vpop.f32.mrf.mxu0
      %v6333 = vadd.f32 %v6199, %v6332
      %6334 = vmatmul.bf16.gmra.mxu0 %v2340
      %v6335 = vpop.f32.mrf.mxu0
      %v6336 = vadd.f32 %v6202, %v6335
      %v6337 = vpop.f32.mrf.mxu0
      %v6338 = vadd.f32 %v6204, %v6337
      %6339 = vmatmul.bf16.gmra.mxu0 %v2358
      %v6340 = vpop.f32.mrf.mxu0
      %v6341 = vadd.f32 %v6207, %v6340
      %v6342 = vpop.f32.mrf.mxu0
      %v6343 = vadd.f32 %v6209, %v6342
      %6344 = vmatmul.bf16.gmra.mxu0 %v2376
      %v6345 = vpop.f32.mrf.mxu0
      %v6346 = vadd.f32 %v6212, %v6345
      %v6347 = vpop.f32.mrf.mxu0
      %v6348 = vadd.f32 %v6214, %v6347
      %6349 = vmatmul.bf16.gmra.mxu0 %v2394
      %v6350 = vpop.f32.mrf.mxu0
      %v6351 = vadd.f32 %v6217, %v6350
      %v6352 = vpop.f32.mrf.mxu0
      %v6353 = vadd.f32 %v6219, %v6352
      %6354 = vmatmul.bf16.gmra.mxu0 %v2412
      %v6355 = vpop.f32.mrf.mxu0
      %v6356 = vadd.f32 %v6222, %v6355
      %v6357 = vpop.f32.mrf.mxu0
      %v6358 = vadd.f32 %v6224, %v6357
      %6359 = vmatmul.bf16.gmra.mxu0 %v2430
      %v6360 = vpop.f32.mrf.mxu0
      %v6361 = vadd.f32 %v6227, %v6360
      %v6362 = vpop.f32.mrf.mxu0
      %v6363 = vadd.f32 %v6229, %v6362
      %6364 = vmatmul.bf16.gmra.mxu0 %v2448
      %v6365 = vpop.f32.mrf.mxu0
      %v6366 = vadd.f32 %v6232, %v6365
      %v6367 = vpop.f32.mrf.mxu0
      %v6368 = vadd.f32 %v6234, %v6367
      %6369 = vmatmul.bf16.gmra.mxu0 %v2466
      %v6370 = vpop.f32.mrf.mxu0
      %v6371 = vadd.f32 %v6237, %v6370
      %v6372 = vpop.f32.mrf.mxu0
      %v6373 = vadd.f32 %v6239, %v6372
      %6374 = vmatmul.bf16.gmra.mxu0 %v2484
      %v6375 = vpop.f32.mrf.mxu0
      %v6376 = vadd.f32 %v6242, %v6375
      %v6377 = vpop.f32.mrf.mxu0
      %v6378 = vadd.f32 %v6244, %v6377
      %6379 = vmatmul.bf16.gmra.mxu0 %v2502
      %v6380 = vpop.f32.mrf.mxu0
      %v6381 = vadd.f32 %v6247, %v6380
      %v6382 = vpop.f32.mrf.mxu0
      %v6383 = vadd.f32 %v6249, %v6382
      %6384 = vmatmul.bf16.gmra.mxu0 %v2520
      %v6385 = vpop.f32.mrf.mxu0
      %v6386 = vadd.f32 %v6252, %v6385
      %v6387 = vpop.f32.mrf.mxu0
      %v6388 = vadd.f32 %v6254, %v6387
      %6389 = vmatmul.bf16.gmra.mxu0 %v2538
      %v6390 = vpop.f32.mrf.mxu0
      %v6391 = vadd.f32 %v6257, %v6390
      %v6392 = vpop.f32.mrf.mxu0
      %v6393 = vadd.f32 %v6259, %v6392
      %6394 = vmatmul.bf16.gmra.mxu0 %v2556
      %v6395 = vpop.f32.mrf.mxu0
      %v6396 = vadd.f32 %v6262, %v6395
      %v6397 = vpop.f32.mrf.mxu0
      %v6398 = vadd.f32 %v6264, %v6397
      %6399 = vmatmul.bf16.gmra.mxu0 %v2574
      %v6400 = vpop.f32.mrf.mxu0
      %v6401 = vadd.f32 %v6267, %v6400
      %v6402 = vpop.f32.mrf.mxu0
      %v6403 = vadd.f32 %v6269, %v6402
      %6404 = vmatmul.bf16.gmra.mxu0 %v2592
      %v6405 = vpop.f32.mrf.mxu0
      %v6406 = vadd.f32 %v6272, %v6405
      %v6407 = vpop.f32.mrf.mxu0
      %v6408 = vadd.f32 %v6274, %v6407
      %6409 = vmatmul.bf16.gmra.mxu0 %v2610
      %v6410 = vpop.f32.mrf.mxu0
      %v6411 = vadd.f32 %v6277, %v6410
      %v6412 = vpop.f32.mrf.mxu0
      %v6413 = vadd.f32 %v6279, %v6412
      %6414 = vmatmul.bf16.gmra.mxu0 %v2628
      %v6415 = vpop.f32.mrf.mxu0
      %v6416 = vadd.f32 %v6282, %v6415
      %v6417 = vpop.f32.mrf.mxu0
      %v6418 = vadd.f32 %v6284, %v6417
      %6419 = vmatmul.bf16.gmra.mxu0 %v2646
      %v6420 = vpop.f32.mrf.mxu0
      %v6421 = vadd.f32 %v6287, %v6420
      %v6422 = vpop.f32.mrf.mxu0
      %v6423 = vadd.f32 %v6289, %v6422
      %6424 = vmatmul.bf16.gmra.mxu0 %v2664
      %v6425 = vpop.f32.mrf.mxu0
      %v6426 = vadd.f32 %v6292, %v6425
      %v6427 = vpop.f32.mrf.mxu0
      %v6428 = vadd.f32 %v6294, %v6427
      %6429 = vmatmul.bf16.gmra.mxu0 %v2682
      %v6430 = vpop.f32.mrf.mxu0
      %v6431 = vadd.f32 %v6297, %v6430
      %v6432 = vpop.f32.mrf.mxu0
      %v6433 = vadd.f32 %v6299, %v6432
      %6434 = vmatmul.bf16.gmra.mxu0 %v2700
      %v6435 = vpop.f32.mrf.mxu0
      %v6436 = vadd.f32 %v6302, %v6435
      %v6437 = vpop.f32.mrf.mxu0
      %v6438 = vadd.f32 %v6304, %v6437
      %6439 = vmatmul.bf16.gmra.mxu0 %v2718
      %v6440 = vpop.f32.mrf.mxu0
      %v6441 = vadd.f32 %v6307, %v6440
      %v6442 = vpop.f32.mrf.mxu0
      %v6443 = vadd.f32 %v6309, %v6442
      %6444 = vdwg.mxu0
      %v6445 = vmax.f32 %v6321, 0.0
      %v6446 = vmax.f32 %v6323, 0.0
      %v6447 = vmax.f32 %v6326, 0.0
      %v6448 = vmax.f32 %v6328, 0.0
      %v6449 = vmax.f32 %v6331, 0.0
      %v6450 = vmax.f32 %v6333, 0.0
      %v6451 = vmax.f32 %v6336, 0.0
      %v6452 = vmax.f32 %v6338, 0.0
      %v6453 = vmax.f32 %v6341, 0.0
      %v6454 = vmax.f32 %v6343, 0.0
      %v6455 = vmax.f32 %v6346, 0.0
      %v6456 = vmax.f32 %v6348, 0.0
      %v6457 = vmax.f32 %v6351, 0.0
      %v6458 = vmax.f32 %v6353, 0.0
      %v6459 = vmax.f32 %v6356, 0.0
      %v6460 = vmax.f32 %v6358, 0.0
      %v6461 = vmax.f32 %v6361, 0.0
      %v6462 = vmax.f32 %v6363, 0.0
      %v6463 = vmax.f32 %v6366, 0.0
      %v6464 = vmax.f32 %v6368, 0.0
      %v6465 = vmax.f32 %v6371, 0.0
      %v6466 = vmax.f32 %v6373, 0.0
      %v6467 = vmax.f32 %v6376, 0.0
      %v6468 = vmax.f32 %v6378, 0.0
      %v6469 = vmax.f32 %v6381, 0.0
      %v6470 = vmax.f32 %v6383, 0.0
      %v6471 = vmax.f32 %v6386, 0.0
      %v6472 = vmax.f32 %v6388, 0.0
      %v6473 = vmax.f32 %v6391, 0.0
      %v6474 = vmax.f32 %v6393, 0.0
      %v6475 = vmax.f32 %v6396, 0.0
      %v6476 = vmax.f32 %v6398, 0.0
      %v6477 = vmax.f32 %v6401, 0.0
      %v6478 = vmax.f32 %v6403, 0.0
      %v6479 = vmax.f32 %v6406, 0.0
      %v6480 = vmax.f32 %v6408, 0.0
      %v6481 = vmax.f32 %v6411, 0.0
      %v6482 = vmax.f32 %v6413, 0.0
      %v6483 = vmax.f32 %v6416, 0.0
      %v6484 = vmax.f32 %v6418, 0.0
      %v6485 = vmax.f32 %v6421, 0.0
      %v6486 = vmax.f32 %v6423, 0.0
      %v6487 = vmax.f32 %v6426, 0.0
      %v6488 = vmax.f32 %v6428, 0.0
      %v6489 = vmax.f32 %v6431, 0.0
      %v6490 = vmax.f32 %v6433, 0.0
      %v6491 = vmax.f32 %v6436, 0.0
      %v6492 = vmax.f32 %v6438, 0.0
      %v6493 = vmax.f32 %v6441, 0.0
      %v6494 = vmax.f32 %v6443, 0.0
      %v6495 = vpack.c.bf16 %v6445, %v6445
      %v6496 = vpack.c.bf16 %v6446, %v6446
      %v6497 = vpack.c.bf16 %v6447, %v6447
      %v6498 = vpack.c.bf16 %v6448, %v6448
      %v6499 = vpack.c.bf16 %v6449, %v6449
      %v6500 = vpack.c.bf16 %v6450, %v6450
      %v6501 = vpack.c.bf16 %v6451, %v6451
      %v6502 = vpack.c.bf16 %v6452, %v6452
      %v6503 = vpack.c.bf16 %v6453, %v6453
      %v6504 = vpack.c.bf16 %v6454, %v6454
      %v6505 = vpack.c.bf16 %v6455, %v6455
      %v6506 = vpack.c.bf16 %v6456, %v6456
      %v6507 = vpack.c.bf16 %v6457, %v6457
      %v6508 = vpack.c.bf16 %v6458, %v6458
      %v6509 = vpack.c.bf16 %v6459, %v6459
      %v6510 = vpack.c.bf16 %v6460, %v6460
      %v6511 = vpack.c.bf16 %v6461, %v6461
      %v6512 = vpack.c.bf16 %v6462, %v6462
      %v6513 = vpack.c.bf16 %v6463, %v6463
      %v6514 = vpack.c.bf16 %v6464, %v6464
      %v6515 = vpack.c.bf16 %v6465, %v6465
      %v6516 = vpack.c.bf16 %v6466, %v6466
      %v6517 = vpack.c.bf16 %v6467, %v6467
      %v6518 = vpack.c.bf16 %v6468, %v6468
      %v6519 = vpack.c.bf16 %v6469, %v6469
      %v6520 = vpack.c.bf16 %v6470, %v6470
      %v6521 = vpack.c.bf16 %v6471, %v6471
      %v6522 = vpack.c.bf16 %v6472, %v6472
      %v6523 = vpack.c.bf16 %v6473, %v6473
      %v6524 = vpack.c.bf16 %v6474, %v6474
      %v6525 = vpack.c.bf16 %v6475, %v6475
      %v6526 = vpack.c.bf16 %v6476, %v6476
      %v6527 = vpack.c.bf16 %v6477, %v6477
      %v6528 = vpack.c.bf16 %v6478, %v6478
      %v6529 = vpack.c.bf16 %v6479, %v6479
      %v6530 = vpack.c.bf16 %v6480, %v6480
      %v6531 = vpack.c.bf16 %v6481, %v6481
      %v6532 = vpack.c.bf16 %v6482, %v6482
      %v6533 = vpack.c.bf16 %v6483, %v6483
      %v6534 = vpack.c.bf16 %v6484, %v6484
      %v6535 = vpack.c.bf16 %v6485, %v6485
      %v6536 = vpack.c.bf16 %v6486, %v6486
      %v6537 = vpack.c.bf16 %v6487, %v6487
      %v6538 = vpack.c.bf16 %v6488, %v6488
      %v6539 = vpack.c.bf16 %v6489, %v6489
      %v6540 = vpack.c.bf16 %v6490, %v6490
      %v6541 = vpack.c.bf16 %v6491, %v6491
      %v6542 = vpack.c.bf16 %v6492, %v6492
      %v6543 = vpack.c.bf16 %v6493, %v6493
      %v6544 = vpack.c.bf16 %v6494, %v6494
      %6545 = vst [vmem:[%s175] sm:$0xf] %v6495
      %6546 = vst [vmem:[%s175 + $0x4] sm:$0xf] %v6496
      %6547 = vst [vmem:[%s175 + $0x8] sm:$0xf] %v6497
      %6548 = vst [vmem:[%s175 + $0xc] sm:$0xf] %v6498
      %6549 = vst [vmem:[%s175 + $0x10] sm:$0xf] %v6499
      %6550 = vst [vmem:[%s175 + $0x14] sm:$0xf] %v6500
      %6551 = vst [vmem:[%s175 + $0x18] sm:$0xf] %v6501
      %6552 = vst [vmem:[%s175 + $0x1c] sm:$0xf] %v6502
      %6553 = vst [vmem:[%s175 + $0x20] sm:$0xf] %v6503
      %6554 = vst [vmem:[%s175 + $0x24] sm:$0xf] %v6504
      %6555 = vst [vmem:[%s175 + $0x28] sm:$0xf] %v6505
      %6556 = vst [vmem:[%s175 + $0x2c] sm:$0xf] %v6506
      %6557 = vst [vmem:[%s175 + $0x30] sm:$0xf] %v6507
      %6558 = vst [vmem:[%s175 + $0x34] sm:$0xf] %v6508
      %6559 = vst [vmem:[%s175 + $0x38] sm:$0xf] %v6509
      %6560 = vst [vmem:[%s175 + $0x3c] sm:$0xf] %v6510
      %6561 = vst [vmem:[%s175 + $0x40] sm:$0xf] %v6511
      %6562 = vst [vmem:[%s175 + $0x44] sm:$0xf] %v6512
      %6563 = vst [vmem:[%s175 + $0x48] sm:$0xf] %v6513
      %6564 = vst [vmem:[%s175 + $0x4c] sm:$0xf] %v6514
      %6565 = vst [vmem:[%s175 + $0x50] sm:$0xf] %v6515
      %6566 = vst [vmem:[%s175 + $0x54] sm:$0xf] %v6516
      %6567 = vst [vmem:[%s175 + $0x58] sm:$0xf] %v6517
      %6568 = vst [vmem:[%s175 + $0x5c] sm:$0xf] %v6518
      %6569 = vst [vmem:[%s175 + $0x60] sm:$0xf] %v6519
      %6570 = vst [vmem:[%s175 + $0x64] sm:$0xf] %v6520
      %6571 = vst [vmem:[%s175 + $0x68] sm:$0xf] %v6521
      %6572 = vst [vmem:[%s175 + $0x6c] sm:$0xf] %v6522
      %6573 = vst [vmem:[%s175 + $0x70] sm:$0xf] %v6523
      %6574 = vst [vmem:[%s175 + $0x74] sm:$0xf] %v6524
      %6575 = vst [vmem:[%s175 + $0x78] sm:$0xf] %v6525
      %6576 = vst [vmem:[%s175 + $0x7c] sm:$0xf] %v6526
      %6577 = vst [vmem:[%s175 + $0x80] sm:$0xf] %v6527
      %6578 = vst [vmem:[%s175 + $0x84] sm:$0xf] %v6528
      %6579 = vst [vmem:[%s175 + $0x88] sm:$0xf] %v6529
      %6580 = vst [vmem:[%s175 + $0x8c] sm:$0xf] %v6530
      %6581 = vst [vmem:[%s175 + $0x90] sm:$0xf] %v6531
      %6582 = vst [vmem:[%s175 + $0x94] sm:$0xf] %v6532
      %6583 = vst [vmem:[%s175 + $0x98] sm:$0xf] %v6533
      %6584 = vst [vmem:[%s175 + $0x9c] sm:$0xf] %v6534
      %6585 = vst [vmem:[%s175 + $0xa0] sm:$0xf] %v6535
      %6586 = vst [vmem:[%s175 + $0xa4] sm:$0xf] %v6536
      %6587 = vst [vmem:[%s175 + $0xa8] sm:$0xf] %v6537
      %6588 = vst [vmem:[%s175 + $0xac] sm:$0xf] %v6538
      %6589 = vst [vmem:[%s175 + $0xb0] sm:$0xf] %v6539
      %6590 = vst [vmem:[%s175 + $0xb4] sm:$0xf] %v6540
      %6591 = vst [vmem:[%s175 + $0xb8] sm:$0xf] %v6541
      %6592 = vst [vmem:[%s175 + $0xbc] sm:$0xf] %v6542
      %6593 = vst [vmem:[%s175 + $0xc0] sm:$0xf] %v6543
      %6594 = vst [vmem:[%s175 + $0xc4] sm:$0xf] %v6544
      %s6595 = smul.u32 50, %s14
      %p6596 = scmp.lt.s32.totalorder %s6595, 199
      %s6597 = scalar_select %p6596, %s6595, 199
      %s6598 = smul.addr %s6597, 4
      %s6599 = scalar_lea.vmem %s3, %s6598
      // Predicated region
      $region33: #{_forward_device.4} parent=31 // pred_check
        %p6600 = pneg %p100
      $region34: #{_forward_device.4} parent=31 // pred_check_branch
        %6602 = sbr.rel (%p6600) target = $region36
      $region35: #{_forward_device.4} parent=31 // pred_region
        %s6603 = smul.u32 50, %s14
      $region36: #{_forward_device.4} parent=31 // pred_fallthru
        _
    $region32: #{_forward_device.4} parent=5 // pred_fallthru
      _
    %p6604 = scmp.le.s32.totalorder 2, %s9
    // Predicated region
    $region37: #{_forward_device.4} parent=5 // pred_check
      %p6605 = pneg %p6604
    $region38: #{_forward_device.4} parent=5 // pred_check_branch
      %6607 = sbr.rel (%p6605) target = $region40
    $region39: #{_forward_device.4} parent=5 // pred_region
      %s6608 = ssub.s32 %s9, 2
      // Predicated region
      $region41: #{_forward_device.4} parent=39 // pred_check
        %p6609 = pneg %p106
      $region42: #{_forward_device.4} parent=39 // pred_check_branch
        %6611 = sbr.rel (%p6609) target = $region44
      $region43: #{_forward_device.4} parent=39 // pred_region
        %s6612 = smul.u32 50, %s15
        %p6613 = scmp.lt.s32.totalorder %s6612, 199
        %s6614 = scalar_select %p6613, %s6612, 199
        %s6615 = smul.addr %s6614, 4
        %s6616 = scalar_lea.vmem %s3, %s6615
      $region44: #{_forward_device.4} parent=39 // pred_fallthru
        _
    $region40: #{_forward_device.4} parent=5 // pred_fallthru
      _
  $region6: #{_forward_device.4} parent=0 // loop_footer
    %s13 = sadd.s32 1, %s9
  $region7: #{_forward_device.4} parent=0 // loop_footer_branch
    %8 = sbr.rel target = $region3
  $region8: #{_forward_device.4} parent=0 // loop_exit
    _

// kernel: _forward_device.5
$region0: #{_forward_device.5}
  #allocation0 [shape = 'u32[]', space=smem, size = 0x4, offset = 0x4, fixed_abs, tag = 'smem constant byte address 0x4 - core index']
  #allocation1 [shape = 'u32[72,128]{1,0:T(1,128)}', space=vmem, size = 0x9000, scoped, tag = 'internal scratch']
  %s0 = inlined_call_operand.vmem [shape: bf16[32,6272], index: 0, kind: input, shape index: {}]
  %s1 = inlined_call_operand.vmem [shape: bf16[6272,128], index: 1, kind: input, shape index: {}]
  %s2 = inlined_call_operand.vmem [shape: f32[1,128], index: 2, kind: input, shape index: {}]
  %s3 = inlined_call_operand.vmem [shape: f32[32,128], index: 3, kind: output, shape index: {}]
  %s4 = sld [smem:[#allocation0]]
  $region22: #{_forward_device.5} parent=0
    _
  %s6 = ssub.s32 1, %s4
  %s7 = scalar_select 0, %s6, %s4
  // Predicated region
  $region2: #{_forward_device.5} parent=0 // pred_check
    _
  $region3: #{_forward_device.5} parent=0 // pred_check_branch
    %9 = sbr.rel (0) target = $region5
  $region4: #{_forward_device.5} parent=0 // pred_region
    _
  $region5: #{_forward_device.5} parent=0 // pred_fallthru
    _
  // Predicated region
  $region6: #{_forward_device.5} parent=0 // pred_check
    _
  $region7: #{_forward_device.5} parent=0 // pred_check_branch
    %11 = sbr.rel (0) target = $region9
  $region8: #{_forward_device.5} parent=0 // pred_region
    _
  $region9: #{_forward_device.5} parent=0 // pred_fallthru
    _
  // Predicated region
  $region10: #{_forward_device.5} parent=0 // pred_check
    _
  $region11: #{_forward_device.5} parent=0 // pred_check_branch
    %13 = sbr.rel (0) target = $region13
  $region12: #{_forward_device.5} parent=0 // pred_region
    _
  $region13: #{_forward_device.5} parent=0 // pred_fallthru
    _
  %v14 = vld [vmem:[%s0] sm:$0xff]
  %v15 = vld [vmem:[%s0 + $0x8] sm:$0xff]
  %v16 = vld [vmem:[%s0 + $0x10] sm:$0xff]
  %v17 = vld [vmem:[%s0 + $0x18] sm:$0xff]
  %v18 = vld [vmem:[%s0 + $0x20] sm:$0xff]
  %v19 = vld [vmem:[%s0 + $0x28] sm:$0xff]
  %v20 = vld [vmem:[%s0 + $0x30] sm:$0xff]
  %v21 = vld [vmem:[%s0 + $0x38] sm:$0xff]
  %v22 = vld [vmem:[%s0 + $0x40] sm:$0xff]
  %v23 = vld [vmem:[%s0 + $0x48] sm:$0xff]
  %v24 = vld [vmem:[%s0 + $0x50] sm:$0xff]
  %v25 = vld [vmem:[%s0 + $0x58] sm:$0xff]
  %v26 = vld [vmem:[%s0 + $0x60] sm:$0xff]
  %v27 = vld [vmem:[%s0 + $0x68] sm:$0xff]
  %v28 = vld [vmem:[%s0 + $0x70] sm:$0xff]
  %v29 = vld [vmem:[%s0 + $0x78] sm:$0xff]
  %v30 = vld [vmem:[%s0 + $0x80] sm:$0xff]
  %v31 = vld [vmem:[%s0 + $0x88] sm:$0xff]
  %v32 = vld [vmem:[%s0 + $0x90] sm:$0xff]
  %v33 = vld [vmem:[%s0 + $0x98] sm:$0xff]
  %v34 = vld [vmem:[%s0 + $0xa0] sm:$0xff]
  %v35 = vld [vmem:[%s0 + $0xa8] sm:$0xff]
  %v36 = vld [vmem:[%s0 + $0xb0] sm:$0xff]
  %v37 = vld [vmem:[%s0 + $0xb8] sm:$0xff]
  %v38 = vld [vmem:[%s0 + $0xc0] sm:$0xf]
  %v39 = vld [vmem:[%s0 + $0xc4] sm:$0xff]
  %v40 = vld [vmem:[%s0 + $0xcc] sm:$0xff]
  %v41 = vld [vmem:[%s0 + $0xd4] sm:$0xff]
  %v42 = vld [vmem:[%s0 + $0xdc] sm:$0xff]
  %v43 = vld [vmem:[%s0 + $0xe4] sm:$0xff]
  %v44 = vld [vmem:[%s0 + $0xec] sm:$0xff]
  %v45 = vld [vmem:[%s0 + $0xf4] sm:$0xff]
  %v46 = vld [vmem:[%s0 + $0xfc] sm:$0xff]
  %v47 = vld [vmem:[%s0 + $0x104] sm:$0xff]
  %v48 = vld [vmem:[%s0 + $0x10c] sm:$0xff]
  %v49 = vld [vmem:[%s0 + $0x114] sm:$0xff]
  %v50 = vld [vmem:[%s0 + $0x11c] sm:$0xff]
  %v51 = vld [vmem:[%s0 + $0x124] sm:$0xff]
  %v52 = vld [vmem:[%s0 + $0x12c] sm:$0xff]
  %v53 = vld [vmem:[%s0 + $0x134] sm:$0xff]
  %v54 = vld [vmem:[%s0 + $0x13c] sm:$0xff]
  %v55 = vld [vmem:[%s0 + $0x144] sm:$0xff]
  %v56 = vld [vmem:[%s0 + $0x14c] sm:$0xff]
  %v57 = vld [vmem:[%s0 + $0x154] sm:$0xff]
  %v58 = vld [vmem:[%s0 + $0x15c] sm:$0xff]
  %v59 = vld [vmem:[%s0 + $0x164] sm:$0xff]
  %v60 = vld [vmem:[%s0 + $0x16c] sm:$0xff]
  %v61 = vld [vmem:[%s0 + $0x174] sm:$0xff]
  %v62 = vld [vmem:[%s0 + $0x17c] sm:$0xff]
  %v63 = vld [vmem:[%s0 + $0x184] sm:$0xf]
  %v64 = vld [vmem:[%s0 + $0x188] sm:$0xff]
  %v65 = vld [vmem:[%s0 + $0x190] sm:$0xff]
  %v66 = vld [vmem:[%s0 + $0x198] sm:$0xff]
  %v67 = vld [vmem:[%s0 + $0x1a0] sm:$0xff]
  %v68 = vld [vmem:[%s0 + $0x1a8] sm:$0xff]
  %v69 = vld [vmem:[%s0 + $0x1b0] sm:$0xff]
  %v70 = vld [vmem:[%s0 + $0x1b8] sm:$0xff]
  %v71 = vld [vmem:[%s0 + $0x1c0] sm:$0xff]
  %v72 = vld [vmem:[%s0 + $0x1c8] sm:$0xff]
  %v73 = vld [vmem:[%s0 + $0x1d0] sm:$0xff]
  %v74 = vld [vmem:[%s0 + $0x1d8] sm:$0xff]
  %v75 = vld [vmem:[%s0 + $0x1e0] sm:$0xff]
  %v76 = vld [vmem:[%s0 + $0x1e8] sm:$0xff]
  %v77 = vld [vmem:[%s0 + $0x1f0] sm:$0xff]
  %v78 = vld [vmem:[%s0 + $0x1f8] sm:$0xff]
  %v79 = vld [vmem:[%s0 + $0x200] sm:$0xff]
  %v80 = vld [vmem:[%s0 + $0x208] sm:$0xff]
  %v81 = vld [vmem:[%s0 + $0x210] sm:$0xff]
  %v82 = vld [vmem:[%s0 + $0x218] sm:$0xff]
  %v83 = vld [vmem:[%s0 + $0x220] sm:$0xff]
  %v84 = vld [vmem:[%s0 + $0x228] sm:$0xff]
  %v85 = vld [vmem:[%s0 + $0x230] sm:$0xff]
  %v86 = vld [vmem:[%s0 + $0x238] sm:$0xff]
  %v87 = vld [vmem:[%s0 + $0x240] sm:$0xff]
  %v88 = vld [vmem:[%s0 + $0x248] sm:$0xf]
  %v89 = vld [vmem:[%s0 + $0x24c] sm:$0xff]
  %v90 = vld [vmem:[%s0 + $0x254] sm:$0xff]
  %v91 = vld [vmem:[%s0 + $0x25c] sm:$0xff]
  %v92 = vld [vmem:[%s0 + $0x264] sm:$0xff]
  %v93 = vld [vmem:[%s0 + $0x26c] sm:$0xff]
  %v94 = vld [vmem:[%s0 + $0x274] sm:$0xff]
  %v95 = vld [vmem:[%s0 + $0x27c] sm:$0xff]
  %v96 = vld [vmem:[%s0 + $0x284] sm:$0xff]
  %v97 = vld [vmem:[%s0 + $0x28c] sm:$0xff]
  %v98 = vld [vmem:[%s0 + $0x294] sm:$0xff]
  %v99 = vld [vmem:[%s0 + $0x29c] sm:$0xff]
  %v100 = vld [vmem:[%s0 + $0x2a4] sm:$0xff]
  %v101 = vld [vmem:[%s0 + $0x2ac] sm:$0xff]
  %v102 = vld [vmem:[%s0 + $0x2b4] sm:$0xff]
  %v103 = vld [vmem:[%s0 + $0x2bc] sm:$0xff]
  %v104 = vld [vmem:[%s0 + $0x2c4] sm:$0xff]
  %v105 = vld [vmem:[%s0 + $0x2cc] sm:$0xff]
  %v106 = vld [vmem:[%s0 + $0x2d4] sm:$0xff]
  %v107 = vld [vmem:[%s0 + $0x2dc] sm:$0xff]
  %v108 = vld [vmem:[%s0 + $0x2e4] sm:$0xff]
  %v109 = vld [vmem:[%s0 + $0x2ec] sm:$0xff]
  %v110 = vld [vmem:[%s0 + $0x2f4] sm:$0xff]
  %v111 = vld [vmem:[%s0 + $0x2fc] sm:$0xff]
  %v112 = vld [vmem:[%s0 + $0x304] sm:$0xff]
  %v113 = vld [vmem:[%s0 + $0x30c] sm:$0xf]
  %v114 = vld [vmem:[%s1] sm:$0xf]
  %v115 = vld [vmem:[%s1 + $0x4] sm:$0xf]
  %v116 = vld [vmem:[%s1 + $0x8] sm:$0xf]
  %v117 = vld [vmem:[%s1 + $0xc] sm:$0xf]
  %v118 = vld [vmem:[%s1 + $0x10] sm:$0xf]
  %v119 = vld [vmem:[%s1 + $0x14] sm:$0xf]
  %v120 = vld [vmem:[%s1 + $0x18] sm:$0xf]
  %v121 = vld [vmem:[%s1 + $0x1c] sm:$0xf]
  %v122 = vld [vmem:[%s1 + $0x20] sm:$0xf]
  %v123 = vld [vmem:[%s1 + $0x24] sm:$0xf]
  %v124 = vld [vmem:[%s1 + $0x28] sm:$0xf]
  %v125 = vld [vmem:[%s1 + $0x2c] sm:$0xf]
  %v126 = vld [vmem:[%s1 + $0x30] sm:$0xf]
  %v127 = vld [vmem:[%s1 + $0x34] sm:$0xf]
  %v128 = vld [vmem:[%s1 + $0x38] sm:$0xf]
  %v129 = vld [vmem:[%s1 + $0x3c] sm:$0xf]
  %v130 = vld [vmem:[%s1 + $0x40] sm:$0xf]
  %v131 = vld [vmem:[%s1 + $0x44] sm:$0xf]
  %v132 = vld [vmem:[%s1 + $0x48] sm:$0xf]
  %v133 = vld [vmem:[%s1 + $0x4c] sm:$0xf]
  %v134 = vld [vmem:[%s1 + $0x50] sm:$0xf]
  %v135 = vld [vmem:[%s1 + $0x54] sm:$0xf]
  %v136 = vld [vmem:[%s1 + $0x58] sm:$0xf]
  %v137 = vld [vmem:[%s1 + $0x5c] sm:$0xf]
  %v138 = vld [vmem:[%s1 + $0x60] sm:$0xf]
  %v139 = vld [vmem:[%s1 + $0x64] sm:$0xf]
  %v140 = vld [vmem:[%s1 + $0x68] sm:$0xf]
  %v141 = vld [vmem:[%s1 + $0x6c] sm:$0xf]
  %v142 = vld [vmem:[%s1 + $0x70] sm:$0xf]
  %v143 = vld [vmem:[%s1 + $0x74] sm:$0xf]
  %v144 = vld [vmem:[%s1 + $0x78] sm:$0xf]
  %v145 = vld [vmem:[%s1 + $0x7c] sm:$0xf]
  %v146 = vld [vmem:[%s1 + $0x80] sm:$0xf]
  %v147 = vld [vmem:[%s1 + $0x84] sm:$0xf]
  %v148 = vld [vmem:[%s1 + $0x88] sm:$0xf]
  %v149 = vld [vmem:[%s1 + $0x8c] sm:$0xf]
  %v150 = vld [vmem:[%s1 + $0x90] sm:$0xf]
  %v151 = vld [vmem:[%s1 + $0x94] sm:$0xf]
  %v152 = vld [vmem:[%s1 + $0x98] sm:$0xf]
  %v153 = vld [vmem:[%s1 + $0x9c] sm:$0xf]
  %v154 = vld [vmem:[%s1 + $0xa0] sm:$0xf]
  %v155 = vld [vmem:[%s1 + $0xa4] sm:$0xf]
  %v156 = vld [vmem:[%s1 + $0xa8] sm:$0xf]
  %v157 = vld [vmem:[%s1 + $0xac] sm:$0xf]
  %v158 = vld [vmem:[%s1 + $0xb0] sm:$0xf]
  %v159 = vld [vmem:[%s1 + $0xb4] sm:$0xf]
  %v160 = vld [vmem:[%s1 + $0xb8] sm:$0xf]
  %v161 = vld [vmem:[%s1 + $0xbc] sm:$0xf]
  %v162 = vld [vmem:[%s1 + $0xc0] sm:$0xf]
  %v163 = vld [vmem:[%s1 + $0xc4] sm:$0xf]
  %v164 = vld [vmem:[%s1 + $0xc8] sm:$0xf]
  %v165 = vld [vmem:[%s1 + $0xcc] sm:$0xf]
  %v166 = vld [vmem:[%s1 + $0xd0] sm:$0xf]
  %v167 = vld [vmem:[%s1 + $0xd4] sm:$0xf]
  %v168 = vld [vmem:[%s1 + $0xd8] sm:$0xf]
  %v169 = vld [vmem:[%s1 + $0xdc] sm:$0xf]
  %v170 = vld [vmem:[%s1 + $0xe0] sm:$0xf]
  %v171 = vld [vmem:[%s1 + $0xe4] sm:$0xf]
  %v172 = vld [vmem:[%s1 + $0xe8] sm:$0xf]
  %v173 = vld [vmem:[%s1 + $0xec] sm:$0xf]
  %v174 = vld [vmem:[%s1 + $0xf0] sm:$0xf]
  %v175 = vld [vmem:[%s1 + $0xf4] sm:$0xf]
  %v176 = vld [vmem:[%s1 + $0xf8] sm:$0xf]
  %v177 = vld [vmem:[%s1 + $0xfc] sm:$0xf]
  %v178 = vld [vmem:[%s1 + $0x100] sm:$0xf]
  %v179 = vld [vmem:[%s1 + $0x104] sm:$0xf]
  %v180 = vld [vmem:[%s1 + $0x108] sm:$0xf]
  %v181 = vld [vmem:[%s1 + $0x10c] sm:$0xf]
  %v182 = vld [vmem:[%s1 + $0x110] sm:$0xf]
  %v183 = vld [vmem:[%s1 + $0x114] sm:$0xf]
  %v184 = vld [vmem:[%s1 + $0x118] sm:$0xf]
  %v185 = vld [vmem:[%s1 + $0x11c] sm:$0xf]
  %v186 = vld [vmem:[%s1 + $0x120] sm:$0xf]
  %v187 = vld [vmem:[%s1 + $0x124] sm:$0xf]
  %v188 = vld [vmem:[%s1 + $0x128] sm:$0xf]
  %v189 = vld [vmem:[%s1 + $0x12c] sm:$0xf]
  %v190 = vld [vmem:[%s1 + $0x130] sm:$0xf]
  %v191 = vld [vmem:[%s1 + $0x134] sm:$0xf]
  %v192 = vld [vmem:[%s1 + $0x138] sm:$0xf]
  %v193 = vld [vmem:[%s1 + $0x13c] sm:$0xf]
  %v194 = vld [vmem:[%s1 + $0x140] sm:$0xf]
  %v195 = vld [vmem:[%s1 + $0x144] sm:$0xf]
  %v196 = vld [vmem:[%s1 + $0x148] sm:$0xf]
  %v197 = vld [vmem:[%s1 + $0x14c] sm:$0xf]
  %v198 = vld [vmem:[%s1 + $0x150] sm:$0xf]
  %v199 = vld [vmem:[%s1 + $0x154] sm:$0xf]
  %v200 = vld [vmem:[%s1 + $0x158] sm:$0xf]
  %v201 = vld [vmem:[%s1 + $0x15c] sm:$0xf]
  %v202 = vld [vmem:[%s1 + $0x160] sm:$0xf]
  %v203 = vld [vmem:[%s1 + $0x164] sm:$0xf]
  %v204 = vld [vmem:[%s1 + $0x168] sm:$0xf]
  %v205 = vld [vmem:[%s1 + $0x16c] sm:$0xf]
  %v206 = vld [vmem:[%s1 + $0x170] sm:$0xf]
  %v207 = vld [vmem:[%s1 + $0x174] sm:$0xf]
  %v208 = vld [vmem:[%s1 + $0x178] sm:$0xf]
  %v209 = vld [vmem:[%s1 + $0x17c] sm:$0xf]
  %v210 = vld [vmem:[%s1 + $0x180] sm:$0xf]
  %v211 = vld [vmem:[%s1 + $0x184] sm:$0xf]
  %v212 = vld [vmem:[%s1 + $0x188] sm:$0xf]
  %v213 = vld [vmem:[%s1 + $0x18c] sm:$0xf]
  %v214 = vld [vmem:[%s1 + $0x190] sm:$0xf]
  %v215 = vld [vmem:[%s1 + $0x194] sm:$0xf]
  %v216 = vld [vmem:[%s1 + $0x198] sm:$0xf]
  %v217 = vld [vmem:[%s1 + $0x19c] sm:$0xf]
  %v218 = vld [vmem:[%s1 + $0x1a0] sm:$0xf]
  %v219 = vld [vmem:[%s1 + $0x1a4] sm:$0xf]
  %v220 = vld [vmem:[%s1 + $0x1a8] sm:$0xf]
  %v221 = vld [vmem:[%s1 + $0x1ac] sm:$0xf]
  %v222 = vld [vmem:[%s1 + $0x1b0] sm:$0xf]
  %v223 = vld [vmem:[%s1 + $0x1b4] sm:$0xf]
  %v224 = vld [vmem:[%s1 + $0x1b8] sm:$0xf]
  %v225 = vld [vmem:[%s1 + $0x1bc] sm:$0xf]
  %v226 = vld [vmem:[%s1 + $0x1c0] sm:$0xf]
  %v227 = vld [vmem:[%s1 + $0x1c4] sm:$0xf]
  %v228 = vld [vmem:[%s1 + $0x1c8] sm:$0xf]
  %v229 = vld [vmem:[%s1 + $0x1cc] sm:$0xf]
  %v230 = vld [vmem:[%s1 + $0x1d0] sm:$0xf]
  %v231 = vld [vmem:[%s1 + $0x1d4] sm:$0xf]
  %v232 = vld [vmem:[%s1 + $0x1d8] sm:$0xf]
  %v233 = vld [vmem:[%s1 + $0x1dc] sm:$0xf]
  %v234 = vld [vmem:[%s1 + $0x1e0] sm:$0xf]
  %v235 = vld [vmem:[%s1 + $0x1e4] sm:$0xf]
  %v236 = vld [vmem:[%s1 + $0x1e8] sm:$0xf]
  %v237 = vld [vmem:[%s1 + $0x1ec] sm:$0xf]
  %v238 = vld [vmem:[%s1 + $0x1f0] sm:$0xf]
  %v239 = vld [vmem:[%s1 + $0x1f4] sm:$0xf]
  %v240 = vld [vmem:[%s1 + $0x1f8] sm:$0xf]
  %v241 = vld [vmem:[%s1 + $0x1fc] sm:$0xf]
  %v242 = vld [vmem:[%s1 + $0x200] sm:$0xf]
  %v243 = vld [vmem:[%s1 + $0x204] sm:$0xf]
  %v244 = vld [vmem:[%s1 + $0x208] sm:$0xf]
  %v245 = vld [vmem:[%s1 + $0x20c] sm:$0xf]
  %v246 = vld [vmem:[%s1 + $0x210] sm:$0xf]
  %v247 = vld [vmem:[%s1 + $0x214] sm:$0xf]
  %v248 = vld [vmem:[%s1 + $0x218] sm:$0xf]
  %v249 = vld [vmem:[%s1 + $0x21c] sm:$0xf]
  %v250 = vld [vmem:[%s1 + $0x220] sm:$0xf]
  %v251 = vld [vmem:[%s1 + $0x224] sm:$0xf]
  %v252 = vld [vmem:[%s1 + $0x228] sm:$0xf]
  %v253 = vld [vmem:[%s1 + $0x22c] sm:$0xf]
  %v254 = vld [vmem:[%s1 + $0x230] sm:$0xf]
  %v255 = vld [vmem:[%s1 + $0x234] sm:$0xf]
  %v256 = vld [vmem:[%s1 + $0x238] sm:$0xf]
  %v257 = vld [vmem:[%s1 + $0x23c] sm:$0xf]
  %v258 = vld [vmem:[%s1 + $0x240] sm:$0xf]
  %v259 = vld [vmem:[%s1 + $0x244] sm:$0xf]
  %v260 = vld [vmem:[%s1 + $0x248] sm:$0xf]
  %v261 = vld [vmem:[%s1 + $0x24c] sm:$0xf]
  %v262 = vld [vmem:[%s1 + $0x250] sm:$0xf]
  %v263 = vld [vmem:[%s1 + $0x254] sm:$0xf]
  %v264 = vld [vmem:[%s1 + $0x258] sm:$0xf]
  %v265 = vld [vmem:[%s1 + $0x25c] sm:$0xf]
  %v266 = vld [vmem:[%s1 + $0x260] sm:$0xf]
  %v267 = vld [vmem:[%s1 + $0x264] sm:$0xf]
  %v268 = vld [vmem:[%s1 + $0x268] sm:$0xf]
  %v269 = vld [vmem:[%s1 + $0x26c] sm:$0xf]
  %v270 = vld [vmem:[%s1 + $0x270] sm:$0xf]
  %v271 = vld [vmem:[%s1 + $0x274] sm:$0xf]
  %v272 = vld [vmem:[%s1 + $0x278] sm:$0xf]
  %v273 = vld [vmem:[%s1 + $0x27c] sm:$0xf]
  %v274 = vld [vmem:[%s1 + $0x280] sm:$0xf]
  %v275 = vld [vmem:[%s1 + $0x284] sm:$0xf]
  %v276 = vld [vmem:[%s1 + $0x288] sm:$0xf]
  %v277 = vld [vmem:[%s1 + $0x28c] sm:$0xf]
  %v278 = vld [vmem:[%s1 + $0x290] sm:$0xf]
  %v279 = vld [vmem:[%s1 + $0x294] sm:$0xf]
  %v280 = vld [vmem:[%s1 + $0x298] sm:$0xf]
  %v281 = vld [vmem:[%s1 + $0x29c] sm:$0xf]
  %v282 = vld [vmem:[%s1 + $0x2a0] sm:$0xf]
  %v283 = vld [vmem:[%s1 + $0x2a4] sm:$0xf]
  %v284 = vld [vmem:[%s1 + $0x2a8] sm:$0xf]
  %v285 = vld [vmem:[%s1 + $0x2ac] sm:$0xf]
  %v286 = vld [vmem:[%s1 + $0x2b0] sm:$0xf]
  %v287 = vld [vmem:[%s1 + $0x2b4] sm:$0xf]
  %v288 = vld [vmem:[%s1 + $0x2b8] sm:$0xf]
  %v289 = vld [vmem:[%s1 + $0x2bc] sm:$0xf]
  %v290 = vld [vmem:[%s1 + $0x2c0] sm:$0xf]
  %v291 = vld [vmem:[%s1 + $0x2c4] sm:$0xf]
  %v292 = vld [vmem:[%s1 + $0x2c8] sm:$0xf]
  %v293 = vld [vmem:[%s1 + $0x2cc] sm:$0xf]
  %v294 = vld [vmem:[%s1 + $0x2d0] sm:$0xf]
  %v295 = vld [vmem:[%s1 + $0x2d4] sm:$0xf]
  %v296 = vld [vmem:[%s1 + $0x2d8] sm:$0xf]
  %v297 = vld [vmem:[%s1 + $0x2dc] sm:$0xf]
  %v298 = vld [vmem:[%s1 + $0x2e0] sm:$0xf]
  %v299 = vld [vmem:[%s1 + $0x2e4] sm:$0xf]
  %v300 = vld [vmem:[%s1 + $0x2e8] sm:$0xf]
  %v301 = vld [vmem:[%s1 + $0x2ec] sm:$0xf]
  %v302 = vld [vmem:[%s1 + $0x2f0] sm:$0xf]
  %v303 = vld [vmem:[%s1 + $0x2f4] sm:$0xf]
  %v304 = vld [vmem:[%s1 + $0x2f8] sm:$0xf]
  %v305 = vld [vmem:[%s1 + $0x2fc] sm:$0xf]
  %v306 = vld [vmem:[%s1 + $0x300] sm:$0xf]
  %v307 = vld [vmem:[%s1 + $0x304] sm:$0xf]
  %v308 = vld [vmem:[%s1 + $0x308] sm:$0xf]
  %v309 = vld [vmem:[%s1 + $0x30c] sm:$0xf]
  %v310 = vld [vmem:[%s1 + $0x310] sm:$0xf]
  %v311 = vld [vmem:[%s1 + $0x314] sm:$0xf]
  %v312 = vld [vmem:[%s1 + $0x318] sm:$0xf]
  %v313 = vld [vmem:[%s1 + $0x31c] sm:$0xf]
  %v314 = vld [vmem:[%s1 + $0x320] sm:$0xf]
  %v315 = vld [vmem:[%s1 + $0x324] sm:$0xf]
  %v316 = vld [vmem:[%s1 + $0x328] sm:$0xf]
  %v317 = vld [vmem:[%s1 + $0x32c] sm:$0xf]
  %v318 = vld [vmem:[%s1 + $0x330] sm:$0xf]
  %v319 = vld [vmem:[%s1 + $0x334] sm:$0xf]
  %v320 = vld [vmem:[%s1 + $0x338] sm:$0xf]
  %v321 = vld [vmem:[%s1 + $0x33c] sm:$0xf]
  %v322 = vld [vmem:[%s1 + $0x340] sm:$0xf]
  %v323 = vld [vmem:[%s1 + $0x344] sm:$0xf]
  %v324 = vld [vmem:[%s1 + $0x348] sm:$0xf]
  %v325 = vld [vmem:[%s1 + $0x34c] sm:$0xf]
  %v326 = vld [vmem:[%s1 + $0x350] sm:$0xf]
  %v327 = vld [vmem:[%s1 + $0x354] sm:$0xf]
  %v328 = vld [vmem:[%s1 + $0x358] sm:$0xf]
  %v329 = vld [vmem:[%s1 + $0x35c] sm:$0xf]
  %v330 = vld [vmem:[%s1 + $0x360] sm:$0xf]
  %v331 = vld [vmem:[%s1 + $0x364] sm:$0xf]
  %v332 = vld [vmem:[%s1 + $0x368] sm:$0xf]
  %v333 = vld [vmem:[%s1 + $0x36c] sm:$0xf]
  %v334 = vld [vmem:[%s1 + $0x370] sm:$0xf]
  %v335 = vld [vmem:[%s1 + $0x374] sm:$0xf]
  %v336 = vld [vmem:[%s1 + $0x378] sm:$0xf]
  %v337 = vld [vmem:[%s1 + $0x37c] sm:$0xf]
  %v338 = vld [vmem:[%s1 + $0x380] sm:$0xf]
  %v339 = vld [vmem:[%s1 + $0x384] sm:$0xf]
  %v340 = vld [vmem:[%s1 + $0x388] sm:$0xf]
  %v341 = vld [vmem:[%s1 + $0x38c] sm:$0xf]
  %v342 = vld [vmem:[%s1 + $0x390] sm:$0xf]
  %v343 = vld [vmem:[%s1 + $0x394] sm:$0xf]
  %v344 = vld [vmem:[%s1 + $0x398] sm:$0xf]
  %v345 = vld [vmem:[%s1 + $0x39c] sm:$0xf]
  %v346 = vld [vmem:[%s1 + $0x3a0] sm:$0xf]
  %v347 = vld [vmem:[%s1 + $0x3a4] sm:$0xf]
  %v348 = vld [vmem:[%s1 + $0x3a8] sm:$0xf]
  %v349 = vld [vmem:[%s1 + $0x3ac] sm:$0xf]
  %v350 = vld [vmem:[%s1 + $0x3b0] sm:$0xf]
  %v351 = vld [vmem:[%s1 + $0x3b4] sm:$0xf]
  %v352 = vld [vmem:[%s1 + $0x3b8] sm:$0xf]
  %v353 = vld [vmem:[%s1 + $0x3bc] sm:$0xf]
  %v354 = vld [vmem:[%s1 + $0x3c0] sm:$0xf]
  %v355 = vld [vmem:[%s1 + $0x3c4] sm:$0xf]
  %v356 = vld [vmem:[%s1 + $0x3c8] sm:$0xf]
  %v357 = vld [vmem:[%s1 + $0x3cc] sm:$0xf]
  %v358 = vld [vmem:[%s1 + $0x3d0] sm:$0xf]
  %v359 = vld [vmem:[%s1 + $0x3d4] sm:$0xf]
  %v360 = vld [vmem:[%s1 + $0x3d8] sm:$0xf]
  %v361 = vld [vmem:[%s1 + $0x3dc] sm:$0xf]
  %v362 = vld [vmem:[%s1 + $0x3e0] sm:$0xf]
  %v363 = vld [vmem:[%s1 + $0x3e4] sm:$0xf]
  %v364 = vld [vmem:[%s1 + $0x3e8] sm:$0xf]
  %v365 = vld [vmem:[%s1 + $0x3ec] sm:$0xf]
  %v366 = vld [vmem:[%s1 + $0x3f0] sm:$0xf]
  %v367 = vld [vmem:[%s1 + $0x3f4] sm:$0xf]
  %v368 = vld [vmem:[%s1 + $0x3f8] sm:$0xf]
  %v369 = vld [vmem:[%s1 + $0x3fc] sm:$0xf]
  %v370 = vld [vmem:[%s1 + $0x400] sm:$0xf]
  %v371 = vld [vmem:[%s1 + $0x404] sm:$0xf]
  %v372 = vld [vmem:[%s1 + $0x408] sm:$0xf]
  %v373 = vld [vmem:[%s1 + $0x40c] sm:$0xf]
  %v374 = vld [vmem:[%s1 + $0x410] sm:$0xf]
  %v375 = vld [vmem:[%s1 + $0x414] sm:$0xf]
  %v376 = vld [vmem:[%s1 + $0x418] sm:$0xf]
  %v377 = vld [vmem:[%s1 + $0x41c] sm:$0xf]
  %v378 = vld [vmem:[%s1 + $0x420] sm:$0xf]
  %v379 = vld [vmem:[%s1 + $0x424] sm:$0xf]
  %v380 = vld [vmem:[%s1 + $0x428] sm:$0xf]
  %v381 = vld [vmem:[%s1 + $0x42c] sm:$0xf]
  %v382 = vld [vmem:[%s1 + $0x430] sm:$0xf]
  %v383 = vld [vmem:[%s1 + $0x434] sm:$0xf]
  %v384 = vld [vmem:[%s1 + $0x438] sm:$0xf]
  %v385 = vld [vmem:[%s1 + $0x43c] sm:$0xf]
  %v386 = vld [vmem:[%s1 + $0x440] sm:$0xf]
  %v387 = vld [vmem:[%s1 + $0x444] sm:$0xf]
  %v388 = vld [vmem:[%s1 + $0x448] sm:$0xf]
  %v389 = vld [vmem:[%s1 + $0x44c] sm:$0xf]
  %v390 = vld [vmem:[%s1 + $0x450] sm:$0xf]
  %v391 = vld [vmem:[%s1 + $0x454] sm:$0xf]
  %v392 = vld [vmem:[%s1 + $0x458] sm:$0xf]
  %v393 = vld [vmem:[%s1 + $0x45c] sm:$0xf]
  %v394 = vld [vmem:[%s1 + $0x460] sm:$0xf]
  %v395 = vld [vmem:[%s1 + $0x464] sm:$0xf]
  %v396 = vld [vmem:[%s1 + $0x468] sm:$0xf]
  %v397 = vld [vmem:[%s1 + $0x46c] sm:$0xf]
  %v398 = vld [vmem:[%s1 + $0x470] sm:$0xf]
  %v399 = vld [vmem:[%s1 + $0x474] sm:$0xf]
  %v400 = vld [vmem:[%s1 + $0x478] sm:$0xf]
  %v401 = vld [vmem:[%s1 + $0x47c] sm:$0xf]
  %v402 = vld [vmem:[%s1 + $0x480] sm:$0xf]
  %v403 = vld [vmem:[%s1 + $0x484] sm:$0xf]
  %v404 = vld [vmem:[%s1 + $0x488] sm:$0xf]
  %v405 = vld [vmem:[%s1 + $0x48c] sm:$0xf]
  %v406 = vld [vmem:[%s1 + $0x490] sm:$0xf]
  %v407 = vld [vmem:[%s1 + $0x494] sm:$0xf]
  %v408 = vld [vmem:[%s1 + $0x498] sm:$0xf]
  %v409 = vld [vmem:[%s1 + $0x49c] sm:$0xf]
  %v410 = vld [vmem:[%s1 + $0x4a0] sm:$0xf]
  %v411 = vld [vmem:[%s1 + $0x4a4] sm:$0xf]
  %v412 = vld [vmem:[%s1 + $0x4a8] sm:$0xf]
  %v413 = vld [vmem:[%s1 + $0x4ac] sm:$0xf]
  %v414 = vld [vmem:[%s1 + $0x4b0] sm:$0xf]
  %v415 = vld [vmem:[%s1 + $0x4b4] sm:$0xf]
  %v416 = vld [vmem:[%s1 + $0x4b8] sm:$0xf]
  %v417 = vld [vmem:[%s1 + $0x4bc] sm:$0xf]
  %v418 = vld [vmem:[%s1 + $0x4c0] sm:$0xf]
  %v419 = vld [vmem:[%s1 + $0x4c4] sm:$0xf]
  %v420 = vld [vmem:[%s1 + $0x4c8] sm:$0xf]
  %v421 = vld [vmem:[%s1 + $0x4cc] sm:$0xf]
  %v422 = vld [vmem:[%s1 + $0x4d0] sm:$0xf]
  %v423 = vld [vmem:[%s1 + $0x4d4] sm:$0xf]
  %v424 = vld [vmem:[%s1 + $0x4d8] sm:$0xf]
  %v425 = vld [vmem:[%s1 + $0x4dc] sm:$0xf]
  %v426 = vld [vmem:[%s1 + $0x4e0] sm:$0xf]
  %v427 = vld [vmem:[%s1 + $0x4e4] sm:$0xf]
  %v428 = vld [vmem:[%s1 + $0x4e8] sm:$0xf]
  %v429 = vld [vmem:[%s1 + $0x4ec] sm:$0xf]
  %v430 = vld [vmem:[%s1 + $0x4f0] sm:$0xf]
  %v431 = vld [vmem:[%s1 + $0x4f4] sm:$0xf]
  %v432 = vld [vmem:[%s1 + $0x4f8] sm:$0xf]
  %v433 = vld [vmem:[%s1 + $0x4fc] sm:$0xf]
  %v434 = vld [vmem:[%s1 + $0x500] sm:$0xf]
  %v435 = vld [vmem:[%s1 + $0x504] sm:$0xf]
  %v436 = vld [vmem:[%s1 + $0x508] sm:$0xf]
  %v437 = vld [vmem:[%s1 + $0x50c] sm:$0xf]
  %v438 = vld [vmem:[%s1 + $0x510] sm:$0xf]
  %v439 = vld [vmem:[%s1 + $0x514] sm:$0xf]
  %v440 = vld [vmem:[%s1 + $0x518] sm:$0xf]
  %v441 = vld [vmem:[%s1 + $0x51c] sm:$0xf]
  %v442 = vld [vmem:[%s1 + $0x520] sm:$0xf]
  %v443 = vld [vmem:[%s1 + $0x524] sm:$0xf]
  %v444 = vld [vmem:[%s1 + $0x528] sm:$0xf]
  %v445 = vld [vmem:[%s1 + $0x52c] sm:$0xf]
  %v446 = vld [vmem:[%s1 + $0x530] sm:$0xf]
  %v447 = vld [vmem:[%s1 + $0x534] sm:$0xf]
  %v448 = vld [vmem:[%s1 + $0x538] sm:$0xf]
  %v449 = vld [vmem:[%s1 + $0x53c] sm:$0xf]
  %v450 = vld [vmem:[%s1 + $0x540] sm:$0xf]
  %v451 = vld [vmem:[%s1 + $0x544] sm:$0xf]
  %v452 = vld [vmem:[%s1 + $0x548] sm:$0xf]
  %v453 = vld [vmem:[%s1 + $0x54c] sm:$0xf]
  %v454 = vld [vmem:[%s1 + $0x550] sm:$0xf]
  %v455 = vld [vmem:[%s1 + $0x554] sm:$0xf]
  %v456 = vld [vmem:[%s1 + $0x558] sm:$0xf]
  %v457 = vld [vmem:[%s1 + $0x55c] sm:$0xf]
  %v458 = vld [vmem:[%s1 + $0x560] sm:$0xf]
  %v459 = vld [vmem:[%s1 + $0x564] sm:$0xf]
  %v460 = vld [vmem:[%s1 + $0x568] sm:$0xf]
  %v461 = vld [vmem:[%s1 + $0x56c] sm:$0xf]
  %v462 = vld [vmem:[%s1 + $0x570] sm:$0xf]
  %v463 = vld [vmem:[%s1 + $0x574] sm:$0xf]
  %v464 = vld [vmem:[%s1 + $0x578] sm:$0xf]
  %v465 = vld [vmem:[%s1 + $0x57c] sm:$0xf]
  %v466 = vld [vmem:[%s1 + $0x580] sm:$0xf]
  %v467 = vld [vmem:[%s1 + $0x584] sm:$0xf]
  %v468 = vld [vmem:[%s1 + $0x588] sm:$0xf]
  %v469 = vld [vmem:[%s1 + $0x58c] sm:$0xf]
  %v470 = vld [vmem:[%s1 + $0x590] sm:$0xf]
  %v471 = vld [vmem:[%s1 + $0x594] sm:$0xf]
  %v472 = vld [vmem:[%s1 + $0x598] sm:$0xf]
  %v473 = vld [vmem:[%s1 + $0x59c] sm:$0xf]
  %v474 = vld [vmem:[%s1 + $0x5a0] sm:$0xf]
  %v475 = vld [vmem:[%s1 + $0x5a4] sm:$0xf]
  %v476 = vld [vmem:[%s1 + $0x5a8] sm:$0xf]
  %v477 = vld [vmem:[%s1 + $0x5ac] sm:$0xf]
  %v478 = vld [vmem:[%s1 + $0x5b0] sm:$0xf]
  %v479 = vld [vmem:[%s1 + $0x5b4] sm:$0xf]
  %v480 = vld [vmem:[%s1 + $0x5b8] sm:$0xf]
  %v481 = vld [vmem:[%s1 + $0x5bc] sm:$0xf]
  %v482 = vld [vmem:[%s1 + $0x5c0] sm:$0xf]
  %v483 = vld [vmem:[%s1 + $0x5c4] sm:$0xf]
  %v484 = vld [vmem:[%s1 + $0x5c8] sm:$0xf]
  %v485 = vld [vmem:[%s1 + $0x5cc] sm:$0xf]
  %v486 = vld [vmem:[%s1 + $0x5d0] sm:$0xf]
  %v487 = vld [vmem:[%s1 + $0x5d4] sm:$0xf]
  %v488 = vld [vmem:[%s1 + $0x5d8] sm:$0xf]
  %v489 = vld [vmem:[%s1 + $0x5dc] sm:$0xf]
  %v490 = vld [vmem:[%s1 + $0x5e0] sm:$0xf]
  %v491 = vld [vmem:[%s1 + $0x5e4] sm:$0xf]
  %v492 = vld [vmem:[%s1 + $0x5e8] sm:$0xf]
  %v493 = vld [vmem:[%s1 + $0x5ec] sm:$0xf]
  %v494 = vld [vmem:[%s1 + $0x5f0] sm:$0xf]
  %v495 = vld [vmem:[%s1 + $0x5f4] sm:$0xf]
  %v496 = vld [vmem:[%s1 + $0x5f8] sm:$0xf]
  %v497 = vld [vmem:[%s1 + $0x5fc] sm:$0xf]
  %v498 = vld [vmem:[%s1 + $0x600] sm:$0xf]
  %v499 = vld [vmem:[%s1 + $0x604] sm:$0xf]
  %v500 = vld [vmem:[%s1 + $0x608] sm:$0xf]
  %v501 = vld [vmem:[%s1 + $0x60c] sm:$0xf]
  %v502 = vld [vmem:[%s1 + $0x610] sm:$0xf]
  %v503 = vld [vmem:[%s1 + $0x614] sm:$0xf]
  %v504 = vld [vmem:[%s1 + $0x618] sm:$0xf]
  %v505 = vld [vmem:[%s1 + $0x61c] sm:$0xf]
  %v506 = vld [vmem:[%s1 + $0x620] sm:$0xf]
  %v507 = vld [vmem:[%s1 + $0x624] sm:$0xf]
  %v508 = vld [vmem:[%s1 + $0x628] sm:$0xf]
  %v509 = vld [vmem:[%s1 + $0x62c] sm:$0xf]
  %v510 = vld [vmem:[%s1 + $0x630] sm:$0xf]
  %v511 = vld [vmem:[%s1 + $0x634] sm:$0xf]
  %v512 = vld [vmem:[%s1 + $0x638] sm:$0xf]
  %v513 = vld [vmem:[%s1 + $0x63c] sm:$0xf]
  %v514 = vld [vmem:[%s1 + $0x640] sm:$0xf]
  %v515 = vld [vmem:[%s1 + $0x644] sm:$0xf]
  %v516 = vld [vmem:[%s1 + $0x648] sm:$0xf]
  %v517 = vld [vmem:[%s1 + $0x64c] sm:$0xf]
  %v518 = vld [vmem:[%s1 + $0x650] sm:$0xf]
  %v519 = vld [vmem:[%s1 + $0x654] sm:$0xf]
  %v520 = vld [vmem:[%s1 + $0x658] sm:$0xf]
  %v521 = vld [vmem:[%s1 + $0x65c] sm:$0xf]
  %v522 = vld [vmem:[%s1 + $0x660] sm:$0xf]
  %v523 = vld [vmem:[%s1 + $0x664] sm:$0xf]
  %v524 = vld [vmem:[%s1 + $0x668] sm:$0xf]
  %v525 = vld [vmem:[%s1 + $0x66c] sm:$0xf]
  %v526 = vld [vmem:[%s1 + $0x670] sm:$0xf]
  %v527 = vld [vmem:[%s1 + $0x674] sm:$0xf]
  %v528 = vld [vmem:[%s1 + $0x678] sm:$0xf]
  %v529 = vld [vmem:[%s1 + $0x67c] sm:$0xf]
  %v530 = vld [vmem:[%s1 + $0x680] sm:$0xf]
  %v531 = vld [vmem:[%s1 + $0x684] sm:$0xf]
  %v532 = vld [vmem:[%s1 + $0x688] sm:$0xf]
  %v533 = vld [vmem:[%s1 + $0x68c] sm:$0xf]
  %v534 = vld [vmem:[%s1 + $0x690] sm:$0xf]
  %v535 = vld [vmem:[%s1 + $0x694] sm:$0xf]
  %v536 = vld [vmem:[%s1 + $0x698] sm:$0xf]
  %v537 = vld [vmem:[%s1 + $0x69c] sm:$0xf]
  %v538 = vld [vmem:[%s1 + $0x6a0] sm:$0xf]
  %v539 = vld [vmem:[%s1 + $0x6a4] sm:$0xf]
  %v540 = vld [vmem:[%s1 + $0x6a8] sm:$0xf]
  %v541 = vld [vmem:[%s1 + $0x6ac] sm:$0xf]
  %v542 = vld [vmem:[%s1 + $0x6b0] sm:$0xf]
  %v543 = vld [vmem:[%s1 + $0x6b4] sm:$0xf]
  %v544 = vld [vmem:[%s1 + $0x6b8] sm:$0xf]
  %v545 = vld [vmem:[%s1 + $0x6bc] sm:$0xf]
  %v546 = vld [vmem:[%s1 + $0x6c0] sm:$0xf]
  %v547 = vld [vmem:[%s1 + $0x6c4] sm:$0xf]
  %v548 = vld [vmem:[%s1 + $0x6c8] sm:$0xf]
  %v549 = vld [vmem:[%s1 + $0x6cc] sm:$0xf]
  %v550 = vld [vmem:[%s1 + $0x6d0] sm:$0xf]
  %v551 = vld [vmem:[%s1 + $0x6d4] sm:$0xf]
  %v552 = vld [vmem:[%s1 + $0x6d8] sm:$0xf]
  %v553 = vld [vmem:[%s1 + $0x6dc] sm:$0xf]
  %v554 = vld [vmem:[%s1 + $0x6e0] sm:$0xf]
  %v555 = vld [vmem:[%s1 + $0x6e4] sm:$0xf]
  %v556 = vld [vmem:[%s1 + $0x6e8] sm:$0xf]
  %v557 = vld [vmem:[%s1 + $0x6ec] sm:$0xf]
  %v558 = vld [vmem:[%s1 + $0x6f0] sm:$0xf]
  %v559 = vld [vmem:[%s1 + $0x6f4] sm:$0xf]
  %v560 = vld [vmem:[%s1 + $0x6f8] sm:$0xf]
  %v561 = vld [vmem:[%s1 + $0x6fc] sm:$0xf]
  %v562 = vld [vmem:[%s1 + $0x700] sm:$0xf]
  %v563 = vld [vmem:[%s1 + $0x704] sm:$0xf]
  %v564 = vld [vmem:[%s1 + $0x708] sm:$0xf]
  %v565 = vld [vmem:[%s1 + $0x70c] sm:$0xf]
  %v566 = vld [vmem:[%s1 + $0x710] sm:$0xf]
  %v567 = vld [vmem:[%s1 + $0x714] sm:$0xf]
  %v568 = vld [vmem:[%s1 + $0x718] sm:$0xf]
  %v569 = vld [vmem:[%s1 + $0x71c] sm:$0xf]
  %v570 = vld [vmem:[%s1 + $0x720] sm:$0xf]
  %v571 = vld [vmem:[%s1 + $0x724] sm:$0xf]
  %v572 = vld [vmem:[%s1 + $0x728] sm:$0xf]
  %v573 = vld [vmem:[%s1 + $0x72c] sm:$0xf]
  %v574 = vld [vmem:[%s1 + $0x730] sm:$0xf]
  %v575 = vld [vmem:[%s1 + $0x734] sm:$0xf]
  %v576 = vld [vmem:[%s1 + $0x738] sm:$0xf]
  %v577 = vld [vmem:[%s1 + $0x73c] sm:$0xf]
  %v578 = vld [vmem:[%s1 + $0x740] sm:$0xf]
  %v579 = vld [vmem:[%s1 + $0x744] sm:$0xf]
  %v580 = vld [vmem:[%s1 + $0x748] sm:$0xf]
  %v581 = vld [vmem:[%s1 + $0x74c] sm:$0xf]
  %v582 = vld [vmem:[%s1 + $0x750] sm:$0xf]
  %v583 = vld [vmem:[%s1 + $0x754] sm:$0xf]
  %v584 = vld [vmem:[%s1 + $0x758] sm:$0xf]
  %v585 = vld [vmem:[%s1 + $0x75c] sm:$0xf]
  %v586 = vld [vmem:[%s1 + $0x760] sm:$0xf]
  %v587 = vld [vmem:[%s1 + $0x764] sm:$0xf]
  %v588 = vld [vmem:[%s1 + $0x768] sm:$0xf]
  %v589 = vld [vmem:[%s1 + $0x76c] sm:$0xf]
  %v590 = vld [vmem:[%s1 + $0x770] sm:$0xf]
  %v591 = vld [vmem:[%s1 + $0x774] sm:$0xf]
  %v592 = vld [vmem:[%s1 + $0x778] sm:$0xf]
  %v593 = vld [vmem:[%s1 + $0x77c] sm:$0xf]
  %v594 = vld [vmem:[%s1 + $0x780] sm:$0xf]
  %v595 = vld [vmem:[%s1 + $0x784] sm:$0xf]
  %v596 = vld [vmem:[%s1 + $0x788] sm:$0xf]
  %v597 = vld [vmem:[%s1 + $0x78c] sm:$0xf]
  %v598 = vld [vmem:[%s1 + $0x790] sm:$0xf]
  %v599 = vld [vmem:[%s1 + $0x794] sm:$0xf]
  %v600 = vld [vmem:[%s1 + $0x798] sm:$0xf]
  %v601 = vld [vmem:[%s1 + $0x79c] sm:$0xf]
  %v602 = vld [vmem:[%s1 + $0x7a0] sm:$0xf]
  %v603 = vld [vmem:[%s1 + $0x7a4] sm:$0xf]
  %v604 = vld [vmem:[%s1 + $0x7a8] sm:$0xf]
  %v605 = vld [vmem:[%s1 + $0x7ac] sm:$0xf]
  %v606 = vld [vmem:[%s1 + $0x7b0] sm:$0xf]
  %v607 = vld [vmem:[%s1 + $0x7b4] sm:$0xf]
  %v608 = vld [vmem:[%s1 + $0x7b8] sm:$0xf]
  %v609 = vld [vmem:[%s1 + $0x7bc] sm:$0xf]
  %v610 = vld [vmem:[%s1 + $0x7c0] sm:$0xf]
  %v611 = vld [vmem:[%s1 + $0x7c4] sm:$0xf]
  %v612 = vld [vmem:[%s1 + $0x7c8] sm:$0xf]
  %v613 = vld [vmem:[%s1 + $0x7cc] sm:$0xf]
  %v614 = vld [vmem:[%s1 + $0x7d0] sm:$0xf]
  %v615 = vld [vmem:[%s1 + $0x7d4] sm:$0xf]
  %v616 = vld [vmem:[%s1 + $0x7d8] sm:$0xf]
  %v617 = vld [vmem:[%s1 + $0x7dc] sm:$0xf]
  %v618 = vld [vmem:[%s1 + $0x7e0] sm:$0xf]
  %v619 = vld [vmem:[%s1 + $0x7e4] sm:$0xf]
  %v620 = vld [vmem:[%s1 + $0x7e8] sm:$0xf]
  %v621 = vld [vmem:[%s1 + $0x7ec] sm:$0xf]
  %v622 = vld [vmem:[%s1 + $0x7f0] sm:$0xf]
  %v623 = vld [vmem:[%s1 + $0x7f4] sm:$0xf]
  %v624 = vld [vmem:[%s1 + $0x7f8] sm:$0xf]
  %v625 = vld [vmem:[%s1 + $0x7fc] sm:$0xf]
  %v626 = vld [vmem:[%s1 + $0x800] sm:$0xf]
  %v627 = vld [vmem:[%s1 + $0x804] sm:$0xf]
  %v628 = vld [vmem:[%s1 + $0x808] sm:$0xf]
  %v629 = vld [vmem:[%s1 + $0x80c] sm:$0xf]
  %v630 = vld [vmem:[%s1 + $0x810] sm:$0xf]
  %v631 = vld [vmem:[%s1 + $0x814] sm:$0xf]
  %v632 = vld [vmem:[%s1 + $0x818] sm:$0xf]
  %v633 = vld [vmem:[%s1 + $0x81c] sm:$0xf]
  %v634 = vld [vmem:[%s1 + $0x820] sm:$0xf]
  %v635 = vld [vmem:[%s1 + $0x824] sm:$0xf]
  %v636 = vld [vmem:[%s1 + $0x828] sm:$0xf]
  %v637 = vld [vmem:[%s1 + $0x82c] sm:$0xf]
  %v638 = vld [vmem:[%s1 + $0x830] sm:$0xf]
  %v639 = vld [vmem:[%s1 + $0x834] sm:$0xf]
  %v640 = vld [vmem:[%s1 + $0x838] sm:$0xf]
  %v641 = vld [vmem:[%s1 + $0x83c] sm:$0xf]
  %v642 = vld [vmem:[%s1 + $0x840] sm:$0xf]
  %v643 = vld [vmem:[%s1 + $0x844] sm:$0xf]
  %v644 = vld [vmem:[%s1 + $0x848] sm:$0xf]
  %v645 = vld [vmem:[%s1 + $0x84c] sm:$0xf]
  %v646 = vld [vmem:[%s1 + $0x850] sm:$0xf]
  %v647 = vld [vmem:[%s1 + $0x854] sm:$0xf]
  %v648 = vld [vmem:[%s1 + $0x858] sm:$0xf]
  %v649 = vld [vmem:[%s1 + $0x85c] sm:$0xf]
  %v650 = vld [vmem:[%s1 + $0x860] sm:$0xf]
  %v651 = vld [vmem:[%s1 + $0x864] sm:$0xf]
  %v652 = vld [vmem:[%s1 + $0x868] sm:$0xf]
  %v653 = vld [vmem:[%s1 + $0x86c] sm:$0xf]
  %v654 = vld [vmem:[%s1 + $0x870] sm:$0xf]
  %v655 = vld [vmem:[%s1 + $0x874] sm:$0xf]
  %v656 = vld [vmem:[%s1 + $0x878] sm:$0xf]
  %v657 = vld [vmem:[%s1 + $0x87c] sm:$0xf]
  %v658 = vld [vmem:[%s1 + $0x880] sm:$0xf]
  %v659 = vld [vmem:[%s1 + $0x884] sm:$0xf]
  %v660 = vld [vmem:[%s1 + $0x888] sm:$0xf]
  %v661 = vld [vmem:[%s1 + $0x88c] sm:$0xf]
  %v662 = vld [vmem:[%s1 + $0x890] sm:$0xf]
  %v663 = vld [vmem:[%s1 + $0x894] sm:$0xf]
  %v664 = vld [vmem:[%s1 + $0x898] sm:$0xf]
  %v665 = vld [vmem:[%s1 + $0x89c] sm:$0xf]
  %v666 = vld [vmem:[%s1 + $0x8a0] sm:$0xf]
  %v667 = vld [vmem:[%s1 + $0x8a4] sm:$0xf]
  %v668 = vld [vmem:[%s1 + $0x8a8] sm:$0xf]
  %v669 = vld [vmem:[%s1 + $0x8ac] sm:$0xf]
  %v670 = vld [vmem:[%s1 + $0x8b0] sm:$0xf]
  %v671 = vld [vmem:[%s1 + $0x8b4] sm:$0xf]
  %v672 = vld [vmem:[%s1 + $0x8b8] sm:$0xf]
  %v673 = vld [vmem:[%s1 + $0x8bc] sm:$0xf]
  %v674 = vld [vmem:[%s1 + $0x8c0] sm:$0xf]
  %v675 = vld [vmem:[%s1 + $0x8c4] sm:$0xf]
  %v676 = vld [vmem:[%s1 + $0x8c8] sm:$0xf]
  %v677 = vld [vmem:[%s1 + $0x8cc] sm:$0xf]
  %v678 = vld [vmem:[%s1 + $0x8d0] sm:$0xf]
  %v679 = vld [vmem:[%s1 + $0x8d4] sm:$0xf]
  %v680 = vld [vmem:[%s1 + $0x8d8] sm:$0xf]
  %v681 = vld [vmem:[%s1 + $0x8dc] sm:$0xf]
  %v682 = vld [vmem:[%s1 + $0x8e0] sm:$0xf]
  %v683 = vld [vmem:[%s1 + $0x8e4] sm:$0xf]
  %v684 = vld [vmem:[%s1 + $0x8e8] sm:$0xf]
  %v685 = vld [vmem:[%s1 + $0x8ec] sm:$0xf]
  %v686 = vld [vmem:[%s1 + $0x8f0] sm:$0xf]
  %v687 = vld [vmem:[%s1 + $0x8f4] sm:$0xf]
  %v688 = vld [vmem:[%s1 + $0x8f8] sm:$0xf]
  %v689 = vld [vmem:[%s1 + $0x8fc] sm:$0xf]
  %v690 = vld [vmem:[%s1 + $0x900] sm:$0xf]
  %v691 = vld [vmem:[%s1 + $0x904] sm:$0xf]
  %v692 = vld [vmem:[%s1 + $0x908] sm:$0xf]
  %v693 = vld [vmem:[%s1 + $0x90c] sm:$0xf]
  %v694 = vld [vmem:[%s1 + $0x910] sm:$0xf]
  %v695 = vld [vmem:[%s1 + $0x914] sm:$0xf]
  %v696 = vld [vmem:[%s1 + $0x918] sm:$0xf]
  %v697 = vld [vmem:[%s1 + $0x91c] sm:$0xf]
  %v698 = vld [vmem:[%s1 + $0x920] sm:$0xf]
  %v699 = vld [vmem:[%s1 + $0x924] sm:$0xf]
  %v700 = vld [vmem:[%s1 + $0x928] sm:$0xf]
  %v701 = vld [vmem:[%s1 + $0x92c] sm:$0xf]
  %v702 = vld [vmem:[%s1 + $0x930] sm:$0xf]
  %v703 = vld [vmem:[%s1 + $0x934] sm:$0xf]
  %v704 = vld [vmem:[%s1 + $0x938] sm:$0xf]
  %v705 = vld [vmem:[%s1 + $0x93c] sm:$0xf]
  %v706 = vld [vmem:[%s1 + $0x940] sm:$0xf]
  %v707 = vld [vmem:[%s1 + $0x944] sm:$0xf]
  %v708 = vld [vmem:[%s1 + $0x948] sm:$0xf]
  %v709 = vld [vmem:[%s1 + $0x94c] sm:$0xf]
  %v710 = vld [vmem:[%s1 + $0x950] sm:$0xf]
  %v711 = vld [vmem:[%s1 + $0x954] sm:$0xf]
  %v712 = vld [vmem:[%s1 + $0x958] sm:$0xf]
  %v713 = vld [vmem:[%s1 + $0x95c] sm:$0xf]
  %v714 = vld [vmem:[%s1 + $0x960] sm:$0xf]
  %v715 = vld [vmem:[%s1 + $0x964] sm:$0xf]
  %v716 = vld [vmem:[%s1 + $0x968] sm:$0xf]
  %v717 = vld [vmem:[%s1 + $0x96c] sm:$0xf]
  %v718 = vld [vmem:[%s1 + $0x970] sm:$0xf]
  %v719 = vld [vmem:[%s1 + $0x974] sm:$0xf]
  %v720 = vld [vmem:[%s1 + $0x978] sm:$0xf]
  %v721 = vld [vmem:[%s1 + $0x97c] sm:$0xf]
  %v722 = vld [vmem:[%s1 + $0x980] sm:$0xf]
  %v723 = vld [vmem:[%s1 + $0x984] sm:$0xf]
  %v724 = vld [vmem:[%s1 + $0x988] sm:$0xf]
  %v725 = vld [vmem:[%s1 + $0x98c] sm:$0xf]
  %v726 = vld [vmem:[%s1 + $0x990] sm:$0xf]
  %v727 = vld [vmem:[%s1 + $0x994] sm:$0xf]
  %v728 = vld [vmem:[%s1 + $0x998] sm:$0xf]
  %v729 = vld [vmem:[%s1 + $0x99c] sm:$0xf]
  %v730 = vld [vmem:[%s1 + $0x9a0] sm:$0xf]
  %v731 = vld [vmem:[%s1 + $0x9a4] sm:$0xf]
  %v732 = vld [vmem:[%s1 + $0x9a8] sm:$0xf]
  %v733 = vld [vmem:[%s1 + $0x9ac] sm:$0xf]
  %v734 = vld [vmem:[%s1 + $0x9b0] sm:$0xf]
  %v735 = vld [vmem:[%s1 + $0x9b4] sm:$0xf]
  %v736 = vld [vmem:[%s1 + $0x9b8] sm:$0xf]
  %v737 = vld [vmem:[%s1 + $0x9bc] sm:$0xf]
  %v738 = vld [vmem:[%s1 + $0x9c0] sm:$0xf]
  %v739 = vld [vmem:[%s1 + $0x9c4] sm:$0xf]
  %v740 = vld [vmem:[%s1 + $0x9c8] sm:$0xf]
  %v741 = vld [vmem:[%s1 + $0x9cc] sm:$0xf]
  %v742 = vld [vmem:[%s1 + $0x9d0] sm:$0xf]
  %v743 = vld [vmem:[%s1 + $0x9d4] sm:$0xf]
  %v744 = vld [vmem:[%s1 + $0x9d8] sm:$0xf]
  %v745 = vld [vmem:[%s1 + $0x9dc] sm:$0xf]
  %v746 = vld [vmem:[%s1 + $0x9e0] sm:$0xf]
  %v747 = vld [vmem:[%s1 + $0x9e4] sm:$0xf]
  %v748 = vld [vmem:[%s1 + $0x9e8] sm:$0xf]
  %v749 = vld [vmem:[%s1 + $0x9ec] sm:$0xf]
  %v750 = vld [vmem:[%s1 + $0x9f0] sm:$0xf]
  %v751 = vld [vmem:[%s1 + $0x9f4] sm:$0xf]
  %v752 = vld [vmem:[%s1 + $0x9f8] sm:$0xf]
  %v753 = vld [vmem:[%s1 + $0x9fc] sm:$0xf]
  %v754 = vld [vmem:[%s1 + $0xa00] sm:$0xf]
  %v755 = vld [vmem:[%s1 + $0xa04] sm:$0xf]
  %v756 = vld [vmem:[%s1 + $0xa08] sm:$0xf]
  %v757 = vld [vmem:[%s1 + $0xa0c] sm:$0xf]
  %v758 = vld [vmem:[%s1 + $0xa10] sm:$0xf]
  %v759 = vld [vmem:[%s1 + $0xa14] sm:$0xf]
  %v760 = vld [vmem:[%s1 + $0xa18] sm:$0xf]
  %v761 = vld [vmem:[%s1 + $0xa1c] sm:$0xf]
  %v762 = vld [vmem:[%s1 + $0xa20] sm:$0xf]
  %v763 = vld [vmem:[%s1 + $0xa24] sm:$0xf]
  %v764 = vld [vmem:[%s1 + $0xa28] sm:$0xf]
  %v765 = vld [vmem:[%s1 + $0xa2c] sm:$0xf]
  %v766 = vld [vmem:[%s1 + $0xa30] sm:$0xf]
  %v767 = vld [vmem:[%s1 + $0xa34] sm:$0xf]
  %v768 = vld [vmem:[%s1 + $0xa38] sm:$0xf]
  %v769 = vld [vmem:[%s1 + $0xa3c] sm:$0xf]
  %v770 = vld [vmem:[%s1 + $0xa40] sm:$0xf]
  %v771 = vld [vmem:[%s1 + $0xa44] sm:$0xf]
  %v772 = vld [vmem:[%s1 + $0xa48] sm:$0xf]
  %v773 = vld [vmem:[%s1 + $0xa4c] sm:$0xf]
  %v774 = vld [vmem:[%s1 + $0xa50] sm:$0xf]
  %v775 = vld [vmem:[%s1 + $0xa54] sm:$0xf]
  %v776 = vld [vmem:[%s1 + $0xa58] sm:$0xf]
  %v777 = vld [vmem:[%s1 + $0xa5c] sm:$0xf]
  %v778 = vld [vmem:[%s1 + $0xa60] sm:$0xf]
  %v779 = vld [vmem:[%s1 + $0xa64] sm:$0xf]
  %v780 = vld [vmem:[%s1 + $0xa68] sm:$0xf]
  %v781 = vld [vmem:[%s1 + $0xa6c] sm:$0xf]
  %v782 = vld [vmem:[%s1 + $0xa70] sm:$0xf]
  %v783 = vld [vmem:[%s1 + $0xa74] sm:$0xf]
  %v784 = vld [vmem:[%s1 + $0xa78] sm:$0xf]
  %v785 = vld [vmem:[%s1 + $0xa7c] sm:$0xf]
  %v786 = vld [vmem:[%s1 + $0xa80] sm:$0xf]
  %v787 = vld [vmem:[%s1 + $0xa84] sm:$0xf]
  %v788 = vld [vmem:[%s1 + $0xa88] sm:$0xf]
  %v789 = vld [vmem:[%s1 + $0xa8c] sm:$0xf]
  %v790 = vld [vmem:[%s1 + $0xa90] sm:$0xf]
  %v791 = vld [vmem:[%s1 + $0xa94] sm:$0xf]
  %v792 = vld [vmem:[%s1 + $0xa98] sm:$0xf]
  %v793 = vld [vmem:[%s1 + $0xa9c] sm:$0xf]
  %v794 = vld [vmem:[%s1 + $0xaa0] sm:$0xf]
  %v795 = vld [vmem:[%s1 + $0xaa4] sm:$0xf]
  %v796 = vld [vmem:[%s1 + $0xaa8] sm:$0xf]
  %v797 = vld [vmem:[%s1 + $0xaac] sm:$0xf]
  %v798 = vld [vmem:[%s1 + $0xab0] sm:$0xf]
  %v799 = vld [vmem:[%s1 + $0xab4] sm:$0xf]
  %v800 = vld [vmem:[%s1 + $0xab8] sm:$0xf]
  %v801 = vld [vmem:[%s1 + $0xabc] sm:$0xf]
  %v802 = vld [vmem:[%s1 + $0xac0] sm:$0xf]
  %v803 = vld [vmem:[%s1 + $0xac4] sm:$0xf]
  %v804 = vld [vmem:[%s1 + $0xac8] sm:$0xf]
  %v805 = vld [vmem:[%s1 + $0xacc] sm:$0xf]
  %v806 = vld [vmem:[%s1 + $0xad0] sm:$0xf]
  %v807 = vld [vmem:[%s1 + $0xad4] sm:$0xf]
  %v808 = vld [vmem:[%s1 + $0xad8] sm:$0xf]
  %v809 = vld [vmem:[%s1 + $0xadc] sm:$0xf]
  %v810 = vld [vmem:[%s1 + $0xae0] sm:$0xf]
  %v811 = vld [vmem:[%s1 + $0xae4] sm:$0xf]
  %v812 = vld [vmem:[%s1 + $0xae8] sm:$0xf]
  %v813 = vld [vmem:[%s1 + $0xaec] sm:$0xf]
  %v814 = vld [vmem:[%s1 + $0xaf0] sm:$0xf]
  %v815 = vld [vmem:[%s1 + $0xaf4] sm:$0xf]
  %v816 = vld [vmem:[%s1 + $0xaf8] sm:$0xf]
  %v817 = vld [vmem:[%s1 + $0xafc] sm:$0xf]
  %v818 = vld [vmem:[%s1 + $0xb00] sm:$0xf]
  %v819 = vld [vmem:[%s1 + $0xb04] sm:$0xf]
  %v820 = vld [vmem:[%s1 + $0xb08] sm:$0xf]
  %v821 = vld [vmem:[%s1 + $0xb0c] sm:$0xf]
  %v822 = vld [vmem:[%s1 + $0xb10] sm:$0xf]
  %v823 = vld [vmem:[%s1 + $0xb14] sm:$0xf]
  %v824 = vld [vmem:[%s1 + $0xb18] sm:$0xf]
  %v825 = vld [vmem:[%s1 + $0xb1c] sm:$0xf]
  %v826 = vld [vmem:[%s1 + $0xb20] sm:$0xf]
  %v827 = vld [vmem:[%s1 + $0xb24] sm:$0xf]
  %v828 = vld [vmem:[%s1 + $0xb28] sm:$0xf]
  %v829 = vld [vmem:[%s1 + $0xb2c] sm:$0xf]
  %v830 = vld [vmem:[%s1 + $0xb30] sm:$0xf]
  %v831 = vld [vmem:[%s1 + $0xb34] sm:$0xf]
  %v832 = vld [vmem:[%s1 + $0xb38] sm:$0xf]
  %v833 = vld [vmem:[%s1 + $0xb3c] sm:$0xf]
  %v834 = vld [vmem:[%s1 + $0xb40] sm:$0xf]
  %v835 = vld [vmem:[%s1 + $0xb44] sm:$0xf]
  %v836 = vld [vmem:[%s1 + $0xb48] sm:$0xf]
  %v837 = vld [vmem:[%s1 + $0xb4c] sm:$0xf]
  %v838 = vld [vmem:[%s1 + $0xb50] sm:$0xf]
  %v839 = vld [vmem:[%s1 + $0xb54] sm:$0xf]
  %v840 = vld [vmem:[%s1 + $0xb58] sm:$0xf]
  %v841 = vld [vmem:[%s1 + $0xb5c] sm:$0xf]
  %v842 = vld [vmem:[%s1 + $0xb60] sm:$0xf]
  %v843 = vld [vmem:[%s1 + $0xb64] sm:$0xf]
  %v844 = vld [vmem:[%s1 + $0xb68] sm:$0xf]
  %v845 = vld [vmem:[%s1 + $0xb6c] sm:$0xf]
  %v846 = vld [vmem:[%s1 + $0xb70] sm:$0xf]
  %v847 = vld [vmem:[%s1 + $0xb74] sm:$0xf]
  %v848 = vld [vmem:[%s1 + $0xb78] sm:$0xf]
  %v849 = vld [vmem:[%s1 + $0xb7c] sm:$0xf]
  %v850 = vld [vmem:[%s1 + $0xb80] sm:$0xf]
  %v851 = vld [vmem:[%s1 + $0xb84] sm:$0xf]
  %v852 = vld [vmem:[%s1 + $0xb88] sm:$0xf]
  %v853 = vld [vmem:[%s1 + $0xb8c] sm:$0xf]
  %v854 = vld [vmem:[%s1 + $0xb90] sm:$0xf]
  %v855 = vld [vmem:[%s1 + $0xb94] sm:$0xf]
  %v856 = vld [vmem:[%s1 + $0xb98] sm:$0xf]
  %v857 = vld [vmem:[%s1 + $0xb9c] sm:$0xf]
  %v858 = vld [vmem:[%s1 + $0xba0] sm:$0xf]
  %v859 = vld [vmem:[%s1 + $0xba4] sm:$0xf]
  %v860 = vld [vmem:[%s1 + $0xba8] sm:$0xf]
  %v861 = vld [vmem:[%s1 + $0xbac] sm:$0xf]
  %v862 = vld [vmem:[%s1 + $0xbb0] sm:$0xf]
  %v863 = vld [vmem:[%s1 + $0xbb4] sm:$0xf]
  %v864 = vld [vmem:[%s1 + $0xbb8] sm:$0xf]
  %v865 = vld [vmem:[%s1 + $0xbbc] sm:$0xf]
  %v866 = vld [vmem:[%s1 + $0xbc0] sm:$0xf]
  %v867 = vld [vmem:[%s1 + $0xbc4] sm:$0xf]
  %v868 = vld [vmem:[%s1 + $0xbc8] sm:$0xf]
  %v869 = vld [vmem:[%s1 + $0xbcc] sm:$0xf]
  %v870 = vld [vmem:[%s1 + $0xbd0] sm:$0xf]
  %v871 = vld [vmem:[%s1 + $0xbd4] sm:$0xf]
  %v872 = vld [vmem:[%s1 + $0xbd8] sm:$0xf]
  %v873 = vld [vmem:[%s1 + $0xbdc] sm:$0xf]
  %v874 = vld [vmem:[%s1 + $0xbe0] sm:$0xf]
  %v875 = vld [vmem:[%s1 + $0xbe4] sm:$0xf]
  %v876 = vld [vmem:[%s1 + $0xbe8] sm:$0xf]
  %v877 = vld [vmem:[%s1 + $0xbec] sm:$0xf]
  %v878 = vld [vmem:[%s1 + $0xbf0] sm:$0xf]
  %v879 = vld [vmem:[%s1 + $0xbf4] sm:$0xf]
  %v880 = vld [vmem:[%s1 + $0xbf8] sm:$0xf]
  %v881 = vld [vmem:[%s1 + $0xbfc] sm:$0xf]
  %v882 = vld [vmem:[%s1 + $0xc00] sm:$0xf]
  %v883 = vld [vmem:[%s1 + $0xc04] sm:$0xf]
  %v884 = vld [vmem:[%s1 + $0xc08] sm:$0xf]
  %v885 = vld [vmem:[%s1 + $0xc0c] sm:$0xf]
  %v886 = vld [vmem:[%s1 + $0xc10] sm:$0xf]
  %v887 = vld [vmem:[%s1 + $0xc14] sm:$0xf]
  %v888 = vld [vmem:[%s1 + $0xc18] sm:$0xf]
  %v889 = vld [vmem:[%s1 + $0xc1c] sm:$0xf]
  %v890 = vld [vmem:[%s1 + $0xc20] sm:$0xf]
  %v891 = vld [vmem:[%s1 + $0xc24] sm:$0xf]
  %v892 = vld [vmem:[%s1 + $0xc28] sm:$0xf]
  %v893 = vld [vmem:[%s1 + $0xc2c] sm:$0xf]
  %v894 = vld [vmem:[%s1 + $0xc30] sm:$0xf]
  %v895 = vld [vmem:[%s1 + $0xc34] sm:$0xf]
  %v896 = vld [vmem:[%s1 + $0xc38] sm:$0xf]
  %v897 = vld [vmem:[%s1 + $0xc3c] sm:$0xf]
  %v898 = vld [vmem:[%s2] sm:$0x1]
  %v900 = vperm.slane %v898, 0
  %v1002 = vunpack.c.l.b16 %v14
  %v1003 = vunpack.c.h.b16 %v14
  %v1004 = vunpack.c.l.b16 %v15
  %v1005 = vunpack.c.h.b16 %v15
  %v1006 = vunpack.c.l.b16 %v16
  %v1007 = vunpack.c.h.b16 %v16
  %v1008 = vunpack.c.l.b16 %v17
  %v1009 = vunpack.c.h.b16 %v17
  %v1010 = vunpack.c.l.b16 %v18
  %v1011 = vunpack.c.h.b16 %v18
  %v1012 = vunpack.c.l.b16 %v19
  %v1013 = vunpack.c.h.b16 %v19
  %v1014 = vunpack.c.l.b16 %v20
  %v1015 = vunpack.c.h.b16 %v20
  %v1016 = vunpack.c.l.b16 %v21
  %v1017 = vunpack.c.h.b16 %v21
  %v1018 = vunpack.c.l.b16 %v22
  %v1019 = vunpack.c.h.b16 %v22
  %v1020 = vunpack.c.l.b16 %v23
  %v1021 = vunpack.c.h.b16 %v23
  %v1022 = vunpack.c.l.b16 %v24
  %v1023 = vunpack.c.h.b16 %v24
  %v1024 = vunpack.c.l.b16 %v25
  %v1025 = vunpack.c.h.b16 %v25
  %v1026 = vunpack.c.l.b16 %v26
  %v1027 = vunpack.c.h.b16 %v26
  %v1028 = vunpack.c.l.b16 %v27
  %v1029 = vunpack.c.h.b16 %v27
  %v1030 = vunpack.c.l.b16 %v28
  %v1031 = vunpack.c.h.b16 %v28
  %v1032 = vunpack.c.l.b16 %v29
  %v1033 = vunpack.c.h.b16 %v29
  %v1034 = vunpack.c.l.b16 %v30
  %v1035 = vunpack.c.h.b16 %v30
  %v1036 = vunpack.c.l.b16 %v31
  %v1037 = vunpack.c.h.b16 %v31
  %v1038 = vunpack.c.l.b16 %v32
  %v1039 = vunpack.c.h.b16 %v32
  %v1040 = vunpack.c.l.b16 %v33
  %v1041 = vunpack.c.h.b16 %v33
  %v1042 = vunpack.c.l.b16 %v34
  %v1043 = vunpack.c.h.b16 %v34
  %v1044 = vunpack.c.l.b16 %v35
  %v1045 = vunpack.c.h.b16 %v35
  %v1046 = vunpack.c.l.b16 %v36
  %v1047 = vunpack.c.h.b16 %v36
  %v1048 = vunpack.c.l.b16 %v37
  %v1049 = vunpack.c.h.b16 %v37
  %v1050 = vunpack.c.l.b16 %v38
  %v1051 = vunpack.c.l.b16 %v39
  %v1052 = vunpack.c.h.b16 %v39
  %v1053 = vunpack.c.l.b16 %v40
  %v1054 = vunpack.c.h.b16 %v40
  %v1055 = vunpack.c.l.b16 %v41
  %v1056 = vunpack.c.h.b16 %v41
  %v1057 = vunpack.c.l.b16 %v42
  %v1058 = vunpack.c.h.b16 %v42
  %v1059 = vunpack.c.l.b16 %v43
  %v1060 = vunpack.c.h.b16 %v43
  %v1061 = vunpack.c.l.b16 %v44
  %v1062 = vunpack.c.h.b16 %v44
  %v1063 = vunpack.c.l.b16 %v45
  %v1064 = vunpack.c.h.b16 %v45
  %v1065 = vunpack.c.l.b16 %v46
  %v1066 = vunpack.c.h.b16 %v46
  %v1067 = vunpack.c.l.b16 %v47
  %v1068 = vunpack.c.h.b16 %v47
  %v1069 = vunpack.c.l.b16 %v48
  %v1070 = vunpack.c.h.b16 %v48
  %v1071 = vunpack.c.l.b16 %v49
  %v1072 = vunpack.c.h.b16 %v49
  %v1073 = vunpack.c.l.b16 %v50
  %v1074 = vunpack.c.h.b16 %v50
  %v1075 = vunpack.c.l.b16 %v51
  %v1076 = vunpack.c.h.b16 %v51
  %v1077 = vunpack.c.l.b16 %v52
  %v1078 = vunpack.c.h.b16 %v52
  %v1079 = vunpack.c.l.b16 %v53
  %v1080 = vunpack.c.h.b16 %v53
  %v1081 = vunpack.c.l.b16 %v54
  %v1082 = vunpack.c.h.b16 %v54
  %v1083 = vunpack.c.l.b16 %v55
  %v1084 = vunpack.c.h.b16 %v55
  %v1085 = vunpack.c.l.b16 %v56
  %v1086 = vunpack.c.h.b16 %v56
  %v1087 = vunpack.c.l.b16 %v57
  %v1088 = vunpack.c.h.b16 %v57
  %v1089 = vunpack.c.l.b16 %v58
  %v1090 = vunpack.c.h.b16 %v58
  %v1091 = vunpack.c.l.b16 %v59
  %v1092 = vunpack.c.h.b16 %v59
  %v1093 = vunpack.c.l.b16 %v60
  %v1094 = vunpack.c.h.b16 %v60
  %v1095 = vunpack.c.l.b16 %v61
  %v1096 = vunpack.c.h.b16 %v61
  %v1097 = vunpack.c.l.b16 %v62
  %v1098 = vunpack.c.h.b16 %v62
  %v1099 = vunpack.c.l.b16 %v63
  %v1100 = vunpack.c.l.b16 %v64
  %v1101 = vunpack.c.h.b16 %v64
  %v1102 = vunpack.c.l.b16 %v65
  %v1103 = vunpack.c.h.b16 %v65
  %v1104 = vunpack.c.l.b16 %v66
  %v1105 = vunpack.c.h.b16 %v66
  %v1106 = vunpack.c.l.b16 %v67
  %v1107 = vunpack.c.h.b16 %v67
  %v1108 = vunpack.c.l.b16 %v68
  %v1109 = vunpack.c.h.b16 %v68
  %v1110 = vunpack.c.l.b16 %v69
  %v1111 = vunpack.c.h.b16 %v69
  %v1112 = vunpack.c.l.b16 %v70
  %v1113 = vunpack.c.h.b16 %v70
  %v1114 = vunpack.c.l.b16 %v71
  %v1115 = vunpack.c.h.b16 %v71
  %v1116 = vunpack.c.l.b16 %v72
  %v1117 = vunpack.c.h.b16 %v72
  %v1118 = vunpack.c.l.b16 %v73
  %v1119 = vunpack.c.h.b16 %v73
  %v1120 = vunpack.c.l.b16 %v74
  %v1121 = vunpack.c.h.b16 %v74
  %v1122 = vunpack.c.l.b16 %v75
  %v1123 = vunpack.c.h.b16 %v75
  %v1124 = vunpack.c.l.b16 %v76
  %v1125 = vunpack.c.h.b16 %v76
  %v1126 = vunpack.c.l.b16 %v77
  %v1127 = vunpack.c.h.b16 %v77
  %v1128 = vunpack.c.l.b16 %v78
  %v1129 = vunpack.c.h.b16 %v78
  %v1130 = vunpack.c.l.b16 %v79
  %v1131 = vunpack.c.h.b16 %v79
  %v1132 = vunpack.c.l.b16 %v80
  %v1133 = vunpack.c.h.b16 %v80
  %v1134 = vunpack.c.l.b16 %v81
  %v1135 = vunpack.c.h.b16 %v81
  %v1136 = vunpack.c.l.b16 %v82
  %v1137 = vunpack.c.h.b16 %v82
  %v1138 = vunpack.c.l.b16 %v83
  %v1139 = vunpack.c.h.b16 %v83
  %v1140 = vunpack.c.l.b16 %v84
  %v1141 = vunpack.c.h.b16 %v84
  %v1142 = vunpack.c.l.b16 %v85
  %v1143 = vunpack.c.h.b16 %v85
  %v1144 = vunpack.c.l.b16 %v86
  %v1145 = vunpack.c.h.b16 %v86
  %v1146 = vunpack.c.l.b16 %v87
  %v1147 = vunpack.c.h.b16 %v87
  %v1148 = vunpack.c.l.b16 %v88
  %v1149 = vunpack.c.l.b16 %v89
  %v1150 = vunpack.c.h.b16 %v89
  %v1151 = vunpack.c.l.b16 %v90
  %v1152 = vunpack.c.h.b16 %v90
  %v1153 = vunpack.c.l.b16 %v91
  %v1154 = vunpack.c.h.b16 %v91
  %v1155 = vunpack.c.l.b16 %v92
  %v1156 = vunpack.c.h.b16 %v92
  %v1157 = vunpack.c.l.b16 %v93
  %v1158 = vunpack.c.h.b16 %v93
  %v1159 = vunpack.c.l.b16 %v94
  %v1160 = vunpack.c.h.b16 %v94
  %v1161 = vunpack.c.l.b16 %v95
  %v1162 = vunpack.c.h.b16 %v95
  %v1163 = vunpack.c.l.b16 %v96
  %v1164 = vunpack.c.h.b16 %v96
  %v1165 = vunpack.c.l.b16 %v97
  %v1166 = vunpack.c.h.b16 %v97
  %v1167 = vunpack.c.l.b16 %v98
  %v1168 = vunpack.c.h.b16 %v98
  %v1169 = vunpack.c.l.b16 %v99
  %v1170 = vunpack.c.h.b16 %v99
  %v1171 = vunpack.c.l.b16 %v100
  %v1172 = vunpack.c.h.b16 %v100
  %v1173 = vunpack.c.l.b16 %v101
  %v1174 = vunpack.c.h.b16 %v101
  %v1175 = vunpack.c.l.b16 %v102
  %v1176 = vunpack.c.h.b16 %v102
  %v1177 = vunpack.c.l.b16 %v103
  %v1178 = vunpack.c.h.b16 %v103
  %v1179 = vunpack.c.l.b16 %v104
  %v1180 = vunpack.c.h.b16 %v104
  %v1181 = vunpack.c.l.b16 %v105
  %v1182 = vunpack.c.h.b16 %v105
  %v1183 = vunpack.c.l.b16 %v106
  %v1184 = vunpack.c.h.b16 %v106
  %v1185 = vunpack.c.l.b16 %v107
  %v1186 = vunpack.c.h.b16 %v107
  %v1187 = vunpack.c.l.b16 %v108
  %v1188 = vunpack.c.h.b16 %v108
  %v1189 = vunpack.c.l.b16 %v109
  %v1190 = vunpack.c.h.b16 %v109
  %v1191 = vunpack.c.l.b16 %v110
  %v1192 = vunpack.c.h.b16 %v110
  %v1193 = vunpack.c.l.b16 %v111
  %v1194 = vunpack.c.h.b16 %v111
  %v1195 = vunpack.c.l.b16 %v112
  %v1196 = vunpack.c.h.b16 %v112
  %v1197 = vunpack.c.l.b16 %v113
  %v1198 = vpack.c.b16 %v1051, %v1002
  %v1199 = vpack.c.b16 %v1052, %v1003
  %v1200 = vpack.c.b16 %v1053, %v1004
  %v1201 = vpack.c.b16 %v1054, %v1005
  %v1202 = vpack.c.b16 %v1055, %v1006
  %v1203 = vpack.c.b16 %v1056, %v1007
  %v1204 = vpack.c.b16 %v1057, %v1008
  %v1205 = vpack.c.b16 %v1058, %v1009
  %v1206 = vpack.c.b16 %v1059, %v1010
  %v1207 = vpack.c.b16 %v1060, %v1011
  %v1208 = vpack.c.b16 %v1061, %v1012
  %v1209 = vpack.c.b16 %v1062, %v1013
  %v1210 = vpack.c.b16 %v1063, %v1014
  %v1211 = vpack.c.b16 %v1064, %v1015
  %v1212 = vpack.c.b16 %v1065, %v1016
  %v1213 = vpack.c.b16 %v1066, %v1017
  %v1214 = vpack.c.b16 %v1067, %v1018
  %v1215 = vpack.c.b16 %v1068, %v1019
  %v1216 = vpack.c.b16 %v1069, %v1020
  %v1217 = vpack.c.b16 %v1070, %v1021
  %v1218 = vpack.c.b16 %v1071, %v1022
  %v1219 = vpack.c.b16 %v1072, %v1023
  %v1220 = vpack.c.b16 %v1073, %v1024
  %v1221 = vpack.c.b16 %v1074, %v1025
  %v1222 = vpack.c.b16 %v1075, %v1026
  %v1223 = vpack.c.b16 %v1076, %v1027
  %v1224 = vpack.c.b16 %v1077, %v1028
  %v1225 = vpack.c.b16 %v1078, %v1029
  %v1226 = vpack.c.b16 %v1079, %v1030
  %v1227 = vpack.c.b16 %v1080, %v1031
  %v1228 = vpack.c.b16 %v1081, %v1032
  %v1229 = vpack.c.b16 %v1082, %v1033
  %v1230 = vpack.c.b16 %v1083, %v1034
  %v1231 = vpack.c.b16 %v1084, %v1035
  %v1232 = vpack.c.b16 %v1085, %v1036
  %v1233 = vpack.c.b16 %v1086, %v1037
  %v1234 = vpack.c.b16 %v1087, %v1038
  %v1235 = vpack.c.b16 %v1088, %v1039
  %v1236 = vpack.c.b16 %v1089, %v1040
  %v1237 = vpack.c.b16 %v1090, %v1041
  %v1238 = vpack.c.b16 %v1091, %v1042
  %v1239 = vpack.c.b16 %v1092, %v1043
  %v1240 = vpack.c.b16 %v1093, %v1044
  %v1241 = vpack.c.b16 %v1094, %v1045
  %v1242 = vpack.c.b16 %v1095, %v1046
  %v1243 = vpack.c.b16 %v1096, %v1047
  %v1244 = vpack.c.b16 %v1097, %v1048
  %v1245 = vpack.c.b16 %v1098, %v1049
  %v1246 = vpack.c.b16 %v1099, %v1050
  %v1247 = vpack.c.b16 %v1149, %v1100
  %v1248 = vpack.c.b16 %v1150, %v1101
  %v1249 = vpack.c.b16 %v1151, %v1102
  %v1250 = vpack.c.b16 %v1152, %v1103
  %v1251 = vpack.c.b16 %v1153, %v1104
  %v1252 = vpack.c.b16 %v1154, %v1105
  %v1253 = vpack.c.b16 %v1155, %v1106
  %v1254 = vpack.c.b16 %v1156, %v1107
  %v1255 = vpack.c.b16 %v1157, %v1108
  %v1256 = vpack.c.b16 %v1158, %v1109
  %v1257 = vpack.c.b16 %v1159, %v1110
  %v1258 = vpack.c.b16 %v1160, %v1111
  %v1259 = vpack.c.b16 %v1161, %v1112
  %v1260 = vpack.c.b16 %v1162, %v1113
  %v1261 = vpack.c.b16 %v1163, %v1114
  %v1262 = vpack.c.b16 %v1164, %v1115
  %v1263 = vpack.c.b16 %v1165, %v1116
  %v1264 = vpack.c.b16 %v1166, %v1117
  %v1265 = vpack.c.b16 %v1167, %v1118
  %v1266 = vpack.c.b16 %v1168, %v1119
  %v1267 = vpack.c.b16 %v1169, %v1120
  %v1268 = vpack.c.b16 %v1170, %v1121
  %v1269 = vpack.c.b16 %v1171, %v1122
  %v1270 = vpack.c.b16 %v1172, %v1123
  %v1271 = vpack.c.b16 %v1173, %v1124
  %v1272 = vpack.c.b16 %v1174, %v1125
  %v1273 = vpack.c.b16 %v1175, %v1126
  %v1274 = vpack.c.b16 %v1176, %v1127
  %v1275 = vpack.c.b16 %v1177, %v1128
  %v1276 = vpack.c.b16 %v1178, %v1129
  %v1277 = vpack.c.b16 %v1179, %v1130
  %v1278 = vpack.c.b16 %v1180, %v1131
  %v1279 = vpack.c.b16 %v1181, %v1132
  %v1280 = vpack.c.b16 %v1182, %v1133
  %v1281 = vpack.c.b16 %v1183, %v1134
  %v1282 = vpack.c.b16 %v1184, %v1135
  %v1283 = vpack.c.b16 %v1185, %v1136
  %v1284 = vpack.c.b16 %v1186, %v1137
  %v1285 = vpack.c.b16 %v1187, %v1138
  %v1286 = vpack.c.b16 %v1188, %v1139
  %v1287 = vpack.c.b16 %v1189, %v1140
  %v1288 = vpack.c.b16 %v1190, %v1141
  %v1289 = vpack.c.b16 %v1191, %v1142
  %v1290 = vpack.c.b16 %v1192, %v1143
  %v1291 = vpack.c.b16 %v1193, %v1144
  %v1292 = vpack.c.b16 %v1194, %v1145
  %v1293 = vpack.c.b16 %v1195, %v1146
  %v1294 = vpack.c.b16 %v1196, %v1147
  %v1295 = vpack.c.b16 %v1197, %v1148
  %v2178 = vunpack.c.l.b16 %v114
  %v2179 = vunpack.c.l.b16 %v115
  %v2180 = vunpack.c.l.b16 %v116
  %v2181 = vunpack.c.l.b16 %v117
  %v2182 = vunpack.c.l.b16 %v118
  %v2183 = vunpack.c.l.b16 %v119
  %v2184 = vunpack.c.l.b16 %v120
  %v2185 = vunpack.c.l.b16 %v121
  %v2186 = vunpack.c.l.b16 %v122
  %v2187 = vunpack.c.l.b16 %v123
  %v2188 = vunpack.c.l.b16 %v124
  %v2189 = vunpack.c.l.b16 %v125
  %v2190 = vunpack.c.l.b16 %v126
  %v2191 = vunpack.c.l.b16 %v127
  %v2192 = vunpack.c.l.b16 %v128
  %v2193 = vunpack.c.l.b16 %v129
  %v2194 = vunpack.c.l.b16 %v130
  %v2195 = vunpack.c.l.b16 %v131
  %v2196 = vunpack.c.l.b16 %v132
  %v2197 = vunpack.c.l.b16 %v133
  %v2198 = vunpack.c.l.b16 %v134
  %v2199 = vunpack.c.l.b16 %v135
  %v2200 = vunpack.c.l.b16 %v136
  %v2201 = vunpack.c.l.b16 %v137
  %v2202 = vunpack.c.l.b16 %v138
  %v2203 = vunpack.c.l.b16 %v139
  %v2204 = vunpack.c.l.b16 %v140
  %v2205 = vunpack.c.l.b16 %v141
  %v2206 = vunpack.c.l.b16 %v142
  %v2207 = vunpack.c.l.b16 %v143
  %v2208 = vunpack.c.l.b16 %v144
  %v2209 = vunpack.c.l.b16 %v145
  %v2210 = vunpack.c.l.b16 %v146
  %v2211 = vunpack.c.l.b16 %v147
  %v2212 = vunpack.c.l.b16 %v148
  %v2213 = vunpack.c.l.b16 %v149
  %v2214 = vunpack.c.l.b16 %v150
  %v2215 = vunpack.c.l.b16 %v151
  %v2216 = vunpack.c.l.b16 %v152
  %v2217 = vunpack.c.l.b16 %v153
  %v2218 = vunpack.c.l.b16 %v154
  %v2219 = vunpack.c.l.b16 %v155
  %v2220 = vunpack.c.l.b16 %v156
  %v2221 = vunpack.c.l.b16 %v157
  %v2222 = vunpack.c.l.b16 %v158
  %v2223 = vunpack.c.l.b16 %v159
  %v2224 = vunpack.c.l.b16 %v160
  %v2225 = vunpack.c.l.b16 %v161
  %v2226 = vunpack.c.l.b16 %v162
  %v2227 = vunpack.c.l.b16 %v163
  %v2228 = vunpack.c.l.b16 %v164
  %v2229 = vunpack.c.l.b16 %v165
  %v2230 = vunpack.c.l.b16 %v166
  %v2231 = vunpack.c.l.b16 %v167
  %v2232 = vunpack.c.l.b16 %v168
  %v2233 = vunpack.c.l.b16 %v169
  %v2234 = vunpack.c.l.b16 %v170
  %v2235 = vunpack.c.l.b16 %v171
  %v2236 = vunpack.c.l.b16 %v172
  %v2237 = vunpack.c.l.b16 %v173
  %v2238 = vunpack.c.l.b16 %v174
  %v2239 = vunpack.c.l.b16 %v175
  %v2240 = vunpack.c.l.b16 %v176
  %v2241 = vunpack.c.l.b16 %v177
  %v2242 = vunpack.c.l.b16 %v178
  %v2243 = vunpack.c.l.b16 %v179
  %v2244 = vunpack.c.l.b16 %v180
  %v2245 = vunpack.c.l.b16 %v181
  %v2246 = vunpack.c.l.b16 %v182
  %v2247 = vunpack.c.l.b16 %v183
  %v2248 = vunpack.c.l.b16 %v184
  %v2249 = vunpack.c.l.b16 %v185
  %v2250 = vunpack.c.l.b16 %v186
  %v2251 = vunpack.c.l.b16 %v187
  %v2252 = vunpack.c.l.b16 %v188
  %v2253 = vunpack.c.l.b16 %v189
  %v2254 = vunpack.c.l.b16 %v190
  %v2255 = vunpack.c.l.b16 %v191
  %v2256 = vunpack.c.l.b16 %v192
  %v2257 = vunpack.c.l.b16 %v193
  %v2258 = vunpack.c.l.b16 %v194
  %v2259 = vunpack.c.l.b16 %v195
  %v2260 = vunpack.c.l.b16 %v196
  %v2261 = vunpack.c.l.b16 %v197
  %v2262 = vunpack.c.l.b16 %v198
  %v2263 = vunpack.c.l.b16 %v199
  %v2264 = vunpack.c.l.b16 %v200
  %v2265 = vunpack.c.l.b16 %v201
  %v2266 = vunpack.c.l.b16 %v202
  %v2267 = vunpack.c.l.b16 %v203
  %v2268 = vunpack.c.l.b16 %v204
  %v2269 = vunpack.c.l.b16 %v205
  %v2270 = vunpack.c.l.b16 %v206
  %v2271 = vunpack.c.l.b16 %v207
  %v2272 = vunpack.c.l.b16 %v208
  %v2273 = vunpack.c.l.b16 %v209
  %v2274 = vunpack.c.l.b16 %v210
  %v2275 = vunpack.c.l.b16 %v211
  %v2276 = vunpack.c.l.b16 %v212
  %v2277 = vunpack.c.l.b16 %v213
  %v2278 = vunpack.c.l.b16 %v214
  %v2279 = vunpack.c.l.b16 %v215
  %v2280 = vunpack.c.l.b16 %v216
  %v2281 = vunpack.c.l.b16 %v217
  %v2282 = vunpack.c.l.b16 %v218
  %v2283 = vunpack.c.l.b16 %v219
  %v2284 = vunpack.c.l.b16 %v220
  %v2285 = vunpack.c.l.b16 %v221
  %v2286 = vunpack.c.l.b16 %v222
  %v2287 = vunpack.c.l.b16 %v223
  %v2288 = vunpack.c.l.b16 %v224
  %v2289 = vunpack.c.l.b16 %v225
  %v2290 = vunpack.c.l.b16 %v226
  %v2291 = vunpack.c.l.b16 %v227
  %v2292 = vunpack.c.l.b16 %v228
  %v2293 = vunpack.c.l.b16 %v229
  %v2294 = vunpack.c.l.b16 %v230
  %v2295 = vunpack.c.l.b16 %v231
  %v2296 = vunpack.c.l.b16 %v232
  %v2297 = vunpack.c.l.b16 %v233
  %v2298 = vunpack.c.l.b16 %v234
  %v2299 = vunpack.c.l.b16 %v235
  %v2300 = vunpack.c.l.b16 %v236
  %v2301 = vunpack.c.l.b16 %v237
  %v2302 = vunpack.c.l.b16 %v238
  %v2303 = vunpack.c.l.b16 %v239
  %v2304 = vunpack.c.l.b16 %v240
  %v2305 = vunpack.c.l.b16 %v241
  %v2306 = vunpack.c.l.b16 %v242
  %v2307 = vunpack.c.l.b16 %v243
  %v2308 = vunpack.c.l.b16 %v244
  %v2309 = vunpack.c.l.b16 %v245
  %v2310 = vunpack.c.l.b16 %v246
  %v2311 = vunpack.c.l.b16 %v247
  %v2312 = vunpack.c.l.b16 %v248
  %v2313 = vunpack.c.l.b16 %v249
  %v2314 = vunpack.c.l.b16 %v250
  %v2315 = vunpack.c.l.b16 %v251
  %v2316 = vunpack.c.l.b16 %v252
  %v2317 = vunpack.c.l.b16 %v253
  %v2318 = vunpack.c.l.b16 %v254
  %v2319 = vunpack.c.l.b16 %v255
  %v2320 = vunpack.c.l.b16 %v256
  %v2321 = vunpack.c.l.b16 %v257
  %v2322 = vunpack.c.l.b16 %v258
  %v2323 = vunpack.c.l.b16 %v259
  %v2324 = vunpack.c.l.b16 %v260
  %v2325 = vunpack.c.l.b16 %v261
  %v2326 = vunpack.c.l.b16 %v262
  %v2327 = vunpack.c.l.b16 %v263
  %v2328 = vunpack.c.l.b16 %v264
  %v2329 = vunpack.c.l.b16 %v265
  %v2330 = vunpack.c.l.b16 %v266
  %v2331 = vunpack.c.l.b16 %v267
  %v2332 = vunpack.c.l.b16 %v268
  %v2333 = vunpack.c.l.b16 %v269
  %v2334 = vunpack.c.l.b16 %v270
  %v2335 = vunpack.c.l.b16 %v271
  %v2336 = vunpack.c.l.b16 %v272
  %v2337 = vunpack.c.l.b16 %v273
  %v2338 = vunpack.c.l.b16 %v274
  %v2339 = vunpack.c.l.b16 %v275
  %v2340 = vunpack.c.l.b16 %v276
  %v2341 = vunpack.c.l.b16 %v277
  %v2342 = vunpack.c.l.b16 %v278
  %v2343 = vunpack.c.l.b16 %v279
  %v2344 = vunpack.c.l.b16 %v280
  %v2345 = vunpack.c.l.b16 %v281
  %v2346 = vunpack.c.l.b16 %v282
  %v2347 = vunpack.c.l.b16 %v283
  %v2348 = vunpack.c.l.b16 %v284
  %v2349 = vunpack.c.l.b16 %v285
  %v2350 = vunpack.c.l.b16 %v286
  %v2351 = vunpack.c.l.b16 %v287
  %v2352 = vunpack.c.l.b16 %v288
  %v2353 = vunpack.c.l.b16 %v289
  %v2354 = vunpack.c.l.b16 %v290
  %v2355 = vunpack.c.l.b16 %v291
  %v2356 = vunpack.c.l.b16 %v292
  %v2357 = vunpack.c.l.b16 %v293
  %v2358 = vunpack.c.l.b16 %v294
  %v2359 = vunpack.c.l.b16 %v295
  %v2360 = vunpack.c.l.b16 %v296
  %v2361 = vunpack.c.l.b16 %v297
  %v2362 = vunpack.c.l.b16 %v298
  %v2363 = vunpack.c.l.b16 %v299
  %v2364 = vunpack.c.l.b16 %v300
  %v2365 = vunpack.c.l.b16 %v301
  %v2366 = vunpack.c.l.b16 %v302
  %v2367 = vunpack.c.l.b16 %v303
  %v2368 = vunpack.c.l.b16 %v304
  %v2369 = vunpack.c.l.b16 %v305
  %v2370 = vunpack.c.l.b16 %v306
  %v2371 = vunpack.c.l.b16 %v307
  %v2372 = vunpack.c.l.b16 %v308
  %v2373 = vunpack.c.l.b16 %v309
  %v2374 = vunpack.c.l.b16 %v310
  %v2375 = vunpack.c.l.b16 %v311
  %v2376 = vunpack.c.l.b16 %v312
  %v2377 = vunpack.c.l.b16 %v313
  %v2378 = vunpack.c.l.b16 %v314
  %v2379 = vunpack.c.l.b16 %v315
  %v2380 = vunpack.c.l.b16 %v316
  %v2381 = vunpack.c.l.b16 %v317
  %v2382 = vunpack.c.l.b16 %v318
  %v2383 = vunpack.c.l.b16 %v319
  %v2384 = vunpack.c.l.b16 %v320
  %v2385 = vunpack.c.l.b16 %v321
  %v2386 = vunpack.c.l.b16 %v322
  %v2387 = vunpack.c.l.b16 %v323
  %v2388 = vunpack.c.l.b16 %v324
  %v2389 = vunpack.c.l.b16 %v325
  %v2390 = vunpack.c.l.b16 %v326
  %v2391 = vunpack.c.l.b16 %v327
  %v2392 = vunpack.c.l.b16 %v328
  %v2393 = vunpack.c.l.b16 %v329
  %v2394 = vunpack.c.l.b16 %v330
  %v2395 = vunpack.c.l.b16 %v331
  %v2396 = vunpack.c.l.b16 %v332
  %v2397 = vunpack.c.l.b16 %v333
  %v2398 = vunpack.c.l.b16 %v334
  %v2399 = vunpack.c.l.b16 %v335
  %v2400 = vunpack.c.l.b16 %v336
  %v2401 = vunpack.c.l.b16 %v337
  %v2402 = vunpack.c.l.b16 %v338
  %v2403 = vunpack.c.l.b16 %v339
  %v2404 = vunpack.c.l.b16 %v340
  %v2405 = vunpack.c.l.b16 %v341
  %v2406 = vunpack.c.l.b16 %v342
  %v2407 = vunpack.c.l.b16 %v343
  %v2408 = vunpack.c.l.b16 %v344
  %v2409 = vunpack.c.l.b16 %v345
  %v2410 = vunpack.c.l.b16 %v346
  %v2411 = vunpack.c.l.b16 %v347
  %v2412 = vunpack.c.l.b16 %v348
  %v2413 = vunpack.c.l.b16 %v349
  %v2414 = vunpack.c.l.b16 %v350
  %v2415 = vunpack.c.l.b16 %v351
  %v2416 = vunpack.c.l.b16 %v352
  %v2417 = vunpack.c.l.b16 %v353
  %v2418 = vunpack.c.l.b16 %v354
  %v2419 = vunpack.c.l.b16 %v355
  %v2420 = vunpack.c.l.b16 %v356
  %v2421 = vunpack.c.l.b16 %v357
  %v2422 = vunpack.c.l.b16 %v358
  %v2423 = vunpack.c.l.b16 %v359
  %v2424 = vunpack.c.l.b16 %v360
  %v2425 = vunpack.c.l.b16 %v361
  %v2426 = vunpack.c.l.b16 %v362
  %v2427 = vunpack.c.l.b16 %v363
  %v2428 = vunpack.c.l.b16 %v364
  %v2429 = vunpack.c.l.b16 %v365
  %v2430 = vunpack.c.l.b16 %v366
  %v2431 = vunpack.c.l.b16 %v367
  %v2432 = vunpack.c.l.b16 %v368
  %v2433 = vunpack.c.l.b16 %v369
  %v2434 = vunpack.c.l.b16 %v370
  %v2435 = vunpack.c.l.b16 %v371
  %v2436 = vunpack.c.l.b16 %v372
  %v2437 = vunpack.c.l.b16 %v373
  %v2438 = vunpack.c.l.b16 %v374
  %v2439 = vunpack.c.l.b16 %v375
  %v2440 = vunpack.c.l.b16 %v376
  %v2441 = vunpack.c.l.b16 %v377
  %v2442 = vunpack.c.l.b16 %v378
  %v2443 = vunpack.c.l.b16 %v379
  %v2444 = vunpack.c.l.b16 %v380
  %v2445 = vunpack.c.l.b16 %v381
  %v2446 = vunpack.c.l.b16 %v382
  %v2447 = vunpack.c.l.b16 %v383
  %v2448 = vunpack.c.l.b16 %v384
  %v2449 = vunpack.c.l.b16 %v385
  %v2450 = vunpack.c.l.b16 %v386
  %v2451 = vunpack.c.l.b16 %v387
  %v2452 = vunpack.c.l.b16 %v388
  %v2453 = vunpack.c.l.b16 %v389
  %v2454 = vunpack.c.l.b16 %v390
  %v2455 = vunpack.c.l.b16 %v391
  %v2456 = vunpack.c.l.b16 %v392
  %v2457 = vunpack.c.l.b16 %v393
  %v2458 = vunpack.c.l.b16 %v394
  %v2459 = vunpack.c.l.b16 %v395
  %v2460 = vunpack.c.l.b16 %v396
  %v2461 = vunpack.c.l.b16 %v397
  %v2462 = vunpack.c.l.b16 %v398
  %v2463 = vunpack.c.l.b16 %v399
  %v2464 = vunpack.c.l.b16 %v400
  %v2465 = vunpack.c.l.b16 %v401
  %v2466 = vunpack.c.l.b16 %v402
  %v2467 = vunpack.c.l.b16 %v403
  %v2468 = vunpack.c.l.b16 %v404
  %v2469 = vunpack.c.l.b16 %v405
  %v2470 = vunpack.c.l.b16 %v406
  %v2471 = vunpack.c.l.b16 %v407
  %v2472 = vunpack.c.l.b16 %v408
  %v2473 = vunpack.c.l.b16 %v409
  %v2474 = vunpack.c.l.b16 %v410
  %v2475 = vunpack.c.l.b16 %v411
  %v2476 = vunpack.c.l.b16 %v412
  %v2477 = vunpack.c.l.b16 %v413
  %v2478 = vunpack.c.l.b16 %v414
  %v2479 = vunpack.c.l.b16 %v415
  %v2480 = vunpack.c.l.b16 %v416
  %v2481 = vunpack.c.l.b16 %v417
  %v2482 = vunpack.c.l.b16 %v418
  %v2483 = vunpack.c.l.b16 %v419
  %v2484 = vunpack.c.l.b16 %v420
  %v2485 = vunpack.c.l.b16 %v421
  %v2486 = vunpack.c.l.b16 %v422
  %v2487 = vunpack.c.l.b16 %v423
  %v2488 = vunpack.c.l.b16 %v424
  %v2489 = vunpack.c.l.b16 %v425
  %v2490 = vunpack.c.l.b16 %v426
  %v2491 = vunpack.c.l.b16 %v427
  %v2492 = vunpack.c.l.b16 %v428
  %v2493 = vunpack.c.l.b16 %v429
  %v2494 = vunpack.c.l.b16 %v430
  %v2495 = vunpack.c.l.b16 %v431
  %v2496 = vunpack.c.l.b16 %v432
  %v2497 = vunpack.c.l.b16 %v433
  %v2498 = vunpack.c.l.b16 %v434
  %v2499 = vunpack.c.l.b16 %v435
  %v2500 = vunpack.c.l.b16 %v436
  %v2501 = vunpack.c.l.b16 %v437
  %v2502 = vunpack.c.l.b16 %v438
  %v2503 = vunpack.c.l.b16 %v439
  %v2504 = vunpack.c.l.b16 %v440
  %v2505 = vunpack.c.l.b16 %v441
  %v2506 = vunpack.c.l.b16 %v442
  %v2507 = vunpack.c.l.b16 %v443
  %v2508 = vunpack.c.l.b16 %v444
  %v2509 = vunpack.c.l.b16 %v445
  %v2510 = vunpack.c.l.b16 %v446
  %v2511 = vunpack.c.l.b16 %v447
  %v2512 = vunpack.c.l.b16 %v448
  %v2513 = vunpack.c.l.b16 %v449
  %v2514 = vunpack.c.l.b16 %v450
  %v2515 = vunpack.c.l.b16 %v451
  %v2516 = vunpack.c.l.b16 %v452
  %v2517 = vunpack.c.l.b16 %v453
  %v2518 = vunpack.c.l.b16 %v454
  %v2519 = vunpack.c.l.b16 %v455
  %v2520 = vunpack.c.l.b16 %v456
  %v2521 = vunpack.c.l.b16 %v457
  %v2522 = vunpack.c.l.b16 %v458
  %v2523 = vunpack.c.l.b16 %v459
  %v2524 = vunpack.c.l.b16 %v460
  %v2525 = vunpack.c.l.b16 %v461
  %v2526 = vunpack.c.l.b16 %v462
  %v2527 = vunpack.c.l.b16 %v463
  %v2528 = vunpack.c.l.b16 %v464
  %v2529 = vunpack.c.l.b16 %v465
  %v2530 = vunpack.c.l.b16 %v466
  %v2531 = vunpack.c.l.b16 %v467
  %v2532 = vunpack.c.l.b16 %v468
  %v2533 = vunpack.c.l.b16 %v469
  %v2534 = vunpack.c.l.b16 %v470
  %v2535 = vunpack.c.l.b16 %v471
  %v2536 = vunpack.c.l.b16 %v472
  %v2537 = vunpack.c.l.b16 %v473
  %v2538 = vunpack.c.l.b16 %v474
  %v2539 = vunpack.c.l.b16 %v475
  %v2540 = vunpack.c.l.b16 %v476
  %v2541 = vunpack.c.l.b16 %v477
  %v2542 = vunpack.c.l.b16 %v478
  %v2543 = vunpack.c.l.b16 %v479
  %v2544 = vunpack.c.l.b16 %v480
  %v2545 = vunpack.c.l.b16 %v481
  %v2546 = vunpack.c.l.b16 %v482
  %v2547 = vunpack.c.l.b16 %v483
  %v2548 = vunpack.c.l.b16 %v484
  %v2549 = vunpack.c.l.b16 %v485
  %v2550 = vunpack.c.l.b16 %v486
  %v2551 = vunpack.c.l.b16 %v487
  %v2552 = vunpack.c.l.b16 %v488
  %v2553 = vunpack.c.l.b16 %v489
  %v2554 = vunpack.c.l.b16 %v490
  %v2555 = vunpack.c.l.b16 %v491
  %v2556 = vunpack.c.l.b16 %v492
  %v2557 = vunpack.c.l.b16 %v493
  %v2558 = vunpack.c.l.b16 %v494
  %v2559 = vunpack.c.l.b16 %v495
  %v2560 = vunpack.c.l.b16 %v496
  %v2561 = vunpack.c.l.b16 %v497
  %v2562 = vunpack.c.l.b16 %v498
  %v2563 = vunpack.c.l.b16 %v499
  %v2564 = vunpack.c.l.b16 %v500
  %v2565 = vunpack.c.l.b16 %v501
  %v2566 = vunpack.c.l.b16 %v502
  %v2567 = vunpack.c.l.b16 %v503
  %v2568 = vunpack.c.l.b16 %v504
  %v2569 = vunpack.c.l.b16 %v505
  %v2570 = vunpack.c.l.b16 %v506
  %v2571 = vunpack.c.l.b16 %v507
  %v2572 = vunpack.c.l.b16 %v508
  %v2573 = vunpack.c.l.b16 %v509
  %v2574 = vunpack.c.l.b16 %v510
  %v2575 = vunpack.c.l.b16 %v511
  %v2576 = vunpack.c.l.b16 %v512
  %v2577 = vunpack.c.l.b16 %v513
  %v2578 = vunpack.c.l.b16 %v514
  %v2579 = vunpack.c.l.b16 %v515
  %v2580 = vunpack.c.l.b16 %v516
  %v2581 = vunpack.c.l.b16 %v517
  %v2582 = vunpack.c.l.b16 %v518
  %v2583 = vunpack.c.l.b16 %v519
  %v2584 = vunpack.c.l.b16 %v520
  %v2585 = vunpack.c.l.b16 %v521
  %v2586 = vunpack.c.l.b16 %v522
  %v2587 = vunpack.c.l.b16 %v523
  %v2588 = vunpack.c.l.b16 %v524
  %v2589 = vunpack.c.l.b16 %v525
  %v2590 = vunpack.c.l.b16 %v526
  %v2591 = vunpack.c.l.b16 %v527
  %v2592 = vunpack.c.l.b16 %v528
  %v2593 = vunpack.c.l.b16 %v529
  %v2594 = vunpack.c.l.b16 %v530
  %v2595 = vunpack.c.l.b16 %v531
  %v2596 = vunpack.c.l.b16 %v532
  %v2597 = vunpack.c.l.b16 %v533
  %v2598 = vunpack.c.l.b16 %v534
  %v2599 = vunpack.c.l.b16 %v535
  %v2600 = vunpack.c.l.b16 %v536
  %v2601 = vunpack.c.l.b16 %v537
  %v2602 = vunpack.c.l.b16 %v538
  %v2603 = vunpack.c.l.b16 %v539
  %v2604 = vunpack.c.l.b16 %v540
  %v2605 = vunpack.c.l.b16 %v541
  %v2606 = vunpack.c.l.b16 %v542
  %v2607 = vunpack.c.l.b16 %v543
  %v2608 = vunpack.c.l.b16 %v544
  %v2609 = vunpack.c.l.b16 %v545
  %v2610 = vunpack.c.l.b16 %v546
  %v2611 = vunpack.c.l.b16 %v547
  %v2612 = vunpack.c.l.b16 %v548
  %v2613 = vunpack.c.l.b16 %v549
  %v2614 = vunpack.c.l.b16 %v550
  %v2615 = vunpack.c.l.b16 %v551
  %v2616 = vunpack.c.l.b16 %v552
  %v2617 = vunpack.c.l.b16 %v553
  %v2618 = vunpack.c.l.b16 %v554
  %v2619 = vunpack.c.l.b16 %v555
  %v2620 = vunpack.c.l.b16 %v556
  %v2621 = vunpack.c.l.b16 %v557
  %v2622 = vunpack.c.l.b16 %v558
  %v2623 = vunpack.c.l.b16 %v559
  %v2624 = vunpack.c.l.b16 %v560
  %v2625 = vunpack.c.l.b16 %v561
  %v2626 = vunpack.c.l.b16 %v562
  %v2627 = vunpack.c.l.b16 %v563
  %v2628 = vunpack.c.l.b16 %v564
  %v2629 = vunpack.c.l.b16 %v565
  %v2630 = vunpack.c.l.b16 %v566
  %v2631 = vunpack.c.l.b16 %v567
  %v2632 = vunpack.c.l.b16 %v568
  %v2633 = vunpack.c.l.b16 %v569
  %v2634 = vunpack.c.l.b16 %v570
  %v2635 = vunpack.c.l.b16 %v571
  %v2636 = vunpack.c.l.b16 %v572
  %v2637 = vunpack.c.l.b16 %v573
  %v2638 = vunpack.c.l.b16 %v574
  %v2639 = vunpack.c.l.b16 %v575
  %v2640 = vunpack.c.l.b16 %v576
  %v2641 = vunpack.c.l.b16 %v577
  %v2642 = vunpack.c.l.b16 %v578
  %v2643 = vunpack.c.l.b16 %v579
  %v2644 = vunpack.c.l.b16 %v580
  %v2645 = vunpack.c.l.b16 %v581
  %v2646 = vunpack.c.l.b16 %v582
  %v2647 = vunpack.c.l.b16 %v583
  %v2648 = vunpack.c.l.b16 %v584
  %v2649 = vunpack.c.l.b16 %v585
  %v2650 = vunpack.c.l.b16 %v586
  %v2651 = vunpack.c.l.b16 %v587
  %v2652 = vunpack.c.l.b16 %v588
  %v2653 = vunpack.c.l.b16 %v589
  %v2654 = vunpack.c.l.b16 %v590
  %v2655 = vunpack.c.l.b16 %v591
  %v2656 = vunpack.c.l.b16 %v592
  %v2657 = vunpack.c.l.b16 %v593
  %v2658 = vunpack.c.l.b16 %v594
  %v2659 = vunpack.c.l.b16 %v595
  %v2660 = vunpack.c.l.b16 %v596
  %v2661 = vunpack.c.l.b16 %v597
  %v2662 = vunpack.c.l.b16 %v598
  %v2663 = vunpack.c.l.b16 %v599
  %v2664 = vunpack.c.l.b16 %v600
  %v2665 = vunpack.c.l.b16 %v601
  %v2666 = vunpack.c.l.b16 %v602
  %v2667 = vunpack.c.l.b16 %v603
  %v2668 = vunpack.c.l.b16 %v604
  %v2669 = vunpack.c.l.b16 %v605
  %v2670 = vunpack.c.l.b16 %v606
  %v2671 = vunpack.c.l.b16 %v607
  %v2672 = vunpack.c.l.b16 %v608
  %v2673 = vunpack.c.l.b16 %v609
  %v2674 = vunpack.c.l.b16 %v610
  %v2675 = vunpack.c.l.b16 %v611
  %v2676 = vunpack.c.l.b16 %v612
  %v2677 = vunpack.c.l.b16 %v613
  %v2678 = vunpack.c.l.b16 %v614
  %v2679 = vunpack.c.l.b16 %v615
  %v2680 = vunpack.c.l.b16 %v616
  %v2681 = vunpack.c.l.b16 %v617
  %v2682 = vunpack.c.l.b16 %v618
  %v2683 = vunpack.c.l.b16 %v619
  %v2684 = vunpack.c.l.b16 %v620
  %v2685 = vunpack.c.l.b16 %v621
  %v2686 = vunpack.c.l.b16 %v622
  %v2687 = vunpack.c.l.b16 %v623
  %v2688 = vunpack.c.l.b16 %v624
  %v2689 = vunpack.c.l.b16 %v625
  %v2690 = vunpack.c.l.b16 %v626
  %v2691 = vunpack.c.l.b16 %v627
  %v2692 = vunpack.c.l.b16 %v628
  %v2693 = vunpack.c.l.b16 %v629
  %v2694 = vunpack.c.l.b16 %v630
  %v2695 = vunpack.c.l.b16 %v631
  %v2696 = vunpack.c.l.b16 %v632
  %v2697 = vunpack.c.l.b16 %v633
  %v2698 = vunpack.c.l.b16 %v634
  %v2699 = vunpack.c.l.b16 %v635
  %v2700 = vunpack.c.l.b16 %v636
  %v2701 = vunpack.c.l.b16 %v637
  %v2702 = vunpack.c.l.b16 %v638
  %v2703 = vunpack.c.l.b16 %v639
  %v2704 = vunpack.c.l.b16 %v640
  %v2705 = vunpack.c.l.b16 %v641
  %v2706 = vunpack.c.l.b16 %v642
  %v2707 = vunpack.c.l.b16 %v643
  %v2708 = vunpack.c.l.b16 %v644
  %v2709 = vunpack.c.l.b16 %v645
  %v2710 = vunpack.c.l.b16 %v646
  %v2711 = vunpack.c.l.b16 %v647
  %v2712 = vunpack.c.l.b16 %v648
  %v2713 = vunpack.c.l.b16 %v649
  %v2714 = vunpack.c.l.b16 %v650
  %v2715 = vunpack.c.l.b16 %v651
  %v2716 = vunpack.c.l.b16 %v652
  %v2717 = vunpack.c.l.b16 %v653
  %v2718 = vunpack.c.l.b16 %v654
  %v2719 = vunpack.c.l.b16 %v655
  %v2720 = vunpack.c.l.b16 %v656
  %v2721 = vunpack.c.l.b16 %v657
  %v2722 = vunpack.c.l.b16 %v658
  %v2723 = vunpack.c.l.b16 %v659
  %v2724 = vunpack.c.l.b16 %v660
  %v2725 = vunpack.c.l.b16 %v661
  %v2726 = vunpack.c.l.b16 %v662
  %v2727 = vunpack.c.l.b16 %v663
  %v2728 = vunpack.c.l.b16 %v664
  %v2729 = vunpack.c.l.b16 %v665
  %v2730 = vunpack.c.l.b16 %v666
  %v2731 = vunpack.c.l.b16 %v667
  %v2732 = vunpack.c.l.b16 %v668
  %v2733 = vunpack.c.l.b16 %v669
  %v2734 = vunpack.c.l.b16 %v670
  %v2735 = vunpack.c.l.b16 %v671
  %v2736 = vunpack.c.l.b16 %v672
  %v2737 = vunpack.c.l.b16 %v673
  %v2738 = vunpack.c.l.b16 %v674
  %v2739 = vunpack.c.l.b16 %v675
  %v2740 = vunpack.c.l.b16 %v676
  %v2741 = vunpack.c.l.b16 %v677
  %v2742 = vunpack.c.l.b16 %v678
  %v2743 = vunpack.c.l.b16 %v679
  %v2744 = vunpack.c.l.b16 %v680
  %v2745 = vunpack.c.l.b16 %v681
  %v2746 = vunpack.c.l.b16 %v682
  %v2747 = vunpack.c.l.b16 %v683
  %v2748 = vunpack.c.l.b16 %v684
  %v2749 = vunpack.c.l.b16 %v685
  %v2750 = vunpack.c.l.b16 %v686
  %v2751 = vunpack.c.l.b16 %v687
  %v2752 = vunpack.c.l.b16 %v688
  %v2753 = vunpack.c.l.b16 %v689
  %v2754 = vunpack.c.l.b16 %v690
  %v2755 = vunpack.c.l.b16 %v691
  %v2756 = vunpack.c.l.b16 %v692
  %v2757 = vunpack.c.l.b16 %v693
  %v2758 = vunpack.c.l.b16 %v694
  %v2759 = vunpack.c.l.b16 %v695
  %v2760 = vunpack.c.l.b16 %v696
  %v2761 = vunpack.c.l.b16 %v697
  %v2762 = vunpack.c.l.b16 %v698
  %v2763 = vunpack.c.l.b16 %v699
  %v2764 = vunpack.c.l.b16 %v700
  %v2765 = vunpack.c.l.b16 %v701
  %v2766 = vunpack.c.l.b16 %v702
  %v2767 = vunpack.c.l.b16 %v703
  %v2768 = vunpack.c.l.b16 %v704
  %v2769 = vunpack.c.l.b16 %v705
  %v2770 = vunpack.c.l.b16 %v706
  %v2771 = vunpack.c.l.b16 %v707
  %v2772 = vunpack.c.l.b16 %v708
  %v2773 = vunpack.c.l.b16 %v709
  %v2774 = vunpack.c.l.b16 %v710
  %v2775 = vunpack.c.l.b16 %v711
  %v2776 = vunpack.c.l.b16 %v712
  %v2777 = vunpack.c.l.b16 %v713
  %v2778 = vunpack.c.l.b16 %v714
  %v2779 = vunpack.c.l.b16 %v715
  %v2780 = vunpack.c.l.b16 %v716
  %v2781 = vunpack.c.l.b16 %v717
  %v2782 = vunpack.c.l.b16 %v718
  %v2783 = vunpack.c.l.b16 %v719
  %v2784 = vunpack.c.l.b16 %v720
  %v2785 = vunpack.c.l.b16 %v721
  %v2786 = vunpack.c.l.b16 %v722
  %v2787 = vunpack.c.l.b16 %v723
  %v2788 = vunpack.c.l.b16 %v724
  %v2789 = vunpack.c.l.b16 %v725
  %v2790 = vunpack.c.l.b16 %v726
  %v2791 = vunpack.c.l.b16 %v727
  %v2792 = vunpack.c.l.b16 %v728
  %v2793 = vunpack.c.l.b16 %v729
  %v2794 = vunpack.c.l.b16 %v730
  %v2795 = vunpack.c.l.b16 %v731
  %v2796 = vunpack.c.l.b16 %v732
  %v2797 = vunpack.c.l.b16 %v733
  %v2798 = vunpack.c.l.b16 %v734
  %v2799 = vunpack.c.l.b16 %v735
  %v2800 = vunpack.c.l.b16 %v736
  %v2801 = vunpack.c.l.b16 %v737
  %v2802 = vunpack.c.l.b16 %v738
  %v2803 = vunpack.c.l.b16 %v739
  %v2804 = vunpack.c.l.b16 %v740
  %v2805 = vunpack.c.l.b16 %v741
  %v2806 = vunpack.c.l.b16 %v742
  %v2807 = vunpack.c.l.b16 %v743
  %v2808 = vunpack.c.l.b16 %v744
  %v2809 = vunpack.c.l.b16 %v745
  %v2810 = vunpack.c.l.b16 %v746
  %v2811 = vunpack.c.l.b16 %v747
  %v2812 = vunpack.c.l.b16 %v748
  %v2813 = vunpack.c.l.b16 %v749
  %v2814 = vunpack.c.l.b16 %v750
  %v2815 = vunpack.c.l.b16 %v751
  %v2816 = vunpack.c.l.b16 %v752
  %v2817 = vunpack.c.l.b16 %v753
  %v2818 = vunpack.c.l.b16 %v754
  %v2819 = vunpack.c.l.b16 %v755
  %v2820 = vunpack.c.l.b16 %v756
  %v2821 = vunpack.c.l.b16 %v757
  %v2822 = vunpack.c.l.b16 %v758
  %v2823 = vunpack.c.l.b16 %v759
  %v2824 = vunpack.c.l.b16 %v760
  %v2825 = vunpack.c.l.b16 %v761
  %v2826 = vunpack.c.l.b16 %v762
  %v2827 = vunpack.c.l.b16 %v763
  %v2828 = vunpack.c.l.b16 %v764
  %v2829 = vunpack.c.l.b16 %v765
  %v2830 = vunpack.c.l.b16 %v766
  %v2831 = vunpack.c.l.b16 %v767
  %v2832 = vunpack.c.l.b16 %v768
  %v2833 = vunpack.c.l.b16 %v769
  %v2834 = vunpack.c.l.b16 %v770
  %v2835 = vunpack.c.l.b16 %v771
  %v2836 = vunpack.c.l.b16 %v772
  %v2837 = vunpack.c.l.b16 %v773
  %v2838 = vunpack.c.l.b16 %v774
  %v2839 = vunpack.c.l.b16 %v775
  %v2840 = vunpack.c.l.b16 %v776
  %v2841 = vunpack.c.l.b16 %v777
  %v2842 = vunpack.c.l.b16 %v778
  %v2843 = vunpack.c.l.b16 %v779
  %v2844 = vunpack.c.l.b16 %v780
  %v2845 = vunpack.c.l.b16 %v781
  %v2846 = vunpack.c.l.b16 %v782
  %v2847 = vunpack.c.l.b16 %v783
  %v2848 = vunpack.c.l.b16 %v784
  %v2849 = vunpack.c.l.b16 %v785
  %v2850 = vunpack.c.l.b16 %v786
  %v2851 = vunpack.c.l.b16 %v787
  %v2852 = vunpack.c.l.b16 %v788
  %v2853 = vunpack.c.l.b16 %v789
  %v2854 = vunpack.c.l.b16 %v790
  %v2855 = vunpack.c.l.b16 %v791
  %v2856 = vunpack.c.l.b16 %v792
  %v2857 = vunpack.c.l.b16 %v793
  %v2858 = vunpack.c.l.b16 %v794
  %v2859 = vunpack.c.l.b16 %v795
  %v2860 = vunpack.c.l.b16 %v796
  %v2861 = vunpack.c.l.b16 %v797
  %v2862 = vunpack.c.l.b16 %v798
  %v2863 = vunpack.c.l.b16 %v799
  %v2864 = vunpack.c.l.b16 %v800
  %v2865 = vunpack.c.l.b16 %v801
  %v2866 = vunpack.c.l.b16 %v802
  %v2867 = vunpack.c.l.b16 %v803
  %v2868 = vunpack.c.l.b16 %v804
  %v2869 = vunpack.c.l.b16 %v805
  %v2870 = vunpack.c.l.b16 %v806
  %v2871 = vunpack.c.l.b16 %v807
  %v2872 = vunpack.c.l.b16 %v808
  %v2873 = vunpack.c.l.b16 %v809
  %v2874 = vunpack.c.l.b16 %v810
  %v2875 = vunpack.c.l.b16 %v811
  %v2876 = vunpack.c.l.b16 %v812
  %v2877 = vunpack.c.l.b16 %v813
  %v2878 = vunpack.c.l.b16 %v814
  %v2879 = vunpack.c.l.b16 %v815
  %v2880 = vunpack.c.l.b16 %v816
  %v2881 = vunpack.c.l.b16 %v817
  %v2882 = vunpack.c.l.b16 %v818
  %v2883 = vunpack.c.l.b16 %v819
  %v2884 = vunpack.c.l.b16 %v820
  %v2885 = vunpack.c.l.b16 %v821
  %v2886 = vunpack.c.l.b16 %v822
  %v2887 = vunpack.c.l.b16 %v823
  %v2888 = vunpack.c.l.b16 %v824
  %v2889 = vunpack.c.l.b16 %v825
  %v2890 = vunpack.c.l.b16 %v826
  %v2891 = vunpack.c.l.b16 %v827
  %v2892 = vunpack.c.l.b16 %v828
  %v2893 = vunpack.c.l.b16 %v829
  %v2894 = vunpack.c.l.b16 %v830
  %v2895 = vunpack.c.l.b16 %v831
  %v2896 = vunpack.c.l.b16 %v832
  %v2897 = vunpack.c.l.b16 %v833
  %v2898 = vunpack.c.l.b16 %v834
  %v2899 = vunpack.c.l.b16 %v835
  %v2900 = vunpack.c.l.b16 %v836
  %v2901 = vunpack.c.l.b16 %v837
  %v2902 = vunpack.c.l.b16 %v838
  %v2903 = vunpack.c.l.b16 %v839
  %v2904 = vunpack.c.l.b16 %v840
  %v2905 = vunpack.c.l.b16 %v841
  %v2906 = vunpack.c.l.b16 %v842
  %v2907 = vunpack.c.l.b16 %v843
  %v2908 = vunpack.c.l.b16 %v844
  %v2909 = vunpack.c.l.b16 %v845
  %v2910 = vunpack.c.l.b16 %v846
  %v2911 = vunpack.c.l.b16 %v847
  %v2912 = vunpack.c.l.b16 %v848
  %v2913 = vunpack.c.l.b16 %v849
  %v2914 = vunpack.c.l.b16 %v850
  %v2915 = vunpack.c.l.b16 %v851
  %v2916 = vunpack.c.l.b16 %v852
  %v2917 = vunpack.c.l.b16 %v853
  %v2918 = vunpack.c.l.b16 %v854
  %v2919 = vunpack.c.l.b16 %v855
  %v2920 = vunpack.c.l.b16 %v856
  %v2921 = vunpack.c.l.b16 %v857
  %v2922 = vunpack.c.l.b16 %v858
  %v2923 = vunpack.c.l.b16 %v859
  %v2924 = vunpack.c.l.b16 %v860
  %v2925 = vunpack.c.l.b16 %v861
  %v2926 = vunpack.c.l.b16 %v862
  %v2927 = vunpack.c.l.b16 %v863
  %v2928 = vunpack.c.l.b16 %v864
  %v2929 = vunpack.c.l.b16 %v865
  %v2930 = vunpack.c.l.b16 %v866
  %v2931 = vunpack.c.l.b16 %v867
  %v2932 = vunpack.c.l.b16 %v868
  %v2933 = vunpack.c.l.b16 %v869
  %v2934 = vunpack.c.l.b16 %v870
  %v2935 = vunpack.c.l.b16 %v871
  %v2936 = vunpack.c.l.b16 %v872
  %v2937 = vunpack.c.l.b16 %v873
  %v2938 = vunpack.c.l.b16 %v874
  %v2939 = vunpack.c.l.b16 %v875
  %v2940 = vunpack.c.l.b16 %v876
  %v2941 = vunpack.c.l.b16 %v877
  %v2942 = vunpack.c.l.b16 %v878
  %v2943 = vunpack.c.l.b16 %v879
  %v2944 = vunpack.c.l.b16 %v880
  %v2945 = vunpack.c.l.b16 %v881
  %v2946 = vunpack.c.l.b16 %v882
  %v2947 = vunpack.c.l.b16 %v883
  %v2948 = vunpack.c.l.b16 %v884
  %v2949 = vunpack.c.l.b16 %v885
  %v2950 = vunpack.c.l.b16 %v886
  %v2951 = vunpack.c.l.b16 %v887
  %v2952 = vunpack.c.l.b16 %v888
  %v2953 = vunpack.c.l.b16 %v889
  %v2954 = vunpack.c.l.b16 %v890
  %v2955 = vunpack.c.l.b16 %v891
  %v2956 = vunpack.c.l.b16 %v892
  %v2957 = vunpack.c.l.b16 %v893
  %v2958 = vunpack.c.l.b16 %v894
  %v2959 = vunpack.c.l.b16 %v895
  %v2960 = vunpack.c.l.b16 %v896
  %v2961 = vunpack.c.l.b16 %v897
  %v2962 = vpack.c.b16 %v2179, %v2178
  %v2963 = vpack.c.b16 %v2181, %v2180
  %v2964 = vpack.c.b16 %v2183, %v2182
  %v2965 = vpack.c.b16 %v2185, %v2184
  %v2966 = vpack.c.b16 %v2187, %v2186
  %v2967 = vpack.c.b16 %v2189, %v2188
  %v2968 = vpack.c.b16 %v2191, %v2190
  %v2969 = vpack.c.b16 %v2193, %v2192
  %v2970 = vpack.c.b16 %v2195, %v2194
  %v2971 = vpack.c.b16 %v2197, %v2196
  %v2972 = vpack.c.b16 %v2199, %v2198
  %v2973 = vpack.c.b16 %v2201, %v2200
  %v2974 = vpack.c.b16 %v2203, %v2202
  %v2975 = vpack.c.b16 %v2205, %v2204
  %v2976 = vpack.c.b16 %v2207, %v2206
  %v2977 = vpack.c.b16 %v2209, %v2208
  %v2978 = vpack.c.b16 %v2211, %v2210
  %v2979 = vpack.c.b16 %v2213, %v2212
  %v2980 = vpack.c.b16 %v2215, %v2214
  %v2981 = vpack.c.b16 %v2217, %v2216
  %v2982 = vpack.c.b16 %v2219, %v2218
  %v2983 = vpack.c.b16 %v2221, %v2220
  %v2984 = vpack.c.b16 %v2223, %v2222
  %v2985 = vpack.c.b16 %v2225, %v2224
  %v2986 = vpack.c.b16 %v2227, %v2226
  %v2987 = vpack.c.b16 %v2229, %v2228
  %v2988 = vpack.c.b16 %v2231, %v2230
  %v2989 = vpack.c.b16 %v2233, %v2232
  %v2990 = vpack.c.b16 %v2235, %v2234
  %v2991 = vpack.c.b16 %v2237, %v2236
  %v2992 = vpack.c.b16 %v2239, %v2238
  %v2993 = vpack.c.b16 %v2241, %v2240
  %v2994 = vpack.c.b16 %v2243, %v2242
  %v2995 = vpack.c.b16 %v2245, %v2244
  %v2996 = vpack.c.b16 %v2247, %v2246
  %v2997 = vpack.c.b16 %v2249, %v2248
  %v2998 = vpack.c.b16 %v2251, %v2250
  %v2999 = vpack.c.b16 %v2253, %v2252
  %v3000 = vpack.c.b16 %v2255, %v2254
  %v3001 = vpack.c.b16 %v2257, %v2256
  %v3002 = vpack.c.b16 %v2259, %v2258
  %v3003 = vpack.c.b16 %v2261, %v2260
  %v3004 = vpack.c.b16 %v2263, %v2262
  %v3005 = vpack.c.b16 %v2265, %v2264
  %v3006 = vpack.c.b16 %v2267, %v2266
  %v3007 = vpack.c.b16 %v2269, %v2268
  %v3008 = vpack.c.b16 %v2271, %v2270
  %v3009 = vpack.c.b16 %v2273, %v2272
  %v3010 = vpack.c.b16 %v2275, %v2274
  %v3011 = vpack.c.b16 %v2277, %v2276
  %v3012 = vpack.c.b16 %v2279, %v2278
  %v3013 = vpack.c.b16 %v2281, %v2280
  %v3014 = vpack.c.b16 %v2283, %v2282
  %v3015 = vpack.c.b16 %v2285, %v2284
  %v3016 = vpack.c.b16 %v2287, %v2286
  %v3017 = vpack.c.b16 %v2289, %v2288
  %v3018 = vpack.c.b16 %v2291, %v2290
  %v3019 = vpack.c.b16 %v2293, %v2292
  %v3020 = vpack.c.b16 %v2295, %v2294
  %v3021 = vpack.c.b16 %v2297, %v2296
  %v3022 = vpack.c.b16 %v2299, %v2298
  %v3023 = vpack.c.b16 %v2301, %v2300
  %v3024 = vpack.c.b16 %v2303, %v2302
  %v3025 = vpack.c.b16 %v2305, %v2304
  %v3026 = vpack.c.b16 %v2307, %v2306
  %v3027 = vpack.c.b16 %v2309, %v2308
  %v3028 = vpack.c.b16 %v2311, %v2310
  %v3029 = vpack.c.b16 %v2313, %v2312
  %v3030 = vpack.c.b16 %v2315, %v2314
  %v3031 = vpack.c.b16 %v2317, %v2316
  %v3032 = vpack.c.b16 %v2319, %v2318
  %v3033 = vpack.c.b16 %v2321, %v2320
  %v3034 = vpack.c.b16 %v2323, %v2322
  %v3035 = vpack.c.b16 %v2325, %v2324
  %v3036 = vpack.c.b16 %v2327, %v2326
  %v3037 = vpack.c.b16 %v2329, %v2328
  %v3038 = vpack.c.b16 %v2331, %v2330
  %v3039 = vpack.c.b16 %v2333, %v2332
  %v3040 = vpack.c.b16 %v2335, %v2334
  %v3041 = vpack.c.b16 %v2337, %v2336
  %v3042 = vpack.c.b16 %v2339, %v2338
  %v3043 = vpack.c.b16 %v2341, %v2340
  %v3044 = vpack.c.b16 %v2343, %v2342
  %v3045 = vpack.c.b16 %v2345, %v2344
  %v3046 = vpack.c.b16 %v2347, %v2346
  %v3047 = vpack.c.b16 %v2349, %v2348
  %v3048 = vpack.c.b16 %v2351, %v2350
  %v3049 = vpack.c.b16 %v2353, %v2352
  %v3050 = vpack.c.b16 %v2355, %v2354
  %v3051 = vpack.c.b16 %v2357, %v2356
  %v3052 = vpack.c.b16 %v2359, %v2358
  %v3053 = vpack.c.b16 %v2361, %v2360
  %v3054 = vpack.c.b16 %v2363, %v2362
  %v3055 = vpack.c.b16 %v2365, %v2364
  %v3056 = vpack.c.b16 %v2367, %v2366
  %v3057 = vpack.c.b16 %v2369, %v2368
  %v3058 = vpack.c.b16 %v2371, %v2370
  %v3059 = vpack.c.b16 %v2373, %v2372
  %v3060 = vpack.c.b16 %v2375, %v2374
  %v3061 = vpack.c.b16 %v2377, %v2376
  %v3062 = vpack.c.b16 %v2379, %v2378
  %v3063 = vpack.c.b16 %v2381, %v2380
  %v3064 = vpack.c.b16 %v2383, %v2382
  %v3065 = vpack.c.b16 %v2385, %v2384
  %v3066 = vpack.c.b16 %v2387, %v2386
  %v3067 = vpack.c.b16 %v2389, %v2388
  %v3068 = vpack.c.b16 %v2391, %v2390
  %v3069 = vpack.c.b16 %v2393, %v2392
  %v3070 = vpack.c.b16 %v2395, %v2394
  %v3071 = vpack.c.b16 %v2397, %v2396
  %v3072 = vpack.c.b16 %v2399, %v2398
  %v3073 = vpack.c.b16 %v2401, %v2400
  %v3074 = vpack.c.b16 %v2403, %v2402
  %v3075 = vpack.c.b16 %v2405, %v2404
  %v3076 = vpack.c.b16 %v2407, %v2406
  %v3077 = vpack.c.b16 %v2409, %v2408
  %v3078 = vpack.c.b16 %v2411, %v2410
  %v3079 = vpack.c.b16 %v2413, %v2412
  %v3080 = vpack.c.b16 %v2415, %v2414
  %v3081 = vpack.c.b16 %v2417, %v2416
  %v3082 = vpack.c.b16 %v2419, %v2418
  %v3083 = vpack.c.b16 %v2421, %v2420
  %v3084 = vpack.c.b16 %v2423, %v2422
  %v3085 = vpack.c.b16 %v2425, %v2424
  %v3086 = vpack.c.b16 %v2427, %v2426
  %v3087 = vpack.c.b16 %v2429, %v2428
  %v3088 = vpack.c.b16 %v2431, %v2430
  %v3089 = vpack.c.b16 %v2433, %v2432
  %v3090 = vpack.c.b16 %v2435, %v2434
  %v3091 = vpack.c.b16 %v2437, %v2436
  %v3092 = vpack.c.b16 %v2439, %v2438
  %v3093 = vpack.c.b16 %v2441, %v2440
  %v3094 = vpack.c.b16 %v2443, %v2442
  %v3095 = vpack.c.b16 %v2445, %v2444
  %v3096 = vpack.c.b16 %v2447, %v2446
  %v3097 = vpack.c.b16 %v2449, %v2448
  %v3098 = vpack.c.b16 %v2451, %v2450
  %v3099 = vpack.c.b16 %v2453, %v2452
  %v3100 = vpack.c.b16 %v2455, %v2454
  %v3101 = vpack.c.b16 %v2457, %v2456
  %v3102 = vpack.c.b16 %v2459, %v2458
  %v3103 = vpack.c.b16 %v2461, %v2460
  %v3104 = vpack.c.b16 %v2463, %v2462
  %v3105 = vpack.c.b16 %v2465, %v2464
  %v3106 = vpack.c.b16 %v2467, %v2466
  %v3107 = vpack.c.b16 %v2469, %v2468
  %v3108 = vpack.c.b16 %v2471, %v2470
  %v3109 = vpack.c.b16 %v2473, %v2472
  %v3110 = vpack.c.b16 %v2475, %v2474
  %v3111 = vpack.c.b16 %v2477, %v2476
  %v3112 = vpack.c.b16 %v2479, %v2478
  %v3113 = vpack.c.b16 %v2481, %v2480
  %v3114 = vpack.c.b16 %v2483, %v2482
  %v3115 = vpack.c.b16 %v2485, %v2484
  %v3116 = vpack.c.b16 %v2487, %v2486
  %v3117 = vpack.c.b16 %v2489, %v2488
  %v3118 = vpack.c.b16 %v2491, %v2490
  %v3119 = vpack.c.b16 %v2493, %v2492
  %v3120 = vpack.c.b16 %v2495, %v2494
  %v3121 = vpack.c.b16 %v2497, %v2496
  %v3122 = vpack.c.b16 %v2499, %v2498
  %v3123 = vpack.c.b16 %v2501, %v2500
  %v3124 = vpack.c.b16 %v2503, %v2502
  %v3125 = vpack.c.b16 %v2505, %v2504
  %v3126 = vpack.c.b16 %v2507, %v2506
  %v3127 = vpack.c.b16 %v2509, %v2508
  %v3128 = vpack.c.b16 %v2511, %v2510
  %v3129 = vpack.c.b16 %v2513, %v2512
  %v3130 = vpack.c.b16 %v2515, %v2514
  %v3131 = vpack.c.b16 %v2517, %v2516
  %v3132 = vpack.c.b16 %v2519, %v2518
  %v3133 = vpack.c.b16 %v2521, %v2520
  %v3134 = vpack.c.b16 %v2523, %v2522
  %v3135 = vpack.c.b16 %v2525, %v2524
  %v3136 = vpack.c.b16 %v2527, %v2526
  %v3137 = vpack.c.b16 %v2529, %v2528
  %v3138 = vpack.c.b16 %v2531, %v2530
  %v3139 = vpack.c.b16 %v2533, %v2532
  %v3140 = vpack.c.b16 %v2535, %v2534
  %v3141 = vpack.c.b16 %v2537, %v2536
  %v3142 = vpack.c.b16 %v2539, %v2538
  %v3143 = vpack.c.b16 %v2541, %v2540
  %v3144 = vpack.c.b16 %v2543, %v2542
  %v3145 = vpack.c.b16 %v2545, %v2544
  %v3146 = vpack.c.b16 %v2547, %v2546
  %v3147 = vpack.c.b16 %v2549, %v2548
  %v3148 = vpack.c.b16 %v2551, %v2550
  %v3149 = vpack.c.b16 %v2553, %v2552
  %v3150 = vpack.c.b16 %v2555, %v2554
  %v3151 = vpack.c.b16 %v2557, %v2556
  %v3152 = vpack.c.b16 %v2559, %v2558
  %v3153 = vpack.c.b16 %v2561, %v2560
  %v3154 = vpack.c.b16 %v2563, %v2562
  %v3155 = vpack.c.b16 %v2565, %v2564
  %v3156 = vpack.c.b16 %v2567, %v2566
  %v3157 = vpack.c.b16 %v2569, %v2568
  %v3158 = vpack.c.b16 %v2571, %v2570
  %v3159 = vpack.c.b16 %v2573, %v2572
  %v3160 = vpack.c.b16 %v2575, %v2574
  %v3161 = vpack.c.b16 %v2577, %v2576
  %v3162 = vpack.c.b16 %v2579, %v2578
  %v3163 = vpack.c.b16 %v2581, %v2580
  %v3164 = vpack.c.b16 %v2583, %v2582
  %v3165 = vpack.c.b16 %v2585, %v2584
  %v3166 = vpack.c.b16 %v2587, %v2586
  %v3167 = vpack.c.b16 %v2589, %v2588
  %v3168 = vpack.c.b16 %v2591, %v2590
  %v3169 = vpack.c.b16 %v2593, %v2592
  %v3170 = vpack.c.b16 %v2595, %v2594
  %v3171 = vpack.c.b16 %v2597, %v2596
  %v3172 = vpack.c.b16 %v2599, %v2598
  %v3173 = vpack.c.b16 %v2601, %v2600
  %v3174 = vpack.c.b16 %v2603, %v2602
  %v3175 = vpack.c.b16 %v2605, %v2604
  %v3176 = vpack.c.b16 %v2607, %v2606
  %v3177 = vpack.c.b16 %v2609, %v2608
  %v3178 = vpack.c.b16 %v2611, %v2610
  %v3179 = vpack.c.b16 %v2613, %v2612
  %v3180 = vpack.c.b16 %v2615, %v2614
  %v3181 = vpack.c.b16 %v2617, %v2616
  %v3182 = vpack.c.b16 %v2619, %v2618
  %v3183 = vpack.c.b16 %v2621, %v2620
  %v3184 = vpack.c.b16 %v2623, %v2622
  %v3185 = vpack.c.b16 %v2625, %v2624
  %v3186 = vpack.c.b16 %v2627, %v2626
  %v3187 = vpack.c.b16 %v2629, %v2628
  %v3188 = vpack.c.b16 %v2631, %v2630
  %v3189 = vpack.c.b16 %v2633, %v2632
  %v3190 = vpack.c.b16 %v2635, %v2634
  %v3191 = vpack.c.b16 %v2637, %v2636
  %v3192 = vpack.c.b16 %v2639, %v2638
  %v3193 = vpack.c.b16 %v2641, %v2640
  %v3194 = vpack.c.b16 %v2643, %v2642
  %v3195 = vpack.c.b16 %v2645, %v2644
  %v3196 = vpack.c.b16 %v2647, %v2646
  %v3197 = vpack.c.b16 %v2649, %v2648
  %v3198 = vpack.c.b16 %v2651, %v2650
  %v3199 = vpack.c.b16 %v2653, %v2652
  %v3200 = vpack.c.b16 %v2655, %v2654
  %v3201 = vpack.c.b16 %v2657, %v2656
  %v3202 = vpack.c.b16 %v2659, %v2658
  %v3203 = vpack.c.b16 %v2661, %v2660
  %v3204 = vpack.c.b16 %v2663, %v2662
  %v3205 = vpack.c.b16 %v2665, %v2664
  %v3206 = vpack.c.b16 %v2667, %v2666
  %v3207 = vpack.c.b16 %v2669, %v2668
  %v3208 = vpack.c.b16 %v2671, %v2670
  %v3209 = vpack.c.b16 %v2673, %v2672
  %v3210 = vpack.c.b16 %v2675, %v2674
  %v3211 = vpack.c.b16 %v2677, %v2676
  %v3212 = vpack.c.b16 %v2679, %v2678
  %v3213 = vpack.c.b16 %v2681, %v2680
  %v3214 = vpack.c.b16 %v2683, %v2682
  %v3215 = vpack.c.b16 %v2685, %v2684
  %v3216 = vpack.c.b16 %v2687, %v2686
  %v3217 = vpack.c.b16 %v2689, %v2688
  %v3218 = vpack.c.b16 %v2691, %v2690
  %v3219 = vpack.c.b16 %v2693, %v2692
  %v3220 = vpack.c.b16 %v2695, %v2694
  %v3221 = vpack.c.b16 %v2697, %v2696
  %v3222 = vpack.c.b16 %v2699, %v2698
  %v3223 = vpack.c.b16 %v2701, %v2700
  %v3224 = vpack.c.b16 %v2703, %v2702
  %v3225 = vpack.c.b16 %v2705, %v2704
  %v3226 = vpack.c.b16 %v2707, %v2706
  %v3227 = vpack.c.b16 %v2709, %v2708
  %v3228 = vpack.c.b16 %v2711, %v2710
  %v3229 = vpack.c.b16 %v2713, %v2712
  %v3230 = vpack.c.b16 %v2715, %v2714
  %v3231 = vpack.c.b16 %v2717, %v2716
  %v3232 = vpack.c.b16 %v2719, %v2718
  %v3233 = vpack.c.b16 %v2721, %v2720
  %v3234 = vpack.c.b16 %v2723, %v2722
  %v3235 = vpack.c.b16 %v2725, %v2724
  %v3236 = vpack.c.b16 %v2727, %v2726
  %v3237 = vpack.c.b16 %v2729, %v2728
  %v3238 = vpack.c.b16 %v2731, %v2730
  %v3239 = vpack.c.b16 %v2733, %v2732
  %v3240 = vpack.c.b16 %v2735, %v2734
  %v3241 = vpack.c.b16 %v2737, %v2736
  %v3242 = vpack.c.b16 %v2739, %v2738
  %v3243 = vpack.c.b16 %v2741, %v2740
  %v3244 = vpack.c.b16 %v2743, %v2742
  %v3245 = vpack.c.b16 %v2745, %v2744
  %v3246 = vpack.c.b16 %v2747, %v2746
  %v3247 = vpack.c.b16 %v2749, %v2748
  %v3248 = vpack.c.b16 %v2751, %v2750
  %v3249 = vpack.c.b16 %v2753, %v2752
  %v3250 = vpack.c.b16 %v2755, %v2754
  %v3251 = vpack.c.b16 %v2757, %v2756
  %v3252 = vpack.c.b16 %v2759, %v2758
  %v3253 = vpack.c.b16 %v2761, %v2760
  %v3254 = vpack.c.b16 %v2763, %v2762
  %v3255 = vpack.c.b16 %v2765, %v2764
  %v3256 = vpack.c.b16 %v2767, %v2766
  %v3257 = vpack.c.b16 %v2769, %v2768
  %v3258 = vpack.c.b16 %v2771, %v2770
  %v3259 = vpack.c.b16 %v2773, %v2772
  %v3260 = vpack.c.b16 %v2775, %v2774
  %v3261 = vpack.c.b16 %v2777, %v2776
  %v3262 = vpack.c.b16 %v2779, %v2778
  %v3263 = vpack.c.b16 %v2781, %v2780
  %v3264 = vpack.c.b16 %v2783, %v2782
  %v3265 = vpack.c.b16 %v2785, %v2784
  %v3266 = vpack.c.b16 %v2787, %v2786
  %v3267 = vpack.c.b16 %v2789, %v2788
  %v3268 = vpack.c.b16 %v2791, %v2790
  %v3269 = vpack.c.b16 %v2793, %v2792
  %v3270 = vpack.c.b16 %v2795, %v2794
  %v3271 = vpack.c.b16 %v2797, %v2796
  %v3272 = vpack.c.b16 %v2799, %v2798
  %v3273 = vpack.c.b16 %v2801, %v2800
  %v3274 = vpack.c.b16 %v2803, %v2802
  %v3275 = vpack.c.b16 %v2805, %v2804
  %v3276 = vpack.c.b16 %v2807, %v2806
  %v3277 = vpack.c.b16 %v2809, %v2808
  %v3278 = vpack.c.b16 %v2811, %v2810
  %v3279 = vpack.c.b16 %v2813, %v2812
  %v3280 = vpack.c.b16 %v2815, %v2814
  %v3281 = vpack.c.b16 %v2817, %v2816
  %v3282 = vpack.c.b16 %v2819, %v2818
  %v3283 = vpack.c.b16 %v2821, %v2820
  %v3284 = vpack.c.b16 %v2823, %v2822
  %v3285 = vpack.c.b16 %v2825, %v2824
  %v3286 = vpack.c.b16 %v2827, %v2826
  %v3287 = vpack.c.b16 %v2829, %v2828
  %v3288 = vpack.c.b16 %v2831, %v2830
  %v3289 = vpack.c.b16 %v2833, %v2832
  %v3290 = vpack.c.b16 %v2835, %v2834
  %v3291 = vpack.c.b16 %v2837, %v2836
  %v3292 = vpack.c.b16 %v2839, %v2838
  %v3293 = vpack.c.b16 %v2841, %v2840
  %v3294 = vpack.c.b16 %v2843, %v2842
  %v3295 = vpack.c.b16 %v2845, %v2844
  %v3296 = vpack.c.b16 %v2847, %v2846
  %v3297 = vpack.c.b16 %v2849, %v2848
  %v3298 = vpack.c.b16 %v2851, %v2850
  %v3299 = vpack.c.b16 %v2853, %v2852
  %v3300 = vpack.c.b16 %v2855, %v2854
  %v3301 = vpack.c.b16 %v2857, %v2856
  %v3302 = vpack.c.b16 %v2859, %v2858
  %v3303 = vpack.c.b16 %v2861, %v2860
  %v3304 = vpack.c.b16 %v2863, %v2862
  %v3305 = vpack.c.b16 %v2865, %v2864
  %v3306 = vpack.c.b16 %v2867, %v2866
  %v3307 = vpack.c.b16 %v2869, %v2868
  %v3308 = vpack.c.b16 %v2871, %v2870
  %v3309 = vpack.c.b16 %v2873, %v2872
  %v3310 = vpack.c.b16 %v2875, %v2874
  %v3311 = vpack.c.b16 %v2877, %v2876
  %v3312 = vpack.c.b16 %v2879, %v2878
  %v3313 = vpack.c.b16 %v2881, %v2880
  %v3314 = vpack.c.b16 %v2883, %v2882
  %v3315 = vpack.c.b16 %v2885, %v2884
  %v3316 = vpack.c.b16 %v2887, %v2886
  %v3317 = vpack.c.b16 %v2889, %v2888
  %v3318 = vpack.c.b16 %v2891, %v2890
  %v3319 = vpack.c.b16 %v2893, %v2892
  %v3320 = vpack.c.b16 %v2895, %v2894
  %v3321 = vpack.c.b16 %v2897, %v2896
  %v3322 = vpack.c.b16 %v2899, %v2898
  %v3323 = vpack.c.b16 %v2901, %v2900
  %v3324 = vpack.c.b16 %v2903, %v2902
  %v3325 = vpack.c.b16 %v2905, %v2904
  %v3326 = vpack.c.b16 %v2907, %v2906
  %v3327 = vpack.c.b16 %v2909, %v2908
  %v3328 = vpack.c.b16 %v2911, %v2910
  %v3329 = vpack.c.b16 %v2913, %v2912
  %v3330 = vpack.c.b16 %v2915, %v2914
  %v3331 = vpack.c.b16 %v2917, %v2916
  %v3332 = vpack.c.b16 %v2919, %v2918
  %v3333 = vpack.c.b16 %v2921, %v2920
  %v3334 = vpack.c.b16 %v2923, %v2922
  %v3335 = vpack.c.b16 %v2925, %v2924
  %v3336 = vpack.c.b16 %v2927, %v2926
  %v3337 = vpack.c.b16 %v2929, %v2928
  %v3338 = vpack.c.b16 %v2931, %v2930
  %v3339 = vpack.c.b16 %v2933, %v2932
  %v3340 = vpack.c.b16 %v2935, %v2934
  %v3341 = vpack.c.b16 %v2937, %v2936
  %v3342 = vpack.c.b16 %v2939, %v2938
  %v3343 = vpack.c.b16 %v2941, %v2940
  %v3344 = vpack.c.b16 %v2943, %v2942
  %v3345 = vpack.c.b16 %v2945, %v2944
  %v3346 = vpack.c.b16 %v2947, %v2946
  %v3347 = vpack.c.b16 %v2949, %v2948
  %v3348 = vpack.c.b16 %v2951, %v2950
  %v3349 = vpack.c.b16 %v2953, %v2952
  %v3350 = vpack.c.b16 %v2955, %v2954
  %v3351 = vpack.c.b16 %v2957, %v2956
  %v3352 = vpack.c.b16 %v2959, %v2958
  %v3353 = vpack.c.b16 %v2961, %v2960
  %3746 = vmatpush.bf16.msra.mxu0 %v2969
  %3747 = vmatpush.bf16.msra.mxu0 %v2968
  %3748 = vmatpush.bf16.msra.mxu0 %v2967
  %3749 = vmatpush.bf16.msra.mxu0 %v2966
  %3750 = vmatpush.bf16.msra.mxu0 %v2965
  %3751 = vmatpush.bf16.msra.mxu0 %v2964
  %3752 = vmatpush.bf16.msra.mxu0 %v2963
  %3753 = vmatpush.bf16.msra.mxu0 %v2962
  %3754 = vmatmul.bf16.gmra.mxu0 %v1198
  %v3755 = vpop.f32.mrf.mxu0
  %v3756 = vadd.f32 %v900, %v3755
  %v3757 = vpop.f32.mrf.mxu0
  %v3758 = vadd.f32 %v900, %v3757
  %3759 = vmatmul.bf16.gmra.mxu0 %v1247
  %v3760 = vpop.f32.mrf.mxu0
  %v3761 = vadd.f32 %v900, %v3760
  %v3762 = vpop.f32.mrf.mxu0
  %v3763 = vadd.f32 %v900, %v3762
  %3764 = vdwg.mxu0
  %3765 = vmatpush.bf16.msra.mxu0 %v2977
  %3766 = vmatpush.bf16.msra.mxu0 %v2976
  %3767 = vmatpush.bf16.msra.mxu0 %v2975
  %3768 = vmatpush.bf16.msra.mxu0 %v2974
  %3769 = vmatpush.bf16.msra.mxu0 %v2973
  %3770 = vmatpush.bf16.msra.mxu0 %v2972
  %3771 = vmatpush.bf16.msra.mxu0 %v2971
  %3772 = vmatpush.bf16.msra.mxu0 %v2970
  %3773 = vmatmul.bf16.gmra.mxu0 %v1199
  %v3774 = vpop.f32.mrf.mxu0
  %v3775 = vadd.f32 %v3756, %v3774
  %v3776 = vpop.f32.mrf.mxu0
  %v3777 = vadd.f32 %v3758, %v3776
  %3778 = vmatmul.bf16.gmra.mxu0 %v1248
  %v3779 = vpop.f32.mrf.mxu0
  %v3780 = vadd.f32 %v3761, %v3779
  %v3781 = vpop.f32.mrf.mxu0
  %v3782 = vadd.f32 %v3763, %v3781
  %3783 = vdwg.mxu0
  %3784 = vmatpush.bf16.msra.mxu0 %v2985
  %3785 = vmatpush.bf16.msra.mxu0 %v2984
  %3786 = vmatpush.bf16.msra.mxu0 %v2983
  %3787 = vmatpush.bf16.msra.mxu0 %v2982
  %3788 = vmatpush.bf16.msra.mxu0 %v2981
  %3789 = vmatpush.bf16.msra.mxu0 %v2980
  %3790 = vmatpush.bf16.msra.mxu0 %v2979
  %3791 = vmatpush.bf16.msra.mxu0 %v2978
  %3792 = vmatmul.bf16.gmra.mxu0 %v1200
  %v3793 = vpop.f32.mrf.mxu0
  %v3794 = vadd.f32 %v3775, %v3793
  %v3795 = vpop.f32.mrf.mxu0
  %v3796 = vadd.f32 %v3777, %v3795
  %3797 = vmatmul.bf16.gmra.mxu0 %v1249
  %v3798 = vpop.f32.mrf.mxu0
  %v3799 = vadd.f32 %v3780, %v3798
  %v3800 = vpop.f32.mrf.mxu0
  %v3801 = vadd.f32 %v3782, %v3800
  %3802 = vdwg.mxu0
  %3803 = vmatpush.bf16.msra.mxu0 %v2993
  %3804 = vmatpush.bf16.msra.mxu0 %v2992
  %3805 = vmatpush.bf16.msra.mxu0 %v2991
  %3806 = vmatpush.bf16.msra.mxu0 %v2990
  %3807 = vmatpush.bf16.msra.mxu0 %v2989
  %3808 = vmatpush.bf16.msra.mxu0 %v2988
  %3809 = vmatpush.bf16.msra.mxu0 %v2987
  %3810 = vmatpush.bf16.msra.mxu0 %v2986
  %3811 = vmatmul.bf16.gmra.mxu0 %v1201
  %v3812 = vpop.f32.mrf.mxu0
  %v3813 = vadd.f32 %v3794, %v3812
  %v3814 = vpop.f32.mrf.mxu0
  %v3815 = vadd.f32 %v3796, %v3814
  %3816 = vmatmul.bf16.gmra.mxu0 %v1250
  %v3817 = vpop.f32.mrf.mxu0
  %v3818 = vadd.f32 %v3799, %v3817
  %v3819 = vpop.f32.mrf.mxu0
  %v3820 = vadd.f32 %v3801, %v3819
  %3821 = vdwg.mxu0
  %3822 = vmatpush.bf16.msra.mxu0 %v3001
  %3823 = vmatpush.bf16.msra.mxu0 %v3000
  %3824 = vmatpush.bf16.msra.mxu0 %v2999
  %3825 = vmatpush.bf16.msra.mxu0 %v2998
  %3826 = vmatpush.bf16.msra.mxu0 %v2997
  %3827 = vmatpush.bf16.msra.mxu0 %v2996
  %3828 = vmatpush.bf16.msra.mxu0 %v2995
  %3829 = vmatpush.bf16.msra.mxu0 %v2994
  %3830 = vmatmul.bf16.gmra.mxu0 %v1202
  %v3831 = vpop.f32.mrf.mxu0
  %v3832 = vadd.f32 %v3813, %v3831
  %v3833 = vpop.f32.mrf.mxu0
  %v3834 = vadd.f32 %v3815, %v3833
  %3835 = vmatmul.bf16.gmra.mxu0 %v1251
  %v3836 = vpop.f32.mrf.mxu0
  %v3837 = vadd.f32 %v3818, %v3836
  %v3838 = vpop.f32.mrf.mxu0
  %v3839 = vadd.f32 %v3820, %v3838
  %3840 = vdwg.mxu0
  %3841 = vmatpush.bf16.msra.mxu0 %v3009
  %3842 = vmatpush.bf16.msra.mxu0 %v3008
  %3843 = vmatpush.bf16.msra.mxu0 %v3007
  %3844 = vmatpush.bf16.msra.mxu0 %v3006
  %3845 = vmatpush.bf16.msra.mxu0 %v3005
  %3846 = vmatpush.bf16.msra.mxu0 %v3004
  %3847 = vmatpush.bf16.msra.mxu0 %v3003
  %3848 = vmatpush.bf16.msra.mxu0 %v3002
  %3849 = vmatmul.bf16.gmra.mxu0 %v1203
  %v3850 = vpop.f32.mrf.mxu0
  %v3851 = vadd.f32 %v3832, %v3850
  %v3852 = vpop.f32.mrf.mxu0
  %v3853 = vadd.f32 %v3834, %v3852
  %3854 = vmatmul.bf16.gmra.mxu0 %v1252
  %v3855 = vpop.f32.mrf.mxu0
  %v3856 = vadd.f32 %v3837, %v3855
  %v3857 = vpop.f32.mrf.mxu0
  %v3858 = vadd.f32 %v3839, %v3857
  %3859 = vdwg.mxu0
  %3860 = vmatpush.bf16.msra.mxu0 %v3017
  %3861 = vmatpush.bf16.msra.mxu0 %v3016
  %3862 = vmatpush.bf16.msra.mxu0 %v3015
  %3863 = vmatpush.bf16.msra.mxu0 %v3014
  %3864 = vmatpush.bf16.msra.mxu0 %v3013
  %3865 = vmatpush.bf16.msra.mxu0 %v3012
  %3866 = vmatpush.bf16.msra.mxu0 %v3011
  %3867 = vmatpush.bf16.msra.mxu0 %v3010
  %3868 = vmatmul.bf16.gmra.mxu0 %v1204
  %v3869 = vpop.f32.mrf.mxu0
  %v3870 = vadd.f32 %v3851, %v3869
  %v3871 = vpop.f32.mrf.mxu0
  %v3872 = vadd.f32 %v3853, %v3871
  %3873 = vmatmul.bf16.gmra.mxu0 %v1253
  %v3874 = vpop.f32.mrf.mxu0
  %v3875 = vadd.f32 %v3856, %v3874
  %v3876 = vpop.f32.mrf.mxu0
  %v3877 = vadd.f32 %v3858, %v3876
  %3878 = vdwg.mxu0
  %3879 = vmatpush.bf16.msra.mxu0 %v3025
  %3880 = vmatpush.bf16.msra.mxu0 %v3024
  %3881 = vmatpush.bf16.msra.mxu0 %v3023
  %3882 = vmatpush.bf16.msra.mxu0 %v3022
  %3883 = vmatpush.bf16.msra.mxu0 %v3021
  %3884 = vmatpush.bf16.msra.mxu0 %v3020
  %3885 = vmatpush.bf16.msra.mxu0 %v3019
  %3886 = vmatpush.bf16.msra.mxu0 %v3018
  %3887 = vmatmul.bf16.gmra.mxu0 %v1205
  %v3888 = vpop.f32.mrf.mxu0
  %v3889 = vadd.f32 %v3870, %v3888
  %v3890 = vpop.f32.mrf.mxu0
  %v3891 = vadd.f32 %v3872, %v3890
  %3892 = vmatmul.bf16.gmra.mxu0 %v1254
  %v3893 = vpop.f32.mrf.mxu0
  %v3894 = vadd.f32 %v3875, %v3893
  %v3895 = vpop.f32.mrf.mxu0
  %v3896 = vadd.f32 %v3877, %v3895
  %3897 = vdwg.mxu0
  %3898 = vmatpush.bf16.msra.mxu0 %v3033
  %3899 = vmatpush.bf16.msra.mxu0 %v3032
  %3900 = vmatpush.bf16.msra.mxu0 %v3031
  %3901 = vmatpush.bf16.msra.mxu0 %v3030
  %3902 = vmatpush.bf16.msra.mxu0 %v3029
  %3903 = vmatpush.bf16.msra.mxu0 %v3028
  %3904 = vmatpush.bf16.msra.mxu0 %v3027
  %3905 = vmatpush.bf16.msra.mxu0 %v3026
  %3906 = vmatmul.bf16.gmra.mxu0 %v1206
  %v3907 = vpop.f32.mrf.mxu0
  %v3908 = vadd.f32 %v3889, %v3907
  %v3909 = vpop.f32.mrf.mxu0
  %v3910 = vadd.f32 %v3891, %v3909
  %3911 = vmatmul.bf16.gmra.mxu0 %v1255
  %v3912 = vpop.f32.mrf.mxu0
  %v3913 = vadd.f32 %v3894, %v3912
  %v3914 = vpop.f32.mrf.mxu0
  %v3915 = vadd.f32 %v3896, %v3914
  %3916 = vdwg.mxu0
  %3917 = vmatpush.bf16.msra.mxu0 %v3041
  %3918 = vmatpush.bf16.msra.mxu0 %v3040
  %3919 = vmatpush.bf16.msra.mxu0 %v3039
  %3920 = vmatpush.bf16.msra.mxu0 %v3038
  %3921 = vmatpush.bf16.msra.mxu0 %v3037
  %3922 = vmatpush.bf16.msra.mxu0 %v3036
  %3923 = vmatpush.bf16.msra.mxu0 %v3035
  %3924 = vmatpush.bf16.msra.mxu0 %v3034
  %3925 = vmatmul.bf16.gmra.mxu0 %v1207
  %v3926 = vpop.f32.mrf.mxu0
  %v3927 = vadd.f32 %v3908, %v3926
  %v3928 = vpop.f32.mrf.mxu0
  %v3929 = vadd.f32 %v3910, %v3928
  %3930 = vmatmul.bf16.gmra.mxu0 %v1256
  %v3931 = vpop.f32.mrf.mxu0
  %v3932 = vadd.f32 %v3913, %v3931
  %v3933 = vpop.f32.mrf.mxu0
  %v3934 = vadd.f32 %v3915, %v3933
  %3935 = vdwg.mxu0
  %3936 = vmatpush.bf16.msra.mxu0 %v3049
  %3937 = vmatpush.bf16.msra.mxu0 %v3048
  %3938 = vmatpush.bf16.msra.mxu0 %v3047
  %3939 = vmatpush.bf16.msra.mxu0 %v3046
  %3940 = vmatpush.bf16.msra.mxu0 %v3045
  %3941 = vmatpush.bf16.msra.mxu0 %v3044
  %3942 = vmatpush.bf16.msra.mxu0 %v3043
  %3943 = vmatpush.bf16.msra.mxu0 %v3042
  %3944 = vmatmul.bf16.gmra.mxu0 %v1208
  %v3945 = vpop.f32.mrf.mxu0
  %v3946 = vadd.f32 %v3927, %v3945
  %v3947 = vpop.f32.mrf.mxu0
  %v3948 = vadd.f32 %v3929, %v3947
  %3949 = vmatmul.bf16.gmra.mxu0 %v1257
  %v3950 = vpop.f32.mrf.mxu0
  %v3951 = vadd.f32 %v3932, %v3950
  %v3952 = vpop.f32.mrf.mxu0
  %v3953 = vadd.f32 %v3934, %v3952
  %3954 = vdwg.mxu0
  %3955 = vmatpush.bf16.msra.mxu0 %v3057
  %3956 = vmatpush.bf16.msra.mxu0 %v3056
  %3957 = vmatpush.bf16.msra.mxu0 %v3055
  %3958 = vmatpush.bf16.msra.mxu0 %v3054
  %3959 = vmatpush.bf16.msra.mxu0 %v3053
  %3960 = vmatpush.bf16.msra.mxu0 %v3052
  %3961 = vmatpush.bf16.msra.mxu0 %v3051
  %3962 = vmatpush.bf16.msra.mxu0 %v3050
  %3963 = vmatmul.bf16.gmra.mxu0 %v1209
  %v3964 = vpop.f32.mrf.mxu0
  %v3965 = vadd.f32 %v3946, %v3964
  %v3966 = vpop.f32.mrf.mxu0
  %v3967 = vadd.f32 %v3948, %v3966
  %3968 = vmatmul.bf16.gmra.mxu0 %v1258
  %v3969 = vpop.f32.mrf.mxu0
  %v3970 = vadd.f32 %v3951, %v3969
  %v3971 = vpop.f32.mrf.mxu0
  %v3972 = vadd.f32 %v3953, %v3971
  %3973 = vdwg.mxu0
  %3974 = vmatpush.bf16.msra.mxu0 %v3065
  %3975 = vmatpush.bf16.msra.mxu0 %v3064
  %3976 = vmatpush.bf16.msra.mxu0 %v3063
  %3977 = vmatpush.bf16.msra.mxu0 %v3062
  %3978 = vmatpush.bf16.msra.mxu0 %v3061
  %3979 = vmatpush.bf16.msra.mxu0 %v3060
  %3980 = vmatpush.bf16.msra.mxu0 %v3059
  %3981 = vmatpush.bf16.msra.mxu0 %v3058
  %3982 = vmatmul.bf16.gmra.mxu0 %v1210
  %v3983 = vpop.f32.mrf.mxu0
  %v3984 = vadd.f32 %v3965, %v3983
  %v3985 = vpop.f32.mrf.mxu0
  %v3986 = vadd.f32 %v3967, %v3985
  %3987 = vmatmul.bf16.gmra.mxu0 %v1259
  %v3988 = vpop.f32.mrf.mxu0
  %v3989 = vadd.f32 %v3970, %v3988
  %v3990 = vpop.f32.mrf.mxu0
  %v3991 = vadd.f32 %v3972, %v3990
  %3992 = vdwg.mxu0
  %3993 = vmatpush.bf16.msra.mxu0 %v3073
  %3994 = vmatpush.bf16.msra.mxu0 %v3072
  %3995 = vmatpush.bf16.msra.mxu0 %v3071
  %3996 = vmatpush.bf16.msra.mxu0 %v3070
  %3997 = vmatpush.bf16.msra.mxu0 %v3069
  %3998 = vmatpush.bf16.msra.mxu0 %v3068
  %3999 = vmatpush.bf16.msra.mxu0 %v3067
  %4000 = vmatpush.bf16.msra.mxu0 %v3066
  %4001 = vmatmul.bf16.gmra.mxu0 %v1211
  %v4002 = vpop.f32.mrf.mxu0
  %v4003 = vadd.f32 %v3984, %v4002
  %v4004 = vpop.f32.mrf.mxu0
  %v4005 = vadd.f32 %v3986, %v4004
  %4006 = vmatmul.bf16.gmra.mxu0 %v1260
  %v4007 = vpop.f32.mrf.mxu0
  %v4008 = vadd.f32 %v3989, %v4007
  %v4009 = vpop.f32.mrf.mxu0
  %v4010 = vadd.f32 %v3991, %v4009
  %4011 = vdwg.mxu0
  %4012 = vmatpush.bf16.msra.mxu0 %v3081
  %4013 = vmatpush.bf16.msra.mxu0 %v3080
  %4014 = vmatpush.bf16.msra.mxu0 %v3079
  %4015 = vmatpush.bf16.msra.mxu0 %v3078
  %4016 = vmatpush.bf16.msra.mxu0 %v3077
  %4017 = vmatpush.bf16.msra.mxu0 %v3076
  %4018 = vmatpush.bf16.msra.mxu0 %v3075
  %4019 = vmatpush.bf16.msra.mxu0 %v3074
  %4020 = vmatmul.bf16.gmra.mxu0 %v1212
  %v4021 = vpop.f32.mrf.mxu0
  %v4022 = vadd.f32 %v4003, %v4021
  %v4023 = vpop.f32.mrf.mxu0
  %v4024 = vadd.f32 %v4005, %v4023
  %4025 = vmatmul.bf16.gmra.mxu0 %v1261
  %v4026 = vpop.f32.mrf.mxu0
  %v4027 = vadd.f32 %v4008, %v4026
  %v4028 = vpop.f32.mrf.mxu0
  %v4029 = vadd.f32 %v4010, %v4028
  %4030 = vdwg.mxu0
  %4031 = vmatpush.bf16.msra.mxu0 %v3089
  %4032 = vmatpush.bf16.msra.mxu0 %v3088
  %4033 = vmatpush.bf16.msra.mxu0 %v3087
  %4034 = vmatpush.bf16.msra.mxu0 %v3086
  %4035 = vmatpush.bf16.msra.mxu0 %v3085
  %4036 = vmatpush.bf16.msra.mxu0 %v3084
  %4037 = vmatpush.bf16.msra.mxu0 %v3083
  %4038 = vmatpush.bf16.msra.mxu0 %v3082
  %4039 = vmatmul.bf16.gmra.mxu0 %v1213
  %v4040 = vpop.f32.mrf.mxu0
  %v4041 = vadd.f32 %v4022, %v4040
  %v4042 = vpop.f32.mrf.mxu0
  %v4043 = vadd.f32 %v4024, %v4042
  %4044 = vmatmul.bf16.gmra.mxu0 %v1262
  %v4045 = vpop.f32.mrf.mxu0
  %v4046 = vadd.f32 %v4027, %v4045
  %v4047 = vpop.f32.mrf.mxu0
  %v4048 = vadd.f32 %v4029, %v4047
  %4049 = vdwg.mxu0
  %4050 = vmatpush.bf16.msra.mxu0 %v3097
  %4051 = vmatpush.bf16.msra.mxu0 %v3096
  %4052 = vmatpush.bf16.msra.mxu0 %v3095
  %4053 = vmatpush.bf16.msra.mxu0 %v3094
  %4054 = vmatpush.bf16.msra.mxu0 %v3093
  %4055 = vmatpush.bf16.msra.mxu0 %v3092
  %4056 = vmatpush.bf16.msra.mxu0 %v3091
  %4057 = vmatpush.bf16.msra.mxu0 %v3090
  %4058 = vmatmul.bf16.gmra.mxu0 %v1214
  %v4059 = vpop.f32.mrf.mxu0
  %v4060 = vadd.f32 %v4041, %v4059
  %v4061 = vpop.f32.mrf.mxu0
  %v4062 = vadd.f32 %v4043, %v4061
  %4063 = vmatmul.bf16.gmra.mxu0 %v1263
  %v4064 = vpop.f32.mrf.mxu0
  %v4065 = vadd.f32 %v4046, %v4064
  %v4066 = vpop.f32.mrf.mxu0
  %v4067 = vadd.f32 %v4048, %v4066
  %4068 = vdwg.mxu0
  %4069 = vmatpush.bf16.msra.mxu0 %v3105
  %4070 = vmatpush.bf16.msra.mxu0 %v3104
  %4071 = vmatpush.bf16.msra.mxu0 %v3103
  %4072 = vmatpush.bf16.msra.mxu0 %v3102
  %4073 = vmatpush.bf16.msra.mxu0 %v3101
  %4074 = vmatpush.bf16.msra.mxu0 %v3100
  %4075 = vmatpush.bf16.msra.mxu0 %v3099
  %4076 = vmatpush.bf16.msra.mxu0 %v3098
  %4077 = vmatmul.bf16.gmra.mxu0 %v1215
  %v4078 = vpop.f32.mrf.mxu0
  %v4079 = vadd.f32 %v4060, %v4078
  %v4080 = vpop.f32.mrf.mxu0
  %v4081 = vadd.f32 %v4062, %v4080
  %4082 = vmatmul.bf16.gmra.mxu0 %v1264
  %v4083 = vpop.f32.mrf.mxu0
  %v4084 = vadd.f32 %v4065, %v4083
  %v4085 = vpop.f32.mrf.mxu0
  %v4086 = vadd.f32 %v4067, %v4085
  %4087 = vdwg.mxu0
  %4088 = vmatpush.bf16.msra.mxu0 %v3113
  %4089 = vmatpush.bf16.msra.mxu0 %v3112
  %4090 = vmatpush.bf16.msra.mxu0 %v3111
  %4091 = vmatpush.bf16.msra.mxu0 %v3110
  %4092 = vmatpush.bf16.msra.mxu0 %v3109
  %4093 = vmatpush.bf16.msra.mxu0 %v3108
  %4094 = vmatpush.bf16.msra.mxu0 %v3107
  %4095 = vmatpush.bf16.msra.mxu0 %v3106
  %4096 = vmatmul.bf16.gmra.mxu0 %v1216
  %v4097 = vpop.f32.mrf.mxu0
  %v4098 = vadd.f32 %v4079, %v4097
  %v4099 = vpop.f32.mrf.mxu0
  %v4100 = vadd.f32 %v4081, %v4099
  %4101 = vmatmul.bf16.gmra.mxu0 %v1265
  %v4102 = vpop.f32.mrf.mxu0
  %v4103 = vadd.f32 %v4084, %v4102
  %v4104 = vpop.f32.mrf.mxu0
  %v4105 = vadd.f32 %v4086, %v4104
  %4106 = vdwg.mxu0
  %4107 = vmatpush.bf16.msra.mxu0 %v3121
  %4108 = vmatpush.bf16.msra.mxu0 %v3120
  %4109 = vmatpush.bf16.msra.mxu0 %v3119
  %4110 = vmatpush.bf16.msra.mxu0 %v3118
  %4111 = vmatpush.bf16.msra.mxu0 %v3117
  %4112 = vmatpush.bf16.msra.mxu0 %v3116
  %4113 = vmatpush.bf16.msra.mxu0 %v3115
  %4114 = vmatpush.bf16.msra.mxu0 %v3114
  %4115 = vmatmul.bf16.gmra.mxu0 %v1217
  %v4116 = vpop.f32.mrf.mxu0
  %v4117 = vadd.f32 %v4098, %v4116
  %v4118 = vpop.f32.mrf.mxu0
  %v4119 = vadd.f32 %v4100, %v4118
  %4120 = vmatmul.bf16.gmra.mxu0 %v1266
  %v4121 = vpop.f32.mrf.mxu0
  %v4122 = vadd.f32 %v4103, %v4121
  %v4123 = vpop.f32.mrf.mxu0
  %v4124 = vadd.f32 %v4105, %v4123
  %4125 = vdwg.mxu0
  %4126 = vmatpush.bf16.msra.mxu0 %v3129
  %4127 = vmatpush.bf16.msra.mxu0 %v3128
  %4128 = vmatpush.bf16.msra.mxu0 %v3127
  %4129 = vmatpush.bf16.msra.mxu0 %v3126
  %4130 = vmatpush.bf16.msra.mxu0 %v3125
  %4131 = vmatpush.bf16.msra.mxu0 %v3124
  %4132 = vmatpush.bf16.msra.mxu0 %v3123
  %4133 = vmatpush.bf16.msra.mxu0 %v3122
  %4134 = vmatmul.bf16.gmra.mxu0 %v1218
  %v4135 = vpop.f32.mrf.mxu0
  %v4136 = vadd.f32 %v4117, %v4135
  %v4137 = vpop.f32.mrf.mxu0
  %v4138 = vadd.f32 %v4119, %v4137
  %4139 = vmatmul.bf16.gmra.mxu0 %v1267
  %v4140 = vpop.f32.mrf.mxu0
  %v4141 = vadd.f32 %v4122, %v4140
  %v4142 = vpop.f32.mrf.mxu0
  %v4143 = vadd.f32 %v4124, %v4142
  %4144 = vdwg.mxu0
  %4145 = vmatpush.bf16.msra.mxu0 %v3137
  %4146 = vmatpush.bf16.msra.mxu0 %v3136
  %4147 = vmatpush.bf16.msra.mxu0 %v3135
  %4148 = vmatpush.bf16.msra.mxu0 %v3134
  %4149 = vmatpush.bf16.msra.mxu0 %v3133
  %4150 = vmatpush.bf16.msra.mxu0 %v3132
  %4151 = vmatpush.bf16.msra.mxu0 %v3131
  %4152 = vmatpush.bf16.msra.mxu0 %v3130
  %4153 = vmatmul.bf16.gmra.mxu0 %v1219
  %v4154 = vpop.f32.mrf.mxu0
  %v4155 = vadd.f32 %v4136, %v4154
  %v4156 = vpop.f32.mrf.mxu0
  %v4157 = vadd.f32 %v4138, %v4156
  %4158 = vmatmul.bf16.gmra.mxu0 %v1268
  %v4159 = vpop.f32.mrf.mxu0
  %v4160 = vadd.f32 %v4141, %v4159
  %v4161 = vpop.f32.mrf.mxu0
  %v4162 = vadd.f32 %v4143, %v4161
  %4163 = vdwg.mxu0
  %4164 = vmatpush.bf16.msra.mxu0 %v3145
  %4165 = vmatpush.bf16.msra.mxu0 %v3144
  %4166 = vmatpush.bf16.msra.mxu0 %v3143
  %4167 = vmatpush.bf16.msra.mxu0 %v3142
  %4168 = vmatpush.bf16.msra.mxu0 %v3141
  %4169 = vmatpush.bf16.msra.mxu0 %v3140
  %4170 = vmatpush.bf16.msra.mxu0 %v3139
  %4171 = vmatpush.bf16.msra.mxu0 %v3138
  %4172 = vmatmul.bf16.gmra.mxu0 %v1220
  %v4173 = vpop.f32.mrf.mxu0
  %v4174 = vadd.f32 %v4155, %v4173
  %v4175 = vpop.f32.mrf.mxu0
  %v4176 = vadd.f32 %v4157, %v4175
  %4177 = vmatmul.bf16.gmra.mxu0 %v1269
  %v4178 = vpop.f32.mrf.mxu0
  %v4179 = vadd.f32 %v4160, %v4178
  %v4180 = vpop.f32.mrf.mxu0
  %v4181 = vadd.f32 %v4162, %v4180
  %4182 = vdwg.mxu0
  %4183 = vmatpush.bf16.msra.mxu0 %v3153
  %4184 = vmatpush.bf16.msra.mxu0 %v3152
  %4185 = vmatpush.bf16.msra.mxu0 %v3151
  %4186 = vmatpush.bf16.msra.mxu0 %v3150
  %4187 = vmatpush.bf16.msra.mxu0 %v3149
  %4188 = vmatpush.bf16.msra.mxu0 %v3148
  %4189 = vmatpush.bf16.msra.mxu0 %v3147
  %4190 = vmatpush.bf16.msra.mxu0 %v3146
  %4191 = vmatmul.bf16.gmra.mxu0 %v1221
  %v4192 = vpop.f32.mrf.mxu0
  %v4193 = vadd.f32 %v4174, %v4192
  %v4194 = vpop.f32.mrf.mxu0
  %v4195 = vadd.f32 %v4176, %v4194
  %4196 = vmatmul.bf16.gmra.mxu0 %v1270
  %v4197 = vpop.f32.mrf.mxu0
  %v4198 = vadd.f32 %v4179, %v4197
  %v4199 = vpop.f32.mrf.mxu0
  %v4200 = vadd.f32 %v4181, %v4199
  %4201 = vdwg.mxu0
  %4202 = vmatpush.bf16.msra.mxu0 %v3161
  %4203 = vmatpush.bf16.msra.mxu0 %v3160
  %4204 = vmatpush.bf16.msra.mxu0 %v3159
  %4205 = vmatpush.bf16.msra.mxu0 %v3158
  %4206 = vmatpush.bf16.msra.mxu0 %v3157
  %4207 = vmatpush.bf16.msra.mxu0 %v3156
  %4208 = vmatpush.bf16.msra.mxu0 %v3155
  %4209 = vmatpush.bf16.msra.mxu0 %v3154
  %4210 = vmatmul.bf16.gmra.mxu0 %v1222
  %v4211 = vpop.f32.mrf.mxu0
  %v4212 = vadd.f32 %v4193, %v4211
  %v4213 = vpop.f32.mrf.mxu0
  %v4214 = vadd.f32 %v4195, %v4213
  %4215 = vmatmul.bf16.gmra.mxu0 %v1271
  %v4216 = vpop.f32.mrf.mxu0
  %v4217 = vadd.f32 %v4198, %v4216
  %v4218 = vpop.f32.mrf.mxu0
  %v4219 = vadd.f32 %v4200, %v4218
  %4220 = vdwg.mxu0
  %4221 = vmatpush.bf16.msra.mxu0 %v3169
  %4222 = vmatpush.bf16.msra.mxu0 %v3168
  %4223 = vmatpush.bf16.msra.mxu0 %v3167
  %4224 = vmatpush.bf16.msra.mxu0 %v3166
  %4225 = vmatpush.bf16.msra.mxu0 %v3165
  %4226 = vmatpush.bf16.msra.mxu0 %v3164
  %4227 = vmatpush.bf16.msra.mxu0 %v3163
  %4228 = vmatpush.bf16.msra.mxu0 %v3162
  %4229 = vmatmul.bf16.gmra.mxu0 %v1223
  %v4230 = vpop.f32.mrf.mxu0
  %v4231 = vadd.f32 %v4212, %v4230
  %v4232 = vpop.f32.mrf.mxu0
  %v4233 = vadd.f32 %v4214, %v4232
  %4234 = vmatmul.bf16.gmra.mxu0 %v1272
  %v4235 = vpop.f32.mrf.mxu0
  %v4236 = vadd.f32 %v4217, %v4235
  %v4237 = vpop.f32.mrf.mxu0
  %v4238 = vadd.f32 %v4219, %v4237
  %4239 = vdwg.mxu0
  %4240 = vmatpush.bf16.msra.mxu0 %v3177
  %4241 = vmatpush.bf16.msra.mxu0 %v3176
  %4242 = vmatpush.bf16.msra.mxu0 %v3175
  %4243 = vmatpush.bf16.msra.mxu0 %v3174
  %4244 = vmatpush.bf16.msra.mxu0 %v3173
  %4245 = vmatpush.bf16.msra.mxu0 %v3172
  %4246 = vmatpush.bf16.msra.mxu0 %v3171
  %4247 = vmatpush.bf16.msra.mxu0 %v3170
  %4248 = vmatmul.bf16.gmra.mxu0 %v1224
  %v4249 = vpop.f32.mrf.mxu0
  %v4250 = vadd.f32 %v4231, %v4249
  %v4251 = vpop.f32.mrf.mxu0
  %v4252 = vadd.f32 %v4233, %v4251
  %4253 = vmatmul.bf16.gmra.mxu0 %v1273
  %v4254 = vpop.f32.mrf.mxu0
  %v4255 = vadd.f32 %v4236, %v4254
  %v4256 = vpop.f32.mrf.mxu0
  %v4257 = vadd.f32 %v4238, %v4256
  %4258 = vdwg.mxu0
  %4259 = vmatpush.bf16.msra.mxu0 %v3185
  %4260 = vmatpush.bf16.msra.mxu0 %v3184
  %4261 = vmatpush.bf16.msra.mxu0 %v3183
  %4262 = vmatpush.bf16.msra.mxu0 %v3182
  %4263 = vmatpush.bf16.msra.mxu0 %v3181
  %4264 = vmatpush.bf16.msra.mxu0 %v3180
  %4265 = vmatpush.bf16.msra.mxu0 %v3179
  %4266 = vmatpush.bf16.msra.mxu0 %v3178
  %4267 = vmatmul.bf16.gmra.mxu0 %v1225
  %v4268 = vpop.f32.mrf.mxu0
  %v4269 = vadd.f32 %v4250, %v4268
  %v4270 = vpop.f32.mrf.mxu0
  %v4271 = vadd.f32 %v4252, %v4270
  %4272 = vmatmul.bf16.gmra.mxu0 %v1274
  %v4273 = vpop.f32.mrf.mxu0
  %v4274 = vadd.f32 %v4255, %v4273
  %v4275 = vpop.f32.mrf.mxu0
  %v4276 = vadd.f32 %v4257, %v4275
  %4277 = vdwg.mxu0
  %4278 = vmatpush.bf16.msra.mxu0 %v3193
  %4279 = vmatpush.bf16.msra.mxu0 %v3192
  %4280 = vmatpush.bf16.msra.mxu0 %v3191
  %4281 = vmatpush.bf16.msra.mxu0 %v3190
  %4282 = vmatpush.bf16.msra.mxu0 %v3189
  %4283 = vmatpush.bf16.msra.mxu0 %v3188
  %4284 = vmatpush.bf16.msra.mxu0 %v3187
  %4285 = vmatpush.bf16.msra.mxu0 %v3186
  %4286 = vmatmul.bf16.gmra.mxu0 %v1226
  %v4287 = vpop.f32.mrf.mxu0
  %v4288 = vadd.f32 %v4269, %v4287
  %v4289 = vpop.f32.mrf.mxu0
  %v4290 = vadd.f32 %v4271, %v4289
  %4291 = vmatmul.bf16.gmra.mxu0 %v1275
  %v4292 = vpop.f32.mrf.mxu0
  %v4293 = vadd.f32 %v4274, %v4292
  %v4294 = vpop.f32.mrf.mxu0
  %v4295 = vadd.f32 %v4276, %v4294
  %4296 = vdwg.mxu0
  %4297 = vmatpush.bf16.msra.mxu0 %v3201
  %4298 = vmatpush.bf16.msra.mxu0 %v3200
  %4299 = vmatpush.bf16.msra.mxu0 %v3199
  %4300 = vmatpush.bf16.msra.mxu0 %v3198
  %4301 = vmatpush.bf16.msra.mxu0 %v3197
  %4302 = vmatpush.bf16.msra.mxu0 %v3196
  %4303 = vmatpush.bf16.msra.mxu0 %v3195
  %4304 = vmatpush.bf16.msra.mxu0 %v3194
  %4305 = vmatmul.bf16.gmra.mxu0 %v1227
  %v4306 = vpop.f32.mrf.mxu0
  %v4307 = vadd.f32 %v4288, %v4306
  %v4308 = vpop.f32.mrf.mxu0
  %v4309 = vadd.f32 %v4290, %v4308
  %4310 = vmatmul.bf16.gmra.mxu0 %v1276
  %v4311 = vpop.f32.mrf.mxu0
  %v4312 = vadd.f32 %v4293, %v4311
  %v4313 = vpop.f32.mrf.mxu0
  %v4314 = vadd.f32 %v4295, %v4313
  %4315 = vdwg.mxu0
  %4316 = vmatpush.bf16.msra.mxu0 %v3209
  %4317 = vmatpush.bf16.msra.mxu0 %v3208
  %4318 = vmatpush.bf16.msra.mxu0 %v3207
  %4319 = vmatpush.bf16.msra.mxu0 %v3206
  %4320 = vmatpush.bf16.msra.mxu0 %v3205
  %4321 = vmatpush.bf16.msra.mxu0 %v3204
  %4322 = vmatpush.bf16.msra.mxu0 %v3203
  %4323 = vmatpush.bf16.msra.mxu0 %v3202
  %4324 = vmatmul.bf16.gmra.mxu0 %v1228
  %v4325 = vpop.f32.mrf.mxu0
  %v4326 = vadd.f32 %v4307, %v4325
  %v4327 = vpop.f32.mrf.mxu0
  %v4328 = vadd.f32 %v4309, %v4327
  %4329 = vmatmul.bf16.gmra.mxu0 %v1277
  %v4330 = vpop.f32.mrf.mxu0
  %v4331 = vadd.f32 %v4312, %v4330
  %v4332 = vpop.f32.mrf.mxu0
  %v4333 = vadd.f32 %v4314, %v4332
  %4334 = vdwg.mxu0
  %4335 = vmatpush.bf16.msra.mxu0 %v3217
  %4336 = vmatpush.bf16.msra.mxu0 %v3216
  %4337 = vmatpush.bf16.msra.mxu0 %v3215
  %4338 = vmatpush.bf16.msra.mxu0 %v3214
  %4339 = vmatpush.bf16.msra.mxu0 %v3213
  %4340 = vmatpush.bf16.msra.mxu0 %v3212
  %4341 = vmatpush.bf16.msra.mxu0 %v3211
  %4342 = vmatpush.bf16.msra.mxu0 %v3210
  %4343 = vmatmul.bf16.gmra.mxu0 %v1229
  %v4344 = vpop.f32.mrf.mxu0
  %v4345 = vadd.f32 %v4326, %v4344
  %v4346 = vpop.f32.mrf.mxu0
  %v4347 = vadd.f32 %v4328, %v4346
  %4348 = vmatmul.bf16.gmra.mxu0 %v1278
  %v4349 = vpop.f32.mrf.mxu0
  %v4350 = vadd.f32 %v4331, %v4349
  %v4351 = vpop.f32.mrf.mxu0
  %v4352 = vadd.f32 %v4333, %v4351
  %4353 = vdwg.mxu0
  %4354 = vmatpush.bf16.msra.mxu0 %v3225
  %4355 = vmatpush.bf16.msra.mxu0 %v3224
  %4356 = vmatpush.bf16.msra.mxu0 %v3223
  %4357 = vmatpush.bf16.msra.mxu0 %v3222
  %4358 = vmatpush.bf16.msra.mxu0 %v3221
  %4359 = vmatpush.bf16.msra.mxu0 %v3220
  %4360 = vmatpush.bf16.msra.mxu0 %v3219
  %4361 = vmatpush.bf16.msra.mxu0 %v3218
  %4362 = vmatmul.bf16.gmra.mxu0 %v1230
  %v4363 = vpop.f32.mrf.mxu0
  %v4364 = vadd.f32 %v4345, %v4363
  %v4365 = vpop.f32.mrf.mxu0
  %v4366 = vadd.f32 %v4347, %v4365
  %4367 = vmatmul.bf16.gmra.mxu0 %v1279
  %v4368 = vpop.f32.mrf.mxu0
  %v4369 = vadd.f32 %v4350, %v4368
  %v4370 = vpop.f32.mrf.mxu0
  %v4371 = vadd.f32 %v4352, %v4370
  %4372 = vdwg.mxu0
  %4373 = vmatpush.bf16.msra.mxu0 %v3233
  %4374 = vmatpush.bf16.msra.mxu0 %v3232
  %4375 = vmatpush.bf16.msra.mxu0 %v3231
  %4376 = vmatpush.bf16.msra.mxu0 %v3230
  %4377 = vmatpush.bf16.msra.mxu0 %v3229
  %4378 = vmatpush.bf16.msra.mxu0 %v3228
  %4379 = vmatpush.bf16.msra.mxu0 %v3227
  %4380 = vmatpush.bf16.msra.mxu0 %v3226
  %4381 = vmatmul.bf16.gmra.mxu0 %v1231
  %v4382 = vpop.f32.mrf.mxu0
  %v4383 = vadd.f32 %v4364, %v4382
  %v4384 = vpop.f32.mrf.mxu0
  %v4385 = vadd.f32 %v4366, %v4384
  %4386 = vmatmul.bf16.gmra.mxu0 %v1280
  %v4387 = vpop.f32.mrf.mxu0
  %v4388 = vadd.f32 %v4369, %v4387
  %v4389 = vpop.f32.mrf.mxu0
  %v4390 = vadd.f32 %v4371, %v4389
  %4391 = vdwg.mxu0
  %4392 = vmatpush.bf16.msra.mxu0 %v3241
  %4393 = vmatpush.bf16.msra.mxu0 %v3240
  %4394 = vmatpush.bf16.msra.mxu0 %v3239
  %4395 = vmatpush.bf16.msra.mxu0 %v3238
  %4396 = vmatpush.bf16.msra.mxu0 %v3237
  %4397 = vmatpush.bf16.msra.mxu0 %v3236
  %4398 = vmatpush.bf16.msra.mxu0 %v3235
  %4399 = vmatpush.bf16.msra.mxu0 %v3234
  %4400 = vmatmul.bf16.gmra.mxu0 %v1232
  %v4401 = vpop.f32.mrf.mxu0
  %v4402 = vadd.f32 %v4383, %v4401
  %v4403 = vpop.f32.mrf.mxu0
  %v4404 = vadd.f32 %v4385, %v4403
  %4405 = vmatmul.bf16.gmra.mxu0 %v1281
  %v4406 = vpop.f32.mrf.mxu0
  %v4407 = vadd.f32 %v4388, %v4406
  %v4408 = vpop.f32.mrf.mxu0
  %v4409 = vadd.f32 %v4390, %v4408
  %4410 = vdwg.mxu0
  %4411 = vmatpush.bf16.msra.mxu0 %v3249
  %4412 = vmatpush.bf16.msra.mxu0 %v3248
  %4413 = vmatpush.bf16.msra.mxu0 %v3247
  %4414 = vmatpush.bf16.msra.mxu0 %v3246
  %4415 = vmatpush.bf16.msra.mxu0 %v3245
  %4416 = vmatpush.bf16.msra.mxu0 %v3244
  %4417 = vmatpush.bf16.msra.mxu0 %v3243
  %4418 = vmatpush.bf16.msra.mxu0 %v3242
  %4419 = vmatmul.bf16.gmra.mxu0 %v1233
  %v4420 = vpop.f32.mrf.mxu0
  %v4421 = vadd.f32 %v4402, %v4420
  %v4422 = vpop.f32.mrf.mxu0
  %v4423 = vadd.f32 %v4404, %v4422
  %4424 = vmatmul.bf16.gmra.mxu0 %v1282
  %v4425 = vpop.f32.mrf.mxu0
  %v4426 = vadd.f32 %v4407, %v4425
  %v4427 = vpop.f32.mrf.mxu0
  %v4428 = vadd.f32 %v4409, %v4427
  %4429 = vdwg.mxu0
  %4430 = vmatpush.bf16.msra.mxu0 %v3257
  %4431 = vmatpush.bf16.msra.mxu0 %v3256
  %4432 = vmatpush.bf16.msra.mxu0 %v3255
  %4433 = vmatpush.bf16.msra.mxu0 %v3254
  %4434 = vmatpush.bf16.msra.mxu0 %v3253
  %4435 = vmatpush.bf16.msra.mxu0 %v3252
  %4436 = vmatpush.bf16.msra.mxu0 %v3251
  %4437 = vmatpush.bf16.msra.mxu0 %v3250
  %4438 = vmatmul.bf16.gmra.mxu0 %v1234
  %v4439 = vpop.f32.mrf.mxu0
  %v4440 = vadd.f32 %v4421, %v4439
  %v4441 = vpop.f32.mrf.mxu0
  %v4442 = vadd.f32 %v4423, %v4441
  %4443 = vmatmul.bf16.gmra.mxu0 %v1283
  %v4444 = vpop.f32.mrf.mxu0
  %v4445 = vadd.f32 %v4426, %v4444
  %v4446 = vpop.f32.mrf.mxu0
  %v4447 = vadd.f32 %v4428, %v4446
  %4448 = vdwg.mxu0
  %4449 = vmatpush.bf16.msra.mxu0 %v3265
  %4450 = vmatpush.bf16.msra.mxu0 %v3264
  %4451 = vmatpush.bf16.msra.mxu0 %v3263
  %4452 = vmatpush.bf16.msra.mxu0 %v3262
  %4453 = vmatpush.bf16.msra.mxu0 %v3261
  %4454 = vmatpush.bf16.msra.mxu0 %v3260
  %4455 = vmatpush.bf16.msra.mxu0 %v3259
  %4456 = vmatpush.bf16.msra.mxu0 %v3258
  %4457 = vmatmul.bf16.gmra.mxu0 %v1235
  %v4458 = vpop.f32.mrf.mxu0
  %v4459 = vadd.f32 %v4440, %v4458
  %v4460 = vpop.f32.mrf.mxu0
  %v4461 = vadd.f32 %v4442, %v4460
  %4462 = vmatmul.bf16.gmra.mxu0 %v1284
  %v4463 = vpop.f32.mrf.mxu0
  %v4464 = vadd.f32 %v4445, %v4463
  %v4465 = vpop.f32.mrf.mxu0
  %v4466 = vadd.f32 %v4447, %v4465
  %4467 = vdwg.mxu0
  %4468 = vmatpush.bf16.msra.mxu0 %v3273
  %4469 = vmatpush.bf16.msra.mxu0 %v3272
  %4470 = vmatpush.bf16.msra.mxu0 %v3271
  %4471 = vmatpush.bf16.msra.mxu0 %v3270
  %4472 = vmatpush.bf16.msra.mxu0 %v3269
  %4473 = vmatpush.bf16.msra.mxu0 %v3268
  %4474 = vmatpush.bf16.msra.mxu0 %v3267
  %4475 = vmatpush.bf16.msra.mxu0 %v3266
  %4476 = vmatmul.bf16.gmra.mxu0 %v1236
  %v4477 = vpop.f32.mrf.mxu0
  %v4478 = vadd.f32 %v4459, %v4477
  %v4479 = vpop.f32.mrf.mxu0
  %v4480 = vadd.f32 %v4461, %v4479
  %4481 = vmatmul.bf16.gmra.mxu0 %v1285
  %v4482 = vpop.f32.mrf.mxu0
  %v4483 = vadd.f32 %v4464, %v4482
  %v4484 = vpop.f32.mrf.mxu0
  %v4485 = vadd.f32 %v4466, %v4484
  %4486 = vdwg.mxu0
  %4487 = vmatpush.bf16.msra.mxu0 %v3281
  %4488 = vmatpush.bf16.msra.mxu0 %v3280
  %4489 = vmatpush.bf16.msra.mxu0 %v3279
  %4490 = vmatpush.bf16.msra.mxu0 %v3278
  %4491 = vmatpush.bf16.msra.mxu0 %v3277
  %4492 = vmatpush.bf16.msra.mxu0 %v3276
  %4493 = vmatpush.bf16.msra.mxu0 %v3275
  %4494 = vmatpush.bf16.msra.mxu0 %v3274
  %4495 = vmatmul.bf16.gmra.mxu0 %v1237
  %v4496 = vpop.f32.mrf.mxu0
  %v4497 = vadd.f32 %v4478, %v4496
  %v4498 = vpop.f32.mrf.mxu0
  %v4499 = vadd.f32 %v4480, %v4498
  %4500 = vmatmul.bf16.gmra.mxu0 %v1286
  %v4501 = vpop.f32.mrf.mxu0
  %v4502 = vadd.f32 %v4483, %v4501
  %v4503 = vpop.f32.mrf.mxu0
  %v4504 = vadd.f32 %v4485, %v4503
  %4505 = vdwg.mxu0
  %4506 = vmatpush.bf16.msra.mxu0 %v3289
  %4507 = vmatpush.bf16.msra.mxu0 %v3288
  %4508 = vmatpush.bf16.msra.mxu0 %v3287
  %4509 = vmatpush.bf16.msra.mxu0 %v3286
  %4510 = vmatpush.bf16.msra.mxu0 %v3285
  %4511 = vmatpush.bf16.msra.mxu0 %v3284
  %4512 = vmatpush.bf16.msra.mxu0 %v3283
  %4513 = vmatpush.bf16.msra.mxu0 %v3282
  %4514 = vmatmul.bf16.gmra.mxu0 %v1238
  %v4515 = vpop.f32.mrf.mxu0
  %v4516 = vadd.f32 %v4497, %v4515
  %v4517 = vpop.f32.mrf.mxu0
  %v4518 = vadd.f32 %v4499, %v4517
  %4519 = vmatmul.bf16.gmra.mxu0 %v1287
  %v4520 = vpop.f32.mrf.mxu0
  %v4521 = vadd.f32 %v4502, %v4520
  %v4522 = vpop.f32.mrf.mxu0
  %v4523 = vadd.f32 %v4504, %v4522
  %4524 = vdwg.mxu0
  %4525 = vmatpush.bf16.msra.mxu0 %v3297
  %4526 = vmatpush.bf16.msra.mxu0 %v3296
  %4527 = vmatpush.bf16.msra.mxu0 %v3295
  %4528 = vmatpush.bf16.msra.mxu0 %v3294
  %4529 = vmatpush.bf16.msra.mxu0 %v3293
  %4530 = vmatpush.bf16.msra.mxu0 %v3292
  %4531 = vmatpush.bf16.msra.mxu0 %v3291
  %4532 = vmatpush.bf16.msra.mxu0 %v3290
  %4533 = vmatmul.bf16.gmra.mxu0 %v1239
  %v4534 = vpop.f32.mrf.mxu0
  %v4535 = vadd.f32 %v4516, %v4534
  %v4536 = vpop.f32.mrf.mxu0
  %v4537 = vadd.f32 %v4518, %v4536
  %4538 = vmatmul.bf16.gmra.mxu0 %v1288
  %v4539 = vpop.f32.mrf.mxu0
  %v4540 = vadd.f32 %v4521, %v4539
  %v4541 = vpop.f32.mrf.mxu0
  %v4542 = vadd.f32 %v4523, %v4541
  %4543 = vdwg.mxu0
  %4544 = vmatpush.bf16.msra.mxu0 %v3305
  %4545 = vmatpush.bf16.msra.mxu0 %v3304
  %4546 = vmatpush.bf16.msra.mxu0 %v3303
  %4547 = vmatpush.bf16.msra.mxu0 %v3302
  %4548 = vmatpush.bf16.msra.mxu0 %v3301
  %4549 = vmatpush.bf16.msra.mxu0 %v3300
  %4550 = vmatpush.bf16.msra.mxu0 %v3299
  %4551 = vmatpush.bf16.msra.mxu0 %v3298
  %4552 = vmatmul.bf16.gmra.mxu0 %v1240
  %v4553 = vpop.f32.mrf.mxu0
  %v4554 = vadd.f32 %v4535, %v4553
  %v4555 = vpop.f32.mrf.mxu0
  %v4556 = vadd.f32 %v4537, %v4555
  %4557 = vmatmul.bf16.gmra.mxu0 %v1289
  %v4558 = vpop.f32.mrf.mxu0
  %v4559 = vadd.f32 %v4540, %v4558
  %v4560 = vpop.f32.mrf.mxu0
  %v4561 = vadd.f32 %v4542, %v4560
  %4562 = vdwg.mxu0
  %4563 = vmatpush.bf16.msra.mxu0 %v3313
  %4564 = vmatpush.bf16.msra.mxu0 %v3312
  %4565 = vmatpush.bf16.msra.mxu0 %v3311
  %4566 = vmatpush.bf16.msra.mxu0 %v3310
  %4567 = vmatpush.bf16.msra.mxu0 %v3309
  %4568 = vmatpush.bf16.msra.mxu0 %v3308
  %4569 = vmatpush.bf16.msra.mxu0 %v3307
  %4570 = vmatpush.bf16.msra.mxu0 %v3306
  %4571 = vmatmul.bf16.gmra.mxu0 %v1241
  %v4572 = vpop.f32.mrf.mxu0
  %v4573 = vadd.f32 %v4554, %v4572
  %v4574 = vpop.f32.mrf.mxu0
  %v4575 = vadd.f32 %v4556, %v4574
  %4576 = vmatmul.bf16.gmra.mxu0 %v1290
  %v4577 = vpop.f32.mrf.mxu0
  %v4578 = vadd.f32 %v4559, %v4577
  %v4579 = vpop.f32.mrf.mxu0
  %v4580 = vadd.f32 %v4561, %v4579
  %4581 = vdwg.mxu0
  %4582 = vmatpush.bf16.msra.mxu0 %v3321
  %4583 = vmatpush.bf16.msra.mxu0 %v3320
  %4584 = vmatpush.bf16.msra.mxu0 %v3319
  %4585 = vmatpush.bf16.msra.mxu0 %v3318
  %4586 = vmatpush.bf16.msra.mxu0 %v3317
  %4587 = vmatpush.bf16.msra.mxu0 %v3316
  %4588 = vmatpush.bf16.msra.mxu0 %v3315
  %4589 = vmatpush.bf16.msra.mxu0 %v3314
  %4590 = vmatmul.bf16.gmra.mxu0 %v1242
  %v4591 = vpop.f32.mrf.mxu0
  %v4592 = vadd.f32 %v4573, %v4591
  %v4593 = vpop.f32.mrf.mxu0
  %v4594 = vadd.f32 %v4575, %v4593
  %4595 = vmatmul.bf16.gmra.mxu0 %v1291
  %v4596 = vpop.f32.mrf.mxu0
  %v4597 = vadd.f32 %v4578, %v4596
  %v4598 = vpop.f32.mrf.mxu0
  %v4599 = vadd.f32 %v4580, %v4598
  %4600 = vdwg.mxu0
  %4601 = vmatpush.bf16.msra.mxu0 %v3329
  %4602 = vmatpush.bf16.msra.mxu0 %v3328
  %4603 = vmatpush.bf16.msra.mxu0 %v3327
  %4604 = vmatpush.bf16.msra.mxu0 %v3326
  %4605 = vmatpush.bf16.msra.mxu0 %v3325
  %4606 = vmatpush.bf16.msra.mxu0 %v3324
  %4607 = vmatpush.bf16.msra.mxu0 %v3323
  %4608 = vmatpush.bf16.msra.mxu0 %v3322
  %4609 = vmatmul.bf16.gmra.mxu0 %v1243
  %v4610 = vpop.f32.mrf.mxu0
  %v4611 = vadd.f32 %v4592, %v4610
  %v4612 = vpop.f32.mrf.mxu0
  %v4613 = vadd.f32 %v4594, %v4612
  %4614 = vmatmul.bf16.gmra.mxu0 %v1292
  %v4615 = vpop.f32.mrf.mxu0
  %v4616 = vadd.f32 %v4597, %v4615
  %v4617 = vpop.f32.mrf.mxu0
  %v4618 = vadd.f32 %v4599, %v4617
  %4619 = vdwg.mxu0
  %4620 = vmatpush.bf16.msra.mxu0 %v3337
  %4621 = vmatpush.bf16.msra.mxu0 %v3336
  %4622 = vmatpush.bf16.msra.mxu0 %v3335
  %4623 = vmatpush.bf16.msra.mxu0 %v3334
  %4624 = vmatpush.bf16.msra.mxu0 %v3333
  %4625 = vmatpush.bf16.msra.mxu0 %v3332
  %4626 = vmatpush.bf16.msra.mxu0 %v3331
  %4627 = vmatpush.bf16.msra.mxu0 %v3330
  %4628 = vmatmul.bf16.gmra.mxu0 %v1244
  %v4629 = vpop.f32.mrf.mxu0
  %v4630 = vadd.f32 %v4611, %v4629
  %v4631 = vpop.f32.mrf.mxu0
  %v4632 = vadd.f32 %v4613, %v4631
  %4633 = vmatmul.bf16.gmra.mxu0 %v1293
  %v4634 = vpop.f32.mrf.mxu0
  %v4635 = vadd.f32 %v4616, %v4634
  %v4636 = vpop.f32.mrf.mxu0
  %v4637 = vadd.f32 %v4618, %v4636
  %4638 = vdwg.mxu0
  %4639 = vmatpush.bf16.msra.mxu0 %v3345
  %4640 = vmatpush.bf16.msra.mxu0 %v3344
  %4641 = vmatpush.bf16.msra.mxu0 %v3343
  %4642 = vmatpush.bf16.msra.mxu0 %v3342
  %4643 = vmatpush.bf16.msra.mxu0 %v3341
  %4644 = vmatpush.bf16.msra.mxu0 %v3340
  %4645 = vmatpush.bf16.msra.mxu0 %v3339
  %4646 = vmatpush.bf16.msra.mxu0 %v3338
  %4647 = vmatmul.bf16.gmra.mxu0 %v1245
  %v4648 = vpop.f32.mrf.mxu0
  %v4649 = vadd.f32 %v4630, %v4648
  %v4650 = vpop.f32.mrf.mxu0
  %v4651 = vadd.f32 %v4632, %v4650
  %4652 = vmatmul.bf16.gmra.mxu0 %v1294
  %v4653 = vpop.f32.mrf.mxu0
  %v4654 = vadd.f32 %v4635, %v4653
  %v4655 = vpop.f32.mrf.mxu0
  %v4656 = vadd.f32 %v4637, %v4655
  %4657 = vdwg.mxu0
  %4658 = vmatpush.bf16.msra.mxu0 %v3353
  %4659 = vmatpush.bf16.msra.mxu0 %v3352
  %4660 = vmatpush.bf16.msra.mxu0 %v3351
  %4661 = vmatpush.bf16.msra.mxu0 %v3350
  %4662 = vmatpush.bf16.msra.mxu0 %v3349
  %4663 = vmatpush.bf16.msra.mxu0 %v3348
  %4664 = vmatpush.bf16.msra.mxu0 %v3347
  %4665 = vmatpush.bf16.msra.mxu0 %v3346
  %4666 = vmatmul.bf16.gmra.mxu0 %v1246
  %v4667 = vpop.f32.mrf.mxu0
  %v4668 = vadd.f32 %v4649, %v4667
  %v4669 = vpop.f32.mrf.mxu0
  %v4670 = vadd.f32 %v4651, %v4669
  %4671 = vmatmul.bf16.gmra.mxu0 %v1295
  %v4672 = vpop.f32.mrf.mxu0
  %v4673 = vadd.f32 %v4654, %v4672
  %v4674 = vpop.f32.mrf.mxu0
  %v4675 = vadd.f32 %v4656, %v4674
  %4676 = vdwg.mxu0
  %4677 = vst [vmem:[%s3] sm:$0xff] %v4668
  %4678 = vst [vmem:[%s3 + $0x8] sm:$0xff] %v4670
  %4679 = vst [vmem:[%s3 + $0x10] sm:$0xff] %v4673
  %4680 = vst [vmem:[%s3 + $0x18] sm:$0xff] %v4675
  // Predicated region
  $region14: #{_forward_device.5} parent=0 // pred_check
    _
  $region15: #{_forward_device.5} parent=0 // pred_check_branch
    %4682 = sbr.rel (0) target = $region17
  $region16: #{_forward_device.5} parent=0 // pred_region
    _
  $region17: #{_forward_device.5} parent=0 // pred_fallthru
    _
  // Predicated region
  $region18: #{_forward_device.5} parent=0 // pred_check
    _
  $region19: #{_forward_device.5} parent=0 // pred_check_branch
    %4684 = sbr.rel (0) target = $region21
  $region20: #{_forward_device.5} parent=0 // pred_region
    _
  $region21: #{_forward_device.5} parent=0 // pred_fallthru
    _

</llo_original>
